<compile_context>
chip_gen: v6e
topology: v6e:2x2x1
jax: 0.10.0
libtpu: 0.0.40
codegen_flags: <defaults>
</compile_context>

<pallas_src>
import jax
import jax.numpy as jnp
import numpy as np
from jax.experimental import pallas as pl
from jax.experimental.pallas import tpu as pltpu


def _round_up(v, m):
    return ((v + m - 1) // m) * m


# ----------------------------------------------------------------------------
# Kernel 1: tiled GEMM + bias + activation (all four conv layers, via im2col)
# ----------------------------------------------------------------------------

def _gemm_bias_act(x, w, b, activation, out_dtype):
    """act(x @ w + b).  x:(M,K) bf16, w:(K,N) bf16, b:(N,) f32.  Tiled over M."""
    M, K = x.shape
    N = w.shape[1]

    # >=2 M-tiles whenever possible so v7x's two TensorCores both get work; multiple of
    # 16 so bf16 blocks stay tile-aligned; capped at 512 rows to bound VMEM per step.
    tm = max(16, min(512, _round_up((M + 1) // 2, 16)))
    Mp = _round_up(M, tm)
    if Mp != M:
        x = jnp.pad(x, ((0, Mp - M), (0, 0)))

    def kernel(x_ref, w_ref, b_ref, o_ref):
        acc = jnp.dot(x_ref[...], w_ref[...], preferred_element_type=jnp.float32)
        acc = acc + b_ref[...]
        if activation == "relu":
            acc = jnp.maximum(acc, 0.0)
        elif activation == "sigmoid":
            acc = jax.nn.sigmoid(acc)
        o_ref[...] = acc.astype(o_ref.dtype)

    out = pl.pallas_call(
        kernel,
        out_shape=jax.ShapeDtypeStruct((Mp, N), out_dtype),
        grid=(Mp // tm,),
        in_specs=[
            pl.BlockSpec((tm, K), lambda i: (i, 0)),
            pl.BlockSpec((K, N), lambda i: (0, 0)),   # weight stays resident
            pl.BlockSpec((1, N), lambda i: (0, 0)),
        ],
        out_specs=pl.BlockSpec((tm, N), lambda i: (i, 0)),
        compiler_params=pltpu.CompilerParams(
            dimension_semantics=("parallel",),
            vmem_limit_bytes=32 * 1024 * 1024,
        ),
    )(x, w, b.reshape(1, N).astype(jnp.float32))
    return out[:M] if Mp != M else out


def _im2col(x_nhwc, kh, kw, stride, pad):
    B, H, W, C = x_nhwc.shape
    Ho = (H + 2 * pad - kh) // stride + 1
    Wo = (W + 2 * pad - kw) // stride + 1
    xp = jnp.pad(x_nhwc, ((0, 0), (pad, pad), (pad, pad), (0, 0)))
    cols = []
    for i in range(kh):
        for j in range(kw):
            cols.append(xp[:, i:i + stride * Ho:stride, j:j + stride * Wo:stride, :])
    patches = jnp.stack(cols, axis=3)                      # (B, Ho, Wo, kh*kw, C)
    return patches.reshape(B * Ho * Wo, kh * kw * C), Ho, Wo


def _conv2d(x_nhwc, w_oihw, b, stride, pad):
    Cout, Cin, kh, kw = w_oihw.shape
    cols, Ho, Wo = _im2col(x_nhwc, kh, kw, stride, pad)    # bf16 patches
    wmat = jnp.transpose(w_oihw, (2, 3, 1, 0)).reshape(kh * kw * Cin, Cout)
    out = _gemm_bias_act(cols.astype(jnp.bfloat16), wmat.astype(jnp.bfloat16),
                         b, "relu", jnp.bfloat16)          # (B*Ho*Wo, Cout) bf16
    B = x_nhwc.shape[0]
    return out.reshape(B, Ho, Wo, Cout)


# ----------------------------------------------------------------------------
# Kernel 2: fused channel attention + gating + spatial attention + gating
# ----------------------------------------------------------------------------

def _sa_conv_matrices(sa_w, H, W):
    """Express the 7x7 / pad-3 spatial-attention conv over the (H,W) map as two static
    (S,S) matrices (one for the channel-mean input, one for the channel-max input)."""
    S = H * W
    k = sa_w.shape[-1]
    r = k // 2
    T = np.zeros((k * k, S, S), np.float32)
    for p in range(S):                     # output position
        ho, wo = divmod(p, W)
        for q in range(S):                 # input position
            hi, wi = divmod(q, W)
            ki, kj = hi - ho + r, wi - wo + r
            if 0 <= ki < k and 0 <= kj < k:
                T[ki * k + kj, q, p] = 1.0
    T = jnp.asarray(T.reshape(k * k, S * S))
    wf = sa_w.reshape(2, k * k).astype(jnp.float32)
    mats = jnp.dot(wf, T).reshape(2, S, S)
    return mats[0], mats[1]                # each (S, S): in_pos x out_pos


def _attention_kernel(y_ref, caw1_ref, caw2_ref, sam_ref, sax_ref, z_ref):
    y = y_ref[...].astype(jnp.float32)               # (B, S, C)
    avg = jnp.mean(y, axis=1)                        # (B, C)  AdaptiveAvgPool2d(1)
    mx = jnp.max(y, axis=1)                          # (B, C)  AdaptiveMaxPool2d(1)
    w1a = caw1_ref[...]                              # (R, C)
    w2a = caw2_ref[...]                              # (R, C)

    def ca_mlp(v):                                   # VPU/XLU only (R is tiny)
        acc = None
        for r in range(w1a.shape[0]):
            m = jnp.maximum(
                jnp.sum(v * w1a[r:r + 1, :], axis=-1, keepdims=True), 0.0)   # (B,1)
            t = m * w2a[r:r + 1, :]                                          # (B,C)
            acc = t if acc is None else acc + t
        return acc

    ca = jax.nn.sigmoid(ca_mlp(avg) + ca_mlp(mx))    # (B, C) channel gate
    yg = y * ca[:, None, :]                          # (B, S, C)

    ch_mean = jnp.mean(yg, axis=-1)                  # (B, S)
    ch_max = jnp.max(yg, axis=-1)                    # (B, S)
    sa = jax.nn.sigmoid(
        jnp.dot(ch_mean, sam_ref[...], preferred_element_type=jnp.float32)
        + jnp.dot(ch_max, sax_ref[...], preferred_element_type=jnp.float32))  # (B, S)

    z_ref[...] = (yg * sa[:, :, None]).astype(z_ref.dtype)


def _attention(y, caw1, caw2, sam, sax):
    B, S, C = y.shape
    R = caw1.shape[0]
    return pl.pallas_call(
        _attention_kernel,
        out_shape=jax.ShapeDtypeStruct((B, S, C), jnp.bfloat16),
        grid=(1,),
        in_specs=[
            pl.BlockSpec((B, S, C), lambda i: (0, 0, 0)),
            pl.BlockSpec((R, C), lambda i: (0, 0)),
            pl.BlockSpec((R, C), lambda i: (0, 0)),
            pl.BlockSpec((S, S), lambda i: (0, 0)),
            pl.BlockSpec((S, S), lambda i: (0, 0)),
        ],
        out_specs=pl.BlockSpec((B, S, C), lambda i: (0, 0, 0)),
        compiler_params=pltpu.CompilerParams(vmem_limit_bytes=32 * 1024 * 1024),
    )(y, caw1, caw2, sam, sax)


# ----------------------------------------------------------------------------
# Kernel 3: fused FC head (fc1 + ReLU + fc_out)
# ----------------------------------------------------------------------------

def _head_kernel(z_ref, w1_ref, b1_ref, w2_ref, b2_ref, o_ref):
    h = jnp.dot(z_ref[...], w1_ref[...],
                preferred_element_type=jnp.float32) + b1_ref[...]            # (B, H)
    h = jnp.maximum(h, 0.0)
    # fc_out has N=1: do it as a VPU multiply + lane reduction instead of an MXU matmul.
    o_ref[...] = jnp.sum(h * w2_ref[...], axis=-1, keepdims=True) + b2_ref[...]


def _head(z_flat, w1, b1, w2, b2):
    B, F = z_flat.shape
    Hd = w1.shape[1]
    cost = pl.CostEstimate(
        flops=int(2 * B * F * Hd + 4 * B * Hd),
        transcendentals=0,
        bytes_accessed=int(z_flat.size * 2 + w1.size * 2 + (2 * Hd + 1) * 4 + B * 4),
    )
    return pl.pallas_call(
        _head_kernel,
        out_shape=jax.ShapeDtypeStruct((B, 1), jnp.float32),
        grid=(1,),
        in_specs=[
            pl.BlockSpec((B, F), lambda i: (0, 0)),
            pl.BlockSpec((F, Hd), lambda i: (0, 0)),
            pl.BlockSpec((1, Hd), lambda i: (0, 0)),
            pl.BlockSpec((1, Hd), lambda i: (0, 0)),
            pl.BlockSpec((1, 1), lambda i: (0, 0)),
        ],
        out_specs=pl.BlockSpec((B, 1), lambda i: (0, 0)),
        compiler_params=pltpu.CompilerParams(vmem_limit_bytes=32 * 1024 * 1024),
        cost_estimate=cost,
    )(z_flat, w1, b1, w2, b2)


# ----------------------------------------------------------------------------
# Forward pass
# ----------------------------------------------------------------------------

def value_net_forward(params, x_nchw):
    B = x_nchw.shape[0]
    x = jnp.transpose(x_nchw, (0, 2, 3, 1)).astype(jnp.bfloat16)     # NCHW -> NHWC bf16

    x = _conv2d(x, params["conv1_w"], params["conv1_b"], 2, 1)       # (B,42,42,32)
    x = _conv2d(x, params["conv2_w"], params["conv2_b"], 2, 1)       # (B,21,21,32)
    x = _conv2d(x, params["conv3_w"], params["conv3_b"], 2, 1)       # (B,11,11,32)
    x = _conv2d(x, params["conv4_w"], params["conv4_b"], 2, 1)       # (B, 6, 6,32)

    _, H, W, C = x.shape
    S = H * W
    y = x.reshape(B, S, C)                                           # NHWC spatial-flat

    R = C // 16
    caw1 = params["ca_fc1_w"].reshape(R, C).astype(jnp.float32)      # (R, C)
    caw2 = params["ca_fc2_w"].reshape(C, R).T.astype(jnp.float32)    # (R, C)
    sam, sax = _sa_conv_matrices(params["sa_w"], H, W)               # (S,S) each

    z = _attention(y, caw1, caw2, sam, sax)                          # (B,S,C) bf16
    z_flat = z.reshape(B, S * C)                                     # metadata-only reshape

    # fc1 weight: permute columns from PyTorch's (C,H,W) flatten to our (H,W,C) flatten,
    # transpose to (in, out), cast to bf16 for the MXU.
    w1 = (params["fc1_w"].reshape(-1, C, S).transpose(0, 2, 1)
          .reshape(-1, C * S).T.astype(jnp.bfloat16))                # (S*C, 512)
    b1 = params["fc1_b"].reshape(1, -1).astype(jnp.float32)
    w2 = params["fc_out_w"].astype(jnp.float32)                      # (1, 512)
    b2 = params["fc_out_b"].reshape(1, 1).astype(jnp.float32)

    out = _head(z_flat, w1, b1, w2, b2)                              # (B, 1)
    # CNN_Model: out.squeeze() -> (B,); ValueNet: squeeze(-1) is then a no-op.
    return out.reshape(B)


# ----------------------------------------------------------------------------
# Deterministic parameter init (PyTorch-style uniform(-1/sqrt(fan_in), +...))
# ----------------------------------------------------------------------------

def init_params(key, state_channels):
    def u(k, shape, fan_in):
        bound = 1.0 / float(np.sqrt(fan_in))
        return jax.random.uniform(k, shape, jnp.float32, minval=-bound, maxval=bound)

    ks = jax.random.split(key, 16)
    p = {}
    p["conv1_w"] = u(ks[0], (32, state_channels, 3, 3), state_channels * 9)
    p["conv1_b"] = u(ks[1], (32,), state_channels * 9)
    p["conv2_w"] = u(ks[2], (32, 32, 3, 3), 32 * 9)
    p["conv2_b"] = u(ks[3], (32,), 32 * 9)
    p["conv3_w"] = u(ks[4], (32, 32, 3, 3), 32 * 9)
    p["conv3_b"] = u(ks[5], (32,), 32 * 9)
    p["conv4_w"] = u(ks[6], (32, 32, 3, 3), 32 * 9)
    p["conv4_b"] = u(ks[7], (32,), 32 * 9)
    p["ca_fc1_w"] = u(ks[8], (2, 32, 1, 1), 32)       # Conv2d(32, 32//16, 1, bias=False)
    p["ca_fc2_w"] = u(ks[9], (32, 2, 1, 1), 2)        # Conv2d(2, 32, 1, bias=False)
    p["sa_w"] = u(ks[10], (1, 2, 7, 7), 2 * 49)       # Conv2d(2, 1, 7, pad=3, bias=False)
    p["fc1_w"] = u(ks[11], (512, 32 * 6 * 6), 32 * 6 * 6)
    p["fc1_b"] = u(ks[12], (512,), 32 * 6 * 6)
    p["fc_out_w"] = u(ks[13], (1, 512), 512)
    p["fc_out_b"] = u(ks[14], (1,), 512)
    return p


# ----------------------------------------------------------------------------
# Pure-JAX reference (mirrors the PyTorch forward, NCHW, f32) for a sanity check
# ----------------------------------------------------------------------------

def reference_forward(params, x):
    HI = jax.lax.Precision.HIGHEST

    def conv(x, w, b, stride, pad):
        out = jax.lax.conv_general_dilated(
            x, w, (stride, stride), [(pad, pad), (pad, pad)],
            dimension_numbers=("NCHW", "OIHW", "NCHW"), precision=HI)
        if b is not None:
            out = out + b.reshape(1, -1, 1, 1)
        return out

    x = jax.nn.relu(conv(x, params["conv1_w"], params["conv1_b"], 2, 1))
    x = jax.nn.relu(conv(x, params["conv2_w"], params["conv2_b"], 2, 1))
    x = jax.nn.relu(conv(x, params["conv3_w"], params["conv3_b"], 2, 1))
    x = jax.nn.relu(conv(x, params["conv4_w"], params["conv4_b"], 2, 1))

    avg = jnp.mean(x, axis=(2, 3), keepdims=True)
    mx = jnp.max(x, axis=(2, 3), keepdims=True)

    def mlp(v):
        h = jax.nn.relu(conv(v, params["ca_fc1_w"], None, 1, 0))
        return conv(h, params["ca_fc2_w"], None, 1, 0)

    x = jax.nn.sigmoid(mlp(avg) + mlp(mx)) * x
    cm = jnp.mean(x, axis=1, keepdims=True)
    cx = jnp.max(x, axis=1, keepdims=True)
    sa = jax.nn.sigmoid(conv(jnp.concatenate([cm, cx], axis=1), params["sa_w"], None, 1, 3))
    x = sa * x
    x = x.reshape(x.shape[0], -1)
    x = jax.nn.relu(jnp.dot(x, params["fc1_w"].T, precision=HI) + params["fc1_b"])
    out = jnp.dot(x, params["fc_out_w"].T, precision=HI) + params["fc_out_b"]
    return out.reshape(-1)


# ----------------------------------------------------------------------------

if __name__ == "__main__":
    B, STATE_CHANNELS = 2, 4
    key = jax.random.PRNGKey(0)
    xkey, pkey = jax.random.split(key)

    # 84x84 spatial is mandated by the module (fc1 expects 32*6*6 features).
    x = jax.random.normal(xkey, (B, STATE_CHANNELS, 84, 84), dtype=jnp.float32)
    params = init_params(pkey, STATE_CHANNELS)

    out = jax.jit(value_net_forward)(params, x)
    out = jax.block_until_ready(out)
    assert out.shape == (B,), f"unexpected output shape {out.shape}"

    ref = jax.block_until_ready(reference_forward(params, x))
    np.testing.assert_allclose(np.asarray(out), np.asarray(ref), rtol=5e-2, atol=5e-2)

    print("KERNEL_OK")
</pallas_src>

<mosaic_0001>
module attributes {stable_mosaic.version = 11 : i64} {
  func.func @kernel(%arg0: i32, %arg1: memref<512x36xbf16, #tpu.memory_space<vmem>>, %arg2: memref<36x32xbf16, #tpu.memory_space<vmem>>, %arg3: memref<1x32xf32, #tpu.memory_space<vmem>>, %arg4: memref<512x32xbf16, #tpu.memory_space<vmem>>) attributes {dimension_semantics = [#tpu.dimension_semantics<parallel>], iteration_bounds = array<i64: 7>, scalar_prefetch = 0 : i64, scratch_operands = 0 : i64, tpu.core_type = #tpu.core_type<tc>, window_params = [{transform_indices = @transform_0, window_bounds = array<i64: 512, 36>}, {pipeline_mode = #tpu.pipeline_mode<synchronous>, transform_indices = @transform_1, window_bounds = array<i64: 36, 32>}, {pipeline_mode = #tpu.pipeline_mode<synchronous>, transform_indices = @transform_2, window_bounds = array<i64: 1, 32>}, {transform_indices = @transform_3, window_bounds = array<i64: 512, 32>}]} {
    %c0 = arith.constant 0 : index
    %c0_0 = arith.constant 0 : index
    %0 = vector.load %arg1[%c0, %c0_0] : memref<512x36xbf16, #tpu.memory_space<vmem>>, vector<512x36xbf16>
    %c0_1 = arith.constant 0 : index
    %c0_2 = arith.constant 0 : index
    %1 = vector.load %arg2[%c0_1, %c0_2] : memref<36x32xbf16, #tpu.memory_space<vmem>>, vector<36x32xbf16>
    %cst = arith.constant dense<0.000000e+00> : vector<512x32xf32>
    %2 = tpu.matmul %0, %1, %cst {dimension_numbers = #tpu.dot_dimension_numbers<[1], [0], [0], [1], [0, 0, 1, 1], [], []>} : vector<512x36xbf16>, vector<36x32xbf16>, vector<512x32xf32> -> vector<512x32xf32>
    %c0_3 = arith.constant 0 : index
    %c0_4 = arith.constant 0 : index
    %3 = vector.load %arg3[%c0_3, %c0_4] : memref<1x32xf32, #tpu.memory_space<vmem>>, vector<1x32xf32>
    %4 = vector.broadcast %3 : vector<1x32xf32> to vector<512x32xf32>
    %5 = arith.addf %2, %4 : vector<512x32xf32>
    %cst_5 = arith.constant 0.000000e+00 : f32
    %6 = vector.broadcast %cst_5 : f32 to vector<512x32xf32>
    %7 = arith.maximumf %5, %6 : vector<512x32xf32>
    %8 = arith.truncf %7 : vector<512x32xf32> to vector<512x32xbf16>
    %c0_6 = arith.constant 0 : index
    %c0_7 = arith.constant 0 : index
    %9 = vector.load %arg4[%c0_6, %c0_7] : memref<512x32xbf16, #tpu.memory_space<vmem>>, vector<512x32xbf16>
    tpu.vector_store %arg4[%c0_6, %c0_7], %8 {strides = array<i32>} : memref<512x32xbf16, #tpu.memory_space<vmem>>, vector<512x32xbf16>,
    return
  }
  func.func @transform_0(%arg0: i32) -> (i32, i32) {
    %c0_i32 = arith.constant 0 : i32
    %c0_i32_0 = arith.constant 0 : i32
    return %arg0, %c0_i32 : i32, i32
  }
  func.func @transform_1(%arg0: i32) -> (i32, i32) {
    %c0_i32 = arith.constant 0 : i32
    %c0_i32_0 = arith.constant 0 : i32
    %c0_i32_1 = arith.constant 0 : i32
    return %c0_i32, %c0_i32_0 : i32, i32
  }
  func.func @transform_2(%arg0: i32) -> (i32, i32) {
    %c0_i32 = arith.constant 0 : i32
    %c0_i32_0 = arith.constant 0 : i32
    %c0_i32_1 = arith.constant 0 : i32
    return %c0_i32, %c0_i32_0 : i32, i32
  }
  func.func @transform_3(%arg0: i32) -> (i32, i32) {
    %c0_i32 = arith.constant 0 : i32
    %c0_i32_0 = arith.constant 0 : i32
    return %arg0, %c0_i32 : i32, i32
  }
}

module attributes {stable_mosaic.version = 11 : i64} {
  func.func @kernel(%arg0: i32, %arg1: memref<448x288xbf16, #tpu.memory_space<vmem>>, %arg2: memref<288x32xbf16, #tpu.memory_space<vmem>>, %arg3: memref<1x32xf32, #tpu.memory_space<vmem>>, %arg4: memref<448x32xbf16, #tpu.memory_space<vmem>>) attributes {dimension_semantics = [#tpu.dimension_semantics<parallel>], iteration_bounds = array<i64: 2>, scalar_prefetch = 0 : i64, scratch_operands = 0 : i64, tpu.core_type = #tpu.core_type<tc>, window_params = [{transform_indices = @transform_0, window_bounds = array<i64: 448, 288>}, {pipeline_mode = #tpu.pipeline_mode<synchronous>, transform_indices = @transform_1, window_bounds = array<i64: 288, 32>}, {pipeline_mode = #tpu.pipeline_mode<synchronous>, transform_indices = @transform_2, window_bounds = array<i64: 1, 32>}, {transform_indices = @transform_3, window_bounds = array<i64: 448, 32>}]} {
    %c0 = arith.constant 0 : index
    %c0_0 = arith.constant 0 : index
    %0 = vector.load %arg1[%c0, %c0_0] : memref<448x288xbf16, #tpu.memory_space<vmem>>, vector<448x288xbf16>
    %c0_1 = arith.constant 0 : index
    %c0_2 = arith.constant 0 : index
    %1 = vector.load %arg2[%c0_1, %c0_2] : memref<288x32xbf16, #tpu.memory_space<vmem>>, vector<288x32xbf16>
    %cst = arith.constant dense<0.000000e+00> : vector<448x32xf32>
    %2 = tpu.matmul %0, %1, %cst {dimension_numbers = #tpu.dot_dimension_numbers<[1], [0], [0], [1], [0, 0, 1, 1], [], []>} : vector<448x288xbf16>, vector<288x32xbf16>, vector<448x32xf32> -> vector<448x32xf32>
    %c0_3 = arith.constant 0 : index
    %c0_4 = arith.constant 0 : index
    %3 = vector.load %arg3[%c0_3, %c0_4] : memref<1x32xf32, #tpu.memory_space<vmem>>, vector<1x32xf32>
    %4 = vector.broadcast %3 : vector<1x32xf32> to vector<448x32xf32>
    %5 = arith.addf %2, %4 : vector<448x32xf32>
    %cst_5 = arith.constant 0.000000e+00 : f32
    %6 = vector.broadcast %cst_5 : f32 to vector<448x32xf32>
    %7 = arith.maximumf %5, %6 : vector<448x32xf32>
    %8 = arith.truncf %7 : vector<448x32xf32> to vector<448x32xbf16>
    %c0_6 = arith.constant 0 : index
    %c0_7 = arith.constant 0 : index
    %9 = vector.load %arg4[%c0_6, %c0_7] : memref<448x32xbf16, #tpu.memory_space<vmem>>, vector<448x32xbf16>
    tpu.vector_store %arg4[%c0_6, %c0_7], %8 {strides = array<i32>} : memref<448x32xbf16, #tpu.memory_space<vmem>>, vector<448x32xbf16>,
    return
  }
  func.func @transform_0(%arg0: i32) -> (i32, i32) {
    %c0_i32 = arith.constant 0 : i32
    %c0_i32_0 = arith.constant 0 : i32
    return %arg0, %c0_i32 : i32, i32
  }
  func.func @transform_1(%arg0: i32) -> (i32, i32) {
    %c0_i32 = arith.constant 0 : i32
    %c0_i32_0 = arith.constant 0 : i32
    %c0_i32_1 = arith.constant 0 : i32
    return %c0_i32, %c0_i32_0 : i32, i32
  }
  func.func @transform_2(%arg0: i32) -> (i32, i32) {
    %c0_i32 = arith.constant 0 : i32
    %c0_i32_0 = arith.constant 0 : i32
    %c0_i32_1 = arith.constant 0 : i32
    return %c0_i32, %c0_i32_0 : i32, i32
  }
  func.func @transform_3(%arg0: i32) -> (i32, i32) {
    %c0_i32 = arith.constant 0 : i32
    %c0_i32_0 = arith.constant 0 : i32
    return %arg0, %c0_i32 : i32, i32
  }
}

module attributes {stable_mosaic.version = 11 : i64} {
  func.func @kernel(%arg0: i32, %arg1: memref<128x288xbf16, #tpu.memory_space<vmem>>, %arg2: memref<288x32xbf16, #tpu.memory_space<vmem>>, %arg3: memref<1x32xf32, #tpu.memory_space<vmem>>, %arg4: memref<128x32xbf16, #tpu.memory_space<vmem>>) attributes {dimension_semantics = [#tpu.dimension_semantics<parallel>], iteration_bounds = array<i64: 2>, scalar_prefetch = 0 : i64, scratch_operands = 0 : i64, tpu.core_type = #tpu.core_type<tc>, window_params = [{transform_indices = @transform_0, window_bounds = array<i64: 128, 288>}, {pipeline_mode = #tpu.pipeline_mode<synchronous>, transform_indices = @transform_1, window_bounds = array<i64: 288, 32>}, {pipeline_mode = #tpu.pipeline_mode<synchronous>, transform_indices = @transform_2, window_bounds = array<i64: 1, 32>}, {transform_indices = @transform_3, window_bounds = array<i64: 128, 32>}]} {
    %c0 = arith.constant 0 : index
    %c0_0 = arith.constant 0 : index
    %0 = vector.load %arg1[%c0, %c0_0] : memref<128x288xbf16, #tpu.memory_space<vmem>>, vector<128x288xbf16>
    %c0_1 = arith.constant 0 : index
    %c0_2 = arith.constant 0 : index
    %1 = vector.load %arg2[%c0_1, %c0_2] : memref<288x32xbf16, #tpu.memory_space<vmem>>, vector<288x32xbf16>
    %cst = arith.constant dense<0.000000e+00> : vector<128x32xf32>
    %2 = tpu.matmul %0, %1, %cst {dimension_numbers = #tpu.dot_dimension_numbers<[1], [0], [0], [1], [0, 0, 1, 1], [], []>} : vector<128x288xbf16>, vector<288x32xbf16>, vector<128x32xf32> -> vector<128x32xf32>
    %c0_3 = arith.constant 0 : index
    %c0_4 = arith.constant 0 : index
    %3 = vector.load %arg3[%c0_3, %c0_4] : memref<1x32xf32, #tpu.memory_space<vmem>>, vector<1x32xf32>
    %4 = vector.broadcast %3 : vector<1x32xf32> to vector<128x32xf32>
    %5 = arith.addf %2, %4 : vector<128x32xf32>
    %cst_5 = arith.constant 0.000000e+00 : f32
    %6 = vector.broadcast %cst_5 : f32 to vector<128x32xf32>
    %7 = arith.maximumf %5, %6 : vector<128x32xf32>
    %8 = arith.truncf %7 : vector<128x32xf32> to vector<128x32xbf16>
    %c0_6 = arith.constant 0 : index
    %c0_7 = arith.constant 0 : index
    %9 = vector.load %arg4[%c0_6, %c0_7] : memref<128x32xbf16, #tpu.memory_space<vmem>>, vector<128x32xbf16>
    tpu.vector_store %arg4[%c0_6, %c0_7], %8 {strides = array<i32>} : memref<128x32xbf16, #tpu.memory_space<vmem>>, vector<128x32xbf16>,
    return
  }
  func.func @transform_0(%arg0: i32) -> (i32, i32) {
    %c0_i32 = arith.constant 0 : i32
    %c0_i32_0 = arith.constant 0 : i32
    return %arg0, %c0_i32 : i32, i32
  }
  func.func @transform_1(%arg0: i32) -> (i32, i32) {
    %c0_i32 = arith.constant 0 : i32
    %c0_i32_0 = arith.constant 0 : i32
    %c0_i32_1 = arith.constant 0 : i32
    return %c0_i32, %c0_i32_0 : i32, i32
  }
  func.func @transform_2(%arg0: i32) -> (i32, i32) {
    %c0_i32 = arith.constant 0 : i32
    %c0_i32_0 = arith.constant 0 : i32
    %c0_i32_1 = arith.constant 0 : i32
    return %c0_i32, %c0_i32_0 : i32, i32
  }
  func.func @transform_3(%arg0: i32) -> (i32, i32) {
    %c0_i32 = arith.constant 0 : i32
    %c0_i32_0 = arith.constant 0 : i32
    return %arg0, %c0_i32 : i32, i32
  }
}

module attributes {stable_mosaic.version = 11 : i64} {
  func.func @kernel(%arg0: i32, %arg1: memref<48x288xbf16, #tpu.memory_space<vmem>>, %arg2: memref<288x32xbf16, #tpu.memory_space<vmem>>, %arg3: memref<1x32xf32, #tpu.memory_space<vmem>>, %arg4: memref<48x32xbf16, #tpu.memory_space<vmem>>) attributes {dimension_semantics = [#tpu.dimension_semantics<parallel>], iteration_bounds = array<i64: 2>, scalar_prefetch = 0 : i64, scratch_operands = 0 : i64, tpu.core_type = #tpu.core_type<tc>, window_params = [{transform_indices = @transform_0, window_bounds = array<i64: 48, 288>}, {pipeline_mode = #tpu.pipeline_mode<synchronous>, transform_indices = @transform_1, window_bounds = array<i64: 288, 32>}, {pipeline_mode = #tpu.pipeline_mode<synchronous>, transform_indices = @transform_2, window_bounds = array<i64: 1, 32>}, {transform_indices = @transform_3, window_bounds = array<i64: 48, 32>}]} {
    %c0 = arith.constant 0 : index
    %c0_0 = arith.constant 0 : index
    %0 = vector.load %arg1[%c0, %c0_0] : memref<48x288xbf16, #tpu.memory_space<vmem>>, vector<48x288xbf16>
    %c0_1 = arith.constant 0 : index
    %c0_2 = arith.constant 0 : index
    %1 = vector.load %arg2[%c0_1, %c0_2] : memref<288x32xbf16, #tpu.memory_space<vmem>>, vector<288x32xbf16>
    %cst = arith.constant dense<0.000000e+00> : vector<48x32xf32>
    %2 = tpu.matmul %0, %1, %cst {dimension_numbers = #tpu.dot_dimension_numbers<[1], [0], [0], [1], [0, 0, 1, 1], [], []>} : vector<48x288xbf16>, vector<288x32xbf16>, vector<48x32xf32> -> vector<48x32xf32>
    %c0_3 = arith.constant 0 : index
    %c0_4 = arith.constant 0 : index
    %3 = vector.load %arg3[%c0_3, %c0_4] : memref<1x32xf32, #tpu.memory_space<vmem>>, vector<1x32xf32>
    %4 = vector.broadcast %3 : vector<1x32xf32> to vector<48x32xf32>
    %5 = arith.addf %2, %4 : vector<48x32xf32>
    %cst_5 = arith.constant 0.000000e+00 : f32
    %6 = vector.broadcast %cst_5 : f32 to vector<48x32xf32>
    %7 = arith.maximumf %5, %6 : vector<48x32xf32>
    %8 = arith.truncf %7 : vector<48x32xf32> to vector<48x32xbf16>
    %c0_6 = arith.constant 0 : index
    %c0_7 = arith.constant 0 : index
    %9 = vector.load %arg4[%c0_6, %c0_7] : memref<48x32xbf16, #tpu.memory_space<vmem>>, vector<48x32xbf16>
    tpu.vector_store %arg4[%c0_6, %c0_7], %8 {strides = array<i32>} : memref<48x32xbf16, #tpu.memory_space<vmem>>, vector<48x32xbf16>,
    return
  }
  func.func @transform_0(%arg0: i32) -> (i32, i32) {
    %c0_i32 = arith.constant 0 : i32
    %c0_i32_0 = arith.constant 0 : i32
    return %arg0, %c0_i32 : i32, i32
  }
  func.func @transform_1(%arg0: i32) -> (i32, i32) {
    %c0_i32 = arith.constant 0 : i32
    %c0_i32_0 = arith.constant 0 : i32
    %c0_i32_1 = arith.constant 0 : i32
    return %c0_i32, %c0_i32_0 : i32, i32
  }
  func.func @transform_2(%arg0: i32) -> (i32, i32) {
    %c0_i32 = arith.constant 0 : i32
    %c0_i32_0 = arith.constant 0 : i32
    %c0_i32_1 = arith.constant 0 : i32
    return %c0_i32, %c0_i32_0 : i32, i32
  }
  func.func @transform_3(%arg0: i32) -> (i32, i32) {
    %c0_i32 = arith.constant 0 : i32
    %c0_i32_0 = arith.constant 0 : i32
    return %arg0, %c0_i32 : i32, i32
  }
}

module attributes {stable_mosaic.version = 11 : i64} {
  func.func @_attention_kernel(%arg0: i32, %arg1: memref<2x36x32xbf16, #tpu.memory_space<vmem>>, %arg2: memref<2x32xf32, #tpu.memory_space<vmem>>, %arg3: memref<2x32xf32, #tpu.memory_space<vmem>>, %arg4: memref<36x36xf32, #tpu.memory_space<vmem>>, %arg5: memref<36x36xf32, #tpu.memory_space<vmem>>, %arg6: memref<2x36x32xbf16, #tpu.memory_space<vmem>>) attributes {dimension_semantics = [#tpu.dimension_semantics<arbitrary>], iteration_bounds = array<i64: 1>, scalar_prefetch = 0 : i64, scratch_operands = 0 : i64, tpu.core_type = #tpu.core_type<tc>, window_params = [{pipeline_mode = #tpu.pipeline_mode<synchronous>, transform_indices = @transform_0, window_bounds = array<i64: 2, 36, 32>}, {pipeline_mode = #tpu.pipeline_mode<synchronous>, transform_indices = @transform_1, window_bounds = array<i64: 2, 32>}, {pipeline_mode = #tpu.pipeline_mode<synchronous>, transform_indices = @transform_2, window_bounds = array<i64: 2, 32>}, {pipeline_mode = #tpu.pipeline_mode<synchronous>, transform_indices = @transform_3, window_bounds = array<i64: 36, 36>}, {pipeline_mode = #tpu.pipeline_mode<synchronous>, transform_indices = @transform_4, window_bounds = array<i64: 36, 36>}, {pipeline_mode = #tpu.pipeline_mode<synchronous>, transform_indices = @transform_5, window_bounds = array<i64: 2, 36, 32>}]} {
    %c0 = arith.constant 0 : index
    %c0_0 = arith.constant 0 : index
    %c0_1 = arith.constant 0 : index
    %0 = vector.load %arg1[%c0, %c0_0, %c0_1] : memref<2x36x32xbf16, #tpu.memory_space<vmem>>, vector<2x36x32xbf16>
    %1 = arith.extf %0 : vector<2x36x32xbf16> to vector<2x36x32xf32>
    %cst = arith.constant dense<0.000000e+00> : vector<2x32xf32>
    %2 = vector.multi_reduction <add>, %1, %cst [1] : vector<2x36x32xf32> to vector<2x32xf32>
    %cst_2 = arith.constant 3.600000e+01 : f32
    %3 = vector.broadcast %cst_2 : f32 to vector<2x32xf32>
    %4 = arith.divf %2, %3 : vector<2x32xf32>
    %cst_3 = arith.constant dense<0xFF800000> : vector<2x32xf32>
    %5 = vector.multi_reduction <maximumf>, %1, %cst_3 [1] : vector<2x36x32xf32> to vector<2x32xf32>
    %c0_4 = arith.constant 0 : index
    %c0_5 = arith.constant 0 : index
    %6 = vector.load %arg2[%c0_4, %c0_5] : memref<2x32xf32, #tpu.memory_space<vmem>>, vector<2x32xf32>
    %c0_6 = arith.constant 0 : index
    %c0_7 = arith.constant 0 : index
    %7 = vector.load %arg3[%c0_6, %c0_7] : memref<2x32xf32, #tpu.memory_space<vmem>>, vector<2x32xf32>
    %8 = vector.extract_strided_slice %6 {offsets = [0, 0], sizes = [1, 32], strides = [1, 1]} : vector<2x32xf32> to vector<1x32xf32>
    %9 = vector.broadcast %8 : vector<1x32xf32> to vector<2x32xf32>
    %10 = arith.mulf %4, %9 : vector<2x32xf32>
    %cst_8 = arith.constant dense<0.000000e+00> : vector<2xf32>
    %11 = vector.multi_reduction <add>, %10, %cst_8 [1] : vector<2x32xf32> to vector<2xf32>
    %12 = vector.shape_cast %11 : vector<2xf32> to vector<2x1xf32>
    %cst_9 = arith.constant 0.000000e+00 : f32
    %13 = vector.broadcast %cst_9 : f32 to vector<2x1xf32>
    %14 = arith.maximumf %12, %13 : vector<2x1xf32>
    %15 = vector.extract_strided_slice %7 {offsets = [0, 0], sizes = [1, 32], strides = [1, 1]} : vector<2x32xf32> to vector<1x32xf32>
    %16 = vector.broadcast %14 : vector<2x1xf32> to vector<2x32xf32>
    %17 = vector.broadcast %15 : vector<1x32xf32> to vector<2x32xf32>
    %18 = arith.mulf %16, %17 : vector<2x32xf32>
    %19 = vector.extract_strided_slice %6 {offsets = [1, 0], sizes = [1, 32], strides = [1, 1]} : vector<2x32xf32> to vector<1x32xf32>
    %20 = vector.broadcast %19 : vector<1x32xf32> to vector<2x32xf32>
    %21 = arith.mulf %4, %20 : vector<2x32xf32>
    %cst_10 = arith.constant dense<0.000000e+00> : vector<2xf32>
    %22 = vector.multi_reduction <add>, %21, %cst_10 [1] : vector<2x32xf32> to vector<2xf32>
    %23 = vector.shape_cast %22 : vector<2xf32> to vector<2x1xf32>
    %cst_11 = arith.constant 0.000000e+00 : f32
    %24 = vector.broadcast %cst_11 : f32 to vector<2x1xf32>
    %25 = arith.maximumf %23, %24 : vector<2x1xf32>
    %26 = vector.extract_strided_slice %7 {offsets = [1, 0], sizes = [1, 32], strides = [1, 1]} : vector<2x32xf32> to vector<1x32xf32>
    %27 = vector.broadcast %25 : vector<2x1xf32> to vector<2x32xf32>
    %28 = vector.broadcast %26 : vector<1x32xf32> to vector<2x32xf32>
    %29 = arith.mulf %27, %28 : vector<2x32xf32>
    %30 = arith.addf %18, %29 : vector<2x32xf32>
    %31 = vector.extract_strided_slice %6 {offsets = [0, 0], sizes = [1, 32], strides = [1, 1]} : vector<2x32xf32> to vector<1x32xf32>
    %32 = vector.broadcast %31 : vector<1x32xf32> to vector<2x32xf32>
    %33 = arith.mulf %5, %32 : vector<2x32xf32>
    %cst_12 = arith.constant dense<0.000000e+00> : vector<2xf32>
    %34 = vector.multi_reduction <add>, %33, %cst_12 [1] : vector<2x32xf32> to vector<2xf32>
    %35 = vector.shape_cast %34 : vector<2xf32> to vector<2x1xf32>
    %cst_13 = arith.constant 0.000000e+00 : f32
    %36 = vector.broadcast %cst_13 : f32 to vector<2x1xf32>
    %37 = arith.maximumf %35, %36 : vector<2x1xf32>
    %38 = vector.extract_strided_slice %7 {offsets = [0, 0], sizes = [1, 32], strides = [1, 1]} : vector<2x32xf32> to vector<1x32xf32>
    %39 = vector.broadcast %37 : vector<2x1xf32> to vector<2x32xf32>
    %40 = vector.broadcast %38 : vector<1x32xf32> to vector<2x32xf32>
    %41 = arith.mulf %39, %40 : vector<2x32xf32>
    %42 = vector.extract_strided_slice %6 {offsets = [1, 0], sizes = [1, 32], strides = [1, 1]} : vector<2x32xf32> to vector<1x32xf32>
    %43 = vector.broadcast %42 : vector<1x32xf32> to vector<2x32xf32>
    %44 = arith.mulf %5, %43 : vector<2x32xf32>
    %cst_14 = arith.constant dense<0.000000e+00> : vector<2xf32>
    %45 = vector.multi_reduction <add>, %44, %cst_14 [1] : vector<2x32xf32> to vector<2xf32>
    %46 = vector.shape_cast %45 : vector<2xf32> to vector<2x1xf32>
    %cst_15 = arith.constant 0.000000e+00 : f32
    %47 = vector.broadcast %cst_15 : f32 to vector<2x1xf32>
    %48 = arith.maximumf %46, %47 : vector<2x1xf32>
    %49 = vector.extract_strided_slice %7 {offsets = [1, 0], sizes = [1, 32], strides = [1, 1]} : vector<2x32xf32> to vector<1x32xf32>
    %50 = vector.broadcast %48 : vector<2x1xf32> to vector<2x32xf32>
    %51 = vector.broadcast %49 : vector<1x32xf32> to vector<2x32xf32>
    %52 = arith.mulf %50, %51 : vector<2x32xf32>
    %53 = arith.addf %41, %52 : vector<2x32xf32>
    %54 = arith.addf %30, %53 : vector<2x32xf32>
    %55 = arith.negf %54 : vector<2x32xf32>
    %56 = math.exp %55 : vector<2x32xf32>
    %cst_16 = arith.constant 1.000000e+00 : f32
    %57 = vector.broadcast %cst_16 : f32 to vector<2x32xf32>
    %58 = arith.addf %57, %56 : vector<2x32xf32>
    %59 = arith.divf %57, %58 : vector<2x32xf32>
    %60 = vector.shape_cast %59 : vector<2x32xf32> to vector<2x1x32xf32>
    %61 = vector.broadcast %60 : vector<2x1x32xf32> to vector<2x36x32xf32>
    %62 = arith.mulf %1, %61 : vector<2x36x32xf32>
    %cst_17 = arith.constant dense<0.000000e+00> : vector<2x36xf32>
    %63 = vector.multi_reduction <add>, %62, %cst_17 [2] : vector<2x36x32xf32> to vector<2x36xf32>
    %cst_18 = arith.constant 3.200000e+01 : f32
    %64 = vector.broadcast %cst_18 : f32 to vector<2x36xf32>
    %65 = arith.divf %63, %64 : vector<2x36xf32>
    %cst_19 = arith.constant dense<0xFF800000> : vector<2x36xf32>
    %66 = vector.multi_reduction <maximumf>, %62, %cst_19 [2] : vector<2x36x32xf32> to vector<2x36xf32>
    %c0_20 = arith.constant 0 : index
    %c0_21 = arith.constant 0 : index
    %67 = vector.load %arg4[%c0_20, %c0_21] : memref<36x36xf32, #tpu.memory_space<vmem>>, vector<36x36xf32>
    %cst_22 = arith.constant dense<0.000000e+00> : vector<2x36xf32>
    %68 = tpu.matmul %65, %67, %cst_22 {dimension_numbers = #tpu.dot_dimension_numbers<[1], [0], [0], [1], [0, 0, 1, 1], [], []>} : vector<2x36xf32>, vector<36x36xf32>, vector<2x36xf32> -> vector<2x36xf32>
    %c0_23 = arith.constant 0 : index
    %c0_24 = arith.constant 0 : index
    %69 = vector.load %arg5[%c0_23, %c0_24] : memref<36x36xf32, #tpu.memory_space<vmem>>, vector<36x36xf32>
    %cst_25 = arith.constant dense<0.000000e+00> : vector<2x36xf32>
    %70 = tpu.matmul %66, %69, %cst_25 {dimension_numbers = #tpu.dot_dimension_numbers<[1], [0], [0], [1], [0, 0, 1, 1], [], []>} : vector<2x36xf32>, vector<36x36xf32>, vector<2x36xf32> -> vector<2x36xf32>
    %71 = arith.addf %68, %70 : vector<2x36xf32>
    %72 = arith.negf %71 : vector<2x36xf32>
    %73 = math.exp %72 : vector<2x36xf32>
    %cst_26 = arith.constant 1.000000e+00 : f32
    %74 = vector.broadcast %cst_26 : f32 to vector<2x36xf32>
    %75 = arith.addf %74, %73 : vector<2x36xf32>
    %76 = arith.divf %74, %75 : vector<2x36xf32>
    %77 = vector.shape_cast %76 : vector<2x36xf32> to vector<2x36x1xf32>
    %78 = vector.broadcast %77 : vector<2x36x1xf32> to vector<2x36x32xf32>
    %79 = arith.mulf %62, %78 : vector<2x36x32xf32>
    %80 = arith.truncf %79 : vector<2x36x32xf32> to vector<2x36x32xbf16>
    %c0_27 = arith.constant 0 : index
    %c0_28 = arith.constant 0 : index
    %c0_29 = arith.constant 0 : index
    %81 = vector.load %arg6[%c0_27, %c0_28, %c0_29] : memref<2x36x32xbf16, #tpu.memory_space<vmem>>, vector<2x36x32xbf16>
    tpu.vector_store %arg6[%c0_27, %c0_28, %c0_29], %80 {strides = array<i32>} : memref<2x36x32xbf16, #tpu.memory_space<vmem>>, vector<2x36x32xbf16>,
    return
  }
  func.func @transform_0(%arg0: i32) -> (i32, i32, i32) {
    %c0_i32 = arith.constant 0 : i32
    %c0_i32_0 = arith.constant 0 : i32
    %c0_i32_1 = arith.constant 0 : i32
    %c0_i32_2 = arith.constant 0 : i32
    return %c0_i32, %c0_i32_0, %c0_i32_1 : i32, i32, i32
  }
  func.func @transform_1(%arg0: i32) -> (i32, i32) {
    %c0_i32 = arith.constant 0 : i32
    %c0_i32_0 = arith.constant 0 : i32
    %c0_i32_1 = arith.constant 0 : i32
    return %c0_i32, %c0_i32_0 : i32, i32
  }
  func.func @transform_2(%arg0: i32) -> (i32, i32) {
    %c0_i32 = arith.constant 0 : i32
    %c0_i32_0 = arith.constant 0 : i32
    %c0_i32_1 = arith.constant 0 : i32
    return %c0_i32, %c0_i32_0 : i32, i32
  }
  func.func @transform_3(%arg0: i32) -> (i32, i32) {
    %c0_i32 = arith.constant 0 : i32
    %c0_i32_0 = arith.constant 0 : i32
    %c0_i32_1 = arith.constant 0 : i32
    return %c0_i32, %c0_i32_0 : i32, i32
  }
  func.func @transform_4(%arg0: i32) -> (i32, i32) {
    %c0_i32 = arith.constant 0 : i32
    %c0_i32_0 = arith.constant 0 : i32
    %c0_i32_1 = arith.constant 0 : i32
    return %c0_i32, %c0_i32_0 : i32, i32
  }
  func.func @transform_5(%arg0: i32) -> (i32, i32, i32) {
    %c0_i32 = arith.constant 0 : i32
    %c0_i32_0 = arith.constant 0 : i32
    %c0_i32_1 = arith.constant 0 : i32
    %c0_i32_2 = arith.constant 0 : i32
    return %c0_i32, %c0_i32_0, %c0_i32_1 : i32, i32, i32
  }
}

module attributes {stable_mosaic.version = 11 : i64} {
  func.func @_head_kernel(%arg0: i32, %arg1: memref<2x1152xbf16, #tpu.memory_space<vmem>>, %arg2: memref<1152x512xbf16, #tpu.memory_space<vmem>>, %arg3: memref<1x512xf32, #tpu.memory_space<vmem>>, %arg4: memref<1x512xf32, #tpu.memory_space<vmem>>, %arg5: memref<1x1xf32, #tpu.memory_space<vmem>>, %arg6: memref<2x1xf32, #tpu.memory_space<vmem>>) attributes {dimension_semantics = [#tpu.dimension_semantics<arbitrary>], iteration_bounds = array<i64: 1>, scalar_prefetch = 0 : i64, scratch_operands = 0 : i64, tpu.core_type = #tpu.core_type<tc>, window_params = [{pipeline_mode = #tpu.pipeline_mode<synchronous>, transform_indices = @transform_0, window_bounds = array<i64: 2, 1152>}, {pipeline_mode = #tpu.pipeline_mode<synchronous>, transform_indices = @transform_1, window_bounds = array<i64: 1152, 512>}, {pipeline_mode = #tpu.pipeline_mode<synchronous>, transform_indices = @transform_2, window_bounds = array<i64: 1, 512>}, {pipeline_mode = #tpu.pipeline_mode<synchronous>, transform_indices = @transform_3, window_bounds = array<i64: 1, 512>}, {pipeline_mode = #tpu.pipeline_mode<synchronous>, transform_indices = @transform_4, window_bounds = array<i64: 1, 1>}, {pipeline_mode = #tpu.pipeline_mode<synchronous>, transform_indices = @transform_5, window_bounds = array<i64: 2, 1>}]} {
    %c0 = arith.constant 0 : index
    %c0_0 = arith.constant 0 : index
    %0 = vector.load %arg1[%c0, %c0_0] : memref<2x1152xbf16, #tpu.memory_space<vmem>>, vector<2x1152xbf16>
    %c0_1 = arith.constant 0 : index
    %c0_2 = arith.constant 0 : index
    %1 = vector.load %arg2[%c0_1, %c0_2] : memref<1152x512xbf16, #tpu.memory_space<vmem>>, vector<1152x512xbf16>
    %cst = arith.constant dense<0.000000e+00> : vector<2x512xf32>
    %2 = tpu.matmul %0, %1, %cst {dimension_numbers = #tpu.dot_dimension_numbers<[1], [0], [0], [1], [0, 0, 1, 1], [], []>} : vector<2x1152xbf16>, vector<1152x512xbf16>, vector<2x512xf32> -> vector<2x512xf32>
    %c0_3 = arith.constant 0 : index
    %c0_4 = arith.constant 0 : index
    %3 = vector.load %arg3[%c0_3, %c0_4] : memref<1x512xf32, #tpu.memory_space<vmem>>, vector<1x512xf32>
    %4 = vector.broadcast %3 : vector<1x512xf32> to vector<2x512xf32>
    %5 = arith.addf %2, %4 : vector<2x512xf32>
    %cst_5 = arith.constant 0.000000e+00 : f32
    %6 = vector.broadcast %cst_5 : f32 to vector<2x512xf32>
    %7 = arith.maximumf %5, %6 : vector<2x512xf32>
    %c0_6 = arith.constant 0 : index
    %c0_7 = arith.constant 0 : index
    %8 = vector.load %arg4[%c0_6, %c0_7] : memref<1x512xf32, #tpu.memory_space<vmem>>, vector<1x512xf32>
    %9 = vector.broadcast %8 : vector<1x512xf32> to vector<2x512xf32>
    %10 = arith.mulf %7, %9 : vector<2x512xf32>
    %cst_8 = arith.constant dense<0.000000e+00> : vector<2xf32>
    %11 = vector.multi_reduction <add>, %10, %cst_8 [1] : vector<2x512xf32> to vector<2xf32>
    %12 = vector.shape_cast %11 : vector<2xf32> to vector<2x1xf32>
    %c0_9 = arith.constant 0 : index
    %c0_10 = arith.constant 0 : index
    %13 = vector.load %arg5[%c0_9, %c0_10] : memref<1x1xf32, #tpu.memory_space<vmem>>, vector<1x1xf32>
    %14 = vector.broadcast %13 : vector<1x1xf32> to vector<2x1xf32>
    %15 = arith.addf %12, %14 : vector<2x1xf32>
    %c0_11 = arith.constant 0 : index
    %c0_12 = arith.constant 0 : index
    %16 = vector.load %arg6[%c0_11, %c0_12] : memref<2x1xf32, #tpu.memory_space<vmem>>, vector<2x1xf32>
    tpu.vector_store %arg6[%c0_11, %c0_12], %15 {strides = array<i32>} : memref<2x1xf32, #tpu.memory_space<vmem>>, vector<2x1xf32>,
    return
  }
  func.func @transform_0(%arg0: i32) -> (i32, i32) {
    %c0_i32 = arith.constant 0 : i32
    %c0_i32_0 = arith.constant 0 : i32
    %c0_i32_1 = arith.constant 0 : i32
    return %c0_i32, %c0_i32_0 : i32, i32
  }
  func.func @transform_1(%arg0: i32) -> (i32, i32) {
    %c0_i32 = arith.constant 0 : i32
    %c0_i32_0 = arith.constant 0 : i32
    %c0_i32_1 = arith.constant 0 : i32
    return %c0_i32, %c0_i32_0 : i32, i32
  }
  func.func @transform_2(%arg0: i32) -> (i32, i32) {
    %c0_i32 = arith.constant 0 : i32
    %c0_i32_0 = arith.constant 0 : i32
    %c0_i32_1 = arith.constant 0 : i32
    return %c0_i32, %c0_i32_0 : i32, i32
  }
  func.func @transform_3(%arg0: i32) -> (i32, i32) {
    %c0_i32 = arith.constant 0 : i32
    %c0_i32_0 = arith.constant 0 : i32
    %c0_i32_1 = arith.constant 0 : i32
    return %c0_i32, %c0_i32_0 : i32, i32
  }
  func.func @transform_4(%arg0: i32) -> (i32, i32) {
    %c0_i32 = arith.constant 0 : i32
    %c0_i32_0 = arith.constant 0 : i32
    %c0_i32_1 = arith.constant 0 : i32
    return %c0_i32, %c0_i32_0 : i32, i32
  }
  func.func @transform_5(%arg0: i32) -> (i32, i32) {
    %c0_i32 = arith.constant 0 : i32
    %c0_i32_0 = arith.constant 0 : i32
    %c0_i32_1 = arith.constant 0 : i32
    return %c0_i32, %c0_i32_0 : i32, i32
  }
}

</mosaic_0001>

<llo_original>
// kernel: value_net_forward.6
$region0: #{value_net_forward.6}
  #allocation0 [shape = 'u32[]', space=smem, size = 0x4, offset = 0x4, fixed_abs, tag = 'smem constant byte address 0x4 - core index']
  #allocation1 [shape = 'u32[144,128]{1,0:T(1,128)}', space=vmem, size = 0x12000, scoped, tag = 'internal scratch']
  %s0 = inlined_call_operand.vmem [shape: bf16[3584,36], index: 0, kind: input, shape index: {}]
  %s1 = inlined_call_operand.vmem [shape: bf16[36,32], index: 1, kind: input, shape index: {}]
  %s2 = inlined_call_operand.vmem [shape: f32[1,32], index: 2, kind: input, shape index: {}]
  %s3 = inlined_call_operand.vmem [shape: bf16[3584,32], index: 3, kind: output, shape index: {}]
  %s4 = sld [smem:[#allocation0]]
  $region45: #{value_net_forward.6} parent=0
    _
  %s6 = ssub.s32 1, %s4
  %s7 = scalar_select 0, %s6, %s4
  loop: start=0, step=1, limit=9
  $region2: #{value_net_forward.6} parent=0 // loop_pre_header
    _
  $region3: #{value_net_forward.6} parent=0 // loop_header
    %s9 = sphi 0, %s13
    %p10 = scmp.ge.s32.totalorder %s9, 9
    %s19 = sphi 0, %s21
    %s22 = sphi 0, %s19
    %s23 = sphi 0, %s22
    %s39 = sphi 0, %s23
    %s43 = sphi 0, %s43
    %s45 = sphi 0, %s43
    %s46 = sphi 0, %s45
    %s60 = sphi 0, %s46
    %s64 = sphi 0, %s64
    %s66 = sphi 0, %s64
    %s67 = sphi 0, %s66
    %s81 = sphi 0, %s67
    %s87 = sphi 0, %s89
    %s90 = sphi 0, %s87
    %s91 = sphi 0, %s90
    %s107 = sphi 0, %s91
  $region4: #{value_net_forward.6} parent=0 // loop_header_branch
    %12 = sbr.rel (%p10) target = $region8
  $region5: #{value_net_forward.6} parent=0 // loop_body
    %s14 = ssub.s32 %s9, 1
    %s15 = ssub.s32 %s9, 2
    %s16 = sadd.s32 %s9, 1
    %s17 = ssub.s32 %s9, %s16
    %p18 = scmp.eq.s32.totalorder %s17, 0
    %s20 = sadd.s32 %s19, 1
    %s21 = scalar_select %p18, %s19, %s20
    %p24 = pneg %p18
    %p25 = scmp.eq.s32.totalorder %s9, 6
    %p26 = por %p24, %p25
    %p27 = scmp.ne.s32.totalorder %s19, %s22
    %p28 = scmp.eq.s32.totalorder %s9, 0
    %p29 = por %p27, %p28
    %p30 = scmp.ne.s32.totalorder %s19, %s22
    %p31 = scmp.eq.s32.totalorder %s14, 6
    %p32 = por %p30, %p31
    %p33 = scmp.ne.s32.totalorder %s22, %s23
    %p34 = scmp.eq.s32.totalorder %s14, 0
    %p35 = por %p33, %p34
    %p36 = scmp.ne.s32.totalorder %s22, %s23
    %p37 = scmp.eq.s32.totalorder %s15, 6
    %p38 = por %p36, %p37
    %p40 = scmp.ne.s32.totalorder %s23, %s39
    %p41 = scmp.eq.s32.totalorder %s15, 0
    %p42 = por %p40, %p41
    %s44 = sadd.s32 %s43, 1
    %p47 = scmp.eq.s32.totalorder %s9, 6
    %p48 = scmp.ne.s32.totalorder %s43, %s45
    %p49 = scmp.eq.s32.totalorder %s9, 0
    %p50 = por %p48, %p49
    %p51 = scmp.ne.s32.totalorder %s43, %s45
    %p52 = scmp.eq.s32.totalorder %s14, 6
    %p53 = por %p51, %p52
    %p54 = scmp.ne.s32.totalorder %s45, %s46
    %p55 = scmp.eq.s32.totalorder %s14, 0
    %p56 = por %p54, %p55
    %p57 = scmp.ne.s32.totalorder %s45, %s46
    %p58 = scmp.eq.s32.totalorder %s15, 6
    %p59 = por %p57, %p58
    %p61 = scmp.ne.s32.totalorder %s46, %s60
    %p62 = scmp.eq.s32.totalorder %s15, 0
    %p63 = por %p61, %p62
    %s65 = sadd.s32 %s64, 1
    %p68 = scmp.eq.s32.totalorder %s9, 6
    %p69 = scmp.ne.s32.totalorder %s64, %s66
    %p70 = scmp.eq.s32.totalorder %s9, 0
    %p71 = por %p69, %p70
    %p72 = scmp.ne.s32.totalorder %s64, %s66
    %p73 = scmp.eq.s32.totalorder %s14, 6
    %p74 = por %p72, %p73
    %p75 = scmp.ne.s32.totalorder %s66, %s67
    %p76 = scmp.eq.s32.totalorder %s14, 0
    %p77 = por %p75, %p76
    %p78 = scmp.ne.s32.totalorder %s66, %s67
    %p79 = scmp.eq.s32.totalorder %s15, 6
    %p80 = por %p78, %p79
    %p82 = scmp.ne.s32.totalorder %s67, %s81
    %p83 = scmp.eq.s32.totalorder %s15, 0
    %p84 = por %p82, %p83
    %s85 = ssub.s32 %s9, %s16
    %p86 = scmp.eq.s32.totalorder %s85, 0
    %s88 = sadd.s32 %s87, 1
    %s89 = scalar_select %p86, %s87, %s88
    %p92 = pneg %p86
    %p93 = scmp.eq.s32.totalorder %s9, 6
    %p94 = por %p92, %p93
    %p95 = scmp.ne.s32.totalorder %s87, %s90
    %p96 = scmp.eq.s32.totalorder %s9, 0
    %p97 = por %p95, %p96
    %p98 = scmp.ne.s32.totalorder %s87, %s90
    %p99 = scmp.eq.s32.totalorder %s14, 6
    %p100 = por %p98, %p99
    %p101 = scmp.ne.s32.totalorder %s90, %s91
    %p102 = scmp.eq.s32.totalorder %s14, 0
    %p103 = por %p101, %p102
    %p104 = scmp.ne.s32.totalorder %s90, %s91
    %p105 = scmp.eq.s32.totalorder %s15, 6
    %p106 = por %p104, %p105
    %p108 = scmp.ne.s32.totalorder %s91, %s107
    %p109 = scmp.eq.s32.totalorder %s15, 0
    %p110 = por %p108, %p109
    %p111 = scmp.le.s32.totalorder 1, %s9
    %p112 = scmp.lt.s32.totalorder %s9, 8
    %p113 = pnand %p111, %p112
    %p114 = pneg %p113
    // Predicated region
    $region9: #{value_net_forward.6} parent=5 // pred_check
      _
    $region10: #{value_net_forward.6} parent=5 // pred_check_branch
      %116 = sbr.rel (%p113) target = $region12
    $region11: #{value_net_forward.6} parent=5 // pred_region
      %s117 = ssub.s32 %s9, 1
      // Predicated region
      $region13: #{value_net_forward.6} parent=11 // pred_check
        %p118 = pneg %p56
      $region14: #{value_net_forward.6} parent=11 // pred_check_branch
        %120 = sbr.rel (%p118) target = $region16
      $region15: #{value_net_forward.6} parent=11 // pred_region
        _
      $region16: #{value_net_forward.6} parent=11 // pred_fallthru
        _
      // Predicated region
      $region17: #{value_net_forward.6} parent=11 // pred_check
        %p121 = pneg %p77
      $region18: #{value_net_forward.6} parent=11 // pred_check_branch
        %123 = sbr.rel (%p121) target = $region20
      $region19: #{value_net_forward.6} parent=11 // pred_region
        _
      $region20: #{value_net_forward.6} parent=11 // pred_fallthru
        _
    $region12: #{value_net_forward.6} parent=5 // pred_fallthru
      _
    %p124 = scmp.lt.s32.totalorder %s9, 7
    // Predicated region
    $region21: #{value_net_forward.6} parent=5 // pred_check
      %p125 = pneg %p124
    $region22: #{value_net_forward.6} parent=5 // pred_check_branch
      %127 = sbr.rel (%p125) target = $region24
    $region23: #{value_net_forward.6} parent=5 // pred_region
      // Predicated region
      $region25: #{value_net_forward.6} parent=23 // pred_check
        %p128 = pneg %p29
      $region26: #{value_net_forward.6} parent=23 // pred_check_branch
        %130 = sbr.rel (%p128) target = $region28
      $region27: #{value_net_forward.6} parent=23 // pred_region
        %s131 = smul.u32 64, %s9
        %p132 = scmp.lt.s32.totalorder %s131, 447
        %s133 = scalar_select %p132, %s131, 447
        %s134 = smul.addr %s133, 4
        %s135 = scalar_lea.vmem %s0, %s134
        %s136 = smul.u32 64, %s9
      $region28: #{value_net_forward.6} parent=23 // pred_fallthru
        _
    $region24: #{value_net_forward.6} parent=5 // pred_fallthru
      _
    %p137 = scmp.le.s32.totalorder 1, %s9
    %p138 = scmp.lt.s32.totalorder %s9, 8
    %p139 = pnand %p137, %p138
    %p140 = pneg %p139
    // Predicated region
    $region29: #{value_net_forward.6} parent=5 // pred_check
      _
    $region30: #{value_net_forward.6} parent=5 // pred_check_branch
      %142 = sbr.rel (%p139) target = $region32
    $region31: #{value_net_forward.6} parent=5 // pred_region
      %s143 = ssub.s32 %s9, 1
      %s144 = smul.u32 64, %s14
      %p145 = scmp.lt.s32.totalorder %s144, 447
      %s146 = scalar_select %p145, %s144, 447
      %s147 = smul.addr %s146, 4
      %s148 = scalar_lea.vmem %s0, %s147
      %p149 = pneg %p35
      %p150 = pneg %p32
      %p151 = pneg %p56
      %p152 = pneg %p53
      %p153 = pneg %p77
      %p154 = pneg %p74
      %p155 = pneg %p103
      %p156 = pneg %p100
      %s157 = smul.u32 64, %s14
      %p158 = scmp.lt.s32.totalorder %s157, 447
      %s159 = scalar_select %p158, %s157, 447
      %s160 = smul.addr %s159, 4
      %s161 = scalar_lea.vmem %s3, %s160
      %s162 = smul.u32 64, %s14
      %p163 = scmp.lt.s32.totalorder %s162, 447
      %s164 = scalar_select %p163, %s162, 447
      %s165 = smul.addr %s164, 4
      %s166 = scalar_lea.vmem %s0, %s165
      %s167 = smul.u32 64, %s14
      %s168 = smul.u32 64, %s14
      %p169 = scmp.lt.s32.totalorder %s168, 447
      %s170 = scalar_select %p169, %s168, 447
      %s171 = smul.addr %s170, 4
      %s172 = scalar_lea.vmem %s3, %s171
      %s173 = smul.u32 64, %s14
      %v175 = vld [vmem:[%s166] sm:$0xf]
      %v176 = vld [vmem:[%s166 + $0x4] sm:$0xf]
      %v177 = vld [vmem:[%s166 + $0x8] sm:$0xf]
      %v178 = vld [vmem:[%s166 + $0xc] sm:$0xf]
      %v179 = vld [vmem:[%s166 + $0x10] sm:$0xf]
      %v180 = vld [vmem:[%s166 + $0x14] sm:$0xf]
      %v181 = vld [vmem:[%s166 + $0x18] sm:$0xf]
      %v182 = vld [vmem:[%s166 + $0x1c] sm:$0xf]
      %v183 = vld [vmem:[%s166 + $0x20] sm:$0xf]
      %v184 = vld [vmem:[%s166 + $0x24] sm:$0xf]
      %v185 = vld [vmem:[%s166 + $0x28] sm:$0xf]
      %v186 = vld [vmem:[%s166 + $0x2c] sm:$0xf]
      %v187 = vld [vmem:[%s166 + $0x30] sm:$0xf]
      %v188 = vld [vmem:[%s166 + $0x34] sm:$0xf]
      %v189 = vld [vmem:[%s166 + $0x38] sm:$0xf]
      %v190 = vld [vmem:[%s166 + $0x3c] sm:$0xf]
      %v191 = vld [vmem:[%s166 + $0x40] sm:$0xf]
      %v192 = vld [vmem:[%s166 + $0x44] sm:$0xf]
      %v193 = vld [vmem:[%s166 + $0x48] sm:$0xf]
      %v194 = vld [vmem:[%s166 + $0x4c] sm:$0xf]
      %v195 = vld [vmem:[%s166 + $0x50] sm:$0xf]
      %v196 = vld [vmem:[%s166 + $0x54] sm:$0xf]
      %v197 = vld [vmem:[%s166 + $0x58] sm:$0xf]
      %v198 = vld [vmem:[%s166 + $0x5c] sm:$0xf]
      %v199 = vld [vmem:[%s166 + $0x60] sm:$0xf]
      %v200 = vld [vmem:[%s166 + $0x64] sm:$0xf]
      %v201 = vld [vmem:[%s166 + $0x68] sm:$0xf]
      %v202 = vld [vmem:[%s166 + $0x6c] sm:$0xf]
      %v203 = vld [vmem:[%s166 + $0x70] sm:$0xf]
      %v204 = vld [vmem:[%s166 + $0x74] sm:$0xf]
      %v205 = vld [vmem:[%s166 + $0x78] sm:$0xf]
      %v206 = vld [vmem:[%s166 + $0x7c] sm:$0xf]
      %v207 = vld [vmem:[%s166 + $0x80] sm:$0xf]
      %v208 = vld [vmem:[%s166 + $0x84] sm:$0xf]
      %v209 = vld [vmem:[%s166 + $0x88] sm:$0xf]
      %v210 = vld [vmem:[%s166 + $0x8c] sm:$0xf]
      %v211 = vld [vmem:[%s166 + $0x90] sm:$0xf]
      %v212 = vld [vmem:[%s166 + $0x94] sm:$0xf]
      %v213 = vld [vmem:[%s166 + $0x98] sm:$0xf]
      %v214 = vld [vmem:[%s166 + $0x9c] sm:$0xf]
      %v215 = vld [vmem:[%s166 + $0xa0] sm:$0xf]
      %v216 = vld [vmem:[%s166 + $0xa4] sm:$0xf]
      %v217 = vld [vmem:[%s166 + $0xa8] sm:$0xf]
      %v218 = vld [vmem:[%s166 + $0xac] sm:$0xf]
      %v219 = vld [vmem:[%s166 + $0xb0] sm:$0xf]
      %v220 = vld [vmem:[%s166 + $0xb4] sm:$0xf]
      %v221 = vld [vmem:[%s166 + $0xb8] sm:$0xf]
      %v222 = vld [vmem:[%s166 + $0xbc] sm:$0xf]
      %v223 = vld [vmem:[%s166 + $0xc0] sm:$0xf]
      %v224 = vld [vmem:[%s166 + $0xc4] sm:$0xf]
      %v225 = vld [vmem:[%s166 + $0xc8] sm:$0xf]
      %v226 = vld [vmem:[%s166 + $0xcc] sm:$0xf]
      %v227 = vld [vmem:[%s166 + $0xd0] sm:$0xf]
      %v228 = vld [vmem:[%s166 + $0xd4] sm:$0xf]
      %v229 = vld [vmem:[%s166 + $0xd8] sm:$0xf]
      %v230 = vld [vmem:[%s166 + $0xdc] sm:$0xf]
      %v231 = vld [vmem:[%s166 + $0xe0] sm:$0xf]
      %v232 = vld [vmem:[%s166 + $0xe4] sm:$0xf]
      %v233 = vld [vmem:[%s166 + $0xe8] sm:$0xf]
      %v234 = vld [vmem:[%s166 + $0xec] sm:$0xf]
      %v235 = vld [vmem:[%s166 + $0xf0] sm:$0xf]
      %v236 = vld [vmem:[%s166 + $0xf4] sm:$0xf]
      %v237 = vld [vmem:[%s166 + $0xf8] sm:$0xf]
      %v238 = vld [vmem:[%s166 + $0xfc] sm:$0xf]
      %v239 = vld [vmem:[%s1] sm:$0xf]
      %v240 = vld [vmem:[%s1 + $0x4] sm:$0xf]
      %v241 = vld [vmem:[%s1 + $0x8] sm:$0xf]
      %v242 = vld [vmem:[%s1 + $0xc] sm:$0xf]
      %v243 = vld [vmem:[%s1 + $0x10] sm:$0x3]
      %v244 = vld [vmem:[%s2] sm:$0x1]
      %v246 = vlaneseq
      %v247 = vshrl.u32 %v246, 7
      %v248 = vsub.s32 0, %v247
      %v249 = vrot.slane %v244, %v248
      %v315 = vunpack.c.l.b16 %v175
      %v316 = vunpack.c.l.b16 %v176
      %v317 = vunpack.c.l.b16 %v177
      %v318 = vunpack.c.l.b16 %v178
      %v319 = vunpack.c.l.b16 %v179
      %v320 = vunpack.c.l.b16 %v180
      %v321 = vunpack.c.l.b16 %v181
      %v322 = vunpack.c.l.b16 %v182
      %v323 = vunpack.c.l.b16 %v183
      %v324 = vunpack.c.l.b16 %v184
      %v325 = vunpack.c.l.b16 %v185
      %v326 = vunpack.c.l.b16 %v186
      %v327 = vunpack.c.l.b16 %v187
      %v328 = vunpack.c.l.b16 %v188
      %v329 = vunpack.c.l.b16 %v189
      %v330 = vunpack.c.l.b16 %v190
      %v331 = vunpack.c.l.b16 %v191
      %v332 = vunpack.c.l.b16 %v192
      %v333 = vunpack.c.l.b16 %v193
      %v334 = vunpack.c.l.b16 %v194
      %v335 = vunpack.c.l.b16 %v195
      %v336 = vunpack.c.l.b16 %v196
      %v337 = vunpack.c.l.b16 %v197
      %v338 = vunpack.c.l.b16 %v198
      %v339 = vunpack.c.l.b16 %v199
      %v340 = vunpack.c.l.b16 %v200
      %v341 = vunpack.c.l.b16 %v201
      %v342 = vunpack.c.l.b16 %v202
      %v343 = vunpack.c.l.b16 %v203
      %v344 = vunpack.c.l.b16 %v204
      %v345 = vunpack.c.l.b16 %v205
      %v346 = vunpack.c.l.b16 %v206
      %v347 = vunpack.c.l.b16 %v207
      %v348 = vunpack.c.l.b16 %v208
      %v349 = vunpack.c.l.b16 %v209
      %v350 = vunpack.c.l.b16 %v210
      %v351 = vunpack.c.l.b16 %v211
      %v352 = vunpack.c.l.b16 %v212
      %v353 = vunpack.c.l.b16 %v213
      %v354 = vunpack.c.l.b16 %v214
      %v355 = vunpack.c.l.b16 %v215
      %v356 = vunpack.c.l.b16 %v216
      %v357 = vunpack.c.l.b16 %v217
      %v358 = vunpack.c.l.b16 %v218
      %v359 = vunpack.c.l.b16 %v219
      %v360 = vunpack.c.l.b16 %v220
      %v361 = vunpack.c.l.b16 %v221
      %v362 = vunpack.c.l.b16 %v222
      %v363 = vunpack.c.l.b16 %v223
      %v364 = vunpack.c.l.b16 %v224
      %v365 = vunpack.c.l.b16 %v225
      %v366 = vunpack.c.l.b16 %v226
      %v367 = vunpack.c.l.b16 %v227
      %v368 = vunpack.c.l.b16 %v228
      %v369 = vunpack.c.l.b16 %v229
      %v370 = vunpack.c.l.b16 %v230
      %v371 = vunpack.c.l.b16 %v231
      %v372 = vunpack.c.l.b16 %v232
      %v373 = vunpack.c.l.b16 %v233
      %v374 = vunpack.c.l.b16 %v234
      %v375 = vunpack.c.l.b16 %v235
      %v376 = vunpack.c.l.b16 %v236
      %v377 = vunpack.c.l.b16 %v237
      %v378 = vunpack.c.l.b16 %v238
      %v379 = vpack.c.b16 %v316, %v315
      %v380 = vpack.c.b16 %v318, %v317
      %v381 = vpack.c.b16 %v320, %v319
      %v382 = vpack.c.b16 %v322, %v321
      %v383 = vpack.c.b16 %v324, %v323
      %v384 = vpack.c.b16 %v326, %v325
      %v385 = vpack.c.b16 %v328, %v327
      %v386 = vpack.c.b16 %v330, %v329
      %v387 = vpack.c.b16 %v332, %v331
      %v388 = vpack.c.b16 %v334, %v333
      %v389 = vpack.c.b16 %v336, %v335
      %v390 = vpack.c.b16 %v338, %v337
      %v391 = vpack.c.b16 %v340, %v339
      %v392 = vpack.c.b16 %v342, %v341
      %v393 = vpack.c.b16 %v344, %v343
      %v394 = vpack.c.b16 %v346, %v345
      %v395 = vpack.c.b16 %v348, %v347
      %v396 = vpack.c.b16 %v350, %v349
      %v397 = vpack.c.b16 %v352, %v351
      %v398 = vpack.c.b16 %v354, %v353
      %v399 = vpack.c.b16 %v356, %v355
      %v400 = vpack.c.b16 %v358, %v357
      %v401 = vpack.c.b16 %v360, %v359
      %v402 = vpack.c.b16 %v362, %v361
      %v403 = vpack.c.b16 %v364, %v363
      %v404 = vpack.c.b16 %v366, %v365
      %v405 = vpack.c.b16 %v368, %v367
      %v406 = vpack.c.b16 %v370, %v369
      %v407 = vpack.c.b16 %v372, %v371
      %v408 = vpack.c.b16 %v374, %v373
      %v409 = vpack.c.b16 %v376, %v375
      %v410 = vpack.c.b16 %v378, %v377
      %v416 = vunpack.c.l.b16 %v239
      %v417 = vunpack.c.l.b16 %v240
      %v418 = vunpack.c.l.b16 %v241
      %v419 = vunpack.c.l.b16 %v242
      %v420 = vunpack.c.l.b16 %v243
      %v421 = vpack.c.b16 %v417, %v416
      %v422 = vpack.c.b16 %v419, %v418
      %v423 = vpack.c.b16 %v420, %v420
      %vm426 = vcmask 293888
      %v428 = vsel %vm426, %v379, 0
      %v431 = vsel %vm426, %v380, 0
      %v434 = vsel %vm426, %v381, 0
      %v437 = vsel %vm426, %v382, 0
      %v440 = vsel %vm426, %v383, 0
      %v443 = vsel %vm426, %v384, 0
      %v446 = vsel %vm426, %v385, 0
      %v449 = vsel %vm426, %v386, 0
      %v452 = vsel %vm426, %v387, 0
      %v455 = vsel %vm426, %v388, 0
      %v458 = vsel %vm426, %v389, 0
      %v461 = vsel %vm426, %v390, 0
      %v464 = vsel %vm426, %v391, 0
      %v467 = vsel %vm426, %v392, 0
      %v470 = vsel %vm426, %v393, 0
      %v473 = vsel %vm426, %v394, 0
      %v476 = vsel %vm426, %v395, 0
      %v479 = vsel %vm426, %v396, 0
      %v482 = vsel %vm426, %v397, 0
      %v485 = vsel %vm426, %v398, 0
      %v488 = vsel %vm426, %v399, 0
      %v491 = vsel %vm426, %v400, 0
      %v494 = vsel %vm426, %v401, 0
      %v497 = vsel %vm426, %v402, 0
      %v500 = vsel %vm426, %v403, 0
      %v503 = vsel %vm426, %v404, 0
      %v506 = vsel %vm426, %v405, 0
      %v509 = vsel %vm426, %v406, 0
      %v512 = vsel %vm426, %v407, 0
      %v515 = vsel %vm426, %v408, 0
      %v518 = vsel %vm426, %v409, 0
      %v521 = vsel %vm426, %v410, 0
      %vm523 = vcmask 1041408
      %v525 = vsel %vm523, %v423, 0
      %527 = vmatprep.subr.bf16.mxu0 0
      %528 = vmatpush1.bf16.msra.mxu0 0
      %529 = vmatprep.subr.bf16.mxu0 0
      %530 = vmatpush1.bf16.msra.mxu0 0
      %531 = vmatprep.subr.bf16.mxu0 0
      %532 = vmatpush1.bf16.msra.mxu0 0
      %533 = vmatprep.subr.bf16.mxu0 0
      %534 = vmatpush1.bf16.msra.mxu0 0
      %535 = vmatprep.subr.bf16.mxu0 0
      %536 = vmatpush1.bf16.msra.mxu0 0
      %537 = vmatprep.subr.bf16.mxu0 0
      %538 = vmatpush1.bf16.msra.mxu0 %v525
      %539 = vmatprep.subr.bf16.mxu0 0
      %540 = vmatpush1.bf16.msra.mxu0 %v422
      %541 = vmatprep.subr.bf16.mxu0 0
      %542 = vmatpush1.bf16.msra.mxu0 %v421
      %543 = vmatprep.subr.bf16.mxu0 0
      %544 = vmatpush2.bf16.msra.mxu0 0
      %545 = vmatprep.subr.bf16.mxu0 0
      %546 = vmatpush2.bf16.msra.mxu0 0
      %547 = vmatprep.subr.bf16.mxu0 0
      %548 = vmatpush2.bf16.msra.mxu0 0
      %549 = vmatprep.subr.bf16.mxu0 0
      %550 = vmatpush2.bf16.msra.mxu0 0
      %551 = vmatprep.subr.bf16.mxu0 0
      %552 = vmatpush2.bf16.msra.mxu0 0
      %553 = vmatprep.subr.bf16.mxu0 0
      %554 = vmatpush2.bf16.msra.mxu0 0
      %555 = vmatprep.subr.bf16.mxu0 0
      %556 = vmatpush2.bf16.msra.mxu0 0
      %557 = vmatprep.subr.bf16.mxu0 0
      %558 = vmatpush2.bf16.msra.mxu0 0
      %559 = vmatprep.mubr.bf16.mxu0 0
      %560 = vmatmul.mubr.bf16.gmra.mxu0 %v428
      %v561 = vpop.f32.mrf.mxu0
      %v562 = vadd.f32 %v249, %v561
      %v563 = vpop.f32.mrf.mxu0
      %v564 = vpop.f32.mrf.mxu0
      %v565 = vadd.f32 %v249, %v564
      %v566 = vpop.f32.mrf.mxu0
      %567 = vmatprep.mubr.bf16.mxu0 0
      %568 = vmatmul.mubr.bf16.gmra.mxu0 %v431
      %v569 = vpop.f32.mrf.mxu0
      %v570 = vadd.f32 %v249, %v569
      %v571 = vpop.f32.mrf.mxu0
      %v572 = vpop.f32.mrf.mxu0
      %v573 = vadd.f32 %v249, %v572
      %v574 = vpop.f32.mrf.mxu0
      %575 = vmatprep.mubr.bf16.mxu0 0
      %576 = vmatmul.mubr.bf16.gmra.mxu0 %v434
      %v577 = vpop.f32.mrf.mxu0
      %v578 = vadd.f32 %v249, %v577
      %v579 = vpop.f32.mrf.mxu0
      %v580 = vpop.f32.mrf.mxu0
      %v581 = vadd.f32 %v249, %v580
      %v582 = vpop.f32.mrf.mxu0
      %583 = vmatprep.mubr.bf16.mxu0 0
      %584 = vmatmul.mubr.bf16.gmra.mxu0 %v437
      %v585 = vpop.f32.mrf.mxu0
      %v586 = vadd.f32 %v249, %v585
      %v587 = vpop.f32.mrf.mxu0
      %v588 = vpop.f32.mrf.mxu0
      %v589 = vadd.f32 %v249, %v588
      %v590 = vpop.f32.mrf.mxu0
      %591 = vmatprep.mubr.bf16.mxu0 0
      %592 = vmatmul.mubr.bf16.gmra.mxu0 %v440
      %v593 = vpop.f32.mrf.mxu0
      %v594 = vadd.f32 %v249, %v593
      %v595 = vpop.f32.mrf.mxu0
      %v596 = vpop.f32.mrf.mxu0
      %v597 = vadd.f32 %v249, %v596
      %v598 = vpop.f32.mrf.mxu0
      %599 = vmatprep.mubr.bf16.mxu0 0
      %600 = vmatmul.mubr.bf16.gmra.mxu0 %v443
      %v601 = vpop.f32.mrf.mxu0
      %v602 = vadd.f32 %v249, %v601
      %v603 = vpop.f32.mrf.mxu0
      %v604 = vpop.f32.mrf.mxu0
      %v605 = vadd.f32 %v249, %v604
      %v606 = vpop.f32.mrf.mxu0
      %607 = vmatprep.mubr.bf16.mxu0 0
      %608 = vmatmul.mubr.bf16.gmra.mxu0 %v446
      %v609 = vpop.f32.mrf.mxu0
      %v610 = vadd.f32 %v249, %v609
      %v611 = vpop.f32.mrf.mxu0
      %v612 = vpop.f32.mrf.mxu0
      %v613 = vadd.f32 %v249, %v612
      %v614 = vpop.f32.mrf.mxu0
      %615 = vmatprep.mubr.bf16.mxu0 0
      %616 = vmatmul.mubr.bf16.gmra.mxu0 %v449
      %v617 = vpop.f32.mrf.mxu0
      %v618 = vadd.f32 %v249, %v617
      %v619 = vpop.f32.mrf.mxu0
      %v620 = vpop.f32.mrf.mxu0
      %v621 = vadd.f32 %v249, %v620
      %v622 = vpop.f32.mrf.mxu0
      %623 = vmatprep.mubr.bf16.mxu0 0
      %624 = vmatmul.mubr.bf16.gmra.mxu0 %v452
      %v625 = vpop.f32.mrf.mxu0
      %v626 = vadd.f32 %v249, %v625
      %v627 = vpop.f32.mrf.mxu0
      %v628 = vpop.f32.mrf.mxu0
      %v629 = vadd.f32 %v249, %v628
      %v630 = vpop.f32.mrf.mxu0
      %631 = vmatprep.mubr.bf16.mxu0 0
      %632 = vmatmul.mubr.bf16.gmra.mxu0 %v455
      %v633 = vpop.f32.mrf.mxu0
      %v634 = vadd.f32 %v249, %v633
      %v635 = vpop.f32.mrf.mxu0
      %v636 = vpop.f32.mrf.mxu0
      %v637 = vadd.f32 %v249, %v636
      %v638 = vpop.f32.mrf.mxu0
      %639 = vmatprep.mubr.bf16.mxu0 0
      %640 = vmatmul.mubr.bf16.gmra.mxu0 %v458
      %v641 = vpop.f32.mrf.mxu0
      %v642 = vadd.f32 %v249, %v641
      %v643 = vpop.f32.mrf.mxu0
      %v644 = vpop.f32.mrf.mxu0
      %v645 = vadd.f32 %v249, %v644
      %v646 = vpop.f32.mrf.mxu0
      %647 = vmatprep.mubr.bf16.mxu0 0
      %648 = vmatmul.mubr.bf16.gmra.mxu0 %v461
      %v649 = vpop.f32.mrf.mxu0
      %v650 = vadd.f32 %v249, %v649
      %v651 = vpop.f32.mrf.mxu0
      %v652 = vpop.f32.mrf.mxu0
      %v653 = vadd.f32 %v249, %v652
      %v654 = vpop.f32.mrf.mxu0
      %655 = vmatprep.mubr.bf16.mxu0 0
      %656 = vmatmul.mubr.bf16.gmra.mxu0 %v464
      %v657 = vpop.f32.mrf.mxu0
      %v658 = vadd.f32 %v249, %v657
      %v659 = vpop.f32.mrf.mxu0
      %v660 = vpop.f32.mrf.mxu0
      %v661 = vadd.f32 %v249, %v660
      %v662 = vpop.f32.mrf.mxu0
      %663 = vmatprep.mubr.bf16.mxu0 0
      %664 = vmatmul.mubr.bf16.gmra.mxu0 %v467
      %v665 = vpop.f32.mrf.mxu0
      %v666 = vadd.f32 %v249, %v665
      %v667 = vpop.f32.mrf.mxu0
      %v668 = vpop.f32.mrf.mxu0
      %v669 = vadd.f32 %v249, %v668
      %v670 = vpop.f32.mrf.mxu0
      %671 = vmatprep.mubr.bf16.mxu0 0
      %672 = vmatmul.mubr.bf16.gmra.mxu0 %v470
      %v673 = vpop.f32.mrf.mxu0
      %v674 = vadd.f32 %v249, %v673
      %v675 = vpop.f32.mrf.mxu0
      %v676 = vpop.f32.mrf.mxu0
      %v677 = vadd.f32 %v249, %v676
      %v678 = vpop.f32.mrf.mxu0
      %679 = vmatprep.mubr.bf16.mxu0 0
      %680 = vmatmul.mubr.bf16.gmra.mxu0 %v473
      %v681 = vpop.f32.mrf.mxu0
      %v682 = vadd.f32 %v249, %v681
      %v683 = vpop.f32.mrf.mxu0
      %v684 = vpop.f32.mrf.mxu0
      %v685 = vadd.f32 %v249, %v684
      %v686 = vpop.f32.mrf.mxu0
      %687 = vmatprep.mubr.bf16.mxu0 0
      %688 = vmatmul.mubr.bf16.gmra.mxu0 %v476
      %v689 = vpop.f32.mrf.mxu0
      %v690 = vadd.f32 %v249, %v689
      %v691 = vpop.f32.mrf.mxu0
      %v692 = vpop.f32.mrf.mxu0
      %v693 = vadd.f32 %v249, %v692
      %v694 = vpop.f32.mrf.mxu0
      %695 = vmatprep.mubr.bf16.mxu0 0
      %696 = vmatmul.mubr.bf16.gmra.mxu0 %v479
      %v697 = vpop.f32.mrf.mxu0
      %v698 = vadd.f32 %v249, %v697
      %v699 = vpop.f32.mrf.mxu0
      %v700 = vpop.f32.mrf.mxu0
      %v701 = vadd.f32 %v249, %v700
      %v702 = vpop.f32.mrf.mxu0
      %703 = vmatprep.mubr.bf16.mxu0 0
      %704 = vmatmul.mubr.bf16.gmra.mxu0 %v482
      %v705 = vpop.f32.mrf.mxu0
      %v706 = vadd.f32 %v249, %v705
      %v707 = vpop.f32.mrf.mxu0
      %v708 = vpop.f32.mrf.mxu0
      %v709 = vadd.f32 %v249, %v708
      %v710 = vpop.f32.mrf.mxu0
      %711 = vmatprep.mubr.bf16.mxu0 0
      %712 = vmatmul.mubr.bf16.gmra.mxu0 %v485
      %v713 = vpop.f32.mrf.mxu0
      %v714 = vadd.f32 %v249, %v713
      %v715 = vpop.f32.mrf.mxu0
      %v716 = vpop.f32.mrf.mxu0
      %v717 = vadd.f32 %v249, %v716
      %v718 = vpop.f32.mrf.mxu0
      %719 = vmatprep.mubr.bf16.mxu0 0
      %720 = vmatmul.mubr.bf16.gmra.mxu0 %v488
      %v721 = vpop.f32.mrf.mxu0
      %v722 = vadd.f32 %v249, %v721
      %v723 = vpop.f32.mrf.mxu0
      %v724 = vpop.f32.mrf.mxu0
      %v725 = vadd.f32 %v249, %v724
      %v726 = vpop.f32.mrf.mxu0
      %727 = vmatprep.mubr.bf16.mxu0 0
      %728 = vmatmul.mubr.bf16.gmra.mxu0 %v491
      %v729 = vpop.f32.mrf.mxu0
      %v730 = vadd.f32 %v249, %v729
      %v731 = vpop.f32.mrf.mxu0
      %v732 = vpop.f32.mrf.mxu0
      %v733 = vadd.f32 %v249, %v732
      %v734 = vpop.f32.mrf.mxu0
      %735 = vmatprep.mubr.bf16.mxu0 0
      %736 = vmatmul.mubr.bf16.gmra.mxu0 %v494
      %v737 = vpop.f32.mrf.mxu0
      %v738 = vadd.f32 %v249, %v737
      %v739 = vpop.f32.mrf.mxu0
      %v740 = vpop.f32.mrf.mxu0
      %v741 = vadd.f32 %v249, %v740
      %v742 = vpop.f32.mrf.mxu0
      %743 = vmatprep.mubr.bf16.mxu0 0
      %744 = vmatmul.mubr.bf16.gmra.mxu0 %v497
      %v745 = vpop.f32.mrf.mxu0
      %v746 = vadd.f32 %v249, %v745
      %v747 = vpop.f32.mrf.mxu0
      %v748 = vpop.f32.mrf.mxu0
      %v749 = vadd.f32 %v249, %v748
      %v750 = vpop.f32.mrf.mxu0
      %751 = vmatprep.mubr.bf16.mxu0 0
      %752 = vmatmul.mubr.bf16.gmra.mxu0 %v500
      %v753 = vpop.f32.mrf.mxu0
      %v754 = vadd.f32 %v249, %v753
      %v755 = vpop.f32.mrf.mxu0
      %v756 = vpop.f32.mrf.mxu0
      %v757 = vadd.f32 %v249, %v756
      %v758 = vpop.f32.mrf.mxu0
      %759 = vmatprep.mubr.bf16.mxu0 0
      %760 = vmatmul.mubr.bf16.gmra.mxu0 %v503
      %v761 = vpop.f32.mrf.mxu0
      %v762 = vadd.f32 %v249, %v761
      %v763 = vpop.f32.mrf.mxu0
      %v764 = vpop.f32.mrf.mxu0
      %v765 = vadd.f32 %v249, %v764
      %v766 = vpop.f32.mrf.mxu0
      %767 = vmatprep.mubr.bf16.mxu0 0
      %768 = vmatmul.mubr.bf16.gmra.mxu0 %v506
      %v769 = vpop.f32.mrf.mxu0
      %v770 = vadd.f32 %v249, %v769
      %v771 = vpop.f32.mrf.mxu0
      %v772 = vpop.f32.mrf.mxu0
      %v773 = vadd.f32 %v249, %v772
      %v774 = vpop.f32.mrf.mxu0
      %775 = vmatprep.mubr.bf16.mxu0 0
      %776 = vmatmul.mubr.bf16.gmra.mxu0 %v509
      %v777 = vpop.f32.mrf.mxu0
      %v778 = vadd.f32 %v249, %v777
      %v779 = vpop.f32.mrf.mxu0
      %v780 = vpop.f32.mrf.mxu0
      %v781 = vadd.f32 %v249, %v780
      %v782 = vpop.f32.mrf.mxu0
      %783 = vmatprep.mubr.bf16.mxu0 0
      %784 = vmatmul.mubr.bf16.gmra.mxu0 %v512
      %v785 = vpop.f32.mrf.mxu0
      %v786 = vadd.f32 %v249, %v785
      %v787 = vpop.f32.mrf.mxu0
      %v788 = vpop.f32.mrf.mxu0
      %v789 = vadd.f32 %v249, %v788
      %v790 = vpop.f32.mrf.mxu0
      %791 = vmatprep.mubr.bf16.mxu0 0
      %792 = vmatmul.mubr.bf16.gmra.mxu0 %v515
      %v793 = vpop.f32.mrf.mxu0
      %v794 = vadd.f32 %v249, %v793
      %v795 = vpop.f32.mrf.mxu0
      %v796 = vpop.f32.mrf.mxu0
      %v797 = vadd.f32 %v249, %v796
      %v798 = vpop.f32.mrf.mxu0
      %799 = vmatprep.mubr.bf16.mxu0 0
      %800 = vmatmul.mubr.bf16.gmra.mxu0 %v518
      %v801 = vpop.f32.mrf.mxu0
      %v802 = vadd.f32 %v249, %v801
      %v803 = vpop.f32.mrf.mxu0
      %v804 = vpop.f32.mrf.mxu0
      %v805 = vadd.f32 %v249, %v804
      %v806 = vpop.f32.mrf.mxu0
      %807 = vmatprep.mubr.bf16.mxu0 0
      %808 = vmatmul.mubr.bf16.gmra.mxu0 %v521
      %v809 = vpop.f32.mrf.mxu0
      %v810 = vadd.f32 %v249, %v809
      %v811 = vpop.f32.mrf.mxu0
      %v812 = vpop.f32.mrf.mxu0
      %v813 = vadd.f32 %v249, %v812
      %v814 = vpop.f32.mrf.mxu0
      %815 = vdwg.mxu0
      %v816 = vmax.f32 %v562, 0.0
      %v817 = vmax.f32 %v565, 0.0
      %v818 = vmax.f32 %v570, 0.0
      %v819 = vmax.f32 %v573, 0.0
      %v820 = vmax.f32 %v578, 0.0
      %v821 = vmax.f32 %v581, 0.0
      %v822 = vmax.f32 %v586, 0.0
      %v823 = vmax.f32 %v589, 0.0
      %v824 = vmax.f32 %v594, 0.0
      %v825 = vmax.f32 %v597, 0.0
      %v826 = vmax.f32 %v602, 0.0
      %v827 = vmax.f32 %v605, 0.0
      %v828 = vmax.f32 %v610, 0.0
      %v829 = vmax.f32 %v613, 0.0
      %v830 = vmax.f32 %v618, 0.0
      %v831 = vmax.f32 %v621, 0.0
      %v832 = vmax.f32 %v626, 0.0
      %v833 = vmax.f32 %v629, 0.0
      %v834 = vmax.f32 %v634, 0.0
      %v835 = vmax.f32 %v637, 0.0
      %v836 = vmax.f32 %v642, 0.0
      %v837 = vmax.f32 %v645, 0.0
      %v838 = vmax.f32 %v650, 0.0
      %v839 = vmax.f32 %v653, 0.0
      %v840 = vmax.f32 %v658, 0.0
      %v841 = vmax.f32 %v661, 0.0
      %v842 = vmax.f32 %v666, 0.0
      %v843 = vmax.f32 %v669, 0.0
      %v844 = vmax.f32 %v674, 0.0
      %v845 = vmax.f32 %v677, 0.0
      %v846 = vmax.f32 %v682, 0.0
      %v847 = vmax.f32 %v685, 0.0
      %v848 = vmax.f32 %v690, 0.0
      %v849 = vmax.f32 %v693, 0.0
      %v850 = vmax.f32 %v698, 0.0
      %v851 = vmax.f32 %v701, 0.0
      %v852 = vmax.f32 %v706, 0.0
      %v853 = vmax.f32 %v709, 0.0
      %v854 = vmax.f32 %v714, 0.0
      %v855 = vmax.f32 %v717, 0.0
      %v856 = vmax.f32 %v722, 0.0
      %v857 = vmax.f32 %v725, 0.0
      %v858 = vmax.f32 %v730, 0.0
      %v859 = vmax.f32 %v733, 0.0
      %v860 = vmax.f32 %v738, 0.0
      %v861 = vmax.f32 %v741, 0.0
      %v862 = vmax.f32 %v746, 0.0
      %v863 = vmax.f32 %v749, 0.0
      %v864 = vmax.f32 %v754, 0.0
      %v865 = vmax.f32 %v757, 0.0
      %v866 = vmax.f32 %v762, 0.0
      %v867 = vmax.f32 %v765, 0.0
      %v868 = vmax.f32 %v770, 0.0
      %v869 = vmax.f32 %v773, 0.0
      %v870 = vmax.f32 %v778, 0.0
      %v871 = vmax.f32 %v781, 0.0
      %v872 = vmax.f32 %v786, 0.0
      %v873 = vmax.f32 %v789, 0.0
      %v874 = vmax.f32 %v794, 0.0
      %v875 = vmax.f32 %v797, 0.0
      %v876 = vmax.f32 %v802, 0.0
      %v877 = vmax.f32 %v805, 0.0
      %v878 = vmax.f32 %v810, 0.0
      %v879 = vmax.f32 %v813, 0.0
      %v880 = vpack.c.bf16 %v817, %v816
      %v881 = vpack.c.bf16 %v819, %v818
      %v882 = vpack.c.bf16 %v821, %v820
      %v883 = vpack.c.bf16 %v823, %v822
      %v884 = vpack.c.bf16 %v825, %v824
      %v885 = vpack.c.bf16 %v827, %v826
      %v886 = vpack.c.bf16 %v829, %v828
      %v887 = vpack.c.bf16 %v831, %v830
      %v888 = vpack.c.bf16 %v833, %v832
      %v889 = vpack.c.bf16 %v835, %v834
      %v890 = vpack.c.bf16 %v837, %v836
      %v891 = vpack.c.bf16 %v839, %v838
      %v892 = vpack.c.bf16 %v841, %v840
      %v893 = vpack.c.bf16 %v843, %v842
      %v894 = vpack.c.bf16 %v845, %v844
      %v895 = vpack.c.bf16 %v847, %v846
      %v896 = vpack.c.bf16 %v849, %v848
      %v897 = vpack.c.bf16 %v851, %v850
      %v898 = vpack.c.bf16 %v853, %v852
      %v899 = vpack.c.bf16 %v855, %v854
      %v900 = vpack.c.bf16 %v857, %v856
      %v901 = vpack.c.bf16 %v859, %v858
      %v902 = vpack.c.bf16 %v861, %v860
      %v903 = vpack.c.bf16 %v863, %v862
      %v904 = vpack.c.bf16 %v865, %v864
      %v905 = vpack.c.bf16 %v867, %v866
      %v906 = vpack.c.bf16 %v869, %v868
      %v907 = vpack.c.bf16 %v871, %v870
      %v908 = vpack.c.bf16 %v873, %v872
      %v909 = vpack.c.bf16 %v875, %v874
      %v910 = vpack.c.bf16 %v877, %v876
      %v911 = vpack.c.bf16 %v879, %v878
      %v944 = vunpack.c.l.b16 %v880
      %v945 = vunpack.c.h.b16 %v880
      %v946 = vunpack.c.l.b16 %v881
      %v947 = vunpack.c.h.b16 %v881
      %v948 = vunpack.c.l.b16 %v882
      %v949 = vunpack.c.h.b16 %v882
      %v950 = vunpack.c.l.b16 %v883
      %v951 = vunpack.c.h.b16 %v883
      %v952 = vunpack.c.l.b16 %v884
      %v953 = vunpack.c.h.b16 %v884
      %v954 = vunpack.c.l.b16 %v885
      %v955 = vunpack.c.h.b16 %v885
      %v956 = vunpack.c.l.b16 %v886
      %v957 = vunpack.c.h.b16 %v886
      %v958 = vunpack.c.l.b16 %v887
      %v959 = vunpack.c.h.b16 %v887
      %v960 = vunpack.c.l.b16 %v888
      %v961 = vunpack.c.h.b16 %v888
      %v962 = vunpack.c.l.b16 %v889
      %v963 = vunpack.c.h.b16 %v889
      %v964 = vunpack.c.l.b16 %v890
      %v965 = vunpack.c.h.b16 %v890
      %v966 = vunpack.c.l.b16 %v891
      %v967 = vunpack.c.h.b16 %v891
      %v968 = vunpack.c.l.b16 %v892
      %v969 = vunpack.c.h.b16 %v892
      %v970 = vunpack.c.l.b16 %v893
      %v971 = vunpack.c.h.b16 %v893
      %v972 = vunpack.c.l.b16 %v894
      %v973 = vunpack.c.h.b16 %v894
      %v974 = vunpack.c.l.b16 %v895
      %v975 = vunpack.c.h.b16 %v895
      %v976 = vunpack.c.l.b16 %v896
      %v977 = vunpack.c.h.b16 %v896
      %v978 = vunpack.c.l.b16 %v897
      %v979 = vunpack.c.h.b16 %v897
      %v980 = vunpack.c.l.b16 %v898
      %v981 = vunpack.c.h.b16 %v898
      %v982 = vunpack.c.l.b16 %v899
      %v983 = vunpack.c.h.b16 %v899
      %v984 = vunpack.c.l.b16 %v900
      %v985 = vunpack.c.h.b16 %v900
      %v986 = vunpack.c.l.b16 %v901
      %v987 = vunpack.c.h.b16 %v901
      %v988 = vunpack.c.l.b16 %v902
      %v989 = vunpack.c.h.b16 %v902
      %v990 = vunpack.c.l.b16 %v903
      %v991 = vunpack.c.h.b16 %v903
      %v992 = vunpack.c.l.b16 %v904
      %v993 = vunpack.c.h.b16 %v904
      %v994 = vunpack.c.l.b16 %v905
      %v995 = vunpack.c.h.b16 %v905
      %v996 = vunpack.c.l.b16 %v906
      %v997 = vunpack.c.h.b16 %v906
      %v998 = vunpack.c.l.b16 %v907
      %v999 = vunpack.c.h.b16 %v907
      %v1000 = vunpack.c.l.b16 %v908
      %v1001 = vunpack.c.h.b16 %v908
      %v1002 = vunpack.c.l.b16 %v909
      %v1003 = vunpack.c.h.b16 %v909
      %v1004 = vunpack.c.l.b16 %v910
      %v1005 = vunpack.c.h.b16 %v910
      %v1006 = vunpack.c.l.b16 %v911
      %v1007 = vunpack.c.h.b16 %v911
      %v1008 = vpack.c.b16 %v944, %v944
      %v1009 = vpack.c.b16 %v945, %v945
      %v1010 = vpack.c.b16 %v946, %v946
      %v1011 = vpack.c.b16 %v947, %v947
      %v1012 = vpack.c.b16 %v948, %v948
      %v1013 = vpack.c.b16 %v949, %v949
      %v1014 = vpack.c.b16 %v950, %v950
      %v1015 = vpack.c.b16 %v951, %v951
      %v1016 = vpack.c.b16 %v952, %v952
      %v1017 = vpack.c.b16 %v953, %v953
      %v1018 = vpack.c.b16 %v954, %v954
      %v1019 = vpack.c.b16 %v955, %v955
      %v1020 = vpack.c.b16 %v956, %v956
      %v1021 = vpack.c.b16 %v957, %v957
      %v1022 = vpack.c.b16 %v958, %v958
      %v1023 = vpack.c.b16 %v959, %v959
      %v1024 = vpack.c.b16 %v960, %v960
      %v1025 = vpack.c.b16 %v961, %v961
      %v1026 = vpack.c.b16 %v962, %v962
      %v1027 = vpack.c.b16 %v963, %v963
      %v1028 = vpack.c.b16 %v964, %v964
      %v1029 = vpack.c.b16 %v965, %v965
      %v1030 = vpack.c.b16 %v966, %v966
      %v1031 = vpack.c.b16 %v967, %v967
      %v1032 = vpack.c.b16 %v968, %v968
      %v1033 = vpack.c.b16 %v969, %v969
      %v1034 = vpack.c.b16 %v970, %v970
      %v1035 = vpack.c.b16 %v971, %v971
      %v1036 = vpack.c.b16 %v972, %v972
      %v1037 = vpack.c.b16 %v973, %v973
      %v1038 = vpack.c.b16 %v974, %v974
      %v1039 = vpack.c.b16 %v975, %v975
      %v1040 = vpack.c.b16 %v976, %v976
      %v1041 = vpack.c.b16 %v977, %v977
      %v1042 = vpack.c.b16 %v978, %v978
      %v1043 = vpack.c.b16 %v979, %v979
      %v1044 = vpack.c.b16 %v980, %v980
      %v1045 = vpack.c.b16 %v981, %v981
      %v1046 = vpack.c.b16 %v982, %v982
      %v1047 = vpack.c.b16 %v983, %v983
      %v1048 = vpack.c.b16 %v984, %v984
      %v1049 = vpack.c.b16 %v985, %v985
      %v1050 = vpack.c.b16 %v986, %v986
      %v1051 = vpack.c.b16 %v987, %v987
      %v1052 = vpack.c.b16 %v988, %v988
      %v1053 = vpack.c.b16 %v989, %v989
      %v1054 = vpack.c.b16 %v990, %v990
      %v1055 = vpack.c.b16 %v991, %v991
      %v1056 = vpack.c.b16 %v992, %v992
      %v1057 = vpack.c.b16 %v993, %v993
      %v1058 = vpack.c.b16 %v994, %v994
      %v1059 = vpack.c.b16 %v995, %v995
      %v1060 = vpack.c.b16 %v996, %v996
      %v1061 = vpack.c.b16 %v997, %v997
      %v1062 = vpack.c.b16 %v998, %v998
      %v1063 = vpack.c.b16 %v999, %v999
      %v1064 = vpack.c.b16 %v1000, %v1000
      %v1065 = vpack.c.b16 %v1001, %v1001
      %v1066 = vpack.c.b16 %v1002, %v1002
      %v1067 = vpack.c.b16 %v1003, %v1003
      %v1068 = vpack.c.b16 %v1004, %v1004
      %v1069 = vpack.c.b16 %v1005, %v1005
      %v1070 = vpack.c.b16 %v1006, %v1006
      %v1071 = vpack.c.b16 %v1007, %v1007
      %vm1136 = vcmask 257024
      %1137 = vst.msk [vmem:[%s172] sm:$0xf] %vm1136, %v1008
      %1138 = vst.msk [vmem:[%s172 + $0x4] sm:$0xf] %vm1136, %v1009
      %1139 = vst.msk [vmem:[%s172 + $0x8] sm:$0xf] %vm1136, %v1010
      %1140 = vst.msk [vmem:[%s172 + $0xc] sm:$0xf] %vm1136, %v1011
      %1141 = vst.msk [vmem:[%s172 + $0x10] sm:$0xf] %vm1136, %v1012
      %1142 = vst.msk [vmem:[%s172 + $0x14] sm:$0xf] %vm1136, %v1013
      %1143 = vst.msk [vmem:[%s172 + $0x18] sm:$0xf] %vm1136, %v1014
      %1144 = vst.msk [vmem:[%s172 + $0x1c] sm:$0xf] %vm1136, %v1015
      %1145 = vst.msk [vmem:[%s172 + $0x20] sm:$0xf] %vm1136, %v1016
      %1146 = vst.msk [vmem:[%s172 + $0x24] sm:$0xf] %vm1136, %v1017
      %1147 = vst.msk [vmem:[%s172 + $0x28] sm:$0xf] %vm1136, %v1018
      %1148 = vst.msk [vmem:[%s172 + $0x2c] sm:$0xf] %vm1136, %v1019
      %1149 = vst.msk [vmem:[%s172 + $0x30] sm:$0xf] %vm1136, %v1020
      %1150 = vst.msk [vmem:[%s172 + $0x34] sm:$0xf] %vm1136, %v1021
      %1151 = vst.msk [vmem:[%s172 + $0x38] sm:$0xf] %vm1136, %v1022
      %1152 = vst.msk [vmem:[%s172 + $0x3c] sm:$0xf] %vm1136, %v1023
      %1153 = vst.msk [vmem:[%s172 + $0x40] sm:$0xf] %vm1136, %v1024
      %1154 = vst.msk [vmem:[%s172 + $0x44] sm:$0xf] %vm1136, %v1025
      %1155 = vst.msk [vmem:[%s172 + $0x48] sm:$0xf] %vm1136, %v1026
      %1156 = vst.msk [vmem:[%s172 + $0x4c] sm:$0xf] %vm1136, %v1027
      %1157 = vst.msk [vmem:[%s172 + $0x50] sm:$0xf] %vm1136, %v1028
      %1158 = vst.msk [vmem:[%s172 + $0x54] sm:$0xf] %vm1136, %v1029
      %1159 = vst.msk [vmem:[%s172 + $0x58] sm:$0xf] %vm1136, %v1030
      %1160 = vst.msk [vmem:[%s172 + $0x5c] sm:$0xf] %vm1136, %v1031
      %1161 = vst.msk [vmem:[%s172 + $0x60] sm:$0xf] %vm1136, %v1032
      %1162 = vst.msk [vmem:[%s172 + $0x64] sm:$0xf] %vm1136, %v1033
      %1163 = vst.msk [vmem:[%s172 + $0x68] sm:$0xf] %vm1136, %v1034
      %1164 = vst.msk [vmem:[%s172 + $0x6c] sm:$0xf] %vm1136, %v1035
      %1165 = vst.msk [vmem:[%s172 + $0x70] sm:$0xf] %vm1136, %v1036
      %1166 = vst.msk [vmem:[%s172 + $0x74] sm:$0xf] %vm1136, %v1037
      %1167 = vst.msk [vmem:[%s172 + $0x78] sm:$0xf] %vm1136, %v1038
      %1168 = vst.msk [vmem:[%s172 + $0x7c] sm:$0xf] %vm1136, %v1039
      %1169 = vst.msk [vmem:[%s172 + $0x80] sm:$0xf] %vm1136, %v1040
      %1170 = vst.msk [vmem:[%s172 + $0x84] sm:$0xf] %vm1136, %v1041
      %1171 = vst.msk [vmem:[%s172 + $0x88] sm:$0xf] %vm1136, %v1042
      %1172 = vst.msk [vmem:[%s172 + $0x8c] sm:$0xf] %vm1136, %v1043
      %1173 = vst.msk [vmem:[%s172 + $0x90] sm:$0xf] %vm1136, %v1044
      %1174 = vst.msk [vmem:[%s172 + $0x94] sm:$0xf] %vm1136, %v1045
      %1175 = vst.msk [vmem:[%s172 + $0x98] sm:$0xf] %vm1136, %v1046
      %1176 = vst.msk [vmem:[%s172 + $0x9c] sm:$0xf] %vm1136, %v1047
      %1177 = vst.msk [vmem:[%s172 + $0xa0] sm:$0xf] %vm1136, %v1048
      %1178 = vst.msk [vmem:[%s172 + $0xa4] sm:$0xf] %vm1136, %v1049
      %1179 = vst.msk [vmem:[%s172 + $0xa8] sm:$0xf] %vm1136, %v1050
      %1180 = vst.msk [vmem:[%s172 + $0xac] sm:$0xf] %vm1136, %v1051
      %1181 = vst.msk [vmem:[%s172 + $0xb0] sm:$0xf] %vm1136, %v1052
      %1182 = vst.msk [vmem:[%s172 + $0xb4] sm:$0xf] %vm1136, %v1053
      %1183 = vst.msk [vmem:[%s172 + $0xb8] sm:$0xf] %vm1136, %v1054
      %1184 = vst.msk [vmem:[%s172 + $0xbc] sm:$0xf] %vm1136, %v1055
      %1185 = vst.msk [vmem:[%s172 + $0xc0] sm:$0xf] %vm1136, %v1056
      %1186 = vst.msk [vmem:[%s172 + $0xc4] sm:$0xf] %vm1136, %v1057
      %1187 = vst.msk [vmem:[%s172 + $0xc8] sm:$0xf] %vm1136, %v1058
      %1188 = vst.msk [vmem:[%s172 + $0xcc] sm:$0xf] %vm1136, %v1059
      %1189 = vst.msk [vmem:[%s172 + $0xd0] sm:$0xf] %vm1136, %v1060
      %1190 = vst.msk [vmem:[%s172 + $0xd4] sm:$0xf] %vm1136, %v1061
      %1191 = vst.msk [vmem:[%s172 + $0xd8] sm:$0xf] %vm1136, %v1062
      %1192 = vst.msk [vmem:[%s172 + $0xdc] sm:$0xf] %vm1136, %v1063
      %1193 = vst.msk [vmem:[%s172 + $0xe0] sm:$0xf] %vm1136, %v1064
      %1194 = vst.msk [vmem:[%s172 + $0xe4] sm:$0xf] %vm1136, %v1065
      %1195 = vst.msk [vmem:[%s172 + $0xe8] sm:$0xf] %vm1136, %v1066
      %1196 = vst.msk [vmem:[%s172 + $0xec] sm:$0xf] %vm1136, %v1067
      %1197 = vst.msk [vmem:[%s172 + $0xf0] sm:$0xf] %vm1136, %v1068
      %1198 = vst.msk [vmem:[%s172 + $0xf4] sm:$0xf] %vm1136, %v1069
      %1199 = vst.msk [vmem:[%s172 + $0xf8] sm:$0xf] %vm1136, %v1070
      %1200 = vst.msk [vmem:[%s172 + $0xfc] sm:$0xf] %vm1136, %v1071
      %s1201 = smul.u32 64, %s14
      %p1202 = scmp.lt.s32.totalorder %s1201, 447
      %s1203 = scalar_select %p1202, %s1201, 447
      %s1204 = smul.addr %s1203, 4
      %s1205 = scalar_lea.vmem %s3, %s1204
      // Predicated region
      $region33: #{value_net_forward.6} parent=31 // pred_check
        %p1206 = pneg %p100
      $region34: #{value_net_forward.6} parent=31 // pred_check_branch
        %1208 = sbr.rel (%p1206) target = $region36
      $region35: #{value_net_forward.6} parent=31 // pred_region
        %s1209 = smul.u32 64, %s14
      $region36: #{value_net_forward.6} parent=31 // pred_fallthru
        _
    $region32: #{value_net_forward.6} parent=5 // pred_fallthru
      _
    %p1210 = scmp.le.s32.totalorder 2, %s9
    // Predicated region
    $region37: #{value_net_forward.6} parent=5 // pred_check
      %p1211 = pneg %p1210
    $region38: #{value_net_forward.6} parent=5 // pred_check_branch
      %1213 = sbr.rel (%p1211) target = $region40
    $region39: #{value_net_forward.6} parent=5 // pred_region
      %s1214 = ssub.s32 %s9, 2
      // Predicated region
      $region41: #{value_net_forward.6} parent=39 // pred_check
        %p1215 = pneg %p106
      $region42: #{value_net_forward.6} parent=39 // pred_check_branch
        %1217 = sbr.rel (%p1215) target = $region44
      $region43: #{value_net_forward.6} parent=39 // pred_region
        %s1218 = smul.u32 64, %s15
        %p1219 = scmp.lt.s32.totalorder %s1218, 447
        %s1220 = scalar_select %p1219, %s1218, 447
        %s1221 = smul.addr %s1220, 4
        %s1222 = scalar_lea.vmem %s3, %s1221
      $region44: #{value_net_forward.6} parent=39 // pred_fallthru
        _
    $region40: #{value_net_forward.6} parent=5 // pred_fallthru
      _
  $region6: #{value_net_forward.6} parent=0 // loop_footer
    %s13 = sadd.s32 1, %s9
  $region7: #{value_net_forward.6} parent=0 // loop_footer_branch
    %8 = sbr.rel target = $region3
  $region8: #{value_net_forward.6} parent=0 // loop_exit
    _

// kernel: value_net_forward.7
$region0: #{value_net_forward.7}
  #allocation0 [shape = 'u32[]', space=smem, size = 0x4, offset = 0x4, fixed_abs, tag = 'smem constant byte address 0x4 - core index']
  #allocation1 [shape = 'u32[144,128]{1,0:T(1,128)}', space=vmem, size = 0x12000, scoped, tag = 'internal scratch']
  %s0 = inlined_call_operand.vmem [shape: bf16[896,288], index: 0, kind: input, shape index: {}]
  %s1 = inlined_call_operand.vmem [shape: bf16[288,32], index: 1, kind: input, shape index: {}]
  %s2 = inlined_call_operand.vmem [shape: f32[1,32], index: 2, kind: input, shape index: {}]
  %s3 = inlined_call_operand.vmem [shape: bf16[896,32], index: 3, kind: output, shape index: {}]
  %s4 = sld [smem:[#allocation0]]
  $region45: #{value_net_forward.7} parent=0
    _
  %s6 = ssub.s32 1, %s4
  %s7 = scalar_select 0, %s6, %s4
  loop: start=0, step=1, limit=4
  $region2: #{value_net_forward.7} parent=0 // loop_pre_header
    _
  $region3: #{value_net_forward.7} parent=0 // loop_header
    %s9 = sphi 0, %s13
    %p10 = scmp.ge.s32.totalorder %s9, 4
    %s19 = sphi 0, %s21
    %s22 = sphi 0, %s19
    %s23 = sphi 0, %s22
    %s39 = sphi 0, %s23
    %s43 = sphi 0, %s43
    %s45 = sphi 0, %s43
    %s46 = sphi 0, %s45
    %s60 = sphi 0, %s46
    %s64 = sphi 0, %s64
    %s66 = sphi 0, %s64
    %s67 = sphi 0, %s66
    %s81 = sphi 0, %s67
    %s87 = sphi 0, %s89
    %s90 = sphi 0, %s87
    %s91 = sphi 0, %s90
    %s107 = sphi 0, %s91
  $region4: #{value_net_forward.7} parent=0 // loop_header_branch
    %12 = sbr.rel (%p10) target = $region8
  $region5: #{value_net_forward.7} parent=0 // loop_body
    %s14 = ssub.s32 %s9, 1
    %s15 = ssub.s32 %s9, 2
    %s16 = sadd.s32 %s9, 1
    %s17 = ssub.s32 %s9, %s16
    %p18 = scmp.eq.s32.totalorder %s17, 0
    %s20 = sadd.s32 %s19, 1
    %s21 = scalar_select %p18, %s19, %s20
    %p24 = pneg %p18
    %p25 = scmp.eq.s32.totalorder %s9, 1
    %p26 = por %p24, %p25
    %p27 = scmp.ne.s32.totalorder %s19, %s22
    %p28 = scmp.eq.s32.totalorder %s9, 0
    %p29 = por %p27, %p28
    %p30 = scmp.ne.s32.totalorder %s19, %s22
    %p31 = scmp.eq.s32.totalorder %s14, 1
    %p32 = por %p30, %p31
    %p33 = scmp.ne.s32.totalorder %s22, %s23
    %p34 = scmp.eq.s32.totalorder %s14, 0
    %p35 = por %p33, %p34
    %p36 = scmp.ne.s32.totalorder %s22, %s23
    %p37 = scmp.eq.s32.totalorder %s15, 1
    %p38 = por %p36, %p37
    %p40 = scmp.ne.s32.totalorder %s23, %s39
    %p41 = scmp.eq.s32.totalorder %s15, 0
    %p42 = por %p40, %p41
    %s44 = sadd.s32 %s43, 1
    %p47 = scmp.eq.s32.totalorder %s9, 1
    %p48 = scmp.ne.s32.totalorder %s43, %s45
    %p49 = scmp.eq.s32.totalorder %s9, 0
    %p50 = por %p48, %p49
    %p51 = scmp.ne.s32.totalorder %s43, %s45
    %p52 = scmp.eq.s32.totalorder %s14, 1
    %p53 = por %p51, %p52
    %p54 = scmp.ne.s32.totalorder %s45, %s46
    %p55 = scmp.eq.s32.totalorder %s14, 0
    %p56 = por %p54, %p55
    %p57 = scmp.ne.s32.totalorder %s45, %s46
    %p58 = scmp.eq.s32.totalorder %s15, 1
    %p59 = por %p57, %p58
    %p61 = scmp.ne.s32.totalorder %s46, %s60
    %p62 = scmp.eq.s32.totalorder %s15, 0
    %p63 = por %p61, %p62
    %s65 = sadd.s32 %s64, 1
    %p68 = scmp.eq.s32.totalorder %s9, 1
    %p69 = scmp.ne.s32.totalorder %s64, %s66
    %p70 = scmp.eq.s32.totalorder %s9, 0
    %p71 = por %p69, %p70
    %p72 = scmp.ne.s32.totalorder %s64, %s66
    %p73 = scmp.eq.s32.totalorder %s14, 1
    %p74 = por %p72, %p73
    %p75 = scmp.ne.s32.totalorder %s66, %s67
    %p76 = scmp.eq.s32.totalorder %s14, 0
    %p77 = por %p75, %p76
    %p78 = scmp.ne.s32.totalorder %s66, %s67
    %p79 = scmp.eq.s32.totalorder %s15, 1
    %p80 = por %p78, %p79
    %p82 = scmp.ne.s32.totalorder %s67, %s81
    %p83 = scmp.eq.s32.totalorder %s15, 0
    %p84 = por %p82, %p83
    %s85 = ssub.s32 %s9, %s16
    %p86 = scmp.eq.s32.totalorder %s85, 0
    %s88 = sadd.s32 %s87, 1
    %s89 = scalar_select %p86, %s87, %s88
    %p92 = pneg %p86
    %p93 = scmp.eq.s32.totalorder %s9, 1
    %p94 = por %p92, %p93
    %p95 = scmp.ne.s32.totalorder %s87, %s90
    %p96 = scmp.eq.s32.totalorder %s9, 0
    %p97 = por %p95, %p96
    %p98 = scmp.ne.s32.totalorder %s87, %s90
    %p99 = scmp.eq.s32.totalorder %s14, 1
    %p100 = por %p98, %p99
    %p101 = scmp.ne.s32.totalorder %s90, %s91
    %p102 = scmp.eq.s32.totalorder %s14, 0
    %p103 = por %p101, %p102
    %p104 = scmp.ne.s32.totalorder %s90, %s91
    %p105 = scmp.eq.s32.totalorder %s15, 1
    %p106 = por %p104, %p105
    %p108 = scmp.ne.s32.totalorder %s91, %s107
    %p109 = scmp.eq.s32.totalorder %s15, 0
    %p110 = por %p108, %p109
    %p111 = scmp.le.s32.totalorder 1, %s9
    %p112 = scmp.lt.s32.totalorder %s9, 3
    %p113 = pnand %p111, %p112
    %p114 = pneg %p113
    // Predicated region
    $region9: #{value_net_forward.7} parent=5 // pred_check
      _
    $region10: #{value_net_forward.7} parent=5 // pred_check_branch
      %116 = sbr.rel (%p113) target = $region12
    $region11: #{value_net_forward.7} parent=5 // pred_region
      %s117 = ssub.s32 %s9, 1
      // Predicated region
      $region13: #{value_net_forward.7} parent=11 // pred_check
        %p118 = pneg %p56
      $region14: #{value_net_forward.7} parent=11 // pred_check_branch
        %120 = sbr.rel (%p118) target = $region16
      $region15: #{value_net_forward.7} parent=11 // pred_region
        _
      $region16: #{value_net_forward.7} parent=11 // pred_fallthru
        _
      // Predicated region
      $region17: #{value_net_forward.7} parent=11 // pred_check
        %p121 = pneg %p77
      $region18: #{value_net_forward.7} parent=11 // pred_check_branch
        %123 = sbr.rel (%p121) target = $region20
      $region19: #{value_net_forward.7} parent=11 // pred_region
        _
      $region20: #{value_net_forward.7} parent=11 // pred_fallthru
        _
    $region12: #{value_net_forward.7} parent=5 // pred_fallthru
      _
    %p124 = scmp.lt.s32.totalorder %s9, 2
    // Predicated region
    $region21: #{value_net_forward.7} parent=5 // pred_check
      %p125 = pneg %p124
    $region22: #{value_net_forward.7} parent=5 // pred_check_branch
      %127 = sbr.rel (%p125) target = $region24
    $region23: #{value_net_forward.7} parent=5 // pred_region
      // Predicated region
      $region25: #{value_net_forward.7} parent=23 // pred_check
        %p128 = pneg %p29
      $region26: #{value_net_forward.7} parent=23 // pred_check_branch
        %130 = sbr.rel (%p128) target = $region28
      $region27: #{value_net_forward.7} parent=23 // pred_region
        %s131 = smul.u32 56, %s9
        %p132 = scmp.lt.s32.totalorder %s131, 111
        %s133 = scalar_select %p132, %s131, 111
        %s134 = smul.addr %s133, 3
        %s135 = smul.addr %s134, 4
        %s136 = scalar_lea.vmem %s0, %s135
        %s137 = smul.u32 56, %s9
      $region28: #{value_net_forward.7} parent=23 // pred_fallthru
        _
    $region24: #{value_net_forward.7} parent=5 // pred_fallthru
      _
    %p138 = scmp.le.s32.totalorder 1, %s9
    %p139 = scmp.lt.s32.totalorder %s9, 3
    %p140 = pnand %p138, %p139
    %p141 = pneg %p140
    // Predicated region
    $region29: #{value_net_forward.7} parent=5 // pred_check
      _
    $region30: #{value_net_forward.7} parent=5 // pred_check_branch
      %143 = sbr.rel (%p140) target = $region32
    $region31: #{value_net_forward.7} parent=5 // pred_region
      %s144 = ssub.s32 %s9, 1
      %s145 = smul.u32 56, %s14
      %p146 = scmp.lt.s32.totalorder %s145, 111
      %s147 = scalar_select %p146, %s145, 111
      %s148 = smul.addr %s147, 3
      %s149 = smul.addr %s148, 4
      %s150 = scalar_lea.vmem %s0, %s149
      %p151 = pneg %p35
      %p152 = pneg %p32
      %p153 = pneg %p56
      %p154 = pneg %p53
      %p155 = pneg %p77
      %p156 = pneg %p74
      %p157 = pneg %p103
      %p158 = pneg %p100
      %s159 = smul.u32 56, %s14
      %p160 = scmp.lt.s32.totalorder %s159, 111
      %s161 = scalar_select %p160, %s159, 111
      %s162 = smul.addr %s161, 4
      %s163 = scalar_lea.vmem %s3, %s162
      %s164 = smul.u32 56, %s14
      %p165 = scmp.lt.s32.totalorder %s164, 111
      %s166 = scalar_select %p165, %s164, 111
      %s167 = smul.addr %s166, 3
      %s168 = smul.addr %s167, 4
      %s169 = scalar_lea.vmem %s0, %s168
      %s170 = smul.u32 56, %s14
      %s171 = smul.u32 56, %s14
      %p172 = scmp.lt.s32.totalorder %s171, 111
      %s173 = scalar_select %p172, %s171, 111
      %s174 = smul.addr %s173, 4
      %s175 = scalar_lea.vmem %s3, %s174
      %s176 = smul.u32 56, %s14
      %v178 = vld [vmem:[%s169] sm:$0xff]
      %v179 = vld [vmem:[%s169 + $0x8] sm:$0xf]
      %v180 = vld [vmem:[%s169 + $0xc] sm:$0xff]
      %v181 = vld [vmem:[%s169 + $0x14] sm:$0xf]
      %v182 = vld [vmem:[%s169 + $0x18] sm:$0xff]
      %v183 = vld [vmem:[%s169 + $0x20] sm:$0xf]
      %v184 = vld [vmem:[%s169 + $0x24] sm:$0xff]
      %v185 = vld [vmem:[%s169 + $0x2c] sm:$0xf]
      %v186 = vld [vmem:[%s169 + $0x30] sm:$0xff]
      %v187 = vld [vmem:[%s169 + $0x38] sm:$0xf]
      %v188 = vld [vmem:[%s169 + $0x3c] sm:$0xff]
      %v189 = vld [vmem:[%s169 + $0x44] sm:$0xf]
      %v190 = vld [vmem:[%s169 + $0x48] sm:$0xff]
      %v191 = vld [vmem:[%s169 + $0x50] sm:$0xf]
      %v192 = vld [vmem:[%s169 + $0x54] sm:$0xff]
      %v193 = vld [vmem:[%s169 + $0x5c] sm:$0xf]
      %v194 = vld [vmem:[%s169 + $0x60] sm:$0xff]
      %v195 = vld [vmem:[%s169 + $0x68] sm:$0xf]
      %v196 = vld [vmem:[%s169 + $0x6c] sm:$0xff]
      %v197 = vld [vmem:[%s169 + $0x74] sm:$0xf]
      %v198 = vld [vmem:[%s169 + $0x78] sm:$0xff]
      %v199 = vld [vmem:[%s169 + $0x80] sm:$0xf]
      %v200 = vld [vmem:[%s169 + $0x84] sm:$0xff]
      %v201 = vld [vmem:[%s169 + $0x8c] sm:$0xf]
      %v202 = vld [vmem:[%s169 + $0x90] sm:$0xff]
      %v203 = vld [vmem:[%s169 + $0x98] sm:$0xf]
      %v204 = vld [vmem:[%s169 + $0x9c] sm:$0xff]
      %v205 = vld [vmem:[%s169 + $0xa4] sm:$0xf]
      %v206 = vld [vmem:[%s169 + $0xa8] sm:$0xff]
      %v207 = vld [vmem:[%s169 + $0xb0] sm:$0xf]
      %v208 = vld [vmem:[%s169 + $0xb4] sm:$0xff]
      %v209 = vld [vmem:[%s169 + $0xbc] sm:$0xf]
      %v210 = vld [vmem:[%s169 + $0xc0] sm:$0xff]
      %v211 = vld [vmem:[%s169 + $0xc8] sm:$0xf]
      %v212 = vld [vmem:[%s169 + $0xcc] sm:$0xff]
      %v213 = vld [vmem:[%s169 + $0xd4] sm:$0xf]
      %v214 = vld [vmem:[%s169 + $0xd8] sm:$0xff]
      %v215 = vld [vmem:[%s169 + $0xe0] sm:$0xf]
      %v216 = vld [vmem:[%s169 + $0xe4] sm:$0xff]
      %v217 = vld [vmem:[%s169 + $0xec] sm:$0xf]
      %v218 = vld [vmem:[%s169 + $0xf0] sm:$0xff]
      %v219 = vld [vmem:[%s169 + $0xf8] sm:$0xf]
      %v220 = vld [vmem:[%s169 + $0xfc] sm:$0xff]
      %v221 = vld [vmem:[%s169 + $0x104] sm:$0xf]
      %v222 = vld [vmem:[%s169 + $0x108] sm:$0xff]
      %v223 = vld [vmem:[%s169 + $0x110] sm:$0xf]
      %v224 = vld [vmem:[%s169 + $0x114] sm:$0xff]
      %v225 = vld [vmem:[%s169 + $0x11c] sm:$0xf]
      %v226 = vld [vmem:[%s169 + $0x120] sm:$0xff]
      %v227 = vld [vmem:[%s169 + $0x128] sm:$0xf]
      %v228 = vld [vmem:[%s169 + $0x12c] sm:$0xff]
      %v229 = vld [vmem:[%s169 + $0x134] sm:$0xf]
      %v230 = vld [vmem:[%s169 + $0x138] sm:$0xff]
      %v231 = vld [vmem:[%s169 + $0x140] sm:$0xf]
      %v232 = vld [vmem:[%s169 + $0x144] sm:$0xff]
      %v233 = vld [vmem:[%s169 + $0x14c] sm:$0xf]
      %v234 = vld [vmem:[%s169 + $0x150] sm:$0xff]
      %v235 = vld [vmem:[%s169 + $0x158] sm:$0xf]
      %v236 = vld [vmem:[%s169 + $0x15c] sm:$0xff]
      %v237 = vld [vmem:[%s169 + $0x164] sm:$0xf]
      %v238 = vld [vmem:[%s169 + $0x168] sm:$0xff]
      %v239 = vld [vmem:[%s169 + $0x170] sm:$0xf]
      %v240 = vld [vmem:[%s169 + $0x174] sm:$0xff]
      %v241 = vld [vmem:[%s169 + $0x17c] sm:$0xf]
      %v242 = vld [vmem:[%s169 + $0x180] sm:$0xff]
      %v243 = vld [vmem:[%s169 + $0x188] sm:$0xf]
      %v244 = vld [vmem:[%s169 + $0x18c] sm:$0xff]
      %v245 = vld [vmem:[%s169 + $0x194] sm:$0xf]
      %v246 = vld [vmem:[%s169 + $0x198] sm:$0xff]
      %v247 = vld [vmem:[%s169 + $0x1a0] sm:$0xf]
      %v248 = vld [vmem:[%s169 + $0x1a4] sm:$0xff]
      %v249 = vld [vmem:[%s169 + $0x1ac] sm:$0xf]
      %v250 = vld [vmem:[%s169 + $0x1b0] sm:$0xff]
      %v251 = vld [vmem:[%s169 + $0x1b8] sm:$0xf]
      %v252 = vld [vmem:[%s169 + $0x1bc] sm:$0xff]
      %v253 = vld [vmem:[%s169 + $0x1c4] sm:$0xf]
      %v254 = vld [vmem:[%s169 + $0x1c8] sm:$0xff]
      %v255 = vld [vmem:[%s169 + $0x1d0] sm:$0xf]
      %v256 = vld [vmem:[%s169 + $0x1d4] sm:$0xff]
      %v257 = vld [vmem:[%s169 + $0x1dc] sm:$0xf]
      %v258 = vld [vmem:[%s169 + $0x1e0] sm:$0xff]
      %v259 = vld [vmem:[%s169 + $0x1e8] sm:$0xf]
      %v260 = vld [vmem:[%s169 + $0x1ec] sm:$0xff]
      %v261 = vld [vmem:[%s169 + $0x1f4] sm:$0xf]
      %v262 = vld [vmem:[%s169 + $0x1f8] sm:$0xff]
      %v263 = vld [vmem:[%s169 + $0x200] sm:$0xf]
      %v264 = vld [vmem:[%s169 + $0x204] sm:$0xff]
      %v265 = vld [vmem:[%s169 + $0x20c] sm:$0xf]
      %v266 = vld [vmem:[%s169 + $0x210] sm:$0xff]
      %v267 = vld [vmem:[%s169 + $0x218] sm:$0xf]
      %v268 = vld [vmem:[%s169 + $0x21c] sm:$0xff]
      %v269 = vld [vmem:[%s169 + $0x224] sm:$0xf]
      %v270 = vld [vmem:[%s169 + $0x228] sm:$0xff]
      %v271 = vld [vmem:[%s169 + $0x230] sm:$0xf]
      %v272 = vld [vmem:[%s169 + $0x234] sm:$0xff]
      %v273 = vld [vmem:[%s169 + $0x23c] sm:$0xf]
      %v274 = vld [vmem:[%s169 + $0x240] sm:$0xff]
      %v275 = vld [vmem:[%s169 + $0x248] sm:$0xf]
      %v276 = vld [vmem:[%s169 + $0x24c] sm:$0xff]
      %v277 = vld [vmem:[%s169 + $0x254] sm:$0xf]
      %v278 = vld [vmem:[%s169 + $0x258] sm:$0xff]
      %v279 = vld [vmem:[%s169 + $0x260] sm:$0xf]
      %v280 = vld [vmem:[%s169 + $0x264] sm:$0xff]
      %v281 = vld [vmem:[%s169 + $0x26c] sm:$0xf]
      %v282 = vld [vmem:[%s169 + $0x270] sm:$0xff]
      %v283 = vld [vmem:[%s169 + $0x278] sm:$0xf]
      %v284 = vld [vmem:[%s169 + $0x27c] sm:$0xff]
      %v285 = vld [vmem:[%s169 + $0x284] sm:$0xf]
      %v286 = vld [vmem:[%s169 + $0x288] sm:$0xff]
      %v287 = vld [vmem:[%s169 + $0x290] sm:$0xf]
      %v288 = vld [vmem:[%s169 + $0x294] sm:$0xff]
      %v289 = vld [vmem:[%s169 + $0x29c] sm:$0xf]
      %v290 = vld [vmem:[%s1] sm:$0xf]
      %v291 = vld [vmem:[%s1 + $0x4] sm:$0xf]
      %v292 = vld [vmem:[%s1 + $0x8] sm:$0xf]
      %v293 = vld [vmem:[%s1 + $0xc] sm:$0xf]
      %v294 = vld [vmem:[%s1 + $0x10] sm:$0xf]
      %v295 = vld [vmem:[%s1 + $0x14] sm:$0xf]
      %v296 = vld [vmem:[%s1 + $0x18] sm:$0xf]
      %v297 = vld [vmem:[%s1 + $0x1c] sm:$0xf]
      %v298 = vld [vmem:[%s1 + $0x20] sm:$0xf]
      %v299 = vld [vmem:[%s1 + $0x24] sm:$0xf]
      %v300 = vld [vmem:[%s1 + $0x28] sm:$0xf]
      %v301 = vld [vmem:[%s1 + $0x2c] sm:$0xf]
      %v302 = vld [vmem:[%s1 + $0x30] sm:$0xf]
      %v303 = vld [vmem:[%s1 + $0x34] sm:$0xf]
      %v304 = vld [vmem:[%s1 + $0x38] sm:$0xf]
      %v305 = vld [vmem:[%s1 + $0x3c] sm:$0xf]
      %v306 = vld [vmem:[%s1 + $0x40] sm:$0xf]
      %v307 = vld [vmem:[%s1 + $0x44] sm:$0xf]
      %v308 = vld [vmem:[%s1 + $0x48] sm:$0xf]
      %v309 = vld [vmem:[%s1 + $0x4c] sm:$0xf]
      %v310 = vld [vmem:[%s1 + $0x50] sm:$0xf]
      %v311 = vld [vmem:[%s1 + $0x54] sm:$0xf]
      %v312 = vld [vmem:[%s1 + $0x58] sm:$0xf]
      %v313 = vld [vmem:[%s1 + $0x5c] sm:$0xf]
      %v314 = vld [vmem:[%s1 + $0x60] sm:$0xf]
      %v315 = vld [vmem:[%s1 + $0x64] sm:$0xf]
      %v316 = vld [vmem:[%s1 + $0x68] sm:$0xf]
      %v317 = vld [vmem:[%s1 + $0x6c] sm:$0xf]
      %v318 = vld [vmem:[%s1 + $0x70] sm:$0xf]
      %v319 = vld [vmem:[%s1 + $0x74] sm:$0xf]
      %v320 = vld [vmem:[%s1 + $0x78] sm:$0xf]
      %v321 = vld [vmem:[%s1 + $0x7c] sm:$0xf]
      %v322 = vld [vmem:[%s1 + $0x80] sm:$0xf]
      %v323 = vld [vmem:[%s1 + $0x84] sm:$0xf]
      %v324 = vld [vmem:[%s1 + $0x88] sm:$0xf]
      %v325 = vld [vmem:[%s1 + $0x8c] sm:$0xf]
      %v326 = vld [vmem:[%s2] sm:$0x1]
      %v328 = vlaneseq
      %v329 = vshrl.u32 %v328, 7
      %v330 = vsub.s32 0, %v329
      %v331 = vrot.slane %v326, %v330
      %v445 = vunpack.c.l.b16 %v178
      %v446 = vunpack.c.h.b16 %v178
      %v447 = vunpack.c.l.b16 %v179
      %v448 = vunpack.c.l.b16 %v180
      %v449 = vunpack.c.h.b16 %v180
      %v450 = vunpack.c.l.b16 %v181
      %v451 = vunpack.c.l.b16 %v182
      %v452 = vunpack.c.h.b16 %v182
      %v453 = vunpack.c.l.b16 %v183
      %v454 = vunpack.c.l.b16 %v184
      %v455 = vunpack.c.h.b16 %v184
      %v456 = vunpack.c.l.b16 %v185
      %v457 = vunpack.c.l.b16 %v186
      %v458 = vunpack.c.h.b16 %v186
      %v459 = vunpack.c.l.b16 %v187
      %v460 = vunpack.c.l.b16 %v188
      %v461 = vunpack.c.h.b16 %v188
      %v462 = vunpack.c.l.b16 %v189
      %v463 = vunpack.c.l.b16 %v190
      %v464 = vunpack.c.h.b16 %v190
      %v465 = vunpack.c.l.b16 %v191
      %v466 = vunpack.c.l.b16 %v192
      %v467 = vunpack.c.h.b16 %v192
      %v468 = vunpack.c.l.b16 %v193
      %v469 = vunpack.c.l.b16 %v194
      %v470 = vunpack.c.h.b16 %v194
      %v471 = vunpack.c.l.b16 %v195
      %v472 = vunpack.c.l.b16 %v196
      %v473 = vunpack.c.h.b16 %v196
      %v474 = vunpack.c.l.b16 %v197
      %v475 = vunpack.c.l.b16 %v198
      %v476 = vunpack.c.h.b16 %v198
      %v477 = vunpack.c.l.b16 %v199
      %v478 = vunpack.c.l.b16 %v200
      %v479 = vunpack.c.h.b16 %v200
      %v480 = vunpack.c.l.b16 %v201
      %v481 = vunpack.c.l.b16 %v202
      %v482 = vunpack.c.h.b16 %v202
      %v483 = vunpack.c.l.b16 %v203
      %v484 = vunpack.c.l.b16 %v204
      %v485 = vunpack.c.h.b16 %v204
      %v486 = vunpack.c.l.b16 %v205
      %v487 = vunpack.c.l.b16 %v206
      %v488 = vunpack.c.h.b16 %v206
      %v489 = vunpack.c.l.b16 %v207
      %v490 = vunpack.c.l.b16 %v208
      %v491 = vunpack.c.h.b16 %v208
      %v492 = vunpack.c.l.b16 %v209
      %v493 = vunpack.c.l.b16 %v210
      %v494 = vunpack.c.h.b16 %v210
      %v495 = vunpack.c.l.b16 %v211
      %v496 = vunpack.c.l.b16 %v212
      %v497 = vunpack.c.h.b16 %v212
      %v498 = vunpack.c.l.b16 %v213
      %v499 = vunpack.c.l.b16 %v214
      %v500 = vunpack.c.h.b16 %v214
      %v501 = vunpack.c.l.b16 %v215
      %v502 = vunpack.c.l.b16 %v216
      %v503 = vunpack.c.h.b16 %v216
      %v504 = vunpack.c.l.b16 %v217
      %v505 = vunpack.c.l.b16 %v218
      %v506 = vunpack.c.h.b16 %v218
      %v507 = vunpack.c.l.b16 %v219
      %v508 = vunpack.c.l.b16 %v220
      %v509 = vunpack.c.h.b16 %v220
      %v510 = vunpack.c.l.b16 %v221
      %v511 = vunpack.c.l.b16 %v222
      %v512 = vunpack.c.h.b16 %v222
      %v513 = vunpack.c.l.b16 %v223
      %v514 = vunpack.c.l.b16 %v224
      %v515 = vunpack.c.h.b16 %v224
      %v516 = vunpack.c.l.b16 %v225
      %v517 = vunpack.c.l.b16 %v226
      %v518 = vunpack.c.h.b16 %v226
      %v519 = vunpack.c.l.b16 %v227
      %v520 = vunpack.c.l.b16 %v228
      %v521 = vunpack.c.h.b16 %v228
      %v522 = vunpack.c.l.b16 %v229
      %v523 = vunpack.c.l.b16 %v230
      %v524 = vunpack.c.h.b16 %v230
      %v525 = vunpack.c.l.b16 %v231
      %v526 = vunpack.c.l.b16 %v232
      %v527 = vunpack.c.h.b16 %v232
      %v528 = vunpack.c.l.b16 %v233
      %v529 = vunpack.c.l.b16 %v234
      %v530 = vunpack.c.h.b16 %v234
      %v531 = vunpack.c.l.b16 %v235
      %v532 = vunpack.c.l.b16 %v236
      %v533 = vunpack.c.h.b16 %v236
      %v534 = vunpack.c.l.b16 %v237
      %v535 = vunpack.c.l.b16 %v238
      %v536 = vunpack.c.h.b16 %v238
      %v537 = vunpack.c.l.b16 %v239
      %v538 = vunpack.c.l.b16 %v240
      %v539 = vunpack.c.h.b16 %v240
      %v540 = vunpack.c.l.b16 %v241
      %v541 = vunpack.c.l.b16 %v242
      %v542 = vunpack.c.h.b16 %v242
      %v543 = vunpack.c.l.b16 %v243
      %v544 = vunpack.c.l.b16 %v244
      %v545 = vunpack.c.h.b16 %v244
      %v546 = vunpack.c.l.b16 %v245
      %v547 = vunpack.c.l.b16 %v246
      %v548 = vunpack.c.h.b16 %v246
      %v549 = vunpack.c.l.b16 %v247
      %v550 = vunpack.c.l.b16 %v248
      %v551 = vunpack.c.h.b16 %v248
      %v552 = vunpack.c.l.b16 %v249
      %v553 = vunpack.c.l.b16 %v250
      %v554 = vunpack.c.h.b16 %v250
      %v555 = vunpack.c.l.b16 %v251
      %v556 = vunpack.c.l.b16 %v252
      %v557 = vunpack.c.h.b16 %v252
      %v558 = vunpack.c.l.b16 %v253
      %v559 = vunpack.c.l.b16 %v254
      %v560 = vunpack.c.h.b16 %v254
      %v561 = vunpack.c.l.b16 %v255
      %v562 = vunpack.c.l.b16 %v256
      %v563 = vunpack.c.h.b16 %v256
      %v564 = vunpack.c.l.b16 %v257
      %v565 = vunpack.c.l.b16 %v258
      %v566 = vunpack.c.h.b16 %v258
      %v567 = vunpack.c.l.b16 %v259
      %v568 = vunpack.c.l.b16 %v260
      %v569 = vunpack.c.h.b16 %v260
      %v570 = vunpack.c.l.b16 %v261
      %v571 = vunpack.c.l.b16 %v262
      %v572 = vunpack.c.h.b16 %v262
      %v573 = vunpack.c.l.b16 %v263
      %v574 = vunpack.c.l.b16 %v264
      %v575 = vunpack.c.h.b16 %v264
      %v576 = vunpack.c.l.b16 %v265
      %v577 = vunpack.c.l.b16 %v266
      %v578 = vunpack.c.h.b16 %v266
      %v579 = vunpack.c.l.b16 %v267
      %v580 = vunpack.c.l.b16 %v268
      %v581 = vunpack.c.h.b16 %v268
      %v582 = vunpack.c.l.b16 %v269
      %v583 = vunpack.c.l.b16 %v270
      %v584 = vunpack.c.h.b16 %v270
      %v585 = vunpack.c.l.b16 %v271
      %v586 = vunpack.c.l.b16 %v272
      %v587 = vunpack.c.h.b16 %v272
      %v588 = vunpack.c.l.b16 %v273
      %v589 = vunpack.c.l.b16 %v274
      %v590 = vunpack.c.h.b16 %v274
      %v591 = vunpack.c.l.b16 %v275
      %v592 = vunpack.c.l.b16 %v276
      %v593 = vunpack.c.h.b16 %v276
      %v594 = vunpack.c.l.b16 %v277
      %v595 = vunpack.c.l.b16 %v278
      %v596 = vunpack.c.h.b16 %v278
      %v597 = vunpack.c.l.b16 %v279
      %v598 = vunpack.c.l.b16 %v280
      %v599 = vunpack.c.h.b16 %v280
      %v600 = vunpack.c.l.b16 %v281
      %v601 = vunpack.c.l.b16 %v282
      %v602 = vunpack.c.h.b16 %v282
      %v603 = vunpack.c.l.b16 %v283
      %v604 = vunpack.c.l.b16 %v284
      %v605 = vunpack.c.h.b16 %v284
      %v606 = vunpack.c.l.b16 %v285
      %v607 = vunpack.c.l.b16 %v286
      %v608 = vunpack.c.h.b16 %v286
      %v609 = vunpack.c.l.b16 %v287
      %v610 = vunpack.c.l.b16 %v288
      %v611 = vunpack.c.h.b16 %v288
      %v612 = vunpack.c.l.b16 %v289
      %v613 = vpack.c.b16 %v448, %v445
      %v614 = vpack.c.b16 %v449, %v446
      %v615 = vpack.c.b16 %v450, %v447
      %v616 = vpack.c.b16 %v454, %v451
      %v617 = vpack.c.b16 %v455, %v452
      %v618 = vpack.c.b16 %v456, %v453
      %v619 = vpack.c.b16 %v460, %v457
      %v620 = vpack.c.b16 %v461, %v458
      %v621 = vpack.c.b16 %v462, %v459
      %v622 = vpack.c.b16 %v466, %v463
      %v623 = vpack.c.b16 %v467, %v464
      %v624 = vpack.c.b16 %v468, %v465
      %v625 = vpack.c.b16 %v472, %v469
      %v626 = vpack.c.b16 %v473, %v470
      %v627 = vpack.c.b16 %v474, %v471
      %v628 = vpack.c.b16 %v478, %v475
      %v629 = vpack.c.b16 %v479, %v476
      %v630 = vpack.c.b16 %v480, %v477
      %v631 = vpack.c.b16 %v484, %v481
      %v632 = vpack.c.b16 %v485, %v482
      %v633 = vpack.c.b16 %v486, %v483
      %v634 = vpack.c.b16 %v490, %v487
      %v635 = vpack.c.b16 %v491, %v488
      %v636 = vpack.c.b16 %v492, %v489
      %v637 = vpack.c.b16 %v496, %v493
      %v638 = vpack.c.b16 %v497, %v494
      %v639 = vpack.c.b16 %v498, %v495
      %v640 = vpack.c.b16 %v502, %v499
      %v641 = vpack.c.b16 %v503, %v500
      %v642 = vpack.c.b16 %v504, %v501
      %v643 = vpack.c.b16 %v508, %v505
      %v644 = vpack.c.b16 %v509, %v506
      %v645 = vpack.c.b16 %v510, %v507
      %v646 = vpack.c.b16 %v514, %v511
      %v647 = vpack.c.b16 %v515, %v512
      %v648 = vpack.c.b16 %v516, %v513
      %v649 = vpack.c.b16 %v520, %v517
      %v650 = vpack.c.b16 %v521, %v518
      %v651 = vpack.c.b16 %v522, %v519
      %v652 = vpack.c.b16 %v526, %v523
      %v653 = vpack.c.b16 %v527, %v524
      %v654 = vpack.c.b16 %v528, %v525
      %v655 = vpack.c.b16 %v532, %v529
      %v656 = vpack.c.b16 %v533, %v530
      %v657 = vpack.c.b16 %v534, %v531
      %v658 = vpack.c.b16 %v538, %v535
      %v659 = vpack.c.b16 %v539, %v536
      %v660 = vpack.c.b16 %v540, %v537
      %v661 = vpack.c.b16 %v544, %v541
      %v662 = vpack.c.b16 %v545, %v542
      %v663 = vpack.c.b16 %v546, %v543
      %v664 = vpack.c.b16 %v550, %v547
      %v665 = vpack.c.b16 %v551, %v548
      %v666 = vpack.c.b16 %v552, %v549
      %v667 = vpack.c.b16 %v556, %v553
      %v668 = vpack.c.b16 %v557, %v554
      %v669 = vpack.c.b16 %v558, %v555
      %v670 = vpack.c.b16 %v562, %v559
      %v671 = vpack.c.b16 %v563, %v560
      %v672 = vpack.c.b16 %v564, %v561
      %v673 = vpack.c.b16 %v568, %v565
      %v674 = vpack.c.b16 %v569, %v566
      %v675 = vpack.c.b16 %v570, %v567
      %v676 = vpack.c.b16 %v574, %v571
      %v677 = vpack.c.b16 %v575, %v572
      %v678 = vpack.c.b16 %v576, %v573
      %v679 = vpack.c.b16 %v580, %v577
      %v680 = vpack.c.b16 %v581, %v578
      %v681 = vpack.c.b16 %v582, %v579
      %v682 = vpack.c.b16 %v586, %v583
      %v683 = vpack.c.b16 %v587, %v584
      %v684 = vpack.c.b16 %v588, %v585
      %v685 = vpack.c.b16 %v592, %v589
      %v686 = vpack.c.b16 %v593, %v590
      %v687 = vpack.c.b16 %v594, %v591
      %v688 = vpack.c.b16 %v598, %v595
      %v689 = vpack.c.b16 %v599, %v596
      %v690 = vpack.c.b16 %v600, %v597
      %v691 = vpack.c.b16 %v604, %v601
      %v692 = vpack.c.b16 %v605, %v602
      %v693 = vpack.c.b16 %v606, %v603
      %v694 = vpack.c.b16 %v610, %v607
      %v695 = vpack.c.b16 %v611, %v608
      %v696 = vpack.c.b16 %v612, %v609
      %v789 = vunpack.c.l.b16 %v290
      %v790 = vunpack.c.l.b16 %v291
      %v791 = vunpack.c.l.b16 %v292
      %v792 = vunpack.c.l.b16 %v293
      %v793 = vunpack.c.l.b16 %v294
      %v794 = vunpack.c.l.b16 %v295
      %v795 = vunpack.c.l.b16 %v296
      %v796 = vunpack.c.l.b16 %v297
      %v797 = vunpack.c.l.b16 %v298
      %v798 = vunpack.c.l.b16 %v299
      %v799 = vunpack.c.l.b16 %v300
      %v800 = vunpack.c.l.b16 %v301
      %v801 = vunpack.c.l.b16 %v302
      %v802 = vunpack.c.l.b16 %v303
      %v803 = vunpack.c.l.b16 %v304
      %v804 = vunpack.c.l.b16 %v305
      %v805 = vunpack.c.l.b16 %v306
      %v806 = vunpack.c.l.b16 %v307
      %v807 = vunpack.c.l.b16 %v308
      %v808 = vunpack.c.l.b16 %v309
      %v809 = vunpack.c.l.b16 %v310
      %v810 = vunpack.c.l.b16 %v311
      %v811 = vunpack.c.l.b16 %v312
      %v812 = vunpack.c.l.b16 %v313
      %v813 = vunpack.c.l.b16 %v314
      %v814 = vunpack.c.l.b16 %v315
      %v815 = vunpack.c.l.b16 %v316
      %v816 = vunpack.c.l.b16 %v317
      %v817 = vunpack.c.l.b16 %v318
      %v818 = vunpack.c.l.b16 %v319
      %v819 = vunpack.c.l.b16 %v320
      %v820 = vunpack.c.l.b16 %v321
      %v821 = vunpack.c.l.b16 %v322
      %v822 = vunpack.c.l.b16 %v323
      %v823 = vunpack.c.l.b16 %v324
      %v824 = vunpack.c.l.b16 %v325
      %v825 = vpack.c.b16 %v790, %v789
      %v826 = vpack.c.b16 %v792, %v791
      %v827 = vpack.c.b16 %v794, %v793
      %v828 = vpack.c.b16 %v796, %v795
      %v829 = vpack.c.b16 %v798, %v797
      %v830 = vpack.c.b16 %v800, %v799
      %v831 = vpack.c.b16 %v802, %v801
      %v832 = vpack.c.b16 %v804, %v803
      %v833 = vpack.c.b16 %v806, %v805
      %v834 = vpack.c.b16 %v808, %v807
      %v835 = vpack.c.b16 %v810, %v809
      %v836 = vpack.c.b16 %v812, %v811
      %v837 = vpack.c.b16 %v814, %v813
      %v838 = vpack.c.b16 %v816, %v815
      %v839 = vpack.c.b16 %v818, %v817
      %v840 = vpack.c.b16 %v820, %v819
      %v841 = vpack.c.b16 %v822, %v821
      %v842 = vpack.c.b16 %v824, %v823
      %vm861 = vcmask 261120
      %v863 = vsel %vm861, %v615, 0
      %v866 = vsel %vm861, %v618, 0
      %v869 = vsel %vm861, %v621, 0
      %v872 = vsel %vm861, %v624, 0
      %v875 = vsel %vm861, %v627, 0
      %v878 = vsel %vm861, %v630, 0
      %v881 = vsel %vm861, %v633, 0
      %v884 = vsel %vm861, %v636, 0
      %v887 = vsel %vm861, %v639, 0
      %v890 = vsel %vm861, %v642, 0
      %v893 = vsel %vm861, %v645, 0
      %v896 = vsel %vm861, %v648, 0
      %v899 = vsel %vm861, %v651, 0
      %v902 = vsel %vm861, %v654, 0
      %v905 = vsel %vm861, %v657, 0
      %v908 = vsel %vm861, %v660, 0
      %v911 = vsel %vm861, %v663, 0
      %v914 = vsel %vm861, %v666, 0
      %v917 = vsel %vm861, %v669, 0
      %v920 = vsel %vm861, %v672, 0
      %v923 = vsel %vm861, %v675, 0
      %v926 = vsel %vm861, %v678, 0
      %v929 = vsel %vm861, %v681, 0
      %v932 = vsel %vm861, %v684, 0
      %v935 = vsel %vm861, %v687, 0
      %v938 = vsel %vm861, %v690, 0
      %v941 = vsel %vm861, %v693, 0
      %v944 = vsel %vm861, %v696, 0
      %946 = vmatprep.subr.bf16.mxu0 0
      %947 = vmatpush1.bf16.msra.mxu0 %v832
      %948 = vmatprep.subr.bf16.mxu0 0
      %949 = vmatpush1.bf16.msra.mxu0 %v831
      %950 = vmatprep.subr.bf16.mxu0 0
      %951 = vmatpush1.bf16.msra.mxu0 %v830
      %952 = vmatprep.subr.bf16.mxu0 0
      %953 = vmatpush1.bf16.msra.mxu0 %v829
      %954 = vmatprep.subr.bf16.mxu0 0
      %955 = vmatpush1.bf16.msra.mxu0 %v828
      %956 = vmatprep.subr.bf16.mxu0 0
      %957 = vmatpush1.bf16.msra.mxu0 %v827
      %958 = vmatprep.subr.bf16.mxu0 0
      %959 = vmatpush1.bf16.msra.mxu0 %v826
      %960 = vmatprep.subr.bf16.mxu0 0
      %961 = vmatpush1.bf16.msra.mxu0 %v825
      %962 = vmatprep.subr.bf16.mxu0 0
      %963 = vmatpush2.bf16.msra.mxu0 %v840
      %964 = vmatprep.subr.bf16.mxu0 0
      %965 = vmatpush2.bf16.msra.mxu0 %v839
      %966 = vmatprep.subr.bf16.mxu0 0
      %967 = vmatpush2.bf16.msra.mxu0 %v838
      %968 = vmatprep.subr.bf16.mxu0 0
      %969 = vmatpush2.bf16.msra.mxu0 %v837
      %970 = vmatprep.subr.bf16.mxu0 0
      %971 = vmatpush2.bf16.msra.mxu0 %v836
      %972 = vmatprep.subr.bf16.mxu0 0
      %973 = vmatpush2.bf16.msra.mxu0 %v835
      %974 = vmatprep.subr.bf16.mxu0 0
      %975 = vmatpush2.bf16.msra.mxu0 %v834
      %976 = vmatprep.subr.bf16.mxu0 0
      %977 = vmatpush2.bf16.msra.mxu0 %v833
      %978 = vmatprep.mubr.bf16.mxu0 %v614
      %979 = vmatmul.mubr.bf16.gmra.mxu0 %v613
      %v980 = vpop.f32.mrf.mxu0
      %v981 = vadd.f32 %v331, %v980
      %v982 = vpop.f32.mrf.mxu0
      %v983 = vpop.f32.mrf.mxu0
      %v984 = vadd.f32 %v331, %v983
      %v985 = vpop.f32.mrf.mxu0
      %986 = vmatprep.mubr.bf16.mxu0 %v617
      %987 = vmatmul.mubr.bf16.gmra.mxu0 %v616
      %v988 = vpop.f32.mrf.mxu0
      %v989 = vadd.f32 %v331, %v988
      %v990 = vpop.f32.mrf.mxu0
      %v991 = vpop.f32.mrf.mxu0
      %v992 = vadd.f32 %v331, %v991
      %v993 = vpop.f32.mrf.mxu0
      %994 = vmatprep.mubr.bf16.mxu0 %v620
      %995 = vmatmul.mubr.bf16.gmra.mxu0 %v619
      %v996 = vpop.f32.mrf.mxu0
      %v997 = vadd.f32 %v331, %v996
      %v998 = vpop.f32.mrf.mxu0
      %v999 = vpop.f32.mrf.mxu0
      %v1000 = vadd.f32 %v331, %v999
      %v1001 = vpop.f32.mrf.mxu0
      %1002 = vmatprep.mubr.bf16.mxu0 %v623
      %1003 = vmatmul.mubr.bf16.gmra.mxu0 %v622
      %v1004 = vpop.f32.mrf.mxu0
      %v1005 = vadd.f32 %v331, %v1004
      %v1006 = vpop.f32.mrf.mxu0
      %v1007 = vpop.f32.mrf.mxu0
      %v1008 = vadd.f32 %v331, %v1007
      %v1009 = vpop.f32.mrf.mxu0
      %1010 = vmatprep.mubr.bf16.mxu0 %v626
      %1011 = vmatmul.mubr.bf16.gmra.mxu0 %v625
      %v1012 = vpop.f32.mrf.mxu0
      %v1013 = vadd.f32 %v331, %v1012
      %v1014 = vpop.f32.mrf.mxu0
      %v1015 = vpop.f32.mrf.mxu0
      %v1016 = vadd.f32 %v331, %v1015
      %v1017 = vpop.f32.mrf.mxu0
      %1018 = vmatprep.mubr.bf16.mxu0 %v629
      %1019 = vmatmul.mubr.bf16.gmra.mxu0 %v628
      %v1020 = vpop.f32.mrf.mxu0
      %v1021 = vadd.f32 %v331, %v1020
      %v1022 = vpop.f32.mrf.mxu0
      %v1023 = vpop.f32.mrf.mxu0
      %v1024 = vadd.f32 %v331, %v1023
      %v1025 = vpop.f32.mrf.mxu0
      %1026 = vmatprep.mubr.bf16.mxu0 %v632
      %1027 = vmatmul.mubr.bf16.gmra.mxu0 %v631
      %v1028 = vpop.f32.mrf.mxu0
      %v1029 = vadd.f32 %v331, %v1028
      %v1030 = vpop.f32.mrf.mxu0
      %v1031 = vpop.f32.mrf.mxu0
      %v1032 = vadd.f32 %v331, %v1031
      %v1033 = vpop.f32.mrf.mxu0
      %1034 = vmatprep.mubr.bf16.mxu0 %v635
      %1035 = vmatmul.mubr.bf16.gmra.mxu0 %v634
      %v1036 = vpop.f32.mrf.mxu0
      %v1037 = vadd.f32 %v331, %v1036
      %v1038 = vpop.f32.mrf.mxu0
      %v1039 = vpop.f32.mrf.mxu0
      %v1040 = vadd.f32 %v331, %v1039
      %v1041 = vpop.f32.mrf.mxu0
      %1042 = vmatprep.mubr.bf16.mxu0 %v638
      %1043 = vmatmul.mubr.bf16.gmra.mxu0 %v637
      %v1044 = vpop.f32.mrf.mxu0
      %v1045 = vadd.f32 %v331, %v1044
      %v1046 = vpop.f32.mrf.mxu0
      %v1047 = vpop.f32.mrf.mxu0
      %v1048 = vadd.f32 %v331, %v1047
      %v1049 = vpop.f32.mrf.mxu0
      %1050 = vmatprep.mubr.bf16.mxu0 %v641
      %1051 = vmatmul.mubr.bf16.gmra.mxu0 %v640
      %v1052 = vpop.f32.mrf.mxu0
      %v1053 = vadd.f32 %v331, %v1052
      %v1054 = vpop.f32.mrf.mxu0
      %v1055 = vpop.f32.mrf.mxu0
      %v1056 = vadd.f32 %v331, %v1055
      %v1057 = vpop.f32.mrf.mxu0
      %1058 = vmatprep.mubr.bf16.mxu0 %v644
      %1059 = vmatmul.mubr.bf16.gmra.mxu0 %v643
      %v1060 = vpop.f32.mrf.mxu0
      %v1061 = vadd.f32 %v331, %v1060
      %v1062 = vpop.f32.mrf.mxu0
      %v1063 = vpop.f32.mrf.mxu0
      %v1064 = vadd.f32 %v331, %v1063
      %v1065 = vpop.f32.mrf.mxu0
      %1066 = vmatprep.mubr.bf16.mxu0 %v647
      %1067 = vmatmul.mubr.bf16.gmra.mxu0 %v646
      %v1068 = vpop.f32.mrf.mxu0
      %v1069 = vadd.f32 %v331, %v1068
      %v1070 = vpop.f32.mrf.mxu0
      %v1071 = vpop.f32.mrf.mxu0
      %v1072 = vadd.f32 %v331, %v1071
      %v1073 = vpop.f32.mrf.mxu0
      %1074 = vmatprep.mubr.bf16.mxu0 %v650
      %1075 = vmatmul.mubr.bf16.gmra.mxu0 %v649
      %v1076 = vpop.f32.mrf.mxu0
      %v1077 = vadd.f32 %v331, %v1076
      %v1078 = vpop.f32.mrf.mxu0
      %v1079 = vpop.f32.mrf.mxu0
      %v1080 = vadd.f32 %v331, %v1079
      %v1081 = vpop.f32.mrf.mxu0
      %1082 = vmatprep.mubr.bf16.mxu0 %v653
      %1083 = vmatmul.mubr.bf16.gmra.mxu0 %v652
      %v1084 = vpop.f32.mrf.mxu0
      %v1085 = vadd.f32 %v331, %v1084
      %v1086 = vpop.f32.mrf.mxu0
      %v1087 = vpop.f32.mrf.mxu0
      %v1088 = vadd.f32 %v331, %v1087
      %v1089 = vpop.f32.mrf.mxu0
      %1090 = vmatprep.mubr.bf16.mxu0 %v656
      %1091 = vmatmul.mubr.bf16.gmra.mxu0 %v655
      %v1092 = vpop.f32.mrf.mxu0
      %v1093 = vadd.f32 %v331, %v1092
      %v1094 = vpop.f32.mrf.mxu0
      %v1095 = vpop.f32.mrf.mxu0
      %v1096 = vadd.f32 %v331, %v1095
      %v1097 = vpop.f32.mrf.mxu0
      %1098 = vmatprep.mubr.bf16.mxu0 %v659
      %1099 = vmatmul.mubr.bf16.gmra.mxu0 %v658
      %v1100 = vpop.f32.mrf.mxu0
      %v1101 = vadd.f32 %v331, %v1100
      %v1102 = vpop.f32.mrf.mxu0
      %v1103 = vpop.f32.mrf.mxu0
      %v1104 = vadd.f32 %v331, %v1103
      %v1105 = vpop.f32.mrf.mxu0
      %1106 = vmatprep.mubr.bf16.mxu0 %v662
      %1107 = vmatmul.mubr.bf16.gmra.mxu0 %v661
      %v1108 = vpop.f32.mrf.mxu0
      %v1109 = vadd.f32 %v331, %v1108
      %v1110 = vpop.f32.mrf.mxu0
      %v1111 = vpop.f32.mrf.mxu0
      %v1112 = vadd.f32 %v331, %v1111
      %v1113 = vpop.f32.mrf.mxu0
      %1114 = vmatprep.mubr.bf16.mxu0 %v665
      %1115 = vmatmul.mubr.bf16.gmra.mxu0 %v664
      %v1116 = vpop.f32.mrf.mxu0
      %v1117 = vadd.f32 %v331, %v1116
      %v1118 = vpop.f32.mrf.mxu0
      %v1119 = vpop.f32.mrf.mxu0
      %v1120 = vadd.f32 %v331, %v1119
      %v1121 = vpop.f32.mrf.mxu0
      %1122 = vmatprep.mubr.bf16.mxu0 %v668
      %1123 = vmatmul.mubr.bf16.gmra.mxu0 %v667
      %v1124 = vpop.f32.mrf.mxu0
      %v1125 = vadd.f32 %v331, %v1124
      %v1126 = vpop.f32.mrf.mxu0
      %v1127 = vpop.f32.mrf.mxu0
      %v1128 = vadd.f32 %v331, %v1127
      %v1129 = vpop.f32.mrf.mxu0
      %1130 = vmatprep.mubr.bf16.mxu0 %v671
      %1131 = vmatmul.mubr.bf16.gmra.mxu0 %v670
      %v1132 = vpop.f32.mrf.mxu0
      %v1133 = vadd.f32 %v331, %v1132
      %v1134 = vpop.f32.mrf.mxu0
      %v1135 = vpop.f32.mrf.mxu0
      %v1136 = vadd.f32 %v331, %v1135
      %v1137 = vpop.f32.mrf.mxu0
      %1138 = vmatprep.mubr.bf16.mxu0 %v674
      %1139 = vmatmul.mubr.bf16.gmra.mxu0 %v673
      %v1140 = vpop.f32.mrf.mxu0
      %v1141 = vadd.f32 %v331, %v1140
      %v1142 = vpop.f32.mrf.mxu0
      %v1143 = vpop.f32.mrf.mxu0
      %v1144 = vadd.f32 %v331, %v1143
      %v1145 = vpop.f32.mrf.mxu0
      %1146 = vmatprep.mubr.bf16.mxu0 %v677
      %1147 = vmatmul.mubr.bf16.gmra.mxu0 %v676
      %v1148 = vpop.f32.mrf.mxu0
      %v1149 = vadd.f32 %v331, %v1148
      %v1150 = vpop.f32.mrf.mxu0
      %v1151 = vpop.f32.mrf.mxu0
      %v1152 = vadd.f32 %v331, %v1151
      %v1153 = vpop.f32.mrf.mxu0
      %1154 = vmatprep.mubr.bf16.mxu0 %v680
      %1155 = vmatmul.mubr.bf16.gmra.mxu0 %v679
      %v1156 = vpop.f32.mrf.mxu0
      %v1157 = vadd.f32 %v331, %v1156
      %v1158 = vpop.f32.mrf.mxu0
      %v1159 = vpop.f32.mrf.mxu0
      %v1160 = vadd.f32 %v331, %v1159
      %v1161 = vpop.f32.mrf.mxu0
      %1162 = vmatprep.mubr.bf16.mxu0 %v683
      %1163 = vmatmul.mubr.bf16.gmra.mxu0 %v682
      %v1164 = vpop.f32.mrf.mxu0
      %v1165 = vadd.f32 %v331, %v1164
      %v1166 = vpop.f32.mrf.mxu0
      %v1167 = vpop.f32.mrf.mxu0
      %v1168 = vadd.f32 %v331, %v1167
      %v1169 = vpop.f32.mrf.mxu0
      %1170 = vmatprep.mubr.bf16.mxu0 %v686
      %1171 = vmatmul.mubr.bf16.gmra.mxu0 %v685
      %v1172 = vpop.f32.mrf.mxu0
      %v1173 = vadd.f32 %v331, %v1172
      %v1174 = vpop.f32.mrf.mxu0
      %v1175 = vpop.f32.mrf.mxu0
      %v1176 = vadd.f32 %v331, %v1175
      %v1177 = vpop.f32.mrf.mxu0
      %1178 = vmatprep.mubr.bf16.mxu0 %v689
      %1179 = vmatmul.mubr.bf16.gmra.mxu0 %v688
      %v1180 = vpop.f32.mrf.mxu0
      %v1181 = vadd.f32 %v331, %v1180
      %v1182 = vpop.f32.mrf.mxu0
      %v1183 = vpop.f32.mrf.mxu0
      %v1184 = vadd.f32 %v331, %v1183
      %v1185 = vpop.f32.mrf.mxu0
      %1186 = vmatprep.mubr.bf16.mxu0 %v692
      %1187 = vmatmul.mubr.bf16.gmra.mxu0 %v691
      %v1188 = vpop.f32.mrf.mxu0
      %v1189 = vadd.f32 %v331, %v1188
      %v1190 = vpop.f32.mrf.mxu0
      %v1191 = vpop.f32.mrf.mxu0
      %v1192 = vadd.f32 %v331, %v1191
      %v1193 = vpop.f32.mrf.mxu0
      %1194 = vmatprep.mubr.bf16.mxu0 %v695
      %1195 = vmatmul.mubr.bf16.gmra.mxu0 %v694
      %v1196 = vpop.f32.mrf.mxu0
      %v1197 = vadd.f32 %v331, %v1196
      %v1198 = vpop.f32.mrf.mxu0
      %v1199 = vpop.f32.mrf.mxu0
      %v1200 = vadd.f32 %v331, %v1199
      %v1201 = vpop.f32.mrf.mxu0
      %1202 = vdwg.mxu0
      %1203 = vmatprep.subr.bf16.mxu0 0
      %1204 = vmatpush1.bf16.msra.mxu0 0
      %1205 = vmatprep.subr.bf16.mxu0 0
      %1206 = vmatpush1.bf16.msra.mxu0 0
      %1207 = vmatprep.subr.bf16.mxu0 0
      %1208 = vmatpush1.bf16.msra.mxu0 0
      %1209 = vmatprep.subr.bf16.mxu0 0
      %1210 = vmatpush1.bf16.msra.mxu0 0
      %1211 = vmatprep.subr.bf16.mxu0 0
      %1212 = vmatpush1.bf16.msra.mxu0 0
      %1213 = vmatprep.subr.bf16.mxu0 0
      %1214 = vmatpush1.bf16.msra.mxu0 0
      %1215 = vmatprep.subr.bf16.mxu0 0
      %1216 = vmatpush1.bf16.msra.mxu0 %v842
      %1217 = vmatprep.subr.bf16.mxu0 0
      %1218 = vmatpush1.bf16.msra.mxu0 %v841
      %1219 = vmatprep.subr.bf16.mxu0 0
      %1220 = vmatpush2.bf16.msra.mxu0 0
      %1221 = vmatprep.subr.bf16.mxu0 0
      %1222 = vmatpush2.bf16.msra.mxu0 0
      %1223 = vmatprep.subr.bf16.mxu0 0
      %1224 = vmatpush2.bf16.msra.mxu0 0
      %1225 = vmatprep.subr.bf16.mxu0 0
      %1226 = vmatpush2.bf16.msra.mxu0 0
      %1227 = vmatprep.subr.bf16.mxu0 0
      %1228 = vmatpush2.bf16.msra.mxu0 0
      %1229 = vmatprep.subr.bf16.mxu0 0
      %1230 = vmatpush2.bf16.msra.mxu0 0
      %1231 = vmatprep.subr.bf16.mxu0 0
      %1232 = vmatpush2.bf16.msra.mxu0 0
      %1233 = vmatprep.subr.bf16.mxu0 0
      %1234 = vmatpush2.bf16.msra.mxu0 0
      %1235 = vmatprep.mubr.bf16.mxu0 0
      %1236 = vmatmul.mubr.bf16.gmra.mxu0 %v863
      %v1237 = vpop.f32.mrf.mxu0
      %v1238 = vadd.f32 %v981, %v1237
      %v1239 = vpop.f32.mrf.mxu0
      %v1240 = vpop.f32.mrf.mxu0
      %v1241 = vadd.f32 %v984, %v1240
      %v1242 = vpop.f32.mrf.mxu0
      %1243 = vmatprep.mubr.bf16.mxu0 0
      %1244 = vmatmul.mubr.bf16.gmra.mxu0 %v866
      %v1245 = vpop.f32.mrf.mxu0
      %v1246 = vadd.f32 %v989, %v1245
      %v1247 = vpop.f32.mrf.mxu0
      %v1248 = vpop.f32.mrf.mxu0
      %v1249 = vadd.f32 %v992, %v1248
      %v1250 = vpop.f32.mrf.mxu0
      %1251 = vmatprep.mubr.bf16.mxu0 0
      %1252 = vmatmul.mubr.bf16.gmra.mxu0 %v869
      %v1253 = vpop.f32.mrf.mxu0
      %v1254 = vadd.f32 %v997, %v1253
      %v1255 = vpop.f32.mrf.mxu0
      %v1256 = vpop.f32.mrf.mxu0
      %v1257 = vadd.f32 %v1000, %v1256
      %v1258 = vpop.f32.mrf.mxu0
      %1259 = vmatprep.mubr.bf16.mxu0 0
      %1260 = vmatmul.mubr.bf16.gmra.mxu0 %v872
      %v1261 = vpop.f32.mrf.mxu0
      %v1262 = vadd.f32 %v1005, %v1261
      %v1263 = vpop.f32.mrf.mxu0
      %v1264 = vpop.f32.mrf.mxu0
      %v1265 = vadd.f32 %v1008, %v1264
      %v1266 = vpop.f32.mrf.mxu0
      %1267 = vmatprep.mubr.bf16.mxu0 0
      %1268 = vmatmul.mubr.bf16.gmra.mxu0 %v875
      %v1269 = vpop.f32.mrf.mxu0
      %v1270 = vadd.f32 %v1013, %v1269
      %v1271 = vpop.f32.mrf.mxu0
      %v1272 = vpop.f32.mrf.mxu0
      %v1273 = vadd.f32 %v1016, %v1272
      %v1274 = vpop.f32.mrf.mxu0
      %1275 = vmatprep.mubr.bf16.mxu0 0
      %1276 = vmatmul.mubr.bf16.gmra.mxu0 %v878
      %v1277 = vpop.f32.mrf.mxu0
      %v1278 = vadd.f32 %v1021, %v1277
      %v1279 = vpop.f32.mrf.mxu0
      %v1280 = vpop.f32.mrf.mxu0
      %v1281 = vadd.f32 %v1024, %v1280
      %v1282 = vpop.f32.mrf.mxu0
      %1283 = vmatprep.mubr.bf16.mxu0 0
      %1284 = vmatmul.mubr.bf16.gmra.mxu0 %v881
      %v1285 = vpop.f32.mrf.mxu0
      %v1286 = vadd.f32 %v1029, %v1285
      %v1287 = vpop.f32.mrf.mxu0
      %v1288 = vpop.f32.mrf.mxu0
      %v1289 = vadd.f32 %v1032, %v1288
      %v1290 = vpop.f32.mrf.mxu0
      %1291 = vmatprep.mubr.bf16.mxu0 0
      %1292 = vmatmul.mubr.bf16.gmra.mxu0 %v884
      %v1293 = vpop.f32.mrf.mxu0
      %v1294 = vadd.f32 %v1037, %v1293
      %v1295 = vpop.f32.mrf.mxu0
      %v1296 = vpop.f32.mrf.mxu0
      %v1297 = vadd.f32 %v1040, %v1296
      %v1298 = vpop.f32.mrf.mxu0
      %1299 = vmatprep.mubr.bf16.mxu0 0
      %1300 = vmatmul.mubr.bf16.gmra.mxu0 %v887
      %v1301 = vpop.f32.mrf.mxu0
      %v1302 = vadd.f32 %v1045, %v1301
      %v1303 = vpop.f32.mrf.mxu0
      %v1304 = vpop.f32.mrf.mxu0
      %v1305 = vadd.f32 %v1048, %v1304
      %v1306 = vpop.f32.mrf.mxu0
      %1307 = vmatprep.mubr.bf16.mxu0 0
      %1308 = vmatmul.mubr.bf16.gmra.mxu0 %v890
      %v1309 = vpop.f32.mrf.mxu0
      %v1310 = vadd.f32 %v1053, %v1309
      %v1311 = vpop.f32.mrf.mxu0
      %v1312 = vpop.f32.mrf.mxu0
      %v1313 = vadd.f32 %v1056, %v1312
      %v1314 = vpop.f32.mrf.mxu0
      %1315 = vmatprep.mubr.bf16.mxu0 0
      %1316 = vmatmul.mubr.bf16.gmra.mxu0 %v893
      %v1317 = vpop.f32.mrf.mxu0
      %v1318 = vadd.f32 %v1061, %v1317
      %v1319 = vpop.f32.mrf.mxu0
      %v1320 = vpop.f32.mrf.mxu0
      %v1321 = vadd.f32 %v1064, %v1320
      %v1322 = vpop.f32.mrf.mxu0
      %1323 = vmatprep.mubr.bf16.mxu0 0
      %1324 = vmatmul.mubr.bf16.gmra.mxu0 %v896
      %v1325 = vpop.f32.mrf.mxu0
      %v1326 = vadd.f32 %v1069, %v1325
      %v1327 = vpop.f32.mrf.mxu0
      %v1328 = vpop.f32.mrf.mxu0
      %v1329 = vadd.f32 %v1072, %v1328
      %v1330 = vpop.f32.mrf.mxu0
      %1331 = vmatprep.mubr.bf16.mxu0 0
      %1332 = vmatmul.mubr.bf16.gmra.mxu0 %v899
      %v1333 = vpop.f32.mrf.mxu0
      %v1334 = vadd.f32 %v1077, %v1333
      %v1335 = vpop.f32.mrf.mxu0
      %v1336 = vpop.f32.mrf.mxu0
      %v1337 = vadd.f32 %v1080, %v1336
      %v1338 = vpop.f32.mrf.mxu0
      %1339 = vmatprep.mubr.bf16.mxu0 0
      %1340 = vmatmul.mubr.bf16.gmra.mxu0 %v902
      %v1341 = vpop.f32.mrf.mxu0
      %v1342 = vadd.f32 %v1085, %v1341
      %v1343 = vpop.f32.mrf.mxu0
      %v1344 = vpop.f32.mrf.mxu0
      %v1345 = vadd.f32 %v1088, %v1344
      %v1346 = vpop.f32.mrf.mxu0
      %1347 = vmatprep.mubr.bf16.mxu0 0
      %1348 = vmatmul.mubr.bf16.gmra.mxu0 %v905
      %v1349 = vpop.f32.mrf.mxu0
      %v1350 = vadd.f32 %v1093, %v1349
      %v1351 = vpop.f32.mrf.mxu0
      %v1352 = vpop.f32.mrf.mxu0
      %v1353 = vadd.f32 %v1096, %v1352
      %v1354 = vpop.f32.mrf.mxu0
      %1355 = vmatprep.mubr.bf16.mxu0 0
      %1356 = vmatmul.mubr.bf16.gmra.mxu0 %v908
      %v1357 = vpop.f32.mrf.mxu0
      %v1358 = vadd.f32 %v1101, %v1357
      %v1359 = vpop.f32.mrf.mxu0
      %v1360 = vpop.f32.mrf.mxu0
      %v1361 = vadd.f32 %v1104, %v1360
      %v1362 = vpop.f32.mrf.mxu0
      %1363 = vmatprep.mubr.bf16.mxu0 0
      %1364 = vmatmul.mubr.bf16.gmra.mxu0 %v911
      %v1365 = vpop.f32.mrf.mxu0
      %v1366 = vadd.f32 %v1109, %v1365
      %v1367 = vpop.f32.mrf.mxu0
      %v1368 = vpop.f32.mrf.mxu0
      %v1369 = vadd.f32 %v1112, %v1368
      %v1370 = vpop.f32.mrf.mxu0
      %1371 = vmatprep.mubr.bf16.mxu0 0
      %1372 = vmatmul.mubr.bf16.gmra.mxu0 %v914
      %v1373 = vpop.f32.mrf.mxu0
      %v1374 = vadd.f32 %v1117, %v1373
      %v1375 = vpop.f32.mrf.mxu0
      %v1376 = vpop.f32.mrf.mxu0
      %v1377 = vadd.f32 %v1120, %v1376
      %v1378 = vpop.f32.mrf.mxu0
      %1379 = vmatprep.mubr.bf16.mxu0 0
      %1380 = vmatmul.mubr.bf16.gmra.mxu0 %v917
      %v1381 = vpop.f32.mrf.mxu0
      %v1382 = vadd.f32 %v1125, %v1381
      %v1383 = vpop.f32.mrf.mxu0
      %v1384 = vpop.f32.mrf.mxu0
      %v1385 = vadd.f32 %v1128, %v1384
      %v1386 = vpop.f32.mrf.mxu0
      %1387 = vmatprep.mubr.bf16.mxu0 0
      %1388 = vmatmul.mubr.bf16.gmra.mxu0 %v920
      %v1389 = vpop.f32.mrf.mxu0
      %v1390 = vadd.f32 %v1133, %v1389
      %v1391 = vpop.f32.mrf.mxu0
      %v1392 = vpop.f32.mrf.mxu0
      %v1393 = vadd.f32 %v1136, %v1392
      %v1394 = vpop.f32.mrf.mxu0
      %1395 = vmatprep.mubr.bf16.mxu0 0
      %1396 = vmatmul.mubr.bf16.gmra.mxu0 %v923
      %v1397 = vpop.f32.mrf.mxu0
      %v1398 = vadd.f32 %v1141, %v1397
      %v1399 = vpop.f32.mrf.mxu0
      %v1400 = vpop.f32.mrf.mxu0
      %v1401 = vadd.f32 %v1144, %v1400
      %v1402 = vpop.f32.mrf.mxu0
      %1403 = vmatprep.mubr.bf16.mxu0 0
      %1404 = vmatmul.mubr.bf16.gmra.mxu0 %v926
      %v1405 = vpop.f32.mrf.mxu0
      %v1406 = vadd.f32 %v1149, %v1405
      %v1407 = vpop.f32.mrf.mxu0
      %v1408 = vpop.f32.mrf.mxu0
      %v1409 = vadd.f32 %v1152, %v1408
      %v1410 = vpop.f32.mrf.mxu0
      %1411 = vmatprep.mubr.bf16.mxu0 0
      %1412 = vmatmul.mubr.bf16.gmra.mxu0 %v929
      %v1413 = vpop.f32.mrf.mxu0
      %v1414 = vadd.f32 %v1157, %v1413
      %v1415 = vpop.f32.mrf.mxu0
      %v1416 = vpop.f32.mrf.mxu0
      %v1417 = vadd.f32 %v1160, %v1416
      %v1418 = vpop.f32.mrf.mxu0
      %1419 = vmatprep.mubr.bf16.mxu0 0
      %1420 = vmatmul.mubr.bf16.gmra.mxu0 %v932
      %v1421 = vpop.f32.mrf.mxu0
      %v1422 = vadd.f32 %v1165, %v1421
      %v1423 = vpop.f32.mrf.mxu0
      %v1424 = vpop.f32.mrf.mxu0
      %v1425 = vadd.f32 %v1168, %v1424
      %v1426 = vpop.f32.mrf.mxu0
      %1427 = vmatprep.mubr.bf16.mxu0 0
      %1428 = vmatmul.mubr.bf16.gmra.mxu0 %v935
      %v1429 = vpop.f32.mrf.mxu0
      %v1430 = vadd.f32 %v1173, %v1429
      %v1431 = vpop.f32.mrf.mxu0
      %v1432 = vpop.f32.mrf.mxu0
      %v1433 = vadd.f32 %v1176, %v1432
      %v1434 = vpop.f32.mrf.mxu0
      %1435 = vmatprep.mubr.bf16.mxu0 0
      %1436 = vmatmul.mubr.bf16.gmra.mxu0 %v938
      %v1437 = vpop.f32.mrf.mxu0
      %v1438 = vadd.f32 %v1181, %v1437
      %v1439 = vpop.f32.mrf.mxu0
      %v1440 = vpop.f32.mrf.mxu0
      %v1441 = vadd.f32 %v1184, %v1440
      %v1442 = vpop.f32.mrf.mxu0
      %1443 = vmatprep.mubr.bf16.mxu0 0
      %1444 = vmatmul.mubr.bf16.gmra.mxu0 %v941
      %v1445 = vpop.f32.mrf.mxu0
      %v1446 = vadd.f32 %v1189, %v1445
      %v1447 = vpop.f32.mrf.mxu0
      %v1448 = vpop.f32.mrf.mxu0
      %v1449 = vadd.f32 %v1192, %v1448
      %v1450 = vpop.f32.mrf.mxu0
      %1451 = vmatprep.mubr.bf16.mxu0 0
      %1452 = vmatmul.mubr.bf16.gmra.mxu0 %v944
      %v1453 = vpop.f32.mrf.mxu0
      %v1454 = vadd.f32 %v1197, %v1453
      %v1455 = vpop.f32.mrf.mxu0
      %v1456 = vpop.f32.mrf.mxu0
      %v1457 = vadd.f32 %v1200, %v1456
      %v1458 = vpop.f32.mrf.mxu0
      %1459 = vdwg.mxu0
      %v1460 = vmax.f32 %v1238, 0.0
      %v1461 = vmax.f32 %v1241, 0.0
      %v1462 = vmax.f32 %v1246, 0.0
      %v1463 = vmax.f32 %v1249, 0.0
      %v1464 = vmax.f32 %v1254, 0.0
      %v1465 = vmax.f32 %v1257, 0.0
      %v1466 = vmax.f32 %v1262, 0.0
      %v1467 = vmax.f32 %v1265, 0.0
      %v1468 = vmax.f32 %v1270, 0.0
      %v1469 = vmax.f32 %v1273, 0.0
      %v1470 = vmax.f32 %v1278, 0.0
      %v1471 = vmax.f32 %v1281, 0.0
      %v1472 = vmax.f32 %v1286, 0.0
      %v1473 = vmax.f32 %v1289, 0.0
      %v1474 = vmax.f32 %v1294, 0.0
      %v1475 = vmax.f32 %v1297, 0.0
      %v1476 = vmax.f32 %v1302, 0.0
      %v1477 = vmax.f32 %v1305, 0.0
      %v1478 = vmax.f32 %v1310, 0.0
      %v1479 = vmax.f32 %v1313, 0.0
      %v1480 = vmax.f32 %v1318, 0.0
      %v1481 = vmax.f32 %v1321, 0.0
      %v1482 = vmax.f32 %v1326, 0.0
      %v1483 = vmax.f32 %v1329, 0.0
      %v1484 = vmax.f32 %v1334, 0.0
      %v1485 = vmax.f32 %v1337, 0.0
      %v1486 = vmax.f32 %v1342, 0.0
      %v1487 = vmax.f32 %v1345, 0.0
      %v1488 = vmax.f32 %v1350, 0.0
      %v1489 = vmax.f32 %v1353, 0.0
      %v1490 = vmax.f32 %v1358, 0.0
      %v1491 = vmax.f32 %v1361, 0.0
      %v1492 = vmax.f32 %v1366, 0.0
      %v1493 = vmax.f32 %v1369, 0.0
      %v1494 = vmax.f32 %v1374, 0.0
      %v1495 = vmax.f32 %v1377, 0.0
      %v1496 = vmax.f32 %v1382, 0.0
      %v1497 = vmax.f32 %v1385, 0.0
      %v1498 = vmax.f32 %v1390, 0.0
      %v1499 = vmax.f32 %v1393, 0.0
      %v1500 = vmax.f32 %v1398, 0.0
      %v1501 = vmax.f32 %v1401, 0.0
      %v1502 = vmax.f32 %v1406, 0.0
      %v1503 = vmax.f32 %v1409, 0.0
      %v1504 = vmax.f32 %v1414, 0.0
      %v1505 = vmax.f32 %v1417, 0.0
      %v1506 = vmax.f32 %v1422, 0.0
      %v1507 = vmax.f32 %v1425, 0.0
      %v1508 = vmax.f32 %v1430, 0.0
      %v1509 = vmax.f32 %v1433, 0.0
      %v1510 = vmax.f32 %v1438, 0.0
      %v1511 = vmax.f32 %v1441, 0.0
      %v1512 = vmax.f32 %v1446, 0.0
      %v1513 = vmax.f32 %v1449, 0.0
      %v1514 = vmax.f32 %v1454, 0.0
      %v1515 = vmax.f32 %v1457, 0.0
      %v1516 = vpack.c.bf16 %v1461, %v1460
      %v1517 = vpack.c.bf16 %v1463, %v1462
      %v1518 = vpack.c.bf16 %v1465, %v1464
      %v1519 = vpack.c.bf16 %v1467, %v1466
      %v1520 = vpack.c.bf16 %v1469, %v1468
      %v1521 = vpack.c.bf16 %v1471, %v1470
      %v1522 = vpack.c.bf16 %v1473, %v1472
      %v1523 = vpack.c.bf16 %v1475, %v1474
      %v1524 = vpack.c.bf16 %v1477, %v1476
      %v1525 = vpack.c.bf16 %v1479, %v1478
      %v1526 = vpack.c.bf16 %v1481, %v1480
      %v1527 = vpack.c.bf16 %v1483, %v1482
      %v1528 = vpack.c.bf16 %v1485, %v1484
      %v1529 = vpack.c.bf16 %v1487, %v1486
      %v1530 = vpack.c.bf16 %v1489, %v1488
      %v1531 = vpack.c.bf16 %v1491, %v1490
      %v1532 = vpack.c.bf16 %v1493, %v1492
      %v1533 = vpack.c.bf16 %v1495, %v1494
      %v1534 = vpack.c.bf16 %v1497, %v1496
      %v1535 = vpack.c.bf16 %v1499, %v1498
      %v1536 = vpack.c.bf16 %v1501, %v1500
      %v1537 = vpack.c.bf16 %v1503, %v1502
      %v1538 = vpack.c.bf16 %v1505, %v1504
      %v1539 = vpack.c.bf16 %v1507, %v1506
      %v1540 = vpack.c.bf16 %v1509, %v1508
      %v1541 = vpack.c.bf16 %v1511, %v1510
      %v1542 = vpack.c.bf16 %v1513, %v1512
      %v1543 = vpack.c.bf16 %v1515, %v1514
      %v1572 = vunpack.c.l.b16 %v1516
      %v1573 = vunpack.c.h.b16 %v1516
      %v1574 = vunpack.c.l.b16 %v1517
      %v1575 = vunpack.c.h.b16 %v1517
      %v1576 = vunpack.c.l.b16 %v1518
      %v1577 = vunpack.c.h.b16 %v1518
      %v1578 = vunpack.c.l.b16 %v1519
      %v1579 = vunpack.c.h.b16 %v1519
      %v1580 = vunpack.c.l.b16 %v1520
      %v1581 = vunpack.c.h.b16 %v1520
      %v1582 = vunpack.c.l.b16 %v1521
      %v1583 = vunpack.c.h.b16 %v1521
      %v1584 = vunpack.c.l.b16 %v1522
      %v1585 = vunpack.c.h.b16 %v1522
      %v1586 = vunpack.c.l.b16 %v1523
      %v1587 = vunpack.c.h.b16 %v1523
      %v1588 = vunpack.c.l.b16 %v1524
      %v1589 = vunpack.c.h.b16 %v1524
      %v1590 = vunpack.c.l.b16 %v1525
      %v1591 = vunpack.c.h.b16 %v1525
      %v1592 = vunpack.c.l.b16 %v1526
      %v1593 = vunpack.c.h.b16 %v1526
      %v1594 = vunpack.c.l.b16 %v1527
      %v1595 = vunpack.c.h.b16 %v1527
      %v1596 = vunpack.c.l.b16 %v1528
      %v1597 = vunpack.c.h.b16 %v1528
      %v1598 = vunpack.c.l.b16 %v1529
      %v1599 = vunpack.c.h.b16 %v1529
      %v1600 = vunpack.c.l.b16 %v1530
      %v1601 = vunpack.c.h.b16 %v1530
      %v1602 = vunpack.c.l.b16 %v1531
      %v1603 = vunpack.c.h.b16 %v1531
      %v1604 = vunpack.c.l.b16 %v1532
      %v1605 = vunpack.c.h.b16 %v1532
      %v1606 = vunpack.c.l.b16 %v1533
      %v1607 = vunpack.c.h.b16 %v1533
      %v1608 = vunpack.c.l.b16 %v1534
      %v1609 = vunpack.c.h.b16 %v1534
      %v1610 = vunpack.c.l.b16 %v1535
      %v1611 = vunpack.c.h.b16 %v1535
      %v1612 = vunpack.c.l.b16 %v1536
      %v1613 = vunpack.c.h.b16 %v1536
      %v1614 = vunpack.c.l.b16 %v1537
      %v1615 = vunpack.c.h.b16 %v1537
      %v1616 = vunpack.c.l.b16 %v1538
      %v1617 = vunpack.c.h.b16 %v1538
      %v1618 = vunpack.c.l.b16 %v1539
      %v1619 = vunpack.c.h.b16 %v1539
      %v1620 = vunpack.c.l.b16 %v1540
      %v1621 = vunpack.c.h.b16 %v1540
      %v1622 = vunpack.c.l.b16 %v1541
      %v1623 = vunpack.c.h.b16 %v1541
      %v1624 = vunpack.c.l.b16 %v1542
      %v1625 = vunpack.c.h.b16 %v1542
      %v1626 = vunpack.c.l.b16 %v1543
      %v1627 = vunpack.c.h.b16 %v1543
      %v1628 = vpack.c.b16 %v1572, %v1572
      %v1629 = vpack.c.b16 %v1573, %v1573
      %v1630 = vpack.c.b16 %v1574, %v1574
      %v1631 = vpack.c.b16 %v1575, %v1575
      %v1632 = vpack.c.b16 %v1576, %v1576
      %v1633 = vpack.c.b16 %v1577, %v1577
      %v1634 = vpack.c.b16 %v1578, %v1578
      %v1635 = vpack.c.b16 %v1579, %v1579
      %v1636 = vpack.c.b16 %v1580, %v1580
      %v1637 = vpack.c.b16 %v1581, %v1581
      %v1638 = vpack.c.b16 %v1582, %v1582
      %v1639 = vpack.c.b16 %v1583, %v1583
      %v1640 = vpack.c.b16 %v1584, %v1584
      %v1641 = vpack.c.b16 %v1585, %v1585
      %v1642 = vpack.c.b16 %v1586, %v1586
      %v1643 = vpack.c.b16 %v1587, %v1587
      %v1644 = vpack.c.b16 %v1588, %v1588
      %v1645 = vpack.c.b16 %v1589, %v1589
      %v1646 = vpack.c.b16 %v1590, %v1590
      %v1647 = vpack.c.b16 %v1591, %v1591
      %v1648 = vpack.c.b16 %v1592, %v1592
      %v1649 = vpack.c.b16 %v1593, %v1593
      %v1650 = vpack.c.b16 %v1594, %v1594
      %v1651 = vpack.c.b16 %v1595, %v1595
      %v1652 = vpack.c.b16 %v1596, %v1596
      %v1653 = vpack.c.b16 %v1597, %v1597
      %v1654 = vpack.c.b16 %v1598, %v1598
      %v1655 = vpack.c.b16 %v1599, %v1599
      %v1656 = vpack.c.b16 %v1600, %v1600
      %v1657 = vpack.c.b16 %v1601, %v1601
      %v1658 = vpack.c.b16 %v1602, %v1602
      %v1659 = vpack.c.b16 %v1603, %v1603
      %v1660 = vpack.c.b16 %v1604, %v1604
      %v1661 = vpack.c.b16 %v1605, %v1605
      %v1662 = vpack.c.b16 %v1606, %v1606
      %v1663 = vpack.c.b16 %v1607, %v1607
      %v1664 = vpack.c.b16 %v1608, %v1608
      %v1665 = vpack.c.b16 %v1609, %v1609
      %v1666 = vpack.c.b16 %v1610, %v1610
      %v1667 = vpack.c.b16 %v1611, %v1611
      %v1668 = vpack.c.b16 %v1612, %v1612
      %v1669 = vpack.c.b16 %v1613, %v1613
      %v1670 = vpack.c.b16 %v1614, %v1614
      %v1671 = vpack.c.b16 %v1615, %v1615
      %v1672 = vpack.c.b16 %v1616, %v1616
      %v1673 = vpack.c.b16 %v1617, %v1617
      %v1674 = vpack.c.b16 %v1618, %v1618
      %v1675 = vpack.c.b16 %v1619, %v1619
      %v1676 = vpack.c.b16 %v1620, %v1620
      %v1677 = vpack.c.b16 %v1621, %v1621
      %v1678 = vpack.c.b16 %v1622, %v1622
      %v1679 = vpack.c.b16 %v1623, %v1623
      %v1680 = vpack.c.b16 %v1624, %v1624
      %v1681 = vpack.c.b16 %v1625, %v1625
      %v1682 = vpack.c.b16 %v1626, %v1626
      %v1683 = vpack.c.b16 %v1627, %v1627
      %vm1740 = vcmask 257024
      %1741 = vst.msk [vmem:[%s175] sm:$0xf] %vm1740, %v1628
      %1742 = vst.msk [vmem:[%s175 + $0x4] sm:$0xf] %vm1740, %v1629
      %1743 = vst.msk [vmem:[%s175 + $0x8] sm:$0xf] %vm1740, %v1630
      %1744 = vst.msk [vmem:[%s175 + $0xc] sm:$0xf] %vm1740, %v1631
      %1745 = vst.msk [vmem:[%s175 + $0x10] sm:$0xf] %vm1740, %v1632
      %1746 = vst.msk [vmem:[%s175 + $0x14] sm:$0xf] %vm1740, %v1633
      %1747 = vst.msk [vmem:[%s175 + $0x18] sm:$0xf] %vm1740, %v1634
      %1748 = vst.msk [vmem:[%s175 + $0x1c] sm:$0xf] %vm1740, %v1635
      %1749 = vst.msk [vmem:[%s175 + $0x20] sm:$0xf] %vm1740, %v1636
      %1750 = vst.msk [vmem:[%s175 + $0x24] sm:$0xf] %vm1740, %v1637
      %1751 = vst.msk [vmem:[%s175 + $0x28] sm:$0xf] %vm1740, %v1638
      %1752 = vst.msk [vmem:[%s175 + $0x2c] sm:$0xf] %vm1740, %v1639
      %1753 = vst.msk [vmem:[%s175 + $0x30] sm:$0xf] %vm1740, %v1640
      %1754 = vst.msk [vmem:[%s175 + $0x34] sm:$0xf] %vm1740, %v1641
      %1755 = vst.msk [vmem:[%s175 + $0x38] sm:$0xf] %vm1740, %v1642
      %1756 = vst.msk [vmem:[%s175 + $0x3c] sm:$0xf] %vm1740, %v1643
      %1757 = vst.msk [vmem:[%s175 + $0x40] sm:$0xf] %vm1740, %v1644
      %1758 = vst.msk [vmem:[%s175 + $0x44] sm:$0xf] %vm1740, %v1645
      %1759 = vst.msk [vmem:[%s175 + $0x48] sm:$0xf] %vm1740, %v1646
      %1760 = vst.msk [vmem:[%s175 + $0x4c] sm:$0xf] %vm1740, %v1647
      %1761 = vst.msk [vmem:[%s175 + $0x50] sm:$0xf] %vm1740, %v1648
      %1762 = vst.msk [vmem:[%s175 + $0x54] sm:$0xf] %vm1740, %v1649
      %1763 = vst.msk [vmem:[%s175 + $0x58] sm:$0xf] %vm1740, %v1650
      %1764 = vst.msk [vmem:[%s175 + $0x5c] sm:$0xf] %vm1740, %v1651
      %1765 = vst.msk [vmem:[%s175 + $0x60] sm:$0xf] %vm1740, %v1652
      %1766 = vst.msk [vmem:[%s175 + $0x64] sm:$0xf] %vm1740, %v1653
      %1767 = vst.msk [vmem:[%s175 + $0x68] sm:$0xf] %vm1740, %v1654
      %1768 = vst.msk [vmem:[%s175 + $0x6c] sm:$0xf] %vm1740, %v1655
      %1769 = vst.msk [vmem:[%s175 + $0x70] sm:$0xf] %vm1740, %v1656
      %1770 = vst.msk [vmem:[%s175 + $0x74] sm:$0xf] %vm1740, %v1657
      %1771 = vst.msk [vmem:[%s175 + $0x78] sm:$0xf] %vm1740, %v1658
      %1772 = vst.msk [vmem:[%s175 + $0x7c] sm:$0xf] %vm1740, %v1659
      %1773 = vst.msk [vmem:[%s175 + $0x80] sm:$0xf] %vm1740, %v1660
      %1774 = vst.msk [vmem:[%s175 + $0x84] sm:$0xf] %vm1740, %v1661
      %1775 = vst.msk [vmem:[%s175 + $0x88] sm:$0xf] %vm1740, %v1662
      %1776 = vst.msk [vmem:[%s175 + $0x8c] sm:$0xf] %vm1740, %v1663
      %1777 = vst.msk [vmem:[%s175 + $0x90] sm:$0xf] %vm1740, %v1664
      %1778 = vst.msk [vmem:[%s175 + $0x94] sm:$0xf] %vm1740, %v1665
      %1779 = vst.msk [vmem:[%s175 + $0x98] sm:$0xf] %vm1740, %v1666
      %1780 = vst.msk [vmem:[%s175 + $0x9c] sm:$0xf] %vm1740, %v1667
      %1781 = vst.msk [vmem:[%s175 + $0xa0] sm:$0xf] %vm1740, %v1668
      %1782 = vst.msk [vmem:[%s175 + $0xa4] sm:$0xf] %vm1740, %v1669
      %1783 = vst.msk [vmem:[%s175 + $0xa8] sm:$0xf] %vm1740, %v1670
      %1784 = vst.msk [vmem:[%s175 + $0xac] sm:$0xf] %vm1740, %v1671
      %1785 = vst.msk [vmem:[%s175 + $0xb0] sm:$0xf] %vm1740, %v1672
      %1786 = vst.msk [vmem:[%s175 + $0xb4] sm:$0xf] %vm1740, %v1673
      %1787 = vst.msk [vmem:[%s175 + $0xb8] sm:$0xf] %vm1740, %v1674
      %1788 = vst.msk [vmem:[%s175 + $0xbc] sm:$0xf] %vm1740, %v1675
      %1789 = vst.msk [vmem:[%s175 + $0xc0] sm:$0xf] %vm1740, %v1676
      %1790 = vst.msk [vmem:[%s175 + $0xc4] sm:$0xf] %vm1740, %v1677
      %1791 = vst.msk [vmem:[%s175 + $0xc8] sm:$0xf] %vm1740, %v1678
      %1792 = vst.msk [vmem:[%s175 + $0xcc] sm:$0xf] %vm1740, %v1679
      %1793 = vst.msk [vmem:[%s175 + $0xd0] sm:$0xf] %vm1740, %v1680
      %1794 = vst.msk [vmem:[%s175 + $0xd4] sm:$0xf] %vm1740, %v1681
      %1795 = vst.msk [vmem:[%s175 + $0xd8] sm:$0xf] %vm1740, %v1682
      %1796 = vst.msk [vmem:[%s175 + $0xdc] sm:$0xf] %vm1740, %v1683
      %s1797 = smul.u32 56, %s14
      %p1798 = scmp.lt.s32.totalorder %s1797, 111
      %s1799 = scalar_select %p1798, %s1797, 111
      %s1800 = smul.addr %s1799, 4
      %s1801 = scalar_lea.vmem %s3, %s1800
      // Predicated region
      $region33: #{value_net_forward.7} parent=31 // pred_check
        %p1802 = pneg %p100
      $region34: #{value_net_forward.7} parent=31 // pred_check_branch
        %1804 = sbr.rel (%p1802) target = $region36
      $region35: #{value_net_forward.7} parent=31 // pred_region
        %s1805 = smul.u32 56, %s14
      $region36: #{value_net_forward.7} parent=31 // pred_fallthru
        _
    $region32: #{value_net_forward.7} parent=5 // pred_fallthru
      _
    %p1806 = scmp.le.s32.totalorder 2, %s9
    // Predicated region
    $region37: #{value_net_forward.7} parent=5 // pred_check
      %p1807 = pneg %p1806
    $region38: #{value_net_forward.7} parent=5 // pred_check_branch
      %1809 = sbr.rel (%p1807) target = $region40
    $region39: #{value_net_forward.7} parent=5 // pred_region
      %s1810 = ssub.s32 %s9, 2
      // Predicated region
      $region41: #{value_net_forward.7} parent=39 // pred_check
        %p1811 = pneg %p106
      $region42: #{value_net_forward.7} parent=39 // pred_check_branch
        %1813 = sbr.rel (%p1811) target = $region44
      $region43: #{value_net_forward.7} parent=39 // pred_region
        %s1814 = smul.u32 56, %s15
        %p1815 = scmp.lt.s32.totalorder %s1814, 111
        %s1816 = scalar_select %p1815, %s1814, 111
        %s1817 = smul.addr %s1816, 4
        %s1818 = scalar_lea.vmem %s3, %s1817
      $region44: #{value_net_forward.7} parent=39 // pred_fallthru
        _
    $region40: #{value_net_forward.7} parent=5 // pred_fallthru
      _
  $region6: #{value_net_forward.7} parent=0 // loop_footer
    %s13 = sadd.s32 1, %s9
  $region7: #{value_net_forward.7} parent=0 // loop_footer_branch
    %8 = sbr.rel target = $region3
  $region8: #{value_net_forward.7} parent=0 // loop_exit
    _

// kernel: value_net_forward.8
$region0: #{value_net_forward.8}
  #allocation0 [shape = 'u32[]', space=smem, size = 0x4, offset = 0x4, fixed_abs, tag = 'smem constant byte address 0x4 - core index']
  #allocation1 [shape = 'u32[144,128]{1,0:T(1,128)}', space=vmem, size = 0x12000, scoped, tag = 'internal scratch']
  %s0 = inlined_call_operand.vmem [shape: bf16[256,288], index: 0, kind: input, shape index: {}]
  %s1 = inlined_call_operand.vmem [shape: bf16[288,32], index: 1, kind: input, shape index: {}]
  %s2 = inlined_call_operand.vmem [shape: f32[1,32], index: 2, kind: input, shape index: {}]
  %s3 = inlined_call_operand.vmem [shape: bf16[256,32], index: 3, kind: output, shape index: {}]
  %s4 = sld [smem:[#allocation0]]
  $region45: #{value_net_forward.8} parent=0
    _
  %s6 = ssub.s32 1, %s4
  %s7 = scalar_select 0, %s6, %s4
  loop: start=0, step=1, limit=4
  $region2: #{value_net_forward.8} parent=0 // loop_pre_header
    _
  $region3: #{value_net_forward.8} parent=0 // loop_header
    %s9 = sphi 0, %s13
    %p10 = scmp.ge.s32.totalorder %s9, 4
    %s19 = sphi 0, %s21
    %s22 = sphi 0, %s19
    %s23 = sphi 0, %s22
    %s39 = sphi 0, %s23
    %s43 = sphi 0, %s43
    %s45 = sphi 0, %s43
    %s46 = sphi 0, %s45
    %s60 = sphi 0, %s46
    %s64 = sphi 0, %s64
    %s66 = sphi 0, %s64
    %s67 = sphi 0, %s66
    %s81 = sphi 0, %s67
    %s87 = sphi 0, %s89
    %s90 = sphi 0, %s87
    %s91 = sphi 0, %s90
    %s107 = sphi 0, %s91
  $region4: #{value_net_forward.8} parent=0 // loop_header_branch
    %12 = sbr.rel (%p10) target = $region8
  $region5: #{value_net_forward.8} parent=0 // loop_body
    %s14 = ssub.s32 %s9, 1
    %s15 = ssub.s32 %s9, 2
    %s16 = sadd.s32 %s9, 1
    %s17 = ssub.s32 %s9, %s16
    %p18 = scmp.eq.s32.totalorder %s17, 0
    %s20 = sadd.s32 %s19, 1
    %s21 = scalar_select %p18, %s19, %s20
    %p24 = pneg %p18
    %p25 = scmp.eq.s32.totalorder %s9, 1
    %p26 = por %p24, %p25
    %p27 = scmp.ne.s32.totalorder %s19, %s22
    %p28 = scmp.eq.s32.totalorder %s9, 0
    %p29 = por %p27, %p28
    %p30 = scmp.ne.s32.totalorder %s19, %s22
    %p31 = scmp.eq.s32.totalorder %s14, 1
    %p32 = por %p30, %p31
    %p33 = scmp.ne.s32.totalorder %s22, %s23
    %p34 = scmp.eq.s32.totalorder %s14, 0
    %p35 = por %p33, %p34
    %p36 = scmp.ne.s32.totalorder %s22, %s23
    %p37 = scmp.eq.s32.totalorder %s15, 1
    %p38 = por %p36, %p37
    %p40 = scmp.ne.s32.totalorder %s23, %s39
    %p41 = scmp.eq.s32.totalorder %s15, 0
    %p42 = por %p40, %p41
    %s44 = sadd.s32 %s43, 1
    %p47 = scmp.eq.s32.totalorder %s9, 1
    %p48 = scmp.ne.s32.totalorder %s43, %s45
    %p49 = scmp.eq.s32.totalorder %s9, 0
    %p50 = por %p48, %p49
    %p51 = scmp.ne.s32.totalorder %s43, %s45
    %p52 = scmp.eq.s32.totalorder %s14, 1
    %p53 = por %p51, %p52
    %p54 = scmp.ne.s32.totalorder %s45, %s46
    %p55 = scmp.eq.s32.totalorder %s14, 0
    %p56 = por %p54, %p55
    %p57 = scmp.ne.s32.totalorder %s45, %s46
    %p58 = scmp.eq.s32.totalorder %s15, 1
    %p59 = por %p57, %p58
    %p61 = scmp.ne.s32.totalorder %s46, %s60
    %p62 = scmp.eq.s32.totalorder %s15, 0
    %p63 = por %p61, %p62
    %s65 = sadd.s32 %s64, 1
    %p68 = scmp.eq.s32.totalorder %s9, 1
    %p69 = scmp.ne.s32.totalorder %s64, %s66
    %p70 = scmp.eq.s32.totalorder %s9, 0
    %p71 = por %p69, %p70
    %p72 = scmp.ne.s32.totalorder %s64, %s66
    %p73 = scmp.eq.s32.totalorder %s14, 1
    %p74 = por %p72, %p73
    %p75 = scmp.ne.s32.totalorder %s66, %s67
    %p76 = scmp.eq.s32.totalorder %s14, 0
    %p77 = por %p75, %p76
    %p78 = scmp.ne.s32.totalorder %s66, %s67
    %p79 = scmp.eq.s32.totalorder %s15, 1
    %p80 = por %p78, %p79
    %p82 = scmp.ne.s32.totalorder %s67, %s81
    %p83 = scmp.eq.s32.totalorder %s15, 0
    %p84 = por %p82, %p83
    %s85 = ssub.s32 %s9, %s16
    %p86 = scmp.eq.s32.totalorder %s85, 0
    %s88 = sadd.s32 %s87, 1
    %s89 = scalar_select %p86, %s87, %s88
    %p92 = pneg %p86
    %p93 = scmp.eq.s32.totalorder %s9, 1
    %p94 = por %p92, %p93
    %p95 = scmp.ne.s32.totalorder %s87, %s90
    %p96 = scmp.eq.s32.totalorder %s9, 0
    %p97 = por %p95, %p96
    %p98 = scmp.ne.s32.totalorder %s87, %s90
    %p99 = scmp.eq.s32.totalorder %s14, 1
    %p100 = por %p98, %p99
    %p101 = scmp.ne.s32.totalorder %s90, %s91
    %p102 = scmp.eq.s32.totalorder %s14, 0
    %p103 = por %p101, %p102
    %p104 = scmp.ne.s32.totalorder %s90, %s91
    %p105 = scmp.eq.s32.totalorder %s15, 1
    %p106 = por %p104, %p105
    %p108 = scmp.ne.s32.totalorder %s91, %s107
    %p109 = scmp.eq.s32.totalorder %s15, 0
    %p110 = por %p108, %p109
    %p111 = scmp.le.s32.totalorder 1, %s9
    %p112 = scmp.lt.s32.totalorder %s9, 3
    %p113 = pnand %p111, %p112
    %p114 = pneg %p113
    // Predicated region
    $region9: #{value_net_forward.8} parent=5 // pred_check
      _
    $region10: #{value_net_forward.8} parent=5 // pred_check_branch
      %116 = sbr.rel (%p113) target = $region12
    $region11: #{value_net_forward.8} parent=5 // pred_region
      %s117 = ssub.s32 %s9, 1
      // Predicated region
      $region13: #{value_net_forward.8} parent=11 // pred_check
        %p118 = pneg %p56
      $region14: #{value_net_forward.8} parent=11 // pred_check_branch
        %120 = sbr.rel (%p118) target = $region16
      $region15: #{value_net_forward.8} parent=11 // pred_region
        _
      $region16: #{value_net_forward.8} parent=11 // pred_fallthru
        _
      // Predicated region
      $region17: #{value_net_forward.8} parent=11 // pred_check
        %p121 = pneg %p77
      $region18: #{value_net_forward.8} parent=11 // pred_check_branch
        %123 = sbr.rel (%p121) target = $region20
      $region19: #{value_net_forward.8} parent=11 // pred_region
        _
      $region20: #{value_net_forward.8} parent=11 // pred_fallthru
        _
    $region12: #{value_net_forward.8} parent=5 // pred_fallthru
      _
    %p124 = scmp.lt.s32.totalorder %s9, 2
    // Predicated region
    $region21: #{value_net_forward.8} parent=5 // pred_check
      %p125 = pneg %p124
    $region22: #{value_net_forward.8} parent=5 // pred_check_branch
      %127 = sbr.rel (%p125) target = $region24
    $region23: #{value_net_forward.8} parent=5 // pred_region
      // Predicated region
      $region25: #{value_net_forward.8} parent=23 // pred_check
        %p128 = pneg %p29
      $region26: #{value_net_forward.8} parent=23 // pred_check_branch
        %130 = sbr.rel (%p128) target = $region28
      $region27: #{value_net_forward.8} parent=23 // pred_region
        %s131 = smul.u32 16, %s9
        %p132 = scmp.lt.s32.totalorder %s131, 31
        %s133 = scalar_select %p132, %s131, 31
        %s134 = smul.addr %s133, 3
        %s135 = smul.addr %s134, 4
        %s136 = scalar_lea.vmem %s0, %s135
        %s137 = smul.u32 16, %s9
      $region28: #{value_net_forward.8} parent=23 // pred_fallthru
        _
    $region24: #{value_net_forward.8} parent=5 // pred_fallthru
      _
    %p138 = scmp.le.s32.totalorder 1, %s9
    %p139 = scmp.lt.s32.totalorder %s9, 3
    %p140 = pnand %p138, %p139
    %p141 = pneg %p140
    // Predicated region
    $region29: #{value_net_forward.8} parent=5 // pred_check
      _
    $region30: #{value_net_forward.8} parent=5 // pred_check_branch
      %143 = sbr.rel (%p140) target = $region32
    $region31: #{value_net_forward.8} parent=5 // pred_region
      %s144 = ssub.s32 %s9, 1
      %s145 = smul.u32 16, %s14
      %p146 = scmp.lt.s32.totalorder %s145, 31
      %s147 = scalar_select %p146, %s145, 31
      %s148 = smul.addr %s147, 3
      %s149 = smul.addr %s148, 4
      %s150 = scalar_lea.vmem %s0, %s149
      %p151 = pneg %p35
      %p152 = pneg %p32
      %p153 = pneg %p56
      %p154 = pneg %p53
      %p155 = pneg %p77
      %p156 = pneg %p74
      %p157 = pneg %p103
      %p158 = pneg %p100
      %s159 = smul.u32 16, %s14
      %p160 = scmp.lt.s32.totalorder %s159, 31
      %s161 = scalar_select %p160, %s159, 31
      %s162 = smul.addr %s161, 4
      %s163 = scalar_lea.vmem %s3, %s162
      %s164 = smul.u32 16, %s14
      %p165 = scmp.lt.s32.totalorder %s164, 31
      %s166 = scalar_select %p165, %s164, 31
      %s167 = smul.addr %s166, 3
      %s168 = smul.addr %s167, 4
      %s169 = scalar_lea.vmem %s0, %s168
      %s170 = smul.u32 16, %s14
      %s171 = smul.u32 16, %s14
      %p172 = scmp.lt.s32.totalorder %s171, 31
      %s173 = scalar_select %p172, %s171, 31
      %s174 = smul.addr %s173, 4
      %s175 = scalar_lea.vmem %s3, %s174
      %s176 = smul.u32 16, %s14
      %v178 = vld [vmem:[%s169] sm:$0xff]
      %v179 = vld [vmem:[%s169 + $0x8] sm:$0xf]
      %v180 = vld [vmem:[%s169 + $0xc] sm:$0xff]
      %v181 = vld [vmem:[%s169 + $0x14] sm:$0xf]
      %v182 = vld [vmem:[%s169 + $0x18] sm:$0xff]
      %v183 = vld [vmem:[%s169 + $0x20] sm:$0xf]
      %v184 = vld [vmem:[%s169 + $0x24] sm:$0xff]
      %v185 = vld [vmem:[%s169 + $0x2c] sm:$0xf]
      %v186 = vld [vmem:[%s169 + $0x30] sm:$0xff]
      %v187 = vld [vmem:[%s169 + $0x38] sm:$0xf]
      %v188 = vld [vmem:[%s169 + $0x3c] sm:$0xff]
      %v189 = vld [vmem:[%s169 + $0x44] sm:$0xf]
      %v190 = vld [vmem:[%s169 + $0x48] sm:$0xff]
      %v191 = vld [vmem:[%s169 + $0x50] sm:$0xf]
      %v192 = vld [vmem:[%s169 + $0x54] sm:$0xff]
      %v193 = vld [vmem:[%s169 + $0x5c] sm:$0xf]
      %v194 = vld [vmem:[%s169 + $0x60] sm:$0xff]
      %v195 = vld [vmem:[%s169 + $0x68] sm:$0xf]
      %v196 = vld [vmem:[%s169 + $0x6c] sm:$0xff]
      %v197 = vld [vmem:[%s169 + $0x74] sm:$0xf]
      %v198 = vld [vmem:[%s169 + $0x78] sm:$0xff]
      %v199 = vld [vmem:[%s169 + $0x80] sm:$0xf]
      %v200 = vld [vmem:[%s169 + $0x84] sm:$0xff]
      %v201 = vld [vmem:[%s169 + $0x8c] sm:$0xf]
      %v202 = vld [vmem:[%s169 + $0x90] sm:$0xff]
      %v203 = vld [vmem:[%s169 + $0x98] sm:$0xf]
      %v204 = vld [vmem:[%s169 + $0x9c] sm:$0xff]
      %v205 = vld [vmem:[%s169 + $0xa4] sm:$0xf]
      %v206 = vld [vmem:[%s169 + $0xa8] sm:$0xff]
      %v207 = vld [vmem:[%s169 + $0xb0] sm:$0xf]
      %v208 = vld [vmem:[%s169 + $0xb4] sm:$0xff]
      %v209 = vld [vmem:[%s169 + $0xbc] sm:$0xf]
      %v210 = vld [vmem:[%s1] sm:$0xf]
      %v211 = vld [vmem:[%s1 + $0x4] sm:$0xf]
      %v212 = vld [vmem:[%s1 + $0x8] sm:$0xf]
      %v213 = vld [vmem:[%s1 + $0xc] sm:$0xf]
      %v214 = vld [vmem:[%s1 + $0x10] sm:$0xf]
      %v215 = vld [vmem:[%s1 + $0x14] sm:$0xf]
      %v216 = vld [vmem:[%s1 + $0x18] sm:$0xf]
      %v217 = vld [vmem:[%s1 + $0x1c] sm:$0xf]
      %v218 = vld [vmem:[%s1 + $0x20] sm:$0xf]
      %v219 = vld [vmem:[%s1 + $0x24] sm:$0xf]
      %v220 = vld [vmem:[%s1 + $0x28] sm:$0xf]
      %v221 = vld [vmem:[%s1 + $0x2c] sm:$0xf]
      %v222 = vld [vmem:[%s1 + $0x30] sm:$0xf]
      %v223 = vld [vmem:[%s1 + $0x34] sm:$0xf]
      %v224 = vld [vmem:[%s1 + $0x38] sm:$0xf]
      %v225 = vld [vmem:[%s1 + $0x3c] sm:$0xf]
      %v226 = vld [vmem:[%s1 + $0x40] sm:$0xf]
      %v227 = vld [vmem:[%s1 + $0x44] sm:$0xf]
      %v228 = vld [vmem:[%s1 + $0x48] sm:$0xf]
      %v229 = vld [vmem:[%s1 + $0x4c] sm:$0xf]
      %v230 = vld [vmem:[%s1 + $0x50] sm:$0xf]
      %v231 = vld [vmem:[%s1 + $0x54] sm:$0xf]
      %v232 = vld [vmem:[%s1 + $0x58] sm:$0xf]
      %v233 = vld [vmem:[%s1 + $0x5c] sm:$0xf]
      %v234 = vld [vmem:[%s1 + $0x60] sm:$0xf]
      %v235 = vld [vmem:[%s1 + $0x64] sm:$0xf]
      %v236 = vld [vmem:[%s1 + $0x68] sm:$0xf]
      %v237 = vld [vmem:[%s1 + $0x6c] sm:$0xf]
      %v238 = vld [vmem:[%s1 + $0x70] sm:$0xf]
      %v239 = vld [vmem:[%s1 + $0x74] sm:$0xf]
      %v240 = vld [vmem:[%s1 + $0x78] sm:$0xf]
      %v241 = vld [vmem:[%s1 + $0x7c] sm:$0xf]
      %v242 = vld [vmem:[%s1 + $0x80] sm:$0xf]
      %v243 = vld [vmem:[%s1 + $0x84] sm:$0xf]
      %v244 = vld [vmem:[%s1 + $0x88] sm:$0xf]
      %v245 = vld [vmem:[%s1 + $0x8c] sm:$0xf]
      %v246 = vld [vmem:[%s2] sm:$0x1]
      %v248 = vlaneseq
      %v249 = vshrl.u32 %v248, 7
      %v250 = vsub.s32 0, %v249
      %v251 = vrot.slane %v246, %v250
      %v285 = vunpack.c.l.b16 %v178
      %v286 = vunpack.c.h.b16 %v178
      %v287 = vunpack.c.l.b16 %v179
      %v288 = vunpack.c.l.b16 %v180
      %v289 = vunpack.c.h.b16 %v180
      %v290 = vunpack.c.l.b16 %v181
      %v291 = vunpack.c.l.b16 %v182
      %v292 = vunpack.c.h.b16 %v182
      %v293 = vunpack.c.l.b16 %v183
      %v294 = vunpack.c.l.b16 %v184
      %v295 = vunpack.c.h.b16 %v184
      %v296 = vunpack.c.l.b16 %v185
      %v297 = vunpack.c.l.b16 %v186
      %v298 = vunpack.c.h.b16 %v186
      %v299 = vunpack.c.l.b16 %v187
      %v300 = vunpack.c.l.b16 %v188
      %v301 = vunpack.c.h.b16 %v188
      %v302 = vunpack.c.l.b16 %v189
      %v303 = vunpack.c.l.b16 %v190
      %v304 = vunpack.c.h.b16 %v190
      %v305 = vunpack.c.l.b16 %v191
      %v306 = vunpack.c.l.b16 %v192
      %v307 = vunpack.c.h.b16 %v192
      %v308 = vunpack.c.l.b16 %v193
      %v309 = vunpack.c.l.b16 %v194
      %v310 = vunpack.c.h.b16 %v194
      %v311 = vunpack.c.l.b16 %v195
      %v312 = vunpack.c.l.b16 %v196
      %v313 = vunpack.c.h.b16 %v196
      %v314 = vunpack.c.l.b16 %v197
      %v315 = vunpack.c.l.b16 %v198
      %v316 = vunpack.c.h.b16 %v198
      %v317 = vunpack.c.l.b16 %v199
      %v318 = vunpack.c.l.b16 %v200
      %v319 = vunpack.c.h.b16 %v200
      %v320 = vunpack.c.l.b16 %v201
      %v321 = vunpack.c.l.b16 %v202
      %v322 = vunpack.c.h.b16 %v202
      %v323 = vunpack.c.l.b16 %v203
      %v324 = vunpack.c.l.b16 %v204
      %v325 = vunpack.c.h.b16 %v204
      %v326 = vunpack.c.l.b16 %v205
      %v327 = vunpack.c.l.b16 %v206
      %v328 = vunpack.c.h.b16 %v206
      %v329 = vunpack.c.l.b16 %v207
      %v330 = vunpack.c.l.b16 %v208
      %v331 = vunpack.c.h.b16 %v208
      %v332 = vunpack.c.l.b16 %v209
      %v333 = vpack.c.b16 %v288, %v285
      %v334 = vpack.c.b16 %v289, %v286
      %v335 = vpack.c.b16 %v290, %v287
      %v336 = vpack.c.b16 %v294, %v291
      %v337 = vpack.c.b16 %v295, %v292
      %v338 = vpack.c.b16 %v296, %v293
      %v339 = vpack.c.b16 %v300, %v297
      %v340 = vpack.c.b16 %v301, %v298
      %v341 = vpack.c.b16 %v302, %v299
      %v342 = vpack.c.b16 %v306, %v303
      %v343 = vpack.c.b16 %v307, %v304
      %v344 = vpack.c.b16 %v308, %v305
      %v345 = vpack.c.b16 %v312, %v309
      %v346 = vpack.c.b16 %v313, %v310
      %v347 = vpack.c.b16 %v314, %v311
      %v348 = vpack.c.b16 %v318, %v315
      %v349 = vpack.c.b16 %v319, %v316
      %v350 = vpack.c.b16 %v320, %v317
      %v351 = vpack.c.b16 %v324, %v321
      %v352 = vpack.c.b16 %v325, %v322
      %v353 = vpack.c.b16 %v326, %v323
      %v354 = vpack.c.b16 %v330, %v327
      %v355 = vpack.c.b16 %v331, %v328
      %v356 = vpack.c.b16 %v332, %v329
      %v409 = vunpack.c.l.b16 %v210
      %v410 = vunpack.c.l.b16 %v211
      %v411 = vunpack.c.l.b16 %v212
      %v412 = vunpack.c.l.b16 %v213
      %v413 = vunpack.c.l.b16 %v214
      %v414 = vunpack.c.l.b16 %v215
      %v415 = vunpack.c.l.b16 %v216
      %v416 = vunpack.c.l.b16 %v217
      %v417 = vunpack.c.l.b16 %v218
      %v418 = vunpack.c.l.b16 %v219
      %v419 = vunpack.c.l.b16 %v220
      %v420 = vunpack.c.l.b16 %v221
      %v421 = vunpack.c.l.b16 %v222
      %v422 = vunpack.c.l.b16 %v223
      %v423 = vunpack.c.l.b16 %v224
      %v424 = vunpack.c.l.b16 %v225
      %v425 = vunpack.c.l.b16 %v226
      %v426 = vunpack.c.l.b16 %v227
      %v427 = vunpack.c.l.b16 %v228
      %v428 = vunpack.c.l.b16 %v229
      %v429 = vunpack.c.l.b16 %v230
      %v430 = vunpack.c.l.b16 %v231
      %v431 = vunpack.c.l.b16 %v232
      %v432 = vunpack.c.l.b16 %v233
      %v433 = vunpack.c.l.b16 %v234
      %v434 = vunpack.c.l.b16 %v235
      %v435 = vunpack.c.l.b16 %v236
      %v436 = vunpack.c.l.b16 %v237
      %v437 = vunpack.c.l.b16 %v238
      %v438 = vunpack.c.l.b16 %v239
      %v439 = vunpack.c.l.b16 %v240
      %v440 = vunpack.c.l.b16 %v241
      %v441 = vunpack.c.l.b16 %v242
      %v442 = vunpack.c.l.b16 %v243
      %v443 = vunpack.c.l.b16 %v244
      %v444 = vunpack.c.l.b16 %v245
      %v445 = vpack.c.b16 %v410, %v409
      %v446 = vpack.c.b16 %v412, %v411
      %v447 = vpack.c.b16 %v414, %v413
      %v448 = vpack.c.b16 %v416, %v415
      %v449 = vpack.c.b16 %v418, %v417
      %v450 = vpack.c.b16 %v420, %v419
      %v451 = vpack.c.b16 %v422, %v421
      %v452 = vpack.c.b16 %v424, %v423
      %v453 = vpack.c.b16 %v426, %v425
      %v454 = vpack.c.b16 %v428, %v427
      %v455 = vpack.c.b16 %v430, %v429
      %v456 = vpack.c.b16 %v432, %v431
      %v457 = vpack.c.b16 %v434, %v433
      %v458 = vpack.c.b16 %v436, %v435
      %v459 = vpack.c.b16 %v438, %v437
      %v460 = vpack.c.b16 %v440, %v439
      %v461 = vpack.c.b16 %v442, %v441
      %v462 = vpack.c.b16 %v444, %v443
      %vm481 = vcmask 261120
      %v483 = vsel %vm481, %v335, 0
      %v486 = vsel %vm481, %v338, 0
      %v489 = vsel %vm481, %v341, 0
      %v492 = vsel %vm481, %v344, 0
      %v495 = vsel %vm481, %v347, 0
      %v498 = vsel %vm481, %v350, 0
      %v501 = vsel %vm481, %v353, 0
      %v504 = vsel %vm481, %v356, 0
      %506 = vmatprep.subr.bf16.mxu0 0
      %507 = vmatpush1.bf16.msra.mxu0 %v452
      %508 = vmatprep.subr.bf16.mxu0 0
      %509 = vmatpush1.bf16.msra.mxu0 %v451
      %510 = vmatprep.subr.bf16.mxu0 0
      %511 = vmatpush1.bf16.msra.mxu0 %v450
      %512 = vmatprep.subr.bf16.mxu0 0
      %513 = vmatpush1.bf16.msra.mxu0 %v449
      %514 = vmatprep.subr.bf16.mxu0 0
      %515 = vmatpush1.bf16.msra.mxu0 %v448
      %516 = vmatprep.subr.bf16.mxu0 0
      %517 = vmatpush1.bf16.msra.mxu0 %v447
      %518 = vmatprep.subr.bf16.mxu0 0
      %519 = vmatpush1.bf16.msra.mxu0 %v446
      %520 = vmatprep.subr.bf16.mxu0 0
      %521 = vmatpush1.bf16.msra.mxu0 %v445
      %522 = vmatprep.subr.bf16.mxu0 0
      %523 = vmatpush2.bf16.msra.mxu0 %v460
      %524 = vmatprep.subr.bf16.mxu0 0
      %525 = vmatpush2.bf16.msra.mxu0 %v459
      %526 = vmatprep.subr.bf16.mxu0 0
      %527 = vmatpush2.bf16.msra.mxu0 %v458
      %528 = vmatprep.subr.bf16.mxu0 0
      %529 = vmatpush2.bf16.msra.mxu0 %v457
      %530 = vmatprep.subr.bf16.mxu0 0
      %531 = vmatpush2.bf16.msra.mxu0 %v456
      %532 = vmatprep.subr.bf16.mxu0 0
      %533 = vmatpush2.bf16.msra.mxu0 %v455
      %534 = vmatprep.subr.bf16.mxu0 0
      %535 = vmatpush2.bf16.msra.mxu0 %v454
      %536 = vmatprep.subr.bf16.mxu0 0
      %537 = vmatpush2.bf16.msra.mxu0 %v453
      %538 = vmatprep.mubr.bf16.mxu0 %v334
      %539 = vmatmul.mubr.bf16.gmra.mxu0 %v333
      %v540 = vpop.f32.mrf.mxu0
      %v541 = vadd.f32 %v251, %v540
      %v542 = vpop.f32.mrf.mxu0
      %v543 = vpop.f32.mrf.mxu0
      %v544 = vadd.f32 %v251, %v543
      %v545 = vpop.f32.mrf.mxu0
      %546 = vmatprep.mubr.bf16.mxu0 %v337
      %547 = vmatmul.mubr.bf16.gmra.mxu0 %v336
      %v548 = vpop.f32.mrf.mxu0
      %v549 = vadd.f32 %v251, %v548
      %v550 = vpop.f32.mrf.mxu0
      %v551 = vpop.f32.mrf.mxu0
      %v552 = vadd.f32 %v251, %v551
      %v553 = vpop.f32.mrf.mxu0
      %554 = vmatprep.mubr.bf16.mxu0 %v340
      %555 = vmatmul.mubr.bf16.gmra.mxu0 %v339
      %v556 = vpop.f32.mrf.mxu0
      %v557 = vadd.f32 %v251, %v556
      %v558 = vpop.f32.mrf.mxu0
      %v559 = vpop.f32.mrf.mxu0
      %v560 = vadd.f32 %v251, %v559
      %v561 = vpop.f32.mrf.mxu0
      %562 = vmatprep.mubr.bf16.mxu0 %v343
      %563 = vmatmul.mubr.bf16.gmra.mxu0 %v342
      %v564 = vpop.f32.mrf.mxu0
      %v565 = vadd.f32 %v251, %v564
      %v566 = vpop.f32.mrf.mxu0
      %v567 = vpop.f32.mrf.mxu0
      %v568 = vadd.f32 %v251, %v567
      %v569 = vpop.f32.mrf.mxu0
      %570 = vmatprep.mubr.bf16.mxu0 %v346
      %571 = vmatmul.mubr.bf16.gmra.mxu0 %v345
      %v572 = vpop.f32.mrf.mxu0
      %v573 = vadd.f32 %v251, %v572
      %v574 = vpop.f32.mrf.mxu0
      %v575 = vpop.f32.mrf.mxu0
      %v576 = vadd.f32 %v251, %v575
      %v577 = vpop.f32.mrf.mxu0
      %578 = vmatprep.mubr.bf16.mxu0 %v349
      %579 = vmatmul.mubr.bf16.gmra.mxu0 %v348
      %v580 = vpop.f32.mrf.mxu0
      %v581 = vadd.f32 %v251, %v580
      %v582 = vpop.f32.mrf.mxu0
      %v583 = vpop.f32.mrf.mxu0
      %v584 = vadd.f32 %v251, %v583
      %v585 = vpop.f32.mrf.mxu0
      %586 = vmatprep.mubr.bf16.mxu0 %v352
      %587 = vmatmul.mubr.bf16.gmra.mxu0 %v351
      %v588 = vpop.f32.mrf.mxu0
      %v589 = vadd.f32 %v251, %v588
      %v590 = vpop.f32.mrf.mxu0
      %v591 = vpop.f32.mrf.mxu0
      %v592 = vadd.f32 %v251, %v591
      %v593 = vpop.f32.mrf.mxu0
      %594 = vmatprep.mubr.bf16.mxu0 %v355
      %595 = vmatmul.mubr.bf16.gmra.mxu0 %v354
      %v596 = vpop.f32.mrf.mxu0
      %v597 = vadd.f32 %v251, %v596
      %v598 = vpop.f32.mrf.mxu0
      %v599 = vpop.f32.mrf.mxu0
      %v600 = vadd.f32 %v251, %v599
      %v601 = vpop.f32.mrf.mxu0
      %602 = vdwg.mxu0
      %603 = vmatprep.subr.bf16.mxu0 0
      %604 = vmatpush1.bf16.msra.mxu0 0
      %605 = vmatprep.subr.bf16.mxu0 0
      %606 = vmatpush1.bf16.msra.mxu0 0
      %607 = vmatprep.subr.bf16.mxu0 0
      %608 = vmatpush1.bf16.msra.mxu0 0
      %609 = vmatprep.subr.bf16.mxu0 0
      %610 = vmatpush1.bf16.msra.mxu0 0
      %611 = vmatprep.subr.bf16.mxu0 0
      %612 = vmatpush1.bf16.msra.mxu0 0
      %613 = vmatprep.subr.bf16.mxu0 0
      %614 = vmatpush1.bf16.msra.mxu0 0
      %615 = vmatprep.subr.bf16.mxu0 0
      %616 = vmatpush1.bf16.msra.mxu0 %v462
      %617 = vmatprep.subr.bf16.mxu0 0
      %618 = vmatpush1.bf16.msra.mxu0 %v461
      %619 = vmatprep.subr.bf16.mxu0 0
      %620 = vmatpush2.bf16.msra.mxu0 0
      %621 = vmatprep.subr.bf16.mxu0 0
      %622 = vmatpush2.bf16.msra.mxu0 0
      %623 = vmatprep.subr.bf16.mxu0 0
      %624 = vmatpush2.bf16.msra.mxu0 0
      %625 = vmatprep.subr.bf16.mxu0 0
      %626 = vmatpush2.bf16.msra.mxu0 0
      %627 = vmatprep.subr.bf16.mxu0 0
      %628 = vmatpush2.bf16.msra.mxu0 0
      %629 = vmatprep.subr.bf16.mxu0 0
      %630 = vmatpush2.bf16.msra.mxu0 0
      %631 = vmatprep.subr.bf16.mxu0 0
      %632 = vmatpush2.bf16.msra.mxu0 0
      %633 = vmatprep.subr.bf16.mxu0 0
      %634 = vmatpush2.bf16.msra.mxu0 0
      %635 = vmatprep.mubr.bf16.mxu0 0
      %636 = vmatmul.mubr.bf16.gmra.mxu0 %v483
      %v637 = vpop.f32.mrf.mxu0
      %v638 = vadd.f32 %v541, %v637
      %v639 = vpop.f32.mrf.mxu0
      %v640 = vpop.f32.mrf.mxu0
      %v641 = vadd.f32 %v544, %v640
      %v642 = vpop.f32.mrf.mxu0
      %643 = vmatprep.mubr.bf16.mxu0 0
      %644 = vmatmul.mubr.bf16.gmra.mxu0 %v486
      %v645 = vpop.f32.mrf.mxu0
      %v646 = vadd.f32 %v549, %v645
      %v647 = vpop.f32.mrf.mxu0
      %v648 = vpop.f32.mrf.mxu0
      %v649 = vadd.f32 %v552, %v648
      %v650 = vpop.f32.mrf.mxu0
      %651 = vmatprep.mubr.bf16.mxu0 0
      %652 = vmatmul.mubr.bf16.gmra.mxu0 %v489
      %v653 = vpop.f32.mrf.mxu0
      %v654 = vadd.f32 %v557, %v653
      %v655 = vpop.f32.mrf.mxu0
      %v656 = vpop.f32.mrf.mxu0
      %v657 = vadd.f32 %v560, %v656
      %v658 = vpop.f32.mrf.mxu0
      %659 = vmatprep.mubr.bf16.mxu0 0
      %660 = vmatmul.mubr.bf16.gmra.mxu0 %v492
      %v661 = vpop.f32.mrf.mxu0
      %v662 = vadd.f32 %v565, %v661
      %v663 = vpop.f32.mrf.mxu0
      %v664 = vpop.f32.mrf.mxu0
      %v665 = vadd.f32 %v568, %v664
      %v666 = vpop.f32.mrf.mxu0
      %667 = vmatprep.mubr.bf16.mxu0 0
      %668 = vmatmul.mubr.bf16.gmra.mxu0 %v495
      %v669 = vpop.f32.mrf.mxu0
      %v670 = vadd.f32 %v573, %v669
      %v671 = vpop.f32.mrf.mxu0
      %v672 = vpop.f32.mrf.mxu0
      %v673 = vadd.f32 %v576, %v672
      %v674 = vpop.f32.mrf.mxu0
      %675 = vmatprep.mubr.bf16.mxu0 0
      %676 = vmatmul.mubr.bf16.gmra.mxu0 %v498
      %v677 = vpop.f32.mrf.mxu0
      %v678 = vadd.f32 %v581, %v677
      %v679 = vpop.f32.mrf.mxu0
      %v680 = vpop.f32.mrf.mxu0
      %v681 = vadd.f32 %v584, %v680
      %v682 = vpop.f32.mrf.mxu0
      %683 = vmatprep.mubr.bf16.mxu0 0
      %684 = vmatmul.mubr.bf16.gmra.mxu0 %v501
      %v685 = vpop.f32.mrf.mxu0
      %v686 = vadd.f32 %v589, %v685
      %v687 = vpop.f32.mrf.mxu0
      %v688 = vpop.f32.mrf.mxu0
      %v689 = vadd.f32 %v592, %v688
      %v690 = vpop.f32.mrf.mxu0
      %691 = vmatprep.mubr.bf16.mxu0 0
      %692 = vmatmul.mubr.bf16.gmra.mxu0 %v504
      %v693 = vpop.f32.mrf.mxu0
      %v694 = vadd.f32 %v597, %v693
      %v695 = vpop.f32.mrf.mxu0
      %v696 = vpop.f32.mrf.mxu0
      %v697 = vadd.f32 %v600, %v696
      %v698 = vpop.f32.mrf.mxu0
      %699 = vdwg.mxu0
      %v700 = vmax.f32 %v638, 0.0
      %v701 = vmax.f32 %v641, 0.0
      %v702 = vmax.f32 %v646, 0.0
      %v703 = vmax.f32 %v649, 0.0
      %v704 = vmax.f32 %v654, 0.0
      %v705 = vmax.f32 %v657, 0.0
      %v706 = vmax.f32 %v662, 0.0
      %v707 = vmax.f32 %v665, 0.0
      %v708 = vmax.f32 %v670, 0.0
      %v709 = vmax.f32 %v673, 0.0
      %v710 = vmax.f32 %v678, 0.0
      %v711 = vmax.f32 %v681, 0.0
      %v712 = vmax.f32 %v686, 0.0
      %v713 = vmax.f32 %v689, 0.0
      %v714 = vmax.f32 %v694, 0.0
      %v715 = vmax.f32 %v697, 0.0
      %v716 = vpack.c.bf16 %v701, %v700
      %v717 = vpack.c.bf16 %v703, %v702
      %v718 = vpack.c.bf16 %v705, %v704
      %v719 = vpack.c.bf16 %v707, %v706
      %v720 = vpack.c.bf16 %v709, %v708
      %v721 = vpack.c.bf16 %v711, %v710
      %v722 = vpack.c.bf16 %v713, %v712
      %v723 = vpack.c.bf16 %v715, %v714
      %v732 = vunpack.c.l.b16 %v716
      %v733 = vunpack.c.h.b16 %v716
      %v734 = vunpack.c.l.b16 %v717
      %v735 = vunpack.c.h.b16 %v717
      %v736 = vunpack.c.l.b16 %v718
      %v737 = vunpack.c.h.b16 %v718
      %v738 = vunpack.c.l.b16 %v719
      %v739 = vunpack.c.h.b16 %v719
      %v740 = vunpack.c.l.b16 %v720
      %v741 = vunpack.c.h.b16 %v720
      %v742 = vunpack.c.l.b16 %v721
      %v743 = vunpack.c.h.b16 %v721
      %v744 = vunpack.c.l.b16 %v722
      %v745 = vunpack.c.h.b16 %v722
      %v746 = vunpack.c.l.b16 %v723
      %v747 = vunpack.c.h.b16 %v723
      %v748 = vpack.c.b16 %v732, %v732
      %v749 = vpack.c.b16 %v733, %v733
      %v750 = vpack.c.b16 %v734, %v734
      %v751 = vpack.c.b16 %v735, %v735
      %v752 = vpack.c.b16 %v736, %v736
      %v753 = vpack.c.b16 %v737, %v737
      %v754 = vpack.c.b16 %v738, %v738
      %v755 = vpack.c.b16 %v739, %v739
      %v756 = vpack.c.b16 %v740, %v740
      %v757 = vpack.c.b16 %v741, %v741
      %v758 = vpack.c.b16 %v742, %v742
      %v759 = vpack.c.b16 %v743, %v743
      %v760 = vpack.c.b16 %v744, %v744
      %v761 = vpack.c.b16 %v745, %v745
      %v762 = vpack.c.b16 %v746, %v746
      %v763 = vpack.c.b16 %v747, %v747
      %vm780 = vcmask 257024
      %781 = vst.msk [vmem:[%s175] sm:$0xf] %vm780, %v748
      %782 = vst.msk [vmem:[%s175 + $0x4] sm:$0xf] %vm780, %v749
      %783 = vst.msk [vmem:[%s175 + $0x8] sm:$0xf] %vm780, %v750
      %784 = vst.msk [vmem:[%s175 + $0xc] sm:$0xf] %vm780, %v751
      %785 = vst.msk [vmem:[%s175 + $0x10] sm:$0xf] %vm780, %v752
      %786 = vst.msk [vmem:[%s175 + $0x14] sm:$0xf] %vm780, %v753
      %787 = vst.msk [vmem:[%s175 + $0x18] sm:$0xf] %vm780, %v754
      %788 = vst.msk [vmem:[%s175 + $0x1c] sm:$0xf] %vm780, %v755
      %789 = vst.msk [vmem:[%s175 + $0x20] sm:$0xf] %vm780, %v756
      %790 = vst.msk [vmem:[%s175 + $0x24] sm:$0xf] %vm780, %v757
      %791 = vst.msk [vmem:[%s175 + $0x28] sm:$0xf] %vm780, %v758
      %792 = vst.msk [vmem:[%s175 + $0x2c] sm:$0xf] %vm780, %v759
      %793 = vst.msk [vmem:[%s175 + $0x30] sm:$0xf] %vm780, %v760
      %794 = vst.msk [vmem:[%s175 + $0x34] sm:$0xf] %vm780, %v761
      %795 = vst.msk [vmem:[%s175 + $0x38] sm:$0xf] %vm780, %v762
      %796 = vst.msk [vmem:[%s175 + $0x3c] sm:$0xf] %vm780, %v763
      %s797 = smul.u32 16, %s14
      %p798 = scmp.lt.s32.totalorder %s797, 31
      %s799 = scalar_select %p798, %s797, 31
      %s800 = smul.addr %s799, 4
      %s801 = scalar_lea.vmem %s3, %s800
      // Predicated region
      $region33: #{value_net_forward.8} parent=31 // pred_check
        %p802 = pneg %p100
      $region34: #{value_net_forward.8} parent=31 // pred_check_branch
        %804 = sbr.rel (%p802) target = $region36
      $region35: #{value_net_forward.8} parent=31 // pred_region
        %s805 = smul.u32 16, %s14
      $region36: #{value_net_forward.8} parent=31 // pred_fallthru
        _
    $region32: #{value_net_forward.8} parent=5 // pred_fallthru
      _
    %p806 = scmp.le.s32.totalorder 2, %s9
    // Predicated region
    $region37: #{value_net_forward.8} parent=5 // pred_check
      %p807 = pneg %p806
    $region38: #{value_net_forward.8} parent=5 // pred_check_branch
      %809 = sbr.rel (%p807) target = $region40
    $region39: #{value_net_forward.8} parent=5 // pred_region
      %s810 = ssub.s32 %s9, 2
      // Predicated region
      $region41: #{value_net_forward.8} parent=39 // pred_check
        %p811 = pneg %p106
      $region42: #{value_net_forward.8} parent=39 // pred_check_branch
        %813 = sbr.rel (%p811) target = $region44
      $region43: #{value_net_forward.8} parent=39 // pred_region
        %s814 = smul.u32 16, %s15
        %p815 = scmp.lt.s32.totalorder %s814, 31
        %s816 = scalar_select %p815, %s814, 31
        %s817 = smul.addr %s816, 4
        %s818 = scalar_lea.vmem %s3, %s817
      $region44: #{value_net_forward.8} parent=39 // pred_fallthru
        _
    $region40: #{value_net_forward.8} parent=5 // pred_fallthru
      _
  $region6: #{value_net_forward.8} parent=0 // loop_footer
    %s13 = sadd.s32 1, %s9
  $region7: #{value_net_forward.8} parent=0 // loop_footer_branch
    %8 = sbr.rel target = $region3
  $region8: #{value_net_forward.8} parent=0 // loop_exit
    _

// kernel: value_net_forward.9
$region0: #{value_net_forward.9}
  #allocation0 [shape = 'u32[]', space=smem, size = 0x4, offset = 0x4, fixed_abs, tag = 'smem constant byte address 0x4 - core index']
  #allocation1 [shape = 'u32[144,128]{1,0:T(1,128)}', space=vmem, size = 0x12000, scoped, tag = 'internal scratch']
  %s0 = inlined_call_operand.vmem [shape: bf16[96,288], index: 0, kind: input, shape index: {}]
  %s1 = inlined_call_operand.vmem [shape: bf16[288,32], index: 1, kind: input, shape index: {}]
  %s2 = inlined_call_operand.vmem [shape: f32[1,32], index: 2, kind: input, shape index: {}]
  %s3 = inlined_call_operand.vmem [shape: bf16[96,32], index: 3, kind: output, shape index: {}]
  %s4 = sld [smem:[#allocation0]]
  $region45: #{value_net_forward.9} parent=0
    _
  %s6 = ssub.s32 1, %s4
  %s7 = scalar_select 0, %s6, %s4
  loop: start=0, step=1, limit=4
  $region2: #{value_net_forward.9} parent=0 // loop_pre_header
    _
  $region3: #{value_net_forward.9} parent=0 // loop_header
    %s9 = sphi 0, %s13
    %p10 = scmp.ge.s32.totalorder %s9, 4
    %s19 = sphi 0, %s21
    %s22 = sphi 0, %s19
    %s23 = sphi 0, %s22
    %s39 = sphi 0, %s23
    %s43 = sphi 0, %s43
    %s45 = sphi 0, %s43
    %s46 = sphi 0, %s45
    %s60 = sphi 0, %s46
    %s64 = sphi 0, %s64
    %s66 = sphi 0, %s64
    %s67 = sphi 0, %s66
    %s81 = sphi 0, %s67
    %s87 = sphi 0, %s89
    %s90 = sphi 0, %s87
    %s91 = sphi 0, %s90
    %s107 = sphi 0, %s91
  $region4: #{value_net_forward.9} parent=0 // loop_header_branch
    %12 = sbr.rel (%p10) target = $region8
  $region5: #{value_net_forward.9} parent=0 // loop_body
    %s14 = ssub.s32 %s9, 1
    %s15 = ssub.s32 %s9, 2
    %s16 = sadd.s32 %s9, 1
    %s17 = ssub.s32 %s9, %s16
    %p18 = scmp.eq.s32.totalorder %s17, 0
    %s20 = sadd.s32 %s19, 1
    %s21 = scalar_select %p18, %s19, %s20
    %p24 = pneg %p18
    %p25 = scmp.eq.s32.totalorder %s9, 1
    %p26 = por %p24, %p25
    %p27 = scmp.ne.s32.totalorder %s19, %s22
    %p28 = scmp.eq.s32.totalorder %s9, 0
    %p29 = por %p27, %p28
    %p30 = scmp.ne.s32.totalorder %s19, %s22
    %p31 = scmp.eq.s32.totalorder %s14, 1
    %p32 = por %p30, %p31
    %p33 = scmp.ne.s32.totalorder %s22, %s23
    %p34 = scmp.eq.s32.totalorder %s14, 0
    %p35 = por %p33, %p34
    %p36 = scmp.ne.s32.totalorder %s22, %s23
    %p37 = scmp.eq.s32.totalorder %s15, 1
    %p38 = por %p36, %p37
    %p40 = scmp.ne.s32.totalorder %s23, %s39
    %p41 = scmp.eq.s32.totalorder %s15, 0
    %p42 = por %p40, %p41
    %s44 = sadd.s32 %s43, 1
    %p47 = scmp.eq.s32.totalorder %s9, 1
    %p48 = scmp.ne.s32.totalorder %s43, %s45
    %p49 = scmp.eq.s32.totalorder %s9, 0
    %p50 = por %p48, %p49
    %p51 = scmp.ne.s32.totalorder %s43, %s45
    %p52 = scmp.eq.s32.totalorder %s14, 1
    %p53 = por %p51, %p52
    %p54 = scmp.ne.s32.totalorder %s45, %s46
    %p55 = scmp.eq.s32.totalorder %s14, 0
    %p56 = por %p54, %p55
    %p57 = scmp.ne.s32.totalorder %s45, %s46
    %p58 = scmp.eq.s32.totalorder %s15, 1
    %p59 = por %p57, %p58
    %p61 = scmp.ne.s32.totalorder %s46, %s60
    %p62 = scmp.eq.s32.totalorder %s15, 0
    %p63 = por %p61, %p62
    %s65 = sadd.s32 %s64, 1
    %p68 = scmp.eq.s32.totalorder %s9, 1
    %p69 = scmp.ne.s32.totalorder %s64, %s66
    %p70 = scmp.eq.s32.totalorder %s9, 0
    %p71 = por %p69, %p70
    %p72 = scmp.ne.s32.totalorder %s64, %s66
    %p73 = scmp.eq.s32.totalorder %s14, 1
    %p74 = por %p72, %p73
    %p75 = scmp.ne.s32.totalorder %s66, %s67
    %p76 = scmp.eq.s32.totalorder %s14, 0
    %p77 = por %p75, %p76
    %p78 = scmp.ne.s32.totalorder %s66, %s67
    %p79 = scmp.eq.s32.totalorder %s15, 1
    %p80 = por %p78, %p79
    %p82 = scmp.ne.s32.totalorder %s67, %s81
    %p83 = scmp.eq.s32.totalorder %s15, 0
    %p84 = por %p82, %p83
    %s85 = ssub.s32 %s9, %s16
    %p86 = scmp.eq.s32.totalorder %s85, 0
    %s88 = sadd.s32 %s87, 1
    %s89 = scalar_select %p86, %s87, %s88
    %p92 = pneg %p86
    %p93 = scmp.eq.s32.totalorder %s9, 1
    %p94 = por %p92, %p93
    %p95 = scmp.ne.s32.totalorder %s87, %s90
    %p96 = scmp.eq.s32.totalorder %s9, 0
    %p97 = por %p95, %p96
    %p98 = scmp.ne.s32.totalorder %s87, %s90
    %p99 = scmp.eq.s32.totalorder %s14, 1
    %p100 = por %p98, %p99
    %p101 = scmp.ne.s32.totalorder %s90, %s91
    %p102 = scmp.eq.s32.totalorder %s14, 0
    %p103 = por %p101, %p102
    %p104 = scmp.ne.s32.totalorder %s90, %s91
    %p105 = scmp.eq.s32.totalorder %s15, 1
    %p106 = por %p104, %p105
    %p108 = scmp.ne.s32.totalorder %s91, %s107
    %p109 = scmp.eq.s32.totalorder %s15, 0
    %p110 = por %p108, %p109
    %p111 = scmp.le.s32.totalorder 1, %s9
    %p112 = scmp.lt.s32.totalorder %s9, 3
    %p113 = pnand %p111, %p112
    %p114 = pneg %p113
    // Predicated region
    $region9: #{value_net_forward.9} parent=5 // pred_check
      _
    $region10: #{value_net_forward.9} parent=5 // pred_check_branch
      %116 = sbr.rel (%p113) target = $region12
    $region11: #{value_net_forward.9} parent=5 // pred_region
      %s117 = ssub.s32 %s9, 1
      // Predicated region
      $region13: #{value_net_forward.9} parent=11 // pred_check
        %p118 = pneg %p56
      $region14: #{value_net_forward.9} parent=11 // pred_check_branch
        %120 = sbr.rel (%p118) target = $region16
      $region15: #{value_net_forward.9} parent=11 // pred_region
        _
      $region16: #{value_net_forward.9} parent=11 // pred_fallthru
        _
      // Predicated region
      $region17: #{value_net_forward.9} parent=11 // pred_check
        %p121 = pneg %p77
      $region18: #{value_net_forward.9} parent=11 // pred_check_branch
        %123 = sbr.rel (%p121) target = $region20
      $region19: #{value_net_forward.9} parent=11 // pred_region
        _
      $region20: #{value_net_forward.9} parent=11 // pred_fallthru
        _
    $region12: #{value_net_forward.9} parent=5 // pred_fallthru
      _
    %p124 = scmp.lt.s32.totalorder %s9, 2
    // Predicated region
    $region21: #{value_net_forward.9} parent=5 // pred_check
      %p125 = pneg %p124
    $region22: #{value_net_forward.9} parent=5 // pred_check_branch
      %127 = sbr.rel (%p125) target = $region24
    $region23: #{value_net_forward.9} parent=5 // pred_region
      // Predicated region
      $region25: #{value_net_forward.9} parent=23 // pred_check
        %p128 = pneg %p29
      $region26: #{value_net_forward.9} parent=23 // pred_check_branch
        %130 = sbr.rel (%p128) target = $region28
      $region27: #{value_net_forward.9} parent=23 // pred_region
        %s131 = smul.u32 6, %s9
        %p132 = scmp.lt.s32.totalorder %s131, 11
        %s133 = scalar_select %p132, %s131, 11
        %s134 = smul.addr %s133, 3
        %s135 = smul.addr %s134, 4
        %s136 = scalar_lea.vmem %s0, %s135
        %s137 = smul.u32 6, %s9
      $region28: #{value_net_forward.9} parent=23 // pred_fallthru
        _
    $region24: #{value_net_forward.9} parent=5 // pred_fallthru
      _
    %p138 = scmp.le.s32.totalorder 1, %s9
    %p139 = scmp.lt.s32.totalorder %s9, 3
    %p140 = pnand %p138, %p139
    %p141 = pneg %p140
    // Predicated region
    $region29: #{value_net_forward.9} parent=5 // pred_check
      _
    $region30: #{value_net_forward.9} parent=5 // pred_check_branch
      %143 = sbr.rel (%p140) target = $region32
    $region31: #{value_net_forward.9} parent=5 // pred_region
      %s144 = ssub.s32 %s9, 1
      %s145 = smul.u32 6, %s14
      %p146 = scmp.lt.s32.totalorder %s145, 11
      %s147 = scalar_select %p146, %s145, 11
      %s148 = smul.addr %s147, 3
      %s149 = smul.addr %s148, 4
      %s150 = scalar_lea.vmem %s0, %s149
      %p151 = pneg %p35
      %p152 = pneg %p32
      %p153 = pneg %p56
      %p154 = pneg %p53
      %p155 = pneg %p77
      %p156 = pneg %p74
      %p157 = pneg %p103
      %p158 = pneg %p100
      %s159 = smul.u32 6, %s14
      %p160 = scmp.lt.s32.totalorder %s159, 11
      %s161 = scalar_select %p160, %s159, 11
      %s162 = smul.addr %s161, 4
      %s163 = scalar_lea.vmem %s3, %s162
      %s164 = smul.u32 6, %s14
      %p165 = scmp.lt.s32.totalorder %s164, 11
      %s166 = scalar_select %p165, %s164, 11
      %s167 = smul.addr %s166, 3
      %s168 = smul.addr %s167, 4
      %s169 = scalar_lea.vmem %s0, %s168
      %s170 = smul.u32 6, %s14
      %s171 = smul.u32 6, %s14
      %p172 = scmp.lt.s32.totalorder %s171, 11
      %s173 = scalar_select %p172, %s171, 11
      %s174 = smul.addr %s173, 4
      %s175 = scalar_lea.vmem %s3, %s174
      %s176 = smul.u32 6, %s14
      %v178 = vld [vmem:[%s169] sm:$0xff]
      %v179 = vld [vmem:[%s169 + $0x8] sm:$0xf]
      %v180 = vld [vmem:[%s169 + $0xc] sm:$0xff]
      %v181 = vld [vmem:[%s169 + $0x14] sm:$0xf]
      %v182 = vld [vmem:[%s169 + $0x18] sm:$0xff]
      %v183 = vld [vmem:[%s169 + $0x20] sm:$0xf]
      %v184 = vld [vmem:[%s169 + $0x24] sm:$0xff]
      %v185 = vld [vmem:[%s169 + $0x2c] sm:$0xf]
      %v186 = vld [vmem:[%s169 + $0x30] sm:$0xff]
      %v187 = vld [vmem:[%s169 + $0x38] sm:$0xf]
      %v188 = vld [vmem:[%s169 + $0x3c] sm:$0xff]
      %v189 = vld [vmem:[%s169 + $0x44] sm:$0xf]
      %v190 = vld [vmem:[%s1] sm:$0xf]
      %v191 = vld [vmem:[%s1 + $0x4] sm:$0xf]
      %v192 = vld [vmem:[%s1 + $0x8] sm:$0xf]
      %v193 = vld [vmem:[%s1 + $0xc] sm:$0xf]
      %v194 = vld [vmem:[%s1 + $0x10] sm:$0xf]
      %v195 = vld [vmem:[%s1 + $0x14] sm:$0xf]
      %v196 = vld [vmem:[%s1 + $0x18] sm:$0xf]
      %v197 = vld [vmem:[%s1 + $0x1c] sm:$0xf]
      %v198 = vld [vmem:[%s1 + $0x20] sm:$0xf]
      %v199 = vld [vmem:[%s1 + $0x24] sm:$0xf]
      %v200 = vld [vmem:[%s1 + $0x28] sm:$0xf]
      %v201 = vld [vmem:[%s1 + $0x2c] sm:$0xf]
      %v202 = vld [vmem:[%s1 + $0x30] sm:$0xf]
      %v203 = vld [vmem:[%s1 + $0x34] sm:$0xf]
      %v204 = vld [vmem:[%s1 + $0x38] sm:$0xf]
      %v205 = vld [vmem:[%s1 + $0x3c] sm:$0xf]
      %v206 = vld [vmem:[%s1 + $0x40] sm:$0xf]
      %v207 = vld [vmem:[%s1 + $0x44] sm:$0xf]
      %v208 = vld [vmem:[%s1 + $0x48] sm:$0xf]
      %v209 = vld [vmem:[%s1 + $0x4c] sm:$0xf]
      %v210 = vld [vmem:[%s1 + $0x50] sm:$0xf]
      %v211 = vld [vmem:[%s1 + $0x54] sm:$0xf]
      %v212 = vld [vmem:[%s1 + $0x58] sm:$0xf]
      %v213 = vld [vmem:[%s1 + $0x5c] sm:$0xf]
      %v214 = vld [vmem:[%s1 + $0x60] sm:$0xf]
      %v215 = vld [vmem:[%s1 + $0x64] sm:$0xf]
      %v216 = vld [vmem:[%s1 + $0x68] sm:$0xf]
      %v217 = vld [vmem:[%s1 + $0x6c] sm:$0xf]
      %v218 = vld [vmem:[%s1 + $0x70] sm:$0xf]
      %v219 = vld [vmem:[%s1 + $0x74] sm:$0xf]
      %v220 = vld [vmem:[%s1 + $0x78] sm:$0xf]
      %v221 = vld [vmem:[%s1 + $0x7c] sm:$0xf]
      %v222 = vld [vmem:[%s1 + $0x80] sm:$0xf]
      %v223 = vld [vmem:[%s1 + $0x84] sm:$0xf]
      %v224 = vld [vmem:[%s1 + $0x88] sm:$0xf]
      %v225 = vld [vmem:[%s1 + $0x8c] sm:$0xf]
      %v226 = vld [vmem:[%s2] sm:$0x1]
      %v228 = vlaneseq
      %v229 = vshrl.u32 %v228, 7
      %v230 = vsub.s32 0, %v229
      %v231 = vrot.slane %v226, %v230
      %v245 = vunpack.c.l.b16 %v178
      %v246 = vunpack.c.h.b16 %v178
      %v247 = vunpack.c.l.b16 %v179
      %v248 = vunpack.c.l.b16 %v180
      %v249 = vunpack.c.h.b16 %v180
      %v250 = vunpack.c.l.b16 %v181
      %v251 = vunpack.c.l.b16 %v182
      %v252 = vunpack.c.h.b16 %v182
      %v253 = vunpack.c.l.b16 %v183
      %v254 = vunpack.c.l.b16 %v184
      %v255 = vunpack.c.h.b16 %v184
      %v256 = vunpack.c.l.b16 %v185
      %v257 = vunpack.c.l.b16 %v186
      %v258 = vunpack.c.h.b16 %v186
      %v259 = vunpack.c.l.b16 %v187
      %v260 = vunpack.c.l.b16 %v188
      %v261 = vunpack.c.h.b16 %v188
      %v262 = vunpack.c.l.b16 %v189
      %v263 = vpack.c.b16 %v248, %v245
      %v264 = vpack.c.b16 %v249, %v246
      %v265 = vpack.c.b16 %v250, %v247
      %v266 = vpack.c.b16 %v254, %v251
      %v267 = vpack.c.b16 %v255, %v252
      %v268 = vpack.c.b16 %v256, %v253
      %v269 = vpack.c.b16 %v260, %v257
      %v270 = vpack.c.b16 %v261, %v258
      %v271 = vpack.c.b16 %v262, %v259
      %v314 = vunpack.c.l.b16 %v190
      %v315 = vunpack.c.l.b16 %v191
      %v316 = vunpack.c.l.b16 %v192
      %v317 = vunpack.c.l.b16 %v193
      %v318 = vunpack.c.l.b16 %v194
      %v319 = vunpack.c.l.b16 %v195
      %v320 = vunpack.c.l.b16 %v196
      %v321 = vunpack.c.l.b16 %v197
      %v322 = vunpack.c.l.b16 %v198
      %v323 = vunpack.c.l.b16 %v199
      %v324 = vunpack.c.l.b16 %v200
      %v325 = vunpack.c.l.b16 %v201
      %v326 = vunpack.c.l.b16 %v202
      %v327 = vunpack.c.l.b16 %v203
      %v328 = vunpack.c.l.b16 %v204
      %v329 = vunpack.c.l.b16 %v205
      %v330 = vunpack.c.l.b16 %v206
      %v331 = vunpack.c.l.b16 %v207
      %v332 = vunpack.c.l.b16 %v208
      %v333 = vunpack.c.l.b16 %v209
      %v334 = vunpack.c.l.b16 %v210
      %v335 = vunpack.c.l.b16 %v211
      %v336 = vunpack.c.l.b16 %v212
      %v337 = vunpack.c.l.b16 %v213
      %v338 = vunpack.c.l.b16 %v214
      %v339 = vunpack.c.l.b16 %v215
      %v340 = vunpack.c.l.b16 %v216
      %v341 = vunpack.c.l.b16 %v217
      %v342 = vunpack.c.l.b16 %v218
      %v343 = vunpack.c.l.b16 %v219
      %v344 = vunpack.c.l.b16 %v220
      %v345 = vunpack.c.l.b16 %v221
      %v346 = vunpack.c.l.b16 %v222
      %v347 = vunpack.c.l.b16 %v223
      %v348 = vunpack.c.l.b16 %v224
      %v349 = vunpack.c.l.b16 %v225
      %v350 = vpack.c.b16 %v315, %v314
      %v351 = vpack.c.b16 %v317, %v316
      %v352 = vpack.c.b16 %v319, %v318
      %v353 = vpack.c.b16 %v321, %v320
      %v354 = vpack.c.b16 %v323, %v322
      %v355 = vpack.c.b16 %v325, %v324
      %v356 = vpack.c.b16 %v327, %v326
      %v357 = vpack.c.b16 %v329, %v328
      %v358 = vpack.c.b16 %v331, %v330
      %v359 = vpack.c.b16 %v333, %v332
      %v360 = vpack.c.b16 %v335, %v334
      %v361 = vpack.c.b16 %v337, %v336
      %v362 = vpack.c.b16 %v339, %v338
      %v363 = vpack.c.b16 %v341, %v340
      %v364 = vpack.c.b16 %v343, %v342
      %v365 = vpack.c.b16 %v345, %v344
      %v366 = vpack.c.b16 %v347, %v346
      %v367 = vpack.c.b16 %v349, %v348
      %vm386 = vcmask 261120
      %v388 = vsel %vm386, %v265, 0
      %v391 = vsel %vm386, %v268, 0
      %v394 = vsel %vm386, %v271, 0
      %396 = vmatprep.subr.bf16.mxu0 0
      %397 = vmatpush1.bf16.msra.mxu0 %v357
      %398 = vmatprep.subr.bf16.mxu0 0
      %399 = vmatpush1.bf16.msra.mxu0 %v356
      %400 = vmatprep.subr.bf16.mxu0 0
      %401 = vmatpush1.bf16.msra.mxu0 %v355
      %402 = vmatprep.subr.bf16.mxu0 0
      %403 = vmatpush1.bf16.msra.mxu0 %v354
      %404 = vmatprep.subr.bf16.mxu0 0
      %405 = vmatpush1.bf16.msra.mxu0 %v353
      %406 = vmatprep.subr.bf16.mxu0 0
      %407 = vmatpush1.bf16.msra.mxu0 %v352
      %408 = vmatprep.subr.bf16.mxu0 0
      %409 = vmatpush1.bf16.msra.mxu0 %v351
      %410 = vmatprep.subr.bf16.mxu0 0
      %411 = vmatpush1.bf16.msra.mxu0 %v350
      %412 = vmatprep.subr.bf16.mxu0 0
      %413 = vmatpush2.bf16.msra.mxu0 %v365
      %414 = vmatprep.subr.bf16.mxu0 0
      %415 = vmatpush2.bf16.msra.mxu0 %v364
      %416 = vmatprep.subr.bf16.mxu0 0
      %417 = vmatpush2.bf16.msra.mxu0 %v363
      %418 = vmatprep.subr.bf16.mxu0 0
      %419 = vmatpush2.bf16.msra.mxu0 %v362
      %420 = vmatprep.subr.bf16.mxu0 0
      %421 = vmatpush2.bf16.msra.mxu0 %v361
      %422 = vmatprep.subr.bf16.mxu0 0
      %423 = vmatpush2.bf16.msra.mxu0 %v360
      %424 = vmatprep.subr.bf16.mxu0 0
      %425 = vmatpush2.bf16.msra.mxu0 %v359
      %426 = vmatprep.subr.bf16.mxu0 0
      %427 = vmatpush2.bf16.msra.mxu0 %v358
      %428 = vmatprep.mubr.bf16.mxu0 %v264
      %429 = vmatmul.mubr.bf16.gmra.mxu0 %v263
      %v430 = vpop.f32.mrf.mxu0
      %v431 = vadd.f32 %v231, %v430
      %v432 = vpop.f32.mrf.mxu0
      %v433 = vpop.f32.mrf.mxu0
      %v434 = vadd.f32 %v231, %v433
      %v435 = vpop.f32.mrf.mxu0
      %436 = vmatprep.mubr.bf16.mxu0 %v267
      %437 = vmatmul.mubr.bf16.gmra.mxu0 %v266
      %v438 = vpop.f32.mrf.mxu0
      %v439 = vadd.f32 %v231, %v438
      %v440 = vpop.f32.mrf.mxu0
      %v441 = vpop.f32.mrf.mxu0
      %v442 = vadd.f32 %v231, %v441
      %v443 = vpop.f32.mrf.mxu0
      %444 = vmatprep.mubr.bf16.mxu0 %v270
      %445 = vmatmul.mubr.bf16.gmra.mxu0 %v269
      %v446 = vpop.f32.mrf.mxu0
      %v447 = vadd.f32 %v231, %v446
      %v448 = vpop.f32.mrf.mxu0
      %v449 = vpop.f32.mrf.mxu0
      %v450 = vadd.f32 %v231, %v449
      %v451 = vpop.f32.mrf.mxu0
      %452 = vdwg.mxu0
      %453 = vmatprep.subr.bf16.mxu0 0
      %454 = vmatpush1.bf16.msra.mxu0 0
      %455 = vmatprep.subr.bf16.mxu0 0
      %456 = vmatpush1.bf16.msra.mxu0 0
      %457 = vmatprep.subr.bf16.mxu0 0
      %458 = vmatpush1.bf16.msra.mxu0 0
      %459 = vmatprep.subr.bf16.mxu0 0
      %460 = vmatpush1.bf16.msra.mxu0 0
      %461 = vmatprep.subr.bf16.mxu0 0
      %462 = vmatpush1.bf16.msra.mxu0 0
      %463 = vmatprep.subr.bf16.mxu0 0
      %464 = vmatpush1.bf16.msra.mxu0 0
      %465 = vmatprep.subr.bf16.mxu0 0
      %466 = vmatpush1.bf16.msra.mxu0 %v367
      %467 = vmatprep.subr.bf16.mxu0 0
      %468 = vmatpush1.bf16.msra.mxu0 %v366
      %469 = vmatprep.subr.bf16.mxu0 0
      %470 = vmatpush2.bf16.msra.mxu0 0
      %471 = vmatprep.subr.bf16.mxu0 0
      %472 = vmatpush2.bf16.msra.mxu0 0
      %473 = vmatprep.subr.bf16.mxu0 0
      %474 = vmatpush2.bf16.msra.mxu0 0
      %475 = vmatprep.subr.bf16.mxu0 0
      %476 = vmatpush2.bf16.msra.mxu0 0
      %477 = vmatprep.subr.bf16.mxu0 0
      %478 = vmatpush2.bf16.msra.mxu0 0
      %479 = vmatprep.subr.bf16.mxu0 0
      %480 = vmatpush2.bf16.msra.mxu0 0
      %481 = vmatprep.subr.bf16.mxu0 0
      %482 = vmatpush2.bf16.msra.mxu0 0
      %483 = vmatprep.subr.bf16.mxu0 0
      %484 = vmatpush2.bf16.msra.mxu0 0
      %485 = vmatprep.mubr.bf16.mxu0 0
      %486 = vmatmul.mubr.bf16.gmra.mxu0 %v388
      %v487 = vpop.f32.mrf.mxu0
      %v488 = vadd.f32 %v431, %v487
      %v489 = vpop.f32.mrf.mxu0
      %v490 = vpop.f32.mrf.mxu0
      %v491 = vadd.f32 %v434, %v490
      %v492 = vpop.f32.mrf.mxu0
      %493 = vmatprep.mubr.bf16.mxu0 0
      %494 = vmatmul.mubr.bf16.gmra.mxu0 %v391
      %v495 = vpop.f32.mrf.mxu0
      %v496 = vadd.f32 %v439, %v495
      %v497 = vpop.f32.mrf.mxu0
      %v498 = vpop.f32.mrf.mxu0
      %v499 = vadd.f32 %v442, %v498
      %v500 = vpop.f32.mrf.mxu0
      %501 = vmatprep.mubr.bf16.mxu0 0
      %502 = vmatmul.mubr.bf16.gmra.mxu0 %v394
      %v503 = vpop.f32.mrf.mxu0
      %v504 = vadd.f32 %v447, %v503
      %v505 = vpop.f32.mrf.mxu0
      %v506 = vpop.f32.mrf.mxu0
      %v507 = vadd.f32 %v450, %v506
      %v508 = vpop.f32.mrf.mxu0
      %509 = vdwg.mxu0
      %v510 = vmax.f32 %v488, 0.0
      %v511 = vmax.f32 %v491, 0.0
      %v512 = vmax.f32 %v496, 0.0
      %v513 = vmax.f32 %v499, 0.0
      %v514 = vmax.f32 %v504, 0.0
      %v515 = vmax.f32 %v507, 0.0
      %v516 = vpack.c.bf16 %v511, %v510
      %v517 = vpack.c.bf16 %v513, %v512
      %v518 = vpack.c.bf16 %v515, %v514
      %v522 = vunpack.c.l.b16 %v516
      %v523 = vunpack.c.h.b16 %v516
      %v524 = vunpack.c.l.b16 %v517
      %v525 = vunpack.c.h.b16 %v517
      %v526 = vunpack.c.l.b16 %v518
      %v527 = vunpack.c.h.b16 %v518
      %v528 = vpack.c.b16 %v522, %v522
      %v529 = vpack.c.b16 %v523, %v523
      %v530 = vpack.c.b16 %v524, %v524
      %v531 = vpack.c.b16 %v525, %v525
      %v532 = vpack.c.b16 %v526, %v526
      %v533 = vpack.c.b16 %v527, %v527
      %vm540 = vcmask 257024
      %541 = vst.msk [vmem:[%s175] sm:$0xf] %vm540, %v528
      %542 = vst.msk [vmem:[%s175 + $0x4] sm:$0xf] %vm540, %v529
      %543 = vst.msk [vmem:[%s175 + $0x8] sm:$0xf] %vm540, %v530
      %544 = vst.msk [vmem:[%s175 + $0xc] sm:$0xf] %vm540, %v531
      %545 = vst.msk [vmem:[%s175 + $0x10] sm:$0xf] %vm540, %v532
      %546 = vst.msk [vmem:[%s175 + $0x14] sm:$0xf] %vm540, %v533
      %s547 = smul.u32 6, %s14
      %p548 = scmp.lt.s32.totalorder %s547, 11
      %s549 = scalar_select %p548, %s547, 11
      %s550 = smul.addr %s549, 4
      %s551 = scalar_lea.vmem %s3, %s550
      // Predicated region
      $region33: #{value_net_forward.9} parent=31 // pred_check
        %p552 = pneg %p100
      $region34: #{value_net_forward.9} parent=31 // pred_check_branch
        %554 = sbr.rel (%p552) target = $region36
      $region35: #{value_net_forward.9} parent=31 // pred_region
        %s555 = smul.u32 6, %s14
      $region36: #{value_net_forward.9} parent=31 // pred_fallthru
        _
    $region32: #{value_net_forward.9} parent=5 // pred_fallthru
      _
    %p556 = scmp.le.s32.totalorder 2, %s9
    // Predicated region
    $region37: #{value_net_forward.9} parent=5 // pred_check
      %p557 = pneg %p556
    $region38: #{value_net_forward.9} parent=5 // pred_check_branch
      %559 = sbr.rel (%p557) target = $region40
    $region39: #{value_net_forward.9} parent=5 // pred_region
      %s560 = ssub.s32 %s9, 2
      // Predicated region
      $region41: #{value_net_forward.9} parent=39 // pred_check
        %p561 = pneg %p106
      $region42: #{value_net_forward.9} parent=39 // pred_check_branch
        %563 = sbr.rel (%p561) target = $region44
      $region43: #{value_net_forward.9} parent=39 // pred_region
        %s564 = smul.u32 6, %s15
        %p565 = scmp.lt.s32.totalorder %s564, 11
        %s566 = scalar_select %p565, %s564, 11
        %s567 = smul.addr %s566, 4
        %s568 = scalar_lea.vmem %s3, %s567
      $region44: #{value_net_forward.9} parent=39 // pred_fallthru
        _
    $region40: #{value_net_forward.9} parent=5 // pred_fallthru
      _
  $region6: #{value_net_forward.9} parent=0 // loop_footer
    %s13 = sadd.s32 1, %s9
  $region7: #{value_net_forward.9} parent=0 // loop_footer_branch
    %8 = sbr.rel target = $region3
  $region8: #{value_net_forward.9} parent=0 // loop_exit
    _

// kernel: squeeze.2
$region0: #{squeeze.2}
  %s0 = inlined_call_operand.vmem [shape: f32[1296], index: 0, kind: input, shape index: {}]
  %s1 = inlined_call_operand.vmem [shape: f32[36,36], index: 1, kind: output, shape index: {}]
  %s2 = smov 3
  %v3 = vld [vmem:[%s0] ss:$9 sm:%s2]
  %vm4 = vcmask 293888
  %5 = vst.msk [vmem:[%s1] sm:$0x1] %vm4, %v3
  %s6 = scalar_lea.vmem %s1, 31
  %7 = vst.msk [vmem:[%s6] sm:$0x2] %vm4, %v3
  %s8 = scalar_lea.vmem %s0, 7
  %v9 = vld [vmem:[%s8] sm:$0x1]
  %10 = vrot.lane.b32.xlu0 %v9, 124
  %v11 = vpop.permute.xlu0 %10
  %vm12 = vcmask 293888
  %s13 = scalar_lea.vmem %s1, 25
  %14 = vst.msk [vmem:[%s13] sm:$0x1] %vm12, %v11
  %s15 = scalar_lea.vmem %s0, 5
  %v16 = vld [vmem:[%s15] sm:$0x1]
  %17 = vrot.lane.b32.xlu0 %v16, 120
  %v18 = vpop.permute.xlu0 %17
  %vm19 = vcmask 293888
  %s20 = scalar_lea.vmem %s1, 18
  %21 = vst.msk [vmem:[%s20] sm:$0x1] %vm19, %v18
  %s22 = scalar_lea.vmem %s0, 3
  %v23 = vld [vmem:[%s22] sm:$0x1]
  %24 = vrot.lane.b32.xlu0 %v23, 116
  %v25 = vpop.permute.xlu0 %24
  %vm26 = vcmask 293888
  %s27 = scalar_lea.vmem %s1, 11
  %28 = vst.msk [vmem:[%s27] sm:$0x1] %vm26, %v25
  %s29 = scalar_lea.vmem %s0, 1
  %v30 = vld [vmem:[%s29] sm:$0x1]
  %31 = vrot.lane.b32.xlu0 %v30, 112
  %v32 = vpop.permute.xlu0 %31
  %vm33 = vcmask 293888
  %s34 = scalar_lea.vmem %s1, 4
  %35 = vst.msk [vmem:[%s34] sm:$0x1] %vm33, %v32
  %s36 = scalar_lea.vmem %s0, 8
  %v37 = vld [vmem:[%s36] sm:$0x1]
  %38 = vrot.lane.b32.xlu0 %v37, 108
  %v39 = vpop.permute.xlu0 %38
  %vm40 = vcmask 293888
  %s41 = scalar_lea.vmem %s1, 29
  %42 = vst.msk [vmem:[%s41] sm:$0x1] %vm40, %v39
  %s43 = scalar_lea.vmem %s0, 6
  %v44 = vld [vmem:[%s43] sm:$0x1]
  %45 = vrot.lane.b32.xlu0 %v44, 104
  %v46 = vpop.permute.xlu0 %45
  %vm47 = vcmask 293888
  %s48 = scalar_lea.vmem %s1, 22
  %49 = vst.msk [vmem:[%s48] sm:$0x1] %vm47, %v46
  %s50 = scalar_lea.vmem %s0, 4
  %v51 = vld [vmem:[%s50] sm:$0x1]
  %52 = vrot.lane.b32.xlu0 %v51, 100
  %v53 = vpop.permute.xlu0 %52
  %vm54 = vcmask 293888
  %s55 = scalar_lea.vmem %s1, 15
  %56 = vst.msk [vmem:[%s55] sm:$0x1] %vm54, %v53
  %s57 = scalar_lea.vmem %s0, 2
  %v58 = vld [vmem:[%s57] sm:$0x1]
  %59 = vrot.lane.b32.xlu0 %v58, 96
  %v60 = vpop.permute.xlu0 %59
  %vm61 = vcmask 293888
  %s62 = scalar_lea.vmem %s1, 8
  %63 = vst.msk [vmem:[%s62] sm:$0x1] %vm61, %v60
  %s64 = smov 3
  %v65 = vld [vmem:[%s0] ss:$9 sm:%s64]
  %66 = vrot.lane.b32.xlu0 %v65, 92
  %v67 = vpop.permute.xlu0 %66
  %vm68 = vcmask 293888
  %s69 = scalar_lea.vmem %s1, 1
  %70 = vst.msk [vmem:[%s69] sm:$0x1] %vm68, %v67
  %s71 = scalar_lea.vmem %s1, 32
  %72 = vst.msk [vmem:[%s71] sm:$0x2] %vm68, %v67
  %s73 = scalar_lea.vmem %s0, 7
  %v74 = vld [vmem:[%s73] sm:$0x1]
  %75 = vrot.lane.b32.xlu0 %v74, 88
  %v76 = vpop.permute.xlu0 %75
  %vm77 = vcmask 293888
  %s78 = scalar_lea.vmem %s1, 26
  %79 = vst.msk [vmem:[%s78] sm:$0x1] %vm77, %v76
  %s80 = scalar_lea.vmem %s0, 5
  %v81 = vld [vmem:[%s80] sm:$0x1]
  %82 = vrot.lane.b32.xlu0 %v81, 84
  %v83 = vpop.permute.xlu0 %82
  %vm84 = vcmask 293888
  %s85 = scalar_lea.vmem %s1, 19
  %86 = vst.msk [vmem:[%s85] sm:$0x1] %vm84, %v83
  %s87 = scalar_lea.vmem %s0, 3
  %v88 = vld [vmem:[%s87] sm:$0x1]
  %89 = vrot.lane.b32.xlu0 %v88, 80
  %v90 = vpop.permute.xlu0 %89
  %vm91 = vcmask 293888
  %s92 = scalar_lea.vmem %s1, 12
  %93 = vst.msk [vmem:[%s92] sm:$0x1] %vm91, %v90
  %s94 = scalar_lea.vmem %s0, 1
  %v95 = vld [vmem:[%s94] sm:$0x1]
  %96 = vrot.lane.b32.xlu0 %v95, 76
  %v97 = vpop.permute.xlu0 %96
  %vm98 = vcmask 293888
  %s99 = scalar_lea.vmem %s1, 5
  %100 = vst.msk [vmem:[%s99] sm:$0x1] %vm98, %v97
  %s101 = scalar_lea.vmem %s0, 8
  %v102 = vld [vmem:[%s101] sm:$0x1]
  %103 = vrot.lane.b32.xlu0 %v102, 72
  %v104 = vpop.permute.xlu0 %103
  %vm105 = vcmask 293888
  %s106 = scalar_lea.vmem %s1, 30
  %107 = vst.msk [vmem:[%s106] sm:$0x1] %vm105, %v104
  %s108 = scalar_lea.vmem %s0, 6
  %v109 = vld [vmem:[%s108] sm:$0x1]
  %110 = vrot.lane.b32.xlu0 %v109, 68
  %v111 = vpop.permute.xlu0 %110
  %vm112 = vcmask 293888
  %s113 = scalar_lea.vmem %s1, 23
  %114 = vst.msk [vmem:[%s113] sm:$0x1] %vm112, %v111
  %s115 = scalar_lea.vmem %s0, 4
  %v116 = vld [vmem:[%s115] sm:$0x1]
  %117 = vrot.lane.b32.xlu0 %v116, 64
  %v118 = vpop.permute.xlu0 %117
  %vm119 = vcmask 293888
  %s120 = scalar_lea.vmem %s1, 16
  %121 = vst.msk [vmem:[%s120] sm:$0x1] %vm119, %v118
  %s122 = scalar_lea.vmem %s0, 2
  %v123 = vld [vmem:[%s122] sm:$0x1]
  %124 = vrot.lane.b32.xlu0 %v123, 60
  %v125 = vpop.permute.xlu0 %124
  %vm126 = vcmask 293888
  %s127 = scalar_lea.vmem %s1, 9
  %128 = vst.msk [vmem:[%s127] sm:$0x1] %vm126, %v125
  %s129 = smov 3
  %v130 = vld [vmem:[%s0] ss:$9 sm:%s129]
  %131 = vrot.lane.b32.xlu0 %v130, 56
  %v132 = vpop.permute.xlu0 %131
  %vm133 = vcmask 293888
  %s134 = scalar_lea.vmem %s1, 2
  %135 = vst.msk [vmem:[%s134] sm:$0x1] %vm133, %v132
  %s136 = scalar_lea.vmem %s1, 33
  %137 = vst.msk [vmem:[%s136] sm:$0x2] %vm133, %v132
  %s138 = scalar_lea.vmem %s0, 7
  %v139 = vld [vmem:[%s138] sm:$0x1]
  %140 = vrot.lane.b32.xlu0 %v139, 52
  %v141 = vpop.permute.xlu0 %140
  %vm142 = vcmask 293888
  %s143 = scalar_lea.vmem %s1, 27
  %144 = vst.msk [vmem:[%s143] sm:$0x1] %vm142, %v141
  %s145 = scalar_lea.vmem %s0, 5
  %v146 = vld [vmem:[%s145] sm:$0x1]
  %147 = vrot.lane.b32.xlu0 %v146, 48
  %v148 = vpop.permute.xlu0 %147
  %vm149 = vcmask 293888
  %s150 = scalar_lea.vmem %s1, 20
  %151 = vst.msk [vmem:[%s150] sm:$0x1] %vm149, %v148
  %s152 = scalar_lea.vmem %s0, 3
  %v153 = vld [vmem:[%s152] sm:$0x1]
  %154 = vrot.lane.b32.xlu0 %v153, 44
  %v155 = vpop.permute.xlu0 %154
  %vm156 = vcmask 293888
  %s157 = scalar_lea.vmem %s1, 13
  %158 = vst.msk [vmem:[%s157] sm:$0x1] %vm156, %v155
  %s159 = scalar_lea.vmem %s0, 1
  %v160 = vld [vmem:[%s159] sm:$0x1]
  %161 = vrot.lane.b32.xlu0 %v160, 40
  %v162 = vpop.permute.xlu0 %161
  %vm163 = vcmask 293888
  %s164 = scalar_lea.vmem %s1, 6
  %165 = vst.msk [vmem:[%s164] sm:$0x1] %vm163, %v162
  %s166 = scalar_lea.vmem %s0, 8
  %v167 = vld [vmem:[%s166] sm:$0x1]
  %168 = vrot.lane.b32.xlu0 %v167, 36
  %v169 = vpop.permute.xlu0 %168
  %vm170 = vcmask 293888
  %s171 = scalar_lea.vmem %s1, 31
  %172 = vst.msk [vmem:[%s171] sm:$0x1] %vm170, %v169
  %s173 = scalar_lea.vmem %s0, 6
  %v174 = vld [vmem:[%s173] sm:$0x1]
  %s175 = scalar_lea.vmem %s0, 7
  %v176 = vld [vmem:[%s175] sm:$0x1]
  %vm177 = vcmask 785408
  %v178 = vsel %vm177, %v176, %v174
  %179 = vrot.lane.b32.xlu0 %v178, 32
  %v180 = vpop.permute.xlu0 %179
  %vm181 = vcmask 261120
  %s182 = scalar_lea.vmem %s1, 24
  %183 = vst.msk [vmem:[%s182] sm:$0x1] %vm181, %v180
  %vm184 = vcmask 294144
  %s185 = scalar_lea.vmem %s1, 24
  %186 = vst.msk [vmem:[%s185] sm:$0x1] %vm184, %v180
  %s187 = scalar_lea.vmem %s0, 4
  %v188 = vld [vmem:[%s187] sm:$0x1]
  %s189 = scalar_lea.vmem %s0, 5
  %v190 = vld [vmem:[%s189] sm:$0x1]
  %vm191 = vcmask 818176
  %v192 = vsel %vm191, %v190, %v188
  %193 = vrot.lane.b32.xlu0 %v192, 28
  %v194 = vpop.permute.xlu0 %193
  %vm195 = vcmask 228352
  %s196 = scalar_lea.vmem %s1, 17
  %197 = vst.msk [vmem:[%s196] sm:$0x1] %vm195, %v194
  %vm198 = vcmask 294112
  %s199 = scalar_lea.vmem %s1, 17
  %200 = vst.msk [vmem:[%s199] sm:$0x1] %vm198, %v194
  %s201 = scalar_lea.vmem %s0, 2
  %v202 = vld [vmem:[%s201] sm:$0x1]
  %s203 = scalar_lea.vmem %s0, 3
  %v204 = vld [vmem:[%s203] sm:$0x1]
  %vm205 = vcmask 850944
  %v206 = vsel %vm205, %v204, %v202
  %207 = vrot.lane.b32.xlu0 %v206, 24
  %v208 = vpop.permute.xlu0 %207
  %vm209 = vcmask 195584
  %s210 = scalar_lea.vmem %s1, 10
  %211 = vst.msk [vmem:[%s210] sm:$0x1] %vm209, %v208
  %vm212 = vcmask 294080
  %s213 = scalar_lea.vmem %s1, 10
  %214 = vst.msk [vmem:[%s213] sm:$0x1] %vm212, %v208
  %s215 = smov 3
  %v216 = vld [vmem:[%s0] ss:$9 sm:%s215]
  %s217 = scalar_lea.vmem %s0, 1
  %s218 = smov 3
  %v219 = vld [vmem:[%s217] ss:$9 sm:%s218]
  %vm220 = vcmask 883712
  %v221 = vsel %vm220, %v219, %v216
  %222 = vrot.lane.b32.xlu0 %v221, 20
  %v223 = vpop.permute.xlu0 %222
  %vm224 = vcmask 162816
  %s225 = scalar_lea.vmem %s1, 3
  %226 = vst.msk [vmem:[%s225] sm:$0x1] %vm224, %v223
  %s227 = scalar_lea.vmem %s1, 34
  %228 = vst.msk [vmem:[%s227] sm:$0x2] %vm224, %v223
  %vm229 = vcmask 294048
  %s230 = scalar_lea.vmem %s1, 3
  %231 = vst.msk [vmem:[%s230] sm:$0x1] %vm229, %v223
  %s232 = scalar_lea.vmem %s1, 34
  %233 = vst.msk [vmem:[%s232] sm:$0x2] %vm229, %v223
  %s234 = scalar_lea.vmem %s0, 7
  %v235 = vld [vmem:[%s234] sm:$0x1]
  %s236 = scalar_lea.vmem %s0, 8
  %v237 = vld [vmem:[%s236] sm:$0x1]
  %vm238 = vcmask 916480
  %v239 = vsel %vm238, %v237, %v235
  %240 = vrot.lane.b32.xlu0 %v239, 16
  %v241 = vpop.permute.xlu0 %240
  %vm242 = vcmask 130048
  %s243 = scalar_lea.vmem %s1, 28
  %244 = vst.msk [vmem:[%s243] sm:$0x1] %vm242, %v241
  %vm245 = vcmask 294016
  %s246 = scalar_lea.vmem %s1, 28
  %247 = vst.msk [vmem:[%s246] sm:$0x1] %vm245, %v241
  %s248 = scalar_lea.vmem %s0, 5
  %v249 = vld [vmem:[%s248] sm:$0x1]
  %s250 = scalar_lea.vmem %s0, 6
  %v251 = vld [vmem:[%s250] sm:$0x1]
  %vm252 = vcmask 949248
  %v253 = vsel %vm252, %v251, %v249
  %254 = vrot.lane.b32.xlu0 %v253, 12
  %v255 = vpop.permute.xlu0 %254
  %vm256 = vcmask 97280
  %s257 = scalar_lea.vmem %s1, 21
  %258 = vst.msk [vmem:[%s257] sm:$0x1] %vm256, %v255
  %vm259 = vcmask 293984
  %s260 = scalar_lea.vmem %s1, 21
  %261 = vst.msk [vmem:[%s260] sm:$0x1] %vm259, %v255
  %s262 = scalar_lea.vmem %s0, 3
  %v263 = vld [vmem:[%s262] sm:$0x1]
  %s264 = scalar_lea.vmem %s0, 4
  %v265 = vld [vmem:[%s264] sm:$0x1]
  %vm266 = vcmask 982016
  %v267 = vsel %vm266, %v265, %v263
  %268 = vrot.lane.b32.xlu0 %v267, 8
  %v269 = vpop.permute.xlu0 %268
  %vm270 = vcmask 64512
  %s271 = scalar_lea.vmem %s1, 14
  %272 = vst.msk [vmem:[%s271] sm:$0x1] %vm270, %v269
  %vm273 = vcmask 293952
  %s274 = scalar_lea.vmem %s1, 14
  %275 = vst.msk [vmem:[%s274] sm:$0x1] %vm273, %v269
  %s276 = scalar_lea.vmem %s0, 1
  %v277 = vld [vmem:[%s276] sm:$0x1]
  %s278 = scalar_lea.vmem %s0, 2
  %v279 = vld [vmem:[%s278] sm:$0x1]
  %vm280 = vcmask 1014784
  %v281 = vsel %vm280, %v279, %v277
  %282 = vrot.lane.b32.xlu0 %v281, 4
  %v283 = vpop.permute.xlu0 %282
  %vm284 = vcmask 31744
  %s285 = scalar_lea.vmem %s1, 7
  %286 = vst.msk [vmem:[%s285] sm:$0x1] %vm284, %v283
  %vm287 = vcmask 293920
  %s288 = scalar_lea.vmem %s1, 7
  %289 = vst.msk [vmem:[%s288] sm:$0x1] %vm287, %v283

// kernel: value_net_forward.10
$region0: #{value_net_forward.10}
  #allocation0 [shape = 'u32[]', space=smem, size = 0x4, offset = 0x4, fixed_abs, tag = 'smem constant byte address 0x4 - core index']
  #allocation1 [shape = 'u32[144,128]{1,0:T(1,128)}', space=vmem, size = 0x12000, scoped, tag = 'internal scratch']
  %s0 = inlined_call_operand.vmem [shape: bf16[2,36,32], index: 0, kind: input, shape index: {}]
  %s1 = inlined_call_operand.vmem [shape: f32[2,32], index: 1, kind: input, shape index: {}]
  %s2 = inlined_call_operand.vmem [shape: f32[2,32], index: 2, kind: input, shape index: {}]
  %s3 = inlined_call_operand.vmem [shape: f32[36,36], index: 3, kind: input, shape index: {}]
  %s4 = inlined_call_operand.vmem [shape: f32[36,36], index: 4, kind: input, shape index: {}]
  %s5 = inlined_call_operand.vmem [shape: bf16[2,36,32], index: 5, kind: output, shape index: {}]
  %s6 = sld [smem:[#allocation0]]
  $region30: #{value_net_forward.10} parent=0
    _
  %s8 = ssub.s32 1, %s6
  %s9 = scalar_select 0, %s8, %s6
  // Predicated region
  $region2: #{value_net_forward.10} parent=0 // pred_check
    _
  $region3: #{value_net_forward.10} parent=0 // pred_check_branch
    %11 = sbr.rel (0) target = $region5
  $region4: #{value_net_forward.10} parent=0 // pred_region
    _
  $region5: #{value_net_forward.10} parent=0 // pred_fallthru
    _
  // Predicated region
  $region6: #{value_net_forward.10} parent=0 // pred_check
    _
  $region7: #{value_net_forward.10} parent=0 // pred_check_branch
    %13 = sbr.rel (0) target = $region9
  $region8: #{value_net_forward.10} parent=0 // pred_region
    _
  $region9: #{value_net_forward.10} parent=0 // pred_fallthru
    _
  // Predicated region
  $region10: #{value_net_forward.10} parent=0 // pred_check
    _
  $region11: #{value_net_forward.10} parent=0 // pred_check_branch
    %15 = sbr.rel (0) target = $region13
  $region12: #{value_net_forward.10} parent=0 // pred_region
    _
  $region13: #{value_net_forward.10} parent=0 // pred_fallthru
    _
  // Predicated region
  $region14: #{value_net_forward.10} parent=0 // pred_check
    _
  $region15: #{value_net_forward.10} parent=0 // pred_check_branch
    %17 = sbr.rel (0) target = $region17
  $region16: #{value_net_forward.10} parent=0 // pred_region
    _
  $region17: #{value_net_forward.10} parent=0 // pred_fallthru
    _
  // Predicated region
  $region18: #{value_net_forward.10} parent=0 // pred_check
    _
  $region19: #{value_net_forward.10} parent=0 // pred_check_branch
    %19 = sbr.rel (0) target = $region21
  $region20: #{value_net_forward.10} parent=0 // pred_region
    _
  $region21: #{value_net_forward.10} parent=0 // pred_fallthru
    _
  %v20 = vld [vmem:[%s0] sm:$0xf]
  %v21 = vld [vmem:[%s0 + $0x4] sm:$0xf]
  %v22 = vld [vmem:[%s0 + $0x8] sm:$0xf]
  %v23 = vld [vmem:[%s0 + $0xc] sm:$0xf]
  %v24 = vld [vmem:[%s0 + $0x10] sm:$0x3]
  %v25 = vld [vmem:[%s0 + $0x14] sm:$0xf]
  %v26 = vld [vmem:[%s0 + $0x18] sm:$0xf]
  %v27 = vld [vmem:[%s0 + $0x1c] sm:$0xf]
  %v28 = vld [vmem:[%s0 + $0x20] sm:$0xf]
  %v29 = vld [vmem:[%s0 + $0x24] sm:$0x3]
  %v30 = vunpack.c.l.bf16 %v20
  %v31 = vunpack.c.l.bf16 %v21
  %v32 = vunpack.c.l.bf16 %v22
  %v33 = vunpack.c.l.bf16 %v23
  %v34 = vunpack.c.l.bf16 %v24
  %v35 = vunpack.c.l.bf16 %v25
  %v36 = vunpack.c.l.bf16 %v26
  %v37 = vunpack.c.l.bf16 %v27
  %v38 = vunpack.c.l.bf16 %v28
  %v39 = vunpack.c.l.bf16 %v29
  %vm40 = vcmask 261120
  %v41 = vsel %vm40, %v30, 0.0
  %v42 = vsel %vm40, %v31, 0.0
  %v43 = vadd.f32 %v41, %v42
  %v44 = vsel %vm40, %v32, 0.0
  %v45 = vadd.f32 %v43, %v44
  %v46 = vsel %vm40, %v33, 0.0
  %v47 = vadd.f32 %v45, %v46
  %vm48 = vcmask 257024
  %v49 = vsel %vm48, %v34, 0.0
  %v50 = vadd.f32 %v47, %v49
  %v51 = vrot.slane %v50, 4
  %v52 = vadd.f32 %v50, %v51
  %v53 = vrot.slane %v52, 2
  %v54 = vadd.f32 %v52, %v53
  %v55 = vrot.slane %v54, 1
  %v56 = vadd.f32 %v54, %v55
  %v57 = vsel %vm40, %v35, 0.0
  %v58 = vsel %vm40, %v36, 0.0
  %v59 = vadd.f32 %v57, %v58
  %v60 = vsel %vm40, %v37, 0.0
  %v61 = vadd.f32 %v59, %v60
  %v62 = vsel %vm40, %v38, 0.0
  %v63 = vadd.f32 %v61, %v62
  %v64 = vsel %vm48, %v39, 0.0
  %v65 = vadd.f32 %v63, %v64
  %v66 = vrot.slane %v65, 4
  %v67 = vadd.f32 %v65, %v66
  %v68 = vrot.slane %v67, 2
  %v69 = vadd.f32 %v67, %v68
  %v70 = vrot.slane %v69, 1
  %v71 = vadd.f32 %v69, %v70
  %v72 = vrcp.pop 36.0
  %v73 = vmul.f32 %v56, %v72
  %v74 = vmul.f32 %v71, %v72
  %v75 = vsel %vm40, %v30, -inf
  %v76 = vsel %vm40, %v31, -inf
  %v77 = vsel %vm40, %v32, -inf
  %v78 = vmax.f32 %v75, %v77
  %v79 = vsel %vm40, %v33, -inf
  %v80 = vmax.f32 %v76, %v79
  %v81 = vsel %vm48, %v34, -inf
  %v82 = vmax.f32 %v78, %v81
  %v83 = vmax.f32 %v82, %v80
  %v84 = vrot.slane %v83, 4
  %v85 = vmax.f32 %v83, %v84
  %v86 = vrot.slane %v85, 2
  %v87 = vmax.f32 %v85, %v86
  %v88 = vrot.slane %v87, 1
  %v89 = vmax.f32 %v87, %v88
  %v90 = vsel %vm40, %v35, -inf
  %v91 = vsel %vm40, %v36, -inf
  %v92 = vsel %vm40, %v37, -inf
  %v93 = vmax.f32 %v90, %v92
  %v94 = vsel %vm40, %v38, -inf
  %v95 = vmax.f32 %v91, %v94
  %v96 = vsel %vm48, %v39, -inf
  %v97 = vmax.f32 %v93, %v96
  %v98 = vmax.f32 %v97, %v95
  %v99 = vrot.slane %v98, 4
  %v100 = vmax.f32 %v98, %v99
  %v101 = vrot.slane %v100, 2
  %v102 = vmax.f32 %v100, %v101
  %v103 = vrot.slane %v102, 1
  %v104 = vmax.f32 %v102, %v103
  %v105 = vld [vmem:[%s1] sm:$0x3]
  %v106 = vld [vmem:[%s2] sm:$0x3]
  %v107 = vlaneseq
  %v108 = vshrl.u32 %v107, 7
  %v109 = vsub.s32 0, %v108
  %v110 = vrot.slane %v105, %v109
  %v111 = vmul.f32 %v73, %v110
  %v112 = vmul.f32 %v74, %v110
  %v115 = vrot.slane %v112, 7
  %vm116 = vcmask 1041409
  %v117 = vsel %vm116, %v115, %v111
  %vm119 = vcmask 254976
  %v120 = vsel %vm119, %v117, 0.0
  %121 = vadd.xlane.f32.xlu0 %v120
  %v122 = vpop.xlane.xlu0 %121
  %v123 = vmax.f32 %v122, 0.0
  %v124 = vlaneseq
  %v125 = vshrl.u32 %v124, 7
  %v126 = vsub.s32 0, %v125
  %v127 = vrot.slane %v106, %v126
  %v128 = vmul.f32 %v123, %v127
  %v129 = vlaneseq
  %v130 = vshrl.u32 %v129, 7
  %v131 = vsub.s32 1, %v130
  %v132 = vrot.slane %v105, %v131
  %v133 = vmul.f32 %v73, %v132
  %v134 = vmul.f32 %v74, %v132
  %v137 = vrot.slane %v134, 7
  %v138 = vsel %vm116, %v137, %v133
  %v140 = vsel %vm119, %v138, 0.0
  %141 = vadd.xlane.f32.xlu0 %v140
  %v142 = vpop.xlane.xlu0 %141
  %v143 = vmax.f32 %v142, 0.0
  %v144 = vlaneseq
  %v145 = vshrl.u32 %v144, 7
  %v146 = vsub.s32 1, %v145
  %v147 = vrot.slane %v106, %v146
  %v148 = vmul.f32 %v143, %v147
  %v149 = vadd.f32 %v128, %v148
  %v150 = vmul.f32 %v89, %v110
  %v151 = vmul.f32 %v104, %v110
  %v154 = vrot.slane %v151, 7
  %v155 = vsel %vm116, %v154, %v150
  %v157 = vsel %vm119, %v155, 0.0
  %158 = vadd.xlane.f32.xlu0 %v157
  %v159 = vpop.xlane.xlu0 %158
  %v160 = vmax.f32 %v159, 0.0
  %v161 = vmul.f32 %v160, %v127
  %v162 = vmul.f32 %v89, %v132
  %v163 = vmul.f32 %v104, %v132
  %v166 = vrot.slane %v163, 7
  %v167 = vsel %vm116, %v166, %v162
  %v169 = vsel %vm119, %v167, 0.0
  %170 = vadd.xlane.f32.xlu0 %v169
  %v171 = vpop.xlane.xlu0 %170
  %v172 = vmax.f32 %v171, 0.0
  %v173 = vmul.f32 %v172, %v147
  %v174 = vadd.f32 %v161, %v173
  %v175 = vadd.f32 %v149, %v174
  %v176 = vxor.u32 %v175, 2147483648
  %v177 = vmul.f32 %v176, 1.442695
  %v178 = vpow.pop %v177
  %v179 = vadd.f32 %v178, 1.0
  %v180 = vrcp.pop %v179
  %v181 = vmul.f32 1.0, %v180
  %v184 = vunpack.c.l.s4 1966171168
  %v185 = vunpack.c.0.s8 %v184
  %v186 = vlaneseq
  %v187 = vshrl.u32 %v186, 7
  %v188 = vsub.s32 %v185, %v187
  %v189 = vrot.slane %v181, %v188
  %v190 = vcombine.high %v189, %v189
  %v192 = vunpack.c.l.s4 1966171168
  %v193 = vunpack.c.0.s8 %v192
  %v194 = vlaneseq
  %v195 = vshrl.u32 %v194, 7
  %v196 = vsub.s32 %v193, %v195
  %v197 = vrot.slane %v189, %v196
  %v199 = vunpack.c.l.s4 1966171168
  %v200 = vunpack.c.0.s8 %v199
  %v201 = vlaneseq
  %v202 = vshrl.u32 %v201, 7
  %v203 = vsub.s32 %v200, %v202
  %v204 = vrot.slane %v190, %v203
  %v205 = vlaneseq
  %v206 = vshrl.u32 %v205, 7
  %v207 = vsub.s32 0, %v206
  %v208 = vrot.slane %v197, %v207
  %v209 = vlaneseq
  %v210 = vshrl.u32 %v209, 7
  %v211 = vsub.s32 0, %v210
  %v212 = vrot.slane %v204, %v211
  %v215 = vmul.f32 %v30, %v208
  %v216 = vmul.f32 %v31, %v208
  %v217 = vmul.f32 %v32, %v208
  %v218 = vmul.f32 %v33, %v208
  %v219 = vmul.f32 %v34, %v208
  %v220 = vmul.f32 %v35, %v212
  %v221 = vmul.f32 %v36, %v212
  %v222 = vmul.f32 %v37, %v212
  %v223 = vmul.f32 %v38, %v212
  %v224 = vmul.f32 %v39, %v212
  %v225 = vsel %vm40, %v215, 0.0
  %226 = vadd.xlane.f32.xlu0 %v225
  %v227 = vpop.xlane.xlu0 %226
  %v228 = vsel %vm40, %v216, 0.0
  %229 = vadd.xlane.f32.xlu0 %v228
  %v230 = vpop.xlane.xlu0 %229
  %v231 = vsel %vm40, %v217, 0.0
  %232 = vadd.xlane.f32.xlu0 %v231
  %v233 = vpop.xlane.xlu0 %232
  %v234 = vsel %vm40, %v218, 0.0
  %235 = vadd.xlane.f32.xlu0 %v234
  %v236 = vpop.xlane.xlu0 %235
  %v237 = vsel %vm48, %v219, 0.0
  %238 = vadd.xlane.f32.xlu0 %v237
  %v239 = vpop.xlane.xlu0 %238
  %v240 = vsel %vm40, %v220, 0.0
  %241 = vadd.xlane.f32.xlu0 %v240
  %v242 = vpop.xlane.xlu0 %241
  %v243 = vsel %vm40, %v221, 0.0
  %244 = vadd.xlane.f32.xlu0 %v243
  %v245 = vpop.xlane.xlu0 %244
  %v246 = vsel %vm40, %v222, 0.0
  %247 = vadd.xlane.f32.xlu0 %v246
  %v248 = vpop.xlane.xlu0 %247
  %v249 = vsel %vm40, %v223, 0.0
  %250 = vadd.xlane.f32.xlu0 %v249
  %v251 = vpop.xlane.xlu0 %250
  %v252 = vsel %vm48, %v224, 0.0
  %253 = vadd.xlane.f32.xlu0 %v252
  %v254 = vpop.xlane.xlu0 %253
  %v255 = vrcp.pop 32.0
  %v256 = vmul.f32 %v227, %v255
  %v257 = vmul.f32 %v230, %v255
  %v258 = vmul.f32 %v233, %v255
  %v259 = vmul.f32 %v236, %v255
  %v260 = vmul.f32 %v239, %v255
  %v261 = vmul.f32 %v242, %v255
  %v262 = vmul.f32 %v245, %v255
  %v263 = vmul.f32 %v248, %v255
  %v264 = vmul.f32 %v251, %v255
  %v265 = vmul.f32 %v254, %v255
  %v266 = vsel %vm40, %v215, -inf
  %267 = vmax.xlane.f32.xlu0 %v266
  %v268 = vpop.xlane.xlu0 %267
  %v269 = vsel %vm40, %v216, -inf
  %270 = vmax.xlane.f32.xlu0 %v269
  %v271 = vpop.xlane.xlu0 %270
  %v272 = vsel %vm40, %v217, -inf
  %273 = vmax.xlane.f32.xlu0 %v272
  %v274 = vpop.xlane.xlu0 %273
  %v275 = vsel %vm40, %v218, -inf
  %276 = vmax.xlane.f32.xlu0 %v275
  %v277 = vpop.xlane.xlu0 %276
  %v278 = vsel %vm48, %v219, -inf
  %279 = vmax.xlane.f32.xlu0 %v278
  %v280 = vpop.xlane.xlu0 %279
  %v281 = vsel %vm40, %v220, -inf
  %282 = vmax.xlane.f32.xlu0 %v281
  %v283 = vpop.xlane.xlu0 %282
  %v284 = vsel %vm40, %v221, -inf
  %285 = vmax.xlane.f32.xlu0 %v284
  %v286 = vpop.xlane.xlu0 %285
  %v287 = vsel %vm40, %v222, -inf
  %288 = vmax.xlane.f32.xlu0 %v287
  %v289 = vpop.xlane.xlu0 %288
  %v290 = vsel %vm40, %v223, -inf
  %291 = vmax.xlane.f32.xlu0 %v290
  %v292 = vpop.xlane.xlu0 %291
  %v293 = vsel %vm48, %v224, -inf
  %294 = vmax.xlane.f32.xlu0 %v293
  %v295 = vpop.xlane.xlu0 %294
  %v296 = vld [vmem:[%s3] sm:$0xff]
  %v297 = vld [vmem:[%s3 + $0x8] sm:$0xff]
  %v298 = vld [vmem:[%s3 + $0x10] sm:$0xff]
  %v299 = vld [vmem:[%s3 + $0x18] sm:$0xff]
  %v300 = vld [vmem:[%s3 + $0x20] sm:$0xf]
  %v301 = vld [vmem:[%s4] sm:$0xff]
  %v302 = vld [vmem:[%s4 + $0x8] sm:$0xff]
  %v303 = vld [vmem:[%s4 + $0x10] sm:$0xff]
  %v304 = vld [vmem:[%s4 + $0x18] sm:$0xff]
  %v305 = vld [vmem:[%s4 + $0x20] sm:$0xf]
  %v316 = vlaneseq
  %v317 = vand.u32 %v316, 127
  %v318 = vlaneseq
  %v319 = vshrl.u32 %v318, 7
  %v320 = vsub.s32 %v317, %v319
  %v321 = vrot.slane %v268, %v320
  %v322 = vadd.s32 %v317, 4294967288
  %v323 = vlaneseq
  %v324 = vshrl.u32 %v323, 7
  %v325 = vsub.s32 %v322, %v324
  %v326 = vrot.slane %v271, %v325
  %vm327 = vcmask 130112
  %v328 = vsel %vm327, %v326, %v321
  %v329 = vadd.s32 %v317, 4294967280
  %v330 = vlaneseq
  %v331 = vshrl.u32 %v330, 7
  %v332 = vsub.s32 %v329, %v331
  %v333 = vrot.slane %v274, %v332
  %vm334 = vcmask 195712
  %v335 = vsel %vm334, %v333, %v328
  %v336 = vadd.s32 %v317, 4294967272
  %v337 = vlaneseq
  %v338 = vshrl.u32 %v337, 7
  %v339 = vsub.s32 %v336, %v338
  %v340 = vrot.slane %v277, %v339
  %vm341 = vcmask 261312
  %v342 = vsel %vm341, %v340, %v335
  %v343 = vadd.s32 %v317, 4294967264
  %v344 = vlaneseq
  %v345 = vshrl.u32 %v344, 7
  %v346 = vsub.s32 %v343, %v345
  %v347 = vrot.slane %v280, %v346
  %vm348 = vcmask 326912
  %v349 = vsel %vm348, %v347, %v342
  %v350 = vlaneseq
  %v351 = vshrl.u32 %v350, 7
  %v352 = vsub.s32 %v317, %v351
  %v353 = vrot.slane %v283, %v352
  %v354 = vlaneseq
  %v355 = vshrl.u32 %v354, 7
  %v356 = vsub.s32 %v322, %v355
  %v357 = vrot.slane %v286, %v356
  %v358 = vsel %vm327, %v357, %v353
  %v359 = vlaneseq
  %v360 = vshrl.u32 %v359, 7
  %v361 = vsub.s32 %v329, %v360
  %v362 = vrot.slane %v289, %v361
  %v363 = vsel %vm334, %v362, %v358
  %v364 = vlaneseq
  %v365 = vshrl.u32 %v364, 7
  %v366 = vsub.s32 %v336, %v365
  %v367 = vrot.slane %v292, %v366
  %v368 = vsel %vm341, %v367, %v363
  %v369 = vlaneseq
  %v370 = vshrl.u32 %v369, 7
  %v371 = vsub.s32 %v343, %v370
  %v372 = vrot.slane %v295, %v371
  %v373 = vsel %vm348, %v372, %v368
  %v374 = vsel %vm116, %v373, %v349
  %vm375 = vcmask 293888
  %v376 = vsel %vm375, %v374, 0
  %vm378 = vcmask 1043456
  %v380 = vsel %vm378, %v305, 0
  %382 = vmatprep.subr.mxu0 0.0
  %383 = vmatpush1.msra.mxu0 0.0
  %384 = vmatprep.subr.mxu0 0.0
  %385 = vmatpush1.msra.mxu0 0.0
  %386 = vmatprep.subr.mxu0 0.0
  %387 = vmatpush1.msra.mxu0 0.0
  %388 = vmatprep.subr.mxu0 0.0
  %389 = vmatpush1.msra.mxu0 0.0
  %390 = vmatprep.subr.mxu0 0.0
  %391 = vmatpush1.msra.mxu0 0.0
  %392 = vmatprep.subr.mxu0 0.0
  %393 = vmatpush1.msra.mxu0 0.0
  %394 = vmatprep.subr.mxu0 0.0
  %395 = vmatpush1.msra.mxu0 0.0
  %396 = vmatprep.subr.mxu0 0.0
  %397 = vmatpush1.msra.mxu0 0.0
  %398 = vmatprep.subr.mxu0 0.0
  %399 = vmatpush1.msra.mxu0 0.0
  %400 = vmatprep.subr.mxu0 0.0
  %401 = vmatpush1.msra.mxu0 0.0
  %402 = vmatprep.subr.mxu0 0.0
  %403 = vmatpush1.msra.mxu0 0.0
  %404 = vmatprep.subr.mxu0 0.0
  %405 = vmatpush1.msra.mxu0 %v380
  %406 = vmatprep.subr.mxu0 0.0
  %407 = vmatpush1.msra.mxu0 %v304
  %408 = vmatprep.subr.mxu0 0.0
  %409 = vmatpush1.msra.mxu0 %v303
  %410 = vmatprep.subr.mxu0 0.0
  %411 = vmatpush1.msra.mxu0 %v302
  %412 = vmatprep.subr.mxu0 0.0
  %413 = vmatpush1.msra.mxu0 %v301
  %414 = vmatprep.subr.mxu0 0.0
  %415 = vmatpush2.msra.mxu0 0.0
  %416 = vmatprep.subr.mxu0 0.0
  %417 = vmatpush2.msra.mxu0 0.0
  %418 = vmatprep.subr.mxu0 0.0
  %419 = vmatpush2.msra.mxu0 0.0
  %420 = vmatprep.subr.mxu0 0.0
  %421 = vmatpush2.msra.mxu0 0.0
  %422 = vmatprep.subr.mxu0 0.0
  %423 = vmatpush2.msra.mxu0 0.0
  %424 = vmatprep.subr.mxu0 0.0
  %425 = vmatpush2.msra.mxu0 0.0
  %426 = vmatprep.subr.mxu0 0.0
  %427 = vmatpush2.msra.mxu0 0.0
  %428 = vmatprep.subr.mxu0 0.0
  %429 = vmatpush2.msra.mxu0 0.0
  %430 = vmatprep.subr.mxu0 0.0
  %431 = vmatpush2.msra.mxu0 0.0
  %432 = vmatprep.subr.mxu0 0.0
  %433 = vmatpush2.msra.mxu0 0.0
  %434 = vmatprep.subr.mxu0 0.0
  %435 = vmatpush2.msra.mxu0 0.0
  %436 = vmatprep.subr.mxu0 0.0
  %437 = vmatpush2.msra.mxu0 0.0
  %438 = vmatprep.subr.mxu0 0.0
  %439 = vmatpush2.msra.mxu0 0.0
  %440 = vmatprep.subr.mxu0 0.0
  %441 = vmatpush2.msra.mxu0 0.0
  %442 = vmatprep.subr.mxu0 0.0
  %443 = vmatpush2.msra.mxu0 0.0
  %444 = vmatprep.subr.mxu0 0.0
  %445 = vmatpush2.msra.mxu0 0.0
  %446 = vmatprep.mubr.f32.mxu0 0.0
  %447 = vmatmul.mubr.f32.gmra.mxu0 %v376
  %v448 = vpop.f32.mrf.mxu0
  %v449 = vadd.f32 0.0, %v448
  %v450 = vpop.f32.mrf.mxu0
  %451 = vdwg.mxu0
  %v462 = vlaneseq
  %v463 = vshrl.u32 %v462, 7
  %v464 = vsub.s32 %v317, %v463
  %v465 = vrot.slane %v256, %v464
  %v466 = vlaneseq
  %v467 = vshrl.u32 %v466, 7
  %v468 = vsub.s32 %v322, %v467
  %v469 = vrot.slane %v257, %v468
  %v470 = vsel %vm327, %v469, %v465
  %v471 = vlaneseq
  %v472 = vshrl.u32 %v471, 7
  %v473 = vsub.s32 %v329, %v472
  %v474 = vrot.slane %v258, %v473
  %v475 = vsel %vm334, %v474, %v470
  %v476 = vlaneseq
  %v477 = vshrl.u32 %v476, 7
  %v478 = vsub.s32 %v336, %v477
  %v479 = vrot.slane %v259, %v478
  %v480 = vsel %vm341, %v479, %v475
  %v481 = vlaneseq
  %v482 = vshrl.u32 %v481, 7
  %v483 = vsub.s32 %v343, %v482
  %v484 = vrot.slane %v260, %v483
  %v485 = vsel %vm348, %v484, %v480
  %v486 = vlaneseq
  %v487 = vshrl.u32 %v486, 7
  %v488 = vsub.s32 %v317, %v487
  %v489 = vrot.slane %v261, %v488
  %v490 = vlaneseq
  %v491 = vshrl.u32 %v490, 7
  %v492 = vsub.s32 %v322, %v491
  %v493 = vrot.slane %v262, %v492
  %v494 = vsel %vm327, %v493, %v489
  %v495 = vlaneseq
  %v496 = vshrl.u32 %v495, 7
  %v497 = vsub.s32 %v329, %v496
  %v498 = vrot.slane %v263, %v497
  %v499 = vsel %vm334, %v498, %v494
  %v500 = vlaneseq
  %v501 = vshrl.u32 %v500, 7
  %v502 = vsub.s32 %v336, %v501
  %v503 = vrot.slane %v264, %v502
  %v504 = vsel %vm341, %v503, %v499
  %v505 = vlaneseq
  %v506 = vshrl.u32 %v505, 7
  %v507 = vsub.s32 %v343, %v506
  %v508 = vrot.slane %v265, %v507
  %v509 = vsel %vm348, %v508, %v504
  %v510 = vsel %vm116, %v509, %v485
  %v511 = vsel %vm375, %v510, 0
  %v514 = vsel %vm378, %v300, 0
  %516 = vmatprep.subr.mxu0 0.0
  %517 = vmatpush1.msra.mxu0 0.0
  %518 = vmatprep.subr.mxu0 0.0
  %519 = vmatpush1.msra.mxu0 0.0
  %520 = vmatprep.subr.mxu0 0.0
  %521 = vmatpush1.msra.mxu0 0.0
  %522 = vmatprep.subr.mxu0 0.0
  %523 = vmatpush1.msra.mxu0 0.0
  %524 = vmatprep.subr.mxu0 0.0
  %525 = vmatpush1.msra.mxu0 0.0
  %526 = vmatprep.subr.mxu0 0.0
  %527 = vmatpush1.msra.mxu0 0.0
  %528 = vmatprep.subr.mxu0 0.0
  %529 = vmatpush1.msra.mxu0 0.0
  %530 = vmatprep.subr.mxu0 0.0
  %531 = vmatpush1.msra.mxu0 0.0
  %532 = vmatprep.subr.mxu0 0.0
  %533 = vmatpush1.msra.mxu0 0.0
  %534 = vmatprep.subr.mxu0 0.0
  %535 = vmatpush1.msra.mxu0 0.0
  %536 = vmatprep.subr.mxu0 0.0
  %537 = vmatpush1.msra.mxu0 0.0
  %538 = vmatprep.subr.mxu0 0.0
  %539 = vmatpush1.msra.mxu0 %v514
  %540 = vmatprep.subr.mxu0 0.0
  %541 = vmatpush1.msra.mxu0 %v299
  %542 = vmatprep.subr.mxu0 0.0
  %543 = vmatpush1.msra.mxu0 %v298
  %544 = vmatprep.subr.mxu0 0.0
  %545 = vmatpush1.msra.mxu0 %v297
  %546 = vmatprep.subr.mxu0 0.0
  %547 = vmatpush1.msra.mxu0 %v296
  %548 = vmatprep.subr.mxu0 0.0
  %549 = vmatpush2.msra.mxu0 0.0
  %550 = vmatprep.subr.mxu0 0.0
  %551 = vmatpush2.msra.mxu0 0.0
  %552 = vmatprep.subr.mxu0 0.0
  %553 = vmatpush2.msra.mxu0 0.0
  %554 = vmatprep.subr.mxu0 0.0
  %555 = vmatpush2.msra.mxu0 0.0
  %556 = vmatprep.subr.mxu0 0.0
  %557 = vmatpush2.msra.mxu0 0.0
  %558 = vmatprep.subr.mxu0 0.0
  %559 = vmatpush2.msra.mxu0 0.0
  %560 = vmatprep.subr.mxu0 0.0
  %561 = vmatpush2.msra.mxu0 0.0
  %562 = vmatprep.subr.mxu0 0.0
  %563 = vmatpush2.msra.mxu0 0.0
  %564 = vmatprep.subr.mxu0 0.0
  %565 = vmatpush2.msra.mxu0 0.0
  %566 = vmatprep.subr.mxu0 0.0
  %567 = vmatpush2.msra.mxu0 0.0
  %568 = vmatprep.subr.mxu0 0.0
  %569 = vmatpush2.msra.mxu0 0.0
  %570 = vmatprep.subr.mxu0 0.0
  %571 = vmatpush2.msra.mxu0 0.0
  %572 = vmatprep.subr.mxu0 0.0
  %573 = vmatpush2.msra.mxu0 0.0
  %574 = vmatprep.subr.mxu0 0.0
  %575 = vmatpush2.msra.mxu0 0.0
  %576 = vmatprep.subr.mxu0 0.0
  %577 = vmatpush2.msra.mxu0 0.0
  %578 = vmatprep.subr.mxu0 0.0
  %579 = vmatpush2.msra.mxu0 0.0
  %580 = vmatprep.mubr.f32.mxu0 0.0
  %581 = vmatmul.mubr.f32.gmra.mxu0 %v511
  %v582 = vpop.f32.mrf.mxu0
  %v583 = vadd.f32 %v449, %v582
  %v584 = vpop.f32.mrf.mxu0
  %585 = vdwg.mxu0
  %v586 = vxor.u32 %v583, 2147483648
  %v587 = vmul.f32 %v586, 1.442695
  %v588 = vpow.pop %v587
  %v589 = vadd.f32 %v588, 1.0
  %v590 = vrcp.pop %v589
  %v591 = vmul.f32 1.0, %v590
  %v592 = vlaneseq
  %v593 = vshrl.u32 %v592, 7
  %v594 = vsub.s32 0, %v593
  %v595 = vrot.slane %v591, %v594
  %597 = vbcast.lane.b32.xlu0 %v595, 256
  %v598 = vpop.permute.xlu0 %597
  %s600 = sor.u32 256, 8
  %601 = vbcast.lane.b32.xlu0 %v595, %s600
  %v602 = vpop.permute.xlu0 %601
  %s604 = sor.u32 256, 16
  %605 = vbcast.lane.b32.xlu0 %v595, %s604
  %v606 = vpop.permute.xlu0 %605
  %s608 = sor.u32 256, 24
  %609 = vbcast.lane.b32.xlu0 %v595, %s608
  %v610 = vpop.permute.xlu0 %609
  %s612 = sor.u32 256, 32
  %613 = vbcast.lane.b32.xlu0 %v595, %s612
  %v614 = vpop.permute.xlu0 %613
  %v615 = vlaneseq
  %v616 = vshrl.u32 %v615, 7
  %v617 = vsub.s32 1, %v616
  %v618 = vrot.slane %v591, %v617
  %620 = vbcast.lane.b32.xlu0 %v618, 256
  %v621 = vpop.permute.xlu0 %620
  %s623 = sor.u32 256, 8
  %624 = vbcast.lane.b32.xlu0 %v618, %s623
  %v625 = vpop.permute.xlu0 %624
  %s627 = sor.u32 256, 16
  %628 = vbcast.lane.b32.xlu0 %v618, %s627
  %v629 = vpop.permute.xlu0 %628
  %s631 = sor.u32 256, 24
  %632 = vbcast.lane.b32.xlu0 %v618, %s631
  %v633 = vpop.permute.xlu0 %632
  %s635 = sor.u32 256, 32
  %636 = vbcast.lane.b32.xlu0 %v618, %s635
  %v637 = vpop.permute.xlu0 %636
  %v638 = vmul.f32 %v215, %v598
  %v639 = vmul.f32 %v216, %v602
  %v640 = vmul.f32 %v217, %v606
  %v641 = vmul.f32 %v218, %v610
  %v642 = vmul.f32 %v219, %v614
  %v643 = vmul.f32 %v220, %v621
  %v644 = vmul.f32 %v221, %v625
  %v645 = vmul.f32 %v222, %v629
  %v646 = vmul.f32 %v223, %v633
  %v647 = vmul.f32 %v224, %v637
  %v648 = vpack.c.bf16 %v639, %v638
  %v649 = vpack.c.bf16 %v641, %v640
  %v650 = vpack.c.bf16 %v642, %v642
  %v651 = vpack.c.bf16 %v644, %v643
  %v652 = vpack.c.bf16 %v646, %v645
  %v653 = vpack.c.bf16 %v647, %v647
  %v660 = vunpack.c.l.b16 %v648
  %v661 = vunpack.c.h.b16 %v648
  %v662 = vunpack.c.l.b16 %v649
  %v663 = vunpack.c.h.b16 %v649
  %v664 = vunpack.c.l.b16 %v650
  %v665 = vunpack.c.l.b16 %v651
  %v666 = vunpack.c.h.b16 %v651
  %v667 = vunpack.c.l.b16 %v652
  %v668 = vunpack.c.h.b16 %v652
  %v669 = vunpack.c.l.b16 %v653
  %v670 = vpack.c.b16 %v660, %v660
  %v671 = vpack.c.b16 %v661, %v661
  %v672 = vpack.c.b16 %v662, %v662
  %v673 = vpack.c.b16 %v663, %v663
  %v674 = vpack.c.b16 %v664, %v664
  %v675 = vpack.c.b16 %v665, %v665
  %v676 = vpack.c.b16 %v666, %v666
  %v677 = vpack.c.b16 %v667, %v667
  %v678 = vpack.c.b16 %v668, %v668
  %v679 = vpack.c.b16 %v669, %v669
  %690 = vst.msk [vmem:[%s5] sm:$0xf] %vm48, %v670
  %691 = vst.msk [vmem:[%s5 + $0x4] sm:$0xf] %vm48, %v671
  %692 = vst.msk [vmem:[%s5 + $0x8] sm:$0xf] %vm48, %v672
  %693 = vst.msk [vmem:[%s5 + $0xc] sm:$0xf] %vm48, %v673
  %694 = vst.msk [vmem:[%s5 + $0x10] sm:$0x3] %vm119, %v674
  %695 = vst.msk [vmem:[%s5 + $0x14] sm:$0xf] %vm48, %v675
  %696 = vst.msk [vmem:[%s5 + $0x18] sm:$0xf] %vm48, %v676
  %697 = vst.msk [vmem:[%s5 + $0x1c] sm:$0xf] %vm48, %v677
  %698 = vst.msk [vmem:[%s5 + $0x20] sm:$0xf] %vm48, %v678
  %699 = vst.msk [vmem:[%s5 + $0x24] sm:$0x3] %vm119, %v679
  // Predicated region
  $region22: #{value_net_forward.10} parent=0 // pred_check
    _
  $region23: #{value_net_forward.10} parent=0 // pred_check_branch
    %701 = sbr.rel (0) target = $region25
  $region24: #{value_net_forward.10} parent=0 // pred_region
    _
  $region25: #{value_net_forward.10} parent=0 // pred_fallthru
    _
  // Predicated region
  $region26: #{value_net_forward.10} parent=0 // pred_check
    _
  $region27: #{value_net_forward.10} parent=0 // pred_check_branch
    %703 = sbr.rel (0) target = $region29
  $region28: #{value_net_forward.10} parent=0 // pred_region
    _
  $region29: #{value_net_forward.10} parent=0 // pred_fallthru
    _

// kernel: value_net_forward.11
$region0: #{value_net_forward.11}
  #allocation0 [shape = 'u32[]', space=smem, size = 0x4, offset = 0x4, fixed_abs, tag = 'smem constant byte address 0x4 - core index']
  #allocation1 [shape = 'u32[144,128]{1,0:T(1,128)}', space=vmem, size = 0x12000, scoped, tag = 'internal scratch']
  #allocation2 [shape = 'f32[1,1]{1,0:T(1,128)S(1)}', space=vmem, size = 0x200, scoped, tag = 'scoped memory for value_net_forward.11']
  %s0 = inlined_call_operand.vmem [shape: bf16[2,1152], index: 0, kind: input, shape index: {}]
  %s1 = inlined_call_operand.vmem [shape: bf16[1152,512], index: 1, kind: input, shape index: {}]
  %s2 = inlined_call_operand.vmem [shape: f32[1,512], index: 2, kind: input, shape index: {}]
  %s3 = inlined_call_operand.vmem [shape: f32[1,512], index: 3, kind: input, shape index: {}]
  %s4 = inlined_call_operand.<no memory space> [shape: f32[1,1], index: 4, kind: input, shape index: {}]
  %s5 = inlined_call_operand.vmem [shape: f32[2,1], index: 5, kind: output, shape index: {}]
  %s6 = sld [smem:[#allocation0]]
  $region30: #{value_net_forward.11} parent=0
    _
  %s8 = ssub.s32 1, %s6
  %s9 = scalar_select 0, %s8, %s6
  %v10 = vstv %s4
  %11 = vst [vmem:[#allocation2] sm:$0x1] %v10
  // Predicated region
  $region2: #{value_net_forward.11} parent=0 // pred_check
    _
  $region3: #{value_net_forward.11} parent=0 // pred_check_branch
    %13 = sbr.rel (0) target = $region5
  $region4: #{value_net_forward.11} parent=0 // pred_region
    _
  $region5: #{value_net_forward.11} parent=0 // pred_fallthru
    _
  // Predicated region
  $region6: #{value_net_forward.11} parent=0 // pred_check
    _
  $region7: #{value_net_forward.11} parent=0 // pred_check_branch
    %15 = sbr.rel (0) target = $region9
  $region8: #{value_net_forward.11} parent=0 // pred_region
    _
  $region9: #{value_net_forward.11} parent=0 // pred_fallthru
    _
  // Predicated region
  $region10: #{value_net_forward.11} parent=0 // pred_check
    _
  $region11: #{value_net_forward.11} parent=0 // pred_check_branch
    %17 = sbr.rel (0) target = $region13
  $region12: #{value_net_forward.11} parent=0 // pred_region
    _
  $region13: #{value_net_forward.11} parent=0 // pred_fallthru
    _
  // Predicated region
  $region14: #{value_net_forward.11} parent=0 // pred_check
    _
  $region15: #{value_net_forward.11} parent=0 // pred_check_branch
    %19 = sbr.rel (0) target = $region17
  $region16: #{value_net_forward.11} parent=0 // pred_region
    _
  $region17: #{value_net_forward.11} parent=0 // pred_fallthru
    _
  // Predicated region
  $region18: #{value_net_forward.11} parent=0 // pred_check
    _
  $region19: #{value_net_forward.11} parent=0 // pred_check_branch
    %21 = sbr.rel (0) target = $region21
  $region20: #{value_net_forward.11} parent=0 // pred_region
    _
  $region21: #{value_net_forward.11} parent=0 // pred_fallthru
    _
  %v23 = vld [vmem:[%s0] sm:$0xff]
  %v24 = vld [vmem:[%s0 + $0x8] sm:$0x1]
  %v25 = vld [vmem:[%s1] sm:$0xff]
  %v26 = vld [vmem:[%s1 + $0x8] sm:$0xff]
  %v27 = vld [vmem:[%s1 + $0x10] sm:$0xff]
  %v28 = vld [vmem:[%s1 + $0x18] sm:$0xff]
  %v29 = vld [vmem:[%s1 + $0x20] sm:$0xff]
  %v30 = vld [vmem:[%s1 + $0x28] sm:$0xff]
  %v31 = vld [vmem:[%s1 + $0x30] sm:$0xff]
  %v32 = vld [vmem:[%s1 + $0x38] sm:$0xff]
  %v33 = vld [vmem:[%s1 + $0x40] sm:$0xff]
  %v34 = vld [vmem:[%s1 + $0x48] sm:$0xff]
  %v35 = vld [vmem:[%s1 + $0x50] sm:$0xff]
  %v36 = vld [vmem:[%s1 + $0x58] sm:$0xff]
  %v37 = vld [vmem:[%s1 + $0x60] sm:$0xff]
  %v38 = vld [vmem:[%s1 + $0x68] sm:$0xff]
  %v39 = vld [vmem:[%s1 + $0x70] sm:$0xff]
  %v40 = vld [vmem:[%s1 + $0x78] sm:$0xff]
  %v41 = vld [vmem:[%s1 + $0x80] sm:$0xff]
  %v42 = vld [vmem:[%s1 + $0x88] sm:$0xff]
  %v43 = vld [vmem:[%s1 + $0x90] sm:$0xff]
  %v44 = vld [vmem:[%s1 + $0x98] sm:$0xff]
  %v45 = vld [vmem:[%s1 + $0xa0] sm:$0xff]
  %v46 = vld [vmem:[%s1 + $0xa8] sm:$0xff]
  %v47 = vld [vmem:[%s1 + $0xb0] sm:$0xff]
  %v48 = vld [vmem:[%s1 + $0xb8] sm:$0xff]
  %v49 = vld [vmem:[%s1 + $0xc0] sm:$0xff]
  %v50 = vld [vmem:[%s1 + $0xc8] sm:$0xff]
  %v51 = vld [vmem:[%s1 + $0xd0] sm:$0xff]
  %v52 = vld [vmem:[%s1 + $0xd8] sm:$0xff]
  %v53 = vld [vmem:[%s1 + $0xe0] sm:$0xff]
  %v54 = vld [vmem:[%s1 + $0xe8] sm:$0xff]
  %v55 = vld [vmem:[%s1 + $0xf0] sm:$0xff]
  %v56 = vld [vmem:[%s1 + $0xf8] sm:$0xff]
  %v57 = vld [vmem:[%s1 + $0x100] sm:$0xff]
  %v58 = vld [vmem:[%s1 + $0x108] sm:$0xff]
  %v59 = vld [vmem:[%s1 + $0x110] sm:$0xff]
  %v60 = vld [vmem:[%s1 + $0x118] sm:$0xff]
  %v61 = vld [vmem:[%s1 + $0x120] sm:$0xff]
  %v62 = vld [vmem:[%s1 + $0x128] sm:$0xff]
  %v63 = vld [vmem:[%s1 + $0x130] sm:$0xff]
  %v64 = vld [vmem:[%s1 + $0x138] sm:$0xff]
  %v65 = vld [vmem:[%s1 + $0x140] sm:$0xff]
  %v66 = vld [vmem:[%s1 + $0x148] sm:$0xff]
  %v67 = vld [vmem:[%s1 + $0x150] sm:$0xff]
  %v68 = vld [vmem:[%s1 + $0x158] sm:$0xff]
  %v69 = vld [vmem:[%s1 + $0x160] sm:$0xff]
  %v70 = vld [vmem:[%s1 + $0x168] sm:$0xff]
  %v71 = vld [vmem:[%s1 + $0x170] sm:$0xff]
  %v72 = vld [vmem:[%s1 + $0x178] sm:$0xff]
  %v73 = vld [vmem:[%s1 + $0x180] sm:$0xff]
  %v74 = vld [vmem:[%s1 + $0x188] sm:$0xff]
  %v75 = vld [vmem:[%s1 + $0x190] sm:$0xff]
  %v76 = vld [vmem:[%s1 + $0x198] sm:$0xff]
  %v77 = vld [vmem:[%s1 + $0x1a0] sm:$0xff]
  %v78 = vld [vmem:[%s1 + $0x1a8] sm:$0xff]
  %v79 = vld [vmem:[%s1 + $0x1b0] sm:$0xff]
  %v80 = vld [vmem:[%s1 + $0x1b8] sm:$0xff]
  %v81 = vld [vmem:[%s1 + $0x1c0] sm:$0xff]
  %v82 = vld [vmem:[%s1 + $0x1c8] sm:$0xff]
  %v83 = vld [vmem:[%s1 + $0x1d0] sm:$0xff]
  %v84 = vld [vmem:[%s1 + $0x1d8] sm:$0xff]
  %v85 = vld [vmem:[%s1 + $0x1e0] sm:$0xff]
  %v86 = vld [vmem:[%s1 + $0x1e8] sm:$0xff]
  %v87 = vld [vmem:[%s1 + $0x1f0] sm:$0xff]
  %v88 = vld [vmem:[%s1 + $0x1f8] sm:$0xff]
  %v89 = vld [vmem:[%s1 + $0x200] sm:$0xff]
  %v90 = vld [vmem:[%s1 + $0x208] sm:$0xff]
  %v91 = vld [vmem:[%s1 + $0x210] sm:$0xff]
  %v92 = vld [vmem:[%s1 + $0x218] sm:$0xff]
  %v93 = vld [vmem:[%s1 + $0x220] sm:$0xff]
  %v94 = vld [vmem:[%s1 + $0x228] sm:$0xff]
  %v95 = vld [vmem:[%s1 + $0x230] sm:$0xff]
  %v96 = vld [vmem:[%s1 + $0x238] sm:$0xff]
  %v97 = vld [vmem:[%s1 + $0x240] sm:$0xff]
  %v98 = vld [vmem:[%s1 + $0x248] sm:$0xff]
  %v99 = vld [vmem:[%s1 + $0x250] sm:$0xff]
  %v100 = vld [vmem:[%s1 + $0x258] sm:$0xff]
  %v101 = vld [vmem:[%s1 + $0x260] sm:$0xff]
  %v102 = vld [vmem:[%s1 + $0x268] sm:$0xff]
  %v103 = vld [vmem:[%s1 + $0x270] sm:$0xff]
  %v104 = vld [vmem:[%s1 + $0x278] sm:$0xff]
  %v105 = vld [vmem:[%s1 + $0x280] sm:$0xff]
  %v106 = vld [vmem:[%s1 + $0x288] sm:$0xff]
  %v107 = vld [vmem:[%s1 + $0x290] sm:$0xff]
  %v108 = vld [vmem:[%s1 + $0x298] sm:$0xff]
  %v109 = vld [vmem:[%s1 + $0x2a0] sm:$0xff]
  %v110 = vld [vmem:[%s1 + $0x2a8] sm:$0xff]
  %v111 = vld [vmem:[%s1 + $0x2b0] sm:$0xff]
  %v112 = vld [vmem:[%s1 + $0x2b8] sm:$0xff]
  %v113 = vld [vmem:[%s1 + $0x2c0] sm:$0xff]
  %v114 = vld [vmem:[%s1 + $0x2c8] sm:$0xff]
  %v115 = vld [vmem:[%s1 + $0x2d0] sm:$0xff]
  %v116 = vld [vmem:[%s1 + $0x2d8] sm:$0xff]
  %v117 = vld [vmem:[%s1 + $0x2e0] sm:$0xff]
  %v118 = vld [vmem:[%s1 + $0x2e8] sm:$0xff]
  %v119 = vld [vmem:[%s1 + $0x2f0] sm:$0xff]
  %v120 = vld [vmem:[%s1 + $0x2f8] sm:$0xff]
  %v121 = vld [vmem:[%s1 + $0x300] sm:$0xff]
  %v122 = vld [vmem:[%s1 + $0x308] sm:$0xff]
  %v123 = vld [vmem:[%s1 + $0x310] sm:$0xff]
  %v124 = vld [vmem:[%s1 + $0x318] sm:$0xff]
  %v125 = vld [vmem:[%s1 + $0x320] sm:$0xff]
  %v126 = vld [vmem:[%s1 + $0x328] sm:$0xff]
  %v127 = vld [vmem:[%s1 + $0x330] sm:$0xff]
  %v128 = vld [vmem:[%s1 + $0x338] sm:$0xff]
  %v129 = vld [vmem:[%s1 + $0x340] sm:$0xff]
  %v130 = vld [vmem:[%s1 + $0x348] sm:$0xff]
  %v131 = vld [vmem:[%s1 + $0x350] sm:$0xff]
  %v132 = vld [vmem:[%s1 + $0x358] sm:$0xff]
  %v133 = vld [vmem:[%s1 + $0x360] sm:$0xff]
  %v134 = vld [vmem:[%s1 + $0x368] sm:$0xff]
  %v135 = vld [vmem:[%s1 + $0x370] sm:$0xff]
  %v136 = vld [vmem:[%s1 + $0x378] sm:$0xff]
  %v137 = vld [vmem:[%s1 + $0x380] sm:$0xff]
  %v138 = vld [vmem:[%s1 + $0x388] sm:$0xff]
  %v139 = vld [vmem:[%s1 + $0x390] sm:$0xff]
  %v140 = vld [vmem:[%s1 + $0x398] sm:$0xff]
  %v141 = vld [vmem:[%s1 + $0x3a0] sm:$0xff]
  %v142 = vld [vmem:[%s1 + $0x3a8] sm:$0xff]
  %v143 = vld [vmem:[%s1 + $0x3b0] sm:$0xff]
  %v144 = vld [vmem:[%s1 + $0x3b8] sm:$0xff]
  %v145 = vld [vmem:[%s1 + $0x3c0] sm:$0xff]
  %v146 = vld [vmem:[%s1 + $0x3c8] sm:$0xff]
  %v147 = vld [vmem:[%s1 + $0x3d0] sm:$0xff]
  %v148 = vld [vmem:[%s1 + $0x3d8] sm:$0xff]
  %v149 = vld [vmem:[%s1 + $0x3e0] sm:$0xff]
  %v150 = vld [vmem:[%s1 + $0x3e8] sm:$0xff]
  %v151 = vld [vmem:[%s1 + $0x3f0] sm:$0xff]
  %v152 = vld [vmem:[%s1 + $0x3f8] sm:$0xff]
  %v153 = vld [vmem:[%s1 + $0x400] sm:$0xff]
  %v154 = vld [vmem:[%s1 + $0x408] sm:$0xff]
  %v155 = vld [vmem:[%s1 + $0x410] sm:$0xff]
  %v156 = vld [vmem:[%s1 + $0x418] sm:$0xff]
  %v157 = vld [vmem:[%s1 + $0x420] sm:$0xff]
  %v158 = vld [vmem:[%s1 + $0x428] sm:$0xff]
  %v159 = vld [vmem:[%s1 + $0x430] sm:$0xff]
  %v160 = vld [vmem:[%s1 + $0x438] sm:$0xff]
  %v161 = vld [vmem:[%s1 + $0x440] sm:$0xff]
  %v162 = vld [vmem:[%s1 + $0x448] sm:$0xff]
  %v163 = vld [vmem:[%s1 + $0x450] sm:$0xff]
  %v164 = vld [vmem:[%s1 + $0x458] sm:$0xff]
  %v165 = vld [vmem:[%s1 + $0x460] sm:$0xff]
  %v166 = vld [vmem:[%s1 + $0x468] sm:$0xff]
  %v167 = vld [vmem:[%s1 + $0x470] sm:$0xff]
  %v168 = vld [vmem:[%s1 + $0x478] sm:$0xff]
  %v169 = vld [vmem:[%s1 + $0x480] sm:$0xff]
  %v170 = vld [vmem:[%s1 + $0x488] sm:$0xff]
  %v171 = vld [vmem:[%s1 + $0x490] sm:$0xff]
  %v172 = vld [vmem:[%s1 + $0x498] sm:$0xff]
  %v173 = vld [vmem:[%s1 + $0x4a0] sm:$0xff]
  %v174 = vld [vmem:[%s1 + $0x4a8] sm:$0xff]
  %v175 = vld [vmem:[%s1 + $0x4b0] sm:$0xff]
  %v176 = vld [vmem:[%s1 + $0x4b8] sm:$0xff]
  %v177 = vld [vmem:[%s1 + $0x4c0] sm:$0xff]
  %v178 = vld [vmem:[%s1 + $0x4c8] sm:$0xff]
  %v179 = vld [vmem:[%s1 + $0x4d0] sm:$0xff]
  %v180 = vld [vmem:[%s1 + $0x4d8] sm:$0xff]
  %v181 = vld [vmem:[%s1 + $0x4e0] sm:$0xff]
  %v182 = vld [vmem:[%s1 + $0x4e8] sm:$0xff]
  %v183 = vld [vmem:[%s1 + $0x4f0] sm:$0xff]
  %v184 = vld [vmem:[%s1 + $0x4f8] sm:$0xff]
  %v185 = vld [vmem:[%s1 + $0x500] sm:$0xff]
  %v186 = vld [vmem:[%s1 + $0x508] sm:$0xff]
  %v187 = vld [vmem:[%s1 + $0x510] sm:$0xff]
  %v188 = vld [vmem:[%s1 + $0x518] sm:$0xff]
  %v189 = vld [vmem:[%s1 + $0x520] sm:$0xff]
  %v190 = vld [vmem:[%s1 + $0x528] sm:$0xff]
  %v191 = vld [vmem:[%s1 + $0x530] sm:$0xff]
  %v192 = vld [vmem:[%s1 + $0x538] sm:$0xff]
  %v193 = vld [vmem:[%s1 + $0x540] sm:$0xff]
  %v194 = vld [vmem:[%s1 + $0x548] sm:$0xff]
  %v195 = vld [vmem:[%s1 + $0x550] sm:$0xff]
  %v196 = vld [vmem:[%s1 + $0x558] sm:$0xff]
  %v197 = vld [vmem:[%s1 + $0x560] sm:$0xff]
  %v198 = vld [vmem:[%s1 + $0x568] sm:$0xff]
  %v199 = vld [vmem:[%s1 + $0x570] sm:$0xff]
  %v200 = vld [vmem:[%s1 + $0x578] sm:$0xff]
  %v201 = vld [vmem:[%s1 + $0x580] sm:$0xff]
  %v202 = vld [vmem:[%s1 + $0x588] sm:$0xff]
  %v203 = vld [vmem:[%s1 + $0x590] sm:$0xff]
  %v204 = vld [vmem:[%s1 + $0x598] sm:$0xff]
  %v205 = vld [vmem:[%s1 + $0x5a0] sm:$0xff]
  %v206 = vld [vmem:[%s1 + $0x5a8] sm:$0xff]
  %v207 = vld [vmem:[%s1 + $0x5b0] sm:$0xff]
  %v208 = vld [vmem:[%s1 + $0x5b8] sm:$0xff]
  %v209 = vld [vmem:[%s1 + $0x5c0] sm:$0xff]
  %v210 = vld [vmem:[%s1 + $0x5c8] sm:$0xff]
  %v211 = vld [vmem:[%s1 + $0x5d0] sm:$0xff]
  %v212 = vld [vmem:[%s1 + $0x5d8] sm:$0xff]
  %v213 = vld [vmem:[%s1 + $0x5e0] sm:$0xff]
  %v214 = vld [vmem:[%s1 + $0x5e8] sm:$0xff]
  %v215 = vld [vmem:[%s1 + $0x5f0] sm:$0xff]
  %v216 = vld [vmem:[%s1 + $0x5f8] sm:$0xff]
  %v217 = vld [vmem:[%s1 + $0x600] sm:$0xff]
  %v218 = vld [vmem:[%s1 + $0x608] sm:$0xff]
  %v219 = vld [vmem:[%s1 + $0x610] sm:$0xff]
  %v220 = vld [vmem:[%s1 + $0x618] sm:$0xff]
  %v221 = vld [vmem:[%s1 + $0x620] sm:$0xff]
  %v222 = vld [vmem:[%s1 + $0x628] sm:$0xff]
  %v223 = vld [vmem:[%s1 + $0x630] sm:$0xff]
  %v224 = vld [vmem:[%s1 + $0x638] sm:$0xff]
  %v225 = vld [vmem:[%s1 + $0x640] sm:$0xff]
  %v226 = vld [vmem:[%s1 + $0x648] sm:$0xff]
  %v227 = vld [vmem:[%s1 + $0x650] sm:$0xff]
  %v228 = vld [vmem:[%s1 + $0x658] sm:$0xff]
  %v229 = vld [vmem:[%s1 + $0x660] sm:$0xff]
  %v230 = vld [vmem:[%s1 + $0x668] sm:$0xff]
  %v231 = vld [vmem:[%s1 + $0x670] sm:$0xff]
  %v232 = vld [vmem:[%s1 + $0x678] sm:$0xff]
  %v233 = vld [vmem:[%s1 + $0x680] sm:$0xff]
  %v234 = vld [vmem:[%s1 + $0x688] sm:$0xff]
  %v235 = vld [vmem:[%s1 + $0x690] sm:$0xff]
  %v236 = vld [vmem:[%s1 + $0x698] sm:$0xff]
  %v237 = vld [vmem:[%s1 + $0x6a0] sm:$0xff]
  %v238 = vld [vmem:[%s1 + $0x6a8] sm:$0xff]
  %v239 = vld [vmem:[%s1 + $0x6b0] sm:$0xff]
  %v240 = vld [vmem:[%s1 + $0x6b8] sm:$0xff]
  %v241 = vld [vmem:[%s1 + $0x6c0] sm:$0xff]
  %v242 = vld [vmem:[%s1 + $0x6c8] sm:$0xff]
  %v243 = vld [vmem:[%s1 + $0x6d0] sm:$0xff]
  %v244 = vld [vmem:[%s1 + $0x6d8] sm:$0xff]
  %v245 = vld [vmem:[%s1 + $0x6e0] sm:$0xff]
  %v246 = vld [vmem:[%s1 + $0x6e8] sm:$0xff]
  %v247 = vld [vmem:[%s1 + $0x6f0] sm:$0xff]
  %v248 = vld [vmem:[%s1 + $0x6f8] sm:$0xff]
  %v249 = vld [vmem:[%s1 + $0x700] sm:$0xff]
  %v250 = vld [vmem:[%s1 + $0x708] sm:$0xff]
  %v251 = vld [vmem:[%s1 + $0x710] sm:$0xff]
  %v252 = vld [vmem:[%s1 + $0x718] sm:$0xff]
  %v253 = vld [vmem:[%s1 + $0x720] sm:$0xff]
  %v254 = vld [vmem:[%s1 + $0x728] sm:$0xff]
  %v255 = vld [vmem:[%s1 + $0x730] sm:$0xff]
  %v256 = vld [vmem:[%s1 + $0x738] sm:$0xff]
  %v257 = vld [vmem:[%s1 + $0x740] sm:$0xff]
  %v258 = vld [vmem:[%s1 + $0x748] sm:$0xff]
  %v259 = vld [vmem:[%s1 + $0x750] sm:$0xff]
  %v260 = vld [vmem:[%s1 + $0x758] sm:$0xff]
  %v261 = vld [vmem:[%s1 + $0x760] sm:$0xff]
  %v262 = vld [vmem:[%s1 + $0x768] sm:$0xff]
  %v263 = vld [vmem:[%s1 + $0x770] sm:$0xff]
  %v264 = vld [vmem:[%s1 + $0x778] sm:$0xff]
  %v265 = vld [vmem:[%s1 + $0x780] sm:$0xff]
  %v266 = vld [vmem:[%s1 + $0x788] sm:$0xff]
  %v267 = vld [vmem:[%s1 + $0x790] sm:$0xff]
  %v268 = vld [vmem:[%s1 + $0x798] sm:$0xff]
  %v269 = vld [vmem:[%s1 + $0x7a0] sm:$0xff]
  %v270 = vld [vmem:[%s1 + $0x7a8] sm:$0xff]
  %v271 = vld [vmem:[%s1 + $0x7b0] sm:$0xff]
  %v272 = vld [vmem:[%s1 + $0x7b8] sm:$0xff]
  %v273 = vld [vmem:[%s1 + $0x7c0] sm:$0xff]
  %v274 = vld [vmem:[%s1 + $0x7c8] sm:$0xff]
  %v275 = vld [vmem:[%s1 + $0x7d0] sm:$0xff]
  %v276 = vld [vmem:[%s1 + $0x7d8] sm:$0xff]
  %v277 = vld [vmem:[%s1 + $0x7e0] sm:$0xff]
  %v278 = vld [vmem:[%s1 + $0x7e8] sm:$0xff]
  %v279 = vld [vmem:[%s1 + $0x7f0] sm:$0xff]
  %v280 = vld [vmem:[%s1 + $0x7f8] sm:$0xff]
  %v281 = vld [vmem:[%s1 + $0x800] sm:$0xff]
  %v282 = vld [vmem:[%s1 + $0x808] sm:$0xff]
  %v283 = vld [vmem:[%s1 + $0x810] sm:$0xff]
  %v284 = vld [vmem:[%s1 + $0x818] sm:$0xff]
  %v285 = vld [vmem:[%s1 + $0x820] sm:$0xff]
  %v286 = vld [vmem:[%s1 + $0x828] sm:$0xff]
  %v287 = vld [vmem:[%s1 + $0x830] sm:$0xff]
  %v288 = vld [vmem:[%s1 + $0x838] sm:$0xff]
  %v289 = vld [vmem:[%s1 + $0x840] sm:$0xff]
  %v290 = vld [vmem:[%s1 + $0x848] sm:$0xff]
  %v291 = vld [vmem:[%s1 + $0x850] sm:$0xff]
  %v292 = vld [vmem:[%s1 + $0x858] sm:$0xff]
  %v293 = vld [vmem:[%s1 + $0x860] sm:$0xff]
  %v294 = vld [vmem:[%s1 + $0x868] sm:$0xff]
  %v295 = vld [vmem:[%s1 + $0x870] sm:$0xff]
  %v296 = vld [vmem:[%s1 + $0x878] sm:$0xff]
  %v297 = vld [vmem:[%s1 + $0x880] sm:$0xff]
  %v298 = vld [vmem:[%s1 + $0x888] sm:$0xff]
  %v299 = vld [vmem:[%s1 + $0x890] sm:$0xff]
  %v300 = vld [vmem:[%s1 + $0x898] sm:$0xff]
  %v301 = vld [vmem:[%s1 + $0x8a0] sm:$0xff]
  %v302 = vld [vmem:[%s1 + $0x8a8] sm:$0xff]
  %v303 = vld [vmem:[%s1 + $0x8b0] sm:$0xff]
  %v304 = vld [vmem:[%s1 + $0x8b8] sm:$0xff]
  %v305 = vld [vmem:[%s1 + $0x8c0] sm:$0xff]
  %v306 = vld [vmem:[%s1 + $0x8c8] sm:$0xff]
  %v307 = vld [vmem:[%s1 + $0x8d0] sm:$0xff]
  %v308 = vld [vmem:[%s1 + $0x8d8] sm:$0xff]
  %v309 = vld [vmem:[%s1 + $0x8e0] sm:$0xff]
  %v310 = vld [vmem:[%s1 + $0x8e8] sm:$0xff]
  %v311 = vld [vmem:[%s1 + $0x8f0] sm:$0xff]
  %v312 = vld [vmem:[%s1 + $0x8f8] sm:$0xff]
  %v313 = vld [vmem:[%s2] sm:$0xf]
  %v315 = vlaneseq
  %v316 = vshrl.u32 %v315, 7
  %v317 = vsub.s32 0, %v316
  %v318 = vrot.slane %v313, %v317
  %v319 = vlaneseq
  %v320 = vshrl.u32 %v319, 7
  %v321 = vsub.s32 1, %v320
  %v322 = vrot.slane %v313, %v321
  %v323 = vlaneseq
  %v324 = vshrl.u32 %v323, 7
  %v325 = vsub.s32 2, %v324
  %v326 = vrot.slane %v313, %v325
  %v327 = vlaneseq
  %v328 = vshrl.u32 %v327, 7
  %v329 = vsub.s32 3, %v328
  %v330 = vrot.slane %v313, %v329
  %v337 = vcombine.high %v23, %v23
  %v339 = vunpack.c.l.s4 1966171168
  %v340 = vunpack.c.0.s8 %v339
  %v341 = vlaneseq
  %v342 = vshrl.u32 %v341, 7
  %v343 = vsub.s32 %v340, %v342
  %v344 = vrot.slane %v23, %v343
  %v346 = vunpack.c.l.s4 1966171168
  %v347 = vunpack.c.0.s8 %v346
  %v348 = vlaneseq
  %v349 = vshrl.u32 %v348, 7
  %v350 = vsub.s32 %v347, %v349
  %v351 = vrot.slane %v337, %v350
  %v352 = vcombine.high %v344, %v344
  %v353 = vcombine.high %v351, %v351
  %v355 = vunpack.c.l.s4 1966171168
  %v356 = vunpack.c.0.s8 %v355
  %v357 = vlaneseq
  %v358 = vshrl.u32 %v357, 7
  %v359 = vsub.s32 %v356, %v358
  %v360 = vrot.slane %v344, %v359
  %v362 = vunpack.c.l.s4 1966171168
  %v363 = vunpack.c.0.s8 %v362
  %v364 = vlaneseq
  %v365 = vshrl.u32 %v364, 7
  %v366 = vsub.s32 %v363, %v365
  %v367 = vrot.slane %v351, %v366
  %v369 = vunpack.c.l.s4 1966171168
  %v370 = vunpack.c.0.s8 %v369
  %v371 = vlaneseq
  %v372 = vshrl.u32 %v371, 7
  %v373 = vsub.s32 %v370, %v372
  %v374 = vrot.slane %v352, %v373
  %v376 = vunpack.c.l.s4 1966171168
  %v377 = vunpack.c.0.s8 %v376
  %v378 = vlaneseq
  %v379 = vshrl.u32 %v378, 7
  %v380 = vsub.s32 %v377, %v379
  %v381 = vrot.slane %v353, %v380
  %v382 = vcombine.high %v360, %v360
  %v383 = vcombine.high %v367, %v367
  %v384 = vcombine.high %v374, %v374
  %v385 = vcombine.high %v381, %v381
  %v387 = vunpack.c.l.s4 1966171168
  %v388 = vunpack.c.0.s8 %v387
  %v389 = vlaneseq
  %v390 = vshrl.u32 %v389, 7
  %v391 = vsub.s32 %v388, %v390
  %v392 = vrot.slane %v24, %v391
  %v394 = vunpack.c.l.s4 1966171168
  %v395 = vunpack.c.0.s8 %v394
  %v396 = vlaneseq
  %v397 = vshrl.u32 %v396, 7
  %v398 = vsub.s32 %v395, %v397
  %v399 = vrot.slane %v392, %v398
  %v697 = vunpack.c.l.b16 %v25
  %v698 = vunpack.c.h.b16 %v25
  %v699 = vunpack.c.l.b16 %v26
  %v700 = vunpack.c.h.b16 %v26
  %v701 = vunpack.c.l.b16 %v27
  %v702 = vunpack.c.h.b16 %v27
  %v703 = vunpack.c.l.b16 %v28
  %v704 = vunpack.c.h.b16 %v28
  %v705 = vunpack.c.l.b16 %v29
  %v706 = vunpack.c.h.b16 %v29
  %v707 = vunpack.c.l.b16 %v30
  %v708 = vunpack.c.h.b16 %v30
  %v709 = vunpack.c.l.b16 %v31
  %v710 = vunpack.c.h.b16 %v31
  %v711 = vunpack.c.l.b16 %v32
  %v712 = vunpack.c.h.b16 %v32
  %v713 = vunpack.c.l.b16 %v33
  %v714 = vunpack.c.h.b16 %v33
  %v715 = vunpack.c.l.b16 %v34
  %v716 = vunpack.c.h.b16 %v34
  %v717 = vunpack.c.l.b16 %v35
  %v718 = vunpack.c.h.b16 %v35
  %v719 = vunpack.c.l.b16 %v36
  %v720 = vunpack.c.h.b16 %v36
  %v721 = vunpack.c.l.b16 %v37
  %v722 = vunpack.c.h.b16 %v37
  %v723 = vunpack.c.l.b16 %v38
  %v724 = vunpack.c.h.b16 %v38
  %v725 = vunpack.c.l.b16 %v39
  %v726 = vunpack.c.h.b16 %v39
  %v727 = vunpack.c.l.b16 %v40
  %v728 = vunpack.c.h.b16 %v40
  %v729 = vunpack.c.l.b16 %v41
  %v730 = vunpack.c.h.b16 %v41
  %v731 = vunpack.c.l.b16 %v42
  %v732 = vunpack.c.h.b16 %v42
  %v733 = vunpack.c.l.b16 %v43
  %v734 = vunpack.c.h.b16 %v43
  %v735 = vunpack.c.l.b16 %v44
  %v736 = vunpack.c.h.b16 %v44
  %v737 = vunpack.c.l.b16 %v45
  %v738 = vunpack.c.h.b16 %v45
  %v739 = vunpack.c.l.b16 %v46
  %v740 = vunpack.c.h.b16 %v46
  %v741 = vunpack.c.l.b16 %v47
  %v742 = vunpack.c.h.b16 %v47
  %v743 = vunpack.c.l.b16 %v48
  %v744 = vunpack.c.h.b16 %v48
  %v745 = vunpack.c.l.b16 %v49
  %v746 = vunpack.c.h.b16 %v49
  %v747 = vunpack.c.l.b16 %v50
  %v748 = vunpack.c.h.b16 %v50
  %v749 = vunpack.c.l.b16 %v51
  %v750 = vunpack.c.h.b16 %v51
  %v751 = vunpack.c.l.b16 %v52
  %v752 = vunpack.c.h.b16 %v52
  %v753 = vunpack.c.l.b16 %v53
  %v754 = vunpack.c.h.b16 %v53
  %v755 = vunpack.c.l.b16 %v54
  %v756 = vunpack.c.h.b16 %v54
  %v757 = vunpack.c.l.b16 %v55
  %v758 = vunpack.c.h.b16 %v55
  %v759 = vunpack.c.l.b16 %v56
  %v760 = vunpack.c.h.b16 %v56
  %v761 = vunpack.c.l.b16 %v57
  %v762 = vunpack.c.h.b16 %v57
  %v763 = vunpack.c.l.b16 %v58
  %v764 = vunpack.c.h.b16 %v58
  %v765 = vunpack.c.l.b16 %v59
  %v766 = vunpack.c.h.b16 %v59
  %v767 = vunpack.c.l.b16 %v60
  %v768 = vunpack.c.h.b16 %v60
  %v769 = vunpack.c.l.b16 %v61
  %v770 = vunpack.c.h.b16 %v61
  %v771 = vunpack.c.l.b16 %v62
  %v772 = vunpack.c.h.b16 %v62
  %v773 = vunpack.c.l.b16 %v63
  %v774 = vunpack.c.h.b16 %v63
  %v775 = vunpack.c.l.b16 %v64
  %v776 = vunpack.c.h.b16 %v64
  %v777 = vunpack.c.l.b16 %v65
  %v778 = vunpack.c.h.b16 %v65
  %v779 = vunpack.c.l.b16 %v66
  %v780 = vunpack.c.h.b16 %v66
  %v781 = vunpack.c.l.b16 %v67
  %v782 = vunpack.c.h.b16 %v67
  %v783 = vunpack.c.l.b16 %v68
  %v784 = vunpack.c.h.b16 %v68
  %v785 = vunpack.c.l.b16 %v69
  %v786 = vunpack.c.h.b16 %v69
  %v787 = vunpack.c.l.b16 %v70
  %v788 = vunpack.c.h.b16 %v70
  %v789 = vunpack.c.l.b16 %v71
  %v790 = vunpack.c.h.b16 %v71
  %v791 = vunpack.c.l.b16 %v72
  %v792 = vunpack.c.h.b16 %v72
  %v793 = vunpack.c.l.b16 %v73
  %v794 = vunpack.c.h.b16 %v73
  %v795 = vunpack.c.l.b16 %v74
  %v796 = vunpack.c.h.b16 %v74
  %v797 = vunpack.c.l.b16 %v75
  %v798 = vunpack.c.h.b16 %v75
  %v799 = vunpack.c.l.b16 %v76
  %v800 = vunpack.c.h.b16 %v76
  %v801 = vunpack.c.l.b16 %v77
  %v802 = vunpack.c.h.b16 %v77
  %v803 = vunpack.c.l.b16 %v78
  %v804 = vunpack.c.h.b16 %v78
  %v805 = vunpack.c.l.b16 %v79
  %v806 = vunpack.c.h.b16 %v79
  %v807 = vunpack.c.l.b16 %v80
  %v808 = vunpack.c.h.b16 %v80
  %v809 = vunpack.c.l.b16 %v81
  %v810 = vunpack.c.h.b16 %v81
  %v811 = vunpack.c.l.b16 %v82
  %v812 = vunpack.c.h.b16 %v82
  %v813 = vunpack.c.l.b16 %v83
  %v814 = vunpack.c.h.b16 %v83
  %v815 = vunpack.c.l.b16 %v84
  %v816 = vunpack.c.h.b16 %v84
  %v817 = vunpack.c.l.b16 %v85
  %v818 = vunpack.c.h.b16 %v85
  %v819 = vunpack.c.l.b16 %v86
  %v820 = vunpack.c.h.b16 %v86
  %v821 = vunpack.c.l.b16 %v87
  %v822 = vunpack.c.h.b16 %v87
  %v823 = vunpack.c.l.b16 %v88
  %v824 = vunpack.c.h.b16 %v88
  %v825 = vunpack.c.l.b16 %v89
  %v826 = vunpack.c.h.b16 %v89
  %v827 = vunpack.c.l.b16 %v90
  %v828 = vunpack.c.h.b16 %v90
  %v829 = vunpack.c.l.b16 %v91
  %v830 = vunpack.c.h.b16 %v91
  %v831 = vunpack.c.l.b16 %v92
  %v832 = vunpack.c.h.b16 %v92
  %v833 = vunpack.c.l.b16 %v93
  %v834 = vunpack.c.h.b16 %v93
  %v835 = vunpack.c.l.b16 %v94
  %v836 = vunpack.c.h.b16 %v94
  %v837 = vunpack.c.l.b16 %v95
  %v838 = vunpack.c.h.b16 %v95
  %v839 = vunpack.c.l.b16 %v96
  %v840 = vunpack.c.h.b16 %v96
  %v841 = vunpack.c.l.b16 %v97
  %v842 = vunpack.c.h.b16 %v97
  %v843 = vunpack.c.l.b16 %v98
  %v844 = vunpack.c.h.b16 %v98
  %v845 = vunpack.c.l.b16 %v99
  %v846 = vunpack.c.h.b16 %v99
  %v847 = vunpack.c.l.b16 %v100
  %v848 = vunpack.c.h.b16 %v100
  %v849 = vunpack.c.l.b16 %v101
  %v850 = vunpack.c.h.b16 %v101
  %v851 = vunpack.c.l.b16 %v102
  %v852 = vunpack.c.h.b16 %v102
  %v853 = vunpack.c.l.b16 %v103
  %v854 = vunpack.c.h.b16 %v103
  %v855 = vunpack.c.l.b16 %v104
  %v856 = vunpack.c.h.b16 %v104
  %v857 = vunpack.c.l.b16 %v105
  %v858 = vunpack.c.h.b16 %v105
  %v859 = vunpack.c.l.b16 %v106
  %v860 = vunpack.c.h.b16 %v106
  %v861 = vunpack.c.l.b16 %v107
  %v862 = vunpack.c.h.b16 %v107
  %v863 = vunpack.c.l.b16 %v108
  %v864 = vunpack.c.h.b16 %v108
  %v865 = vunpack.c.l.b16 %v109
  %v866 = vunpack.c.h.b16 %v109
  %v867 = vunpack.c.l.b16 %v110
  %v868 = vunpack.c.h.b16 %v110
  %v869 = vunpack.c.l.b16 %v111
  %v870 = vunpack.c.h.b16 %v111
  %v871 = vunpack.c.l.b16 %v112
  %v872 = vunpack.c.h.b16 %v112
  %v873 = vunpack.c.l.b16 %v113
  %v874 = vunpack.c.h.b16 %v113
  %v875 = vunpack.c.l.b16 %v114
  %v876 = vunpack.c.h.b16 %v114
  %v877 = vunpack.c.l.b16 %v115
  %v878 = vunpack.c.h.b16 %v115
  %v879 = vunpack.c.l.b16 %v116
  %v880 = vunpack.c.h.b16 %v116
  %v881 = vunpack.c.l.b16 %v117
  %v882 = vunpack.c.h.b16 %v117
  %v883 = vunpack.c.l.b16 %v118
  %v884 = vunpack.c.h.b16 %v118
  %v885 = vunpack.c.l.b16 %v119
  %v886 = vunpack.c.h.b16 %v119
  %v887 = vunpack.c.l.b16 %v120
  %v888 = vunpack.c.h.b16 %v120
  %v889 = vunpack.c.l.b16 %v121
  %v890 = vunpack.c.h.b16 %v121
  %v891 = vunpack.c.l.b16 %v122
  %v892 = vunpack.c.h.b16 %v122
  %v893 = vunpack.c.l.b16 %v123
  %v894 = vunpack.c.h.b16 %v123
  %v895 = vunpack.c.l.b16 %v124
  %v896 = vunpack.c.h.b16 %v124
  %v897 = vunpack.c.l.b16 %v125
  %v898 = vunpack.c.h.b16 %v125
  %v899 = vunpack.c.l.b16 %v126
  %v900 = vunpack.c.h.b16 %v126
  %v901 = vunpack.c.l.b16 %v127
  %v902 = vunpack.c.h.b16 %v127
  %v903 = vunpack.c.l.b16 %v128
  %v904 = vunpack.c.h.b16 %v128
  %v905 = vunpack.c.l.b16 %v129
  %v906 = vunpack.c.h.b16 %v129
  %v907 = vunpack.c.l.b16 %v130
  %v908 = vunpack.c.h.b16 %v130
  %v909 = vunpack.c.l.b16 %v131
  %v910 = vunpack.c.h.b16 %v131
  %v911 = vunpack.c.l.b16 %v132
  %v912 = vunpack.c.h.b16 %v132
  %v913 = vunpack.c.l.b16 %v133
  %v914 = vunpack.c.h.b16 %v133
  %v915 = vunpack.c.l.b16 %v134
  %v916 = vunpack.c.h.b16 %v134
  %v917 = vunpack.c.l.b16 %v135
  %v918 = vunpack.c.h.b16 %v135
  %v919 = vunpack.c.l.b16 %v136
  %v920 = vunpack.c.h.b16 %v136
  %v921 = vunpack.c.l.b16 %v137
  %v922 = vunpack.c.h.b16 %v137
  %v923 = vunpack.c.l.b16 %v138
  %v924 = vunpack.c.h.b16 %v138
  %v925 = vunpack.c.l.b16 %v139
  %v926 = vunpack.c.h.b16 %v139
  %v927 = vunpack.c.l.b16 %v140
  %v928 = vunpack.c.h.b16 %v140
  %v929 = vunpack.c.l.b16 %v141
  %v930 = vunpack.c.h.b16 %v141
  %v931 = vunpack.c.l.b16 %v142
  %v932 = vunpack.c.h.b16 %v142
  %v933 = vunpack.c.l.b16 %v143
  %v934 = vunpack.c.h.b16 %v143
  %v935 = vunpack.c.l.b16 %v144
  %v936 = vunpack.c.h.b16 %v144
  %v937 = vunpack.c.l.b16 %v145
  %v938 = vunpack.c.h.b16 %v145
  %v939 = vunpack.c.l.b16 %v146
  %v940 = vunpack.c.h.b16 %v146
  %v941 = vunpack.c.l.b16 %v147
  %v942 = vunpack.c.h.b16 %v147
  %v943 = vunpack.c.l.b16 %v148
  %v944 = vunpack.c.h.b16 %v148
  %v945 = vunpack.c.l.b16 %v149
  %v946 = vunpack.c.h.b16 %v149
  %v947 = vunpack.c.l.b16 %v150
  %v948 = vunpack.c.h.b16 %v150
  %v949 = vunpack.c.l.b16 %v151
  %v950 = vunpack.c.h.b16 %v151
  %v951 = vunpack.c.l.b16 %v152
  %v952 = vunpack.c.h.b16 %v152
  %v953 = vunpack.c.l.b16 %v153
  %v954 = vunpack.c.h.b16 %v153
  %v955 = vunpack.c.l.b16 %v154
  %v956 = vunpack.c.h.b16 %v154
  %v957 = vunpack.c.l.b16 %v155
  %v958 = vunpack.c.h.b16 %v155
  %v959 = vunpack.c.l.b16 %v156
  %v960 = vunpack.c.h.b16 %v156
  %v961 = vunpack.c.l.b16 %v157
  %v962 = vunpack.c.h.b16 %v157
  %v963 = vunpack.c.l.b16 %v158
  %v964 = vunpack.c.h.b16 %v158
  %v965 = vunpack.c.l.b16 %v159
  %v966 = vunpack.c.h.b16 %v159
  %v967 = vunpack.c.l.b16 %v160
  %v968 = vunpack.c.h.b16 %v160
  %v969 = vunpack.c.l.b16 %v161
  %v970 = vunpack.c.h.b16 %v161
  %v971 = vunpack.c.l.b16 %v162
  %v972 = vunpack.c.h.b16 %v162
  %v973 = vunpack.c.l.b16 %v163
  %v974 = vunpack.c.h.b16 %v163
  %v975 = vunpack.c.l.b16 %v164
  %v976 = vunpack.c.h.b16 %v164
  %v977 = vunpack.c.l.b16 %v165
  %v978 = vunpack.c.h.b16 %v165
  %v979 = vunpack.c.l.b16 %v166
  %v980 = vunpack.c.h.b16 %v166
  %v981 = vunpack.c.l.b16 %v167
  %v982 = vunpack.c.h.b16 %v167
  %v983 = vunpack.c.l.b16 %v168
  %v984 = vunpack.c.h.b16 %v168
  %v985 = vunpack.c.l.b16 %v169
  %v986 = vunpack.c.h.b16 %v169
  %v987 = vunpack.c.l.b16 %v170
  %v988 = vunpack.c.h.b16 %v170
  %v989 = vunpack.c.l.b16 %v171
  %v990 = vunpack.c.h.b16 %v171
  %v991 = vunpack.c.l.b16 %v172
  %v992 = vunpack.c.h.b16 %v172
  %v993 = vunpack.c.l.b16 %v173
  %v994 = vunpack.c.h.b16 %v173
  %v995 = vunpack.c.l.b16 %v174
  %v996 = vunpack.c.h.b16 %v174
  %v997 = vunpack.c.l.b16 %v175
  %v998 = vunpack.c.h.b16 %v175
  %v999 = vunpack.c.l.b16 %v176
  %v1000 = vunpack.c.h.b16 %v176
  %v1001 = vunpack.c.l.b16 %v177
  %v1002 = vunpack.c.h.b16 %v177
  %v1003 = vunpack.c.l.b16 %v178
  %v1004 = vunpack.c.h.b16 %v178
  %v1005 = vunpack.c.l.b16 %v179
  %v1006 = vunpack.c.h.b16 %v179
  %v1007 = vunpack.c.l.b16 %v180
  %v1008 = vunpack.c.h.b16 %v180
  %v1009 = vunpack.c.l.b16 %v181
  %v1010 = vunpack.c.h.b16 %v181
  %v1011 = vunpack.c.l.b16 %v182
  %v1012 = vunpack.c.h.b16 %v182
  %v1013 = vunpack.c.l.b16 %v183
  %v1014 = vunpack.c.h.b16 %v183
  %v1015 = vunpack.c.l.b16 %v184
  %v1016 = vunpack.c.h.b16 %v184
  %v1017 = vunpack.c.l.b16 %v185
  %v1018 = vunpack.c.h.b16 %v185
  %v1019 = vunpack.c.l.b16 %v186
  %v1020 = vunpack.c.h.b16 %v186
  %v1021 = vunpack.c.l.b16 %v187
  %v1022 = vunpack.c.h.b16 %v187
  %v1023 = vunpack.c.l.b16 %v188
  %v1024 = vunpack.c.h.b16 %v188
  %v1025 = vunpack.c.l.b16 %v189
  %v1026 = vunpack.c.h.b16 %v189
  %v1027 = vunpack.c.l.b16 %v190
  %v1028 = vunpack.c.h.b16 %v190
  %v1029 = vunpack.c.l.b16 %v191
  %v1030 = vunpack.c.h.b16 %v191
  %v1031 = vunpack.c.l.b16 %v192
  %v1032 = vunpack.c.h.b16 %v192
  %v1033 = vunpack.c.l.b16 %v193
  %v1034 = vunpack.c.h.b16 %v193
  %v1035 = vunpack.c.l.b16 %v194
  %v1036 = vunpack.c.h.b16 %v194
  %v1037 = vunpack.c.l.b16 %v195
  %v1038 = vunpack.c.h.b16 %v195
  %v1039 = vunpack.c.l.b16 %v196
  %v1040 = vunpack.c.h.b16 %v196
  %v1041 = vunpack.c.l.b16 %v197
  %v1042 = vunpack.c.h.b16 %v197
  %v1043 = vunpack.c.l.b16 %v198
  %v1044 = vunpack.c.h.b16 %v198
  %v1045 = vunpack.c.l.b16 %v199
  %v1046 = vunpack.c.h.b16 %v199
  %v1047 = vunpack.c.l.b16 %v200
  %v1048 = vunpack.c.h.b16 %v200
  %v1049 = vunpack.c.l.b16 %v201
  %v1050 = vunpack.c.h.b16 %v201
  %v1051 = vunpack.c.l.b16 %v202
  %v1052 = vunpack.c.h.b16 %v202
  %v1053 = vunpack.c.l.b16 %v203
  %v1054 = vunpack.c.h.b16 %v203
  %v1055 = vunpack.c.l.b16 %v204
  %v1056 = vunpack.c.h.b16 %v204
  %v1057 = vunpack.c.l.b16 %v205
  %v1058 = vunpack.c.h.b16 %v205
  %v1059 = vunpack.c.l.b16 %v206
  %v1060 = vunpack.c.h.b16 %v206
  %v1061 = vunpack.c.l.b16 %v207
  %v1062 = vunpack.c.h.b16 %v207
  %v1063 = vunpack.c.l.b16 %v208
  %v1064 = vunpack.c.h.b16 %v208
  %v1065 = vunpack.c.l.b16 %v209
  %v1066 = vunpack.c.h.b16 %v209
  %v1067 = vunpack.c.l.b16 %v210
  %v1068 = vunpack.c.h.b16 %v210
  %v1069 = vunpack.c.l.b16 %v211
  %v1070 = vunpack.c.h.b16 %v211
  %v1071 = vunpack.c.l.b16 %v212
  %v1072 = vunpack.c.h.b16 %v212
  %v1073 = vunpack.c.l.b16 %v213
  %v1074 = vunpack.c.h.b16 %v213
  %v1075 = vunpack.c.l.b16 %v214
  %v1076 = vunpack.c.h.b16 %v214
  %v1077 = vunpack.c.l.b16 %v215
  %v1078 = vunpack.c.h.b16 %v215
  %v1079 = vunpack.c.l.b16 %v216
  %v1080 = vunpack.c.h.b16 %v216
  %v1081 = vunpack.c.l.b16 %v217
  %v1082 = vunpack.c.h.b16 %v217
  %v1083 = vunpack.c.l.b16 %v218
  %v1084 = vunpack.c.h.b16 %v218
  %v1085 = vunpack.c.l.b16 %v219
  %v1086 = vunpack.c.h.b16 %v219
  %v1087 = vunpack.c.l.b16 %v220
  %v1088 = vunpack.c.h.b16 %v220
  %v1089 = vunpack.c.l.b16 %v221
  %v1090 = vunpack.c.h.b16 %v221
  %v1091 = vunpack.c.l.b16 %v222
  %v1092 = vunpack.c.h.b16 %v222
  %v1093 = vunpack.c.l.b16 %v223
  %v1094 = vunpack.c.h.b16 %v223
  %v1095 = vunpack.c.l.b16 %v224
  %v1096 = vunpack.c.h.b16 %v224
  %v1097 = vunpack.c.l.b16 %v225
  %v1098 = vunpack.c.h.b16 %v225
  %v1099 = vunpack.c.l.b16 %v226
  %v1100 = vunpack.c.h.b16 %v226
  %v1101 = vunpack.c.l.b16 %v227
  %v1102 = vunpack.c.h.b16 %v227
  %v1103 = vunpack.c.l.b16 %v228
  %v1104 = vunpack.c.h.b16 %v228
  %v1105 = vunpack.c.l.b16 %v229
  %v1106 = vunpack.c.h.b16 %v229
  %v1107 = vunpack.c.l.b16 %v230
  %v1108 = vunpack.c.h.b16 %v230
  %v1109 = vunpack.c.l.b16 %v231
  %v1110 = vunpack.c.h.b16 %v231
  %v1111 = vunpack.c.l.b16 %v232
  %v1112 = vunpack.c.h.b16 %v232
  %v1113 = vunpack.c.l.b16 %v233
  %v1114 = vunpack.c.h.b16 %v233
  %v1115 = vunpack.c.l.b16 %v234
  %v1116 = vunpack.c.h.b16 %v234
  %v1117 = vunpack.c.l.b16 %v235
  %v1118 = vunpack.c.h.b16 %v235
  %v1119 = vunpack.c.l.b16 %v236
  %v1120 = vunpack.c.h.b16 %v236
  %v1121 = vunpack.c.l.b16 %v237
  %v1122 = vunpack.c.h.b16 %v237
  %v1123 = vunpack.c.l.b16 %v238
  %v1124 = vunpack.c.h.b16 %v238
  %v1125 = vunpack.c.l.b16 %v239
  %v1126 = vunpack.c.h.b16 %v239
  %v1127 = vunpack.c.l.b16 %v240
  %v1128 = vunpack.c.h.b16 %v240
  %v1129 = vunpack.c.l.b16 %v241
  %v1130 = vunpack.c.h.b16 %v241
  %v1131 = vunpack.c.l.b16 %v242
  %v1132 = vunpack.c.h.b16 %v242
  %v1133 = vunpack.c.l.b16 %v243
  %v1134 = vunpack.c.h.b16 %v243
  %v1135 = vunpack.c.l.b16 %v244
  %v1136 = vunpack.c.h.b16 %v244
  %v1137 = vunpack.c.l.b16 %v245
  %v1138 = vunpack.c.h.b16 %v245
  %v1139 = vunpack.c.l.b16 %v246
  %v1140 = vunpack.c.h.b16 %v246
  %v1141 = vunpack.c.l.b16 %v247
  %v1142 = vunpack.c.h.b16 %v247
  %v1143 = vunpack.c.l.b16 %v248
  %v1144 = vunpack.c.h.b16 %v248
  %v1145 = vunpack.c.l.b16 %v249
  %v1146 = vunpack.c.h.b16 %v249
  %v1147 = vunpack.c.l.b16 %v250
  %v1148 = vunpack.c.h.b16 %v250
  %v1149 = vunpack.c.l.b16 %v251
  %v1150 = vunpack.c.h.b16 %v251
  %v1151 = vunpack.c.l.b16 %v252
  %v1152 = vunpack.c.h.b16 %v252
  %v1153 = vunpack.c.l.b16 %v253
  %v1154 = vunpack.c.h.b16 %v253
  %v1155 = vunpack.c.l.b16 %v254
  %v1156 = vunpack.c.h.b16 %v254
  %v1157 = vunpack.c.l.b16 %v255
  %v1158 = vunpack.c.h.b16 %v255
  %v1159 = vunpack.c.l.b16 %v256
  %v1160 = vunpack.c.h.b16 %v256
  %v1161 = vunpack.c.l.b16 %v257
  %v1162 = vunpack.c.h.b16 %v257
  %v1163 = vunpack.c.l.b16 %v258
  %v1164 = vunpack.c.h.b16 %v258
  %v1165 = vunpack.c.l.b16 %v259
  %v1166 = vunpack.c.h.b16 %v259
  %v1167 = vunpack.c.l.b16 %v260
  %v1168 = vunpack.c.h.b16 %v260
  %v1169 = vunpack.c.l.b16 %v261
  %v1170 = vunpack.c.h.b16 %v261
  %v1171 = vunpack.c.l.b16 %v262
  %v1172 = vunpack.c.h.b16 %v262
  %v1173 = vunpack.c.l.b16 %v263
  %v1174 = vunpack.c.h.b16 %v263
  %v1175 = vunpack.c.l.b16 %v264
  %v1176 = vunpack.c.h.b16 %v264
  %v1177 = vunpack.c.l.b16 %v265
  %v1178 = vunpack.c.h.b16 %v265
  %v1179 = vunpack.c.l.b16 %v266
  %v1180 = vunpack.c.h.b16 %v266
  %v1181 = vunpack.c.l.b16 %v267
  %v1182 = vunpack.c.h.b16 %v267
  %v1183 = vunpack.c.l.b16 %v268
  %v1184 = vunpack.c.h.b16 %v268
  %v1185 = vunpack.c.l.b16 %v269
  %v1186 = vunpack.c.h.b16 %v269
  %v1187 = vunpack.c.l.b16 %v270
  %v1188 = vunpack.c.h.b16 %v270
  %v1189 = vunpack.c.l.b16 %v271
  %v1190 = vunpack.c.h.b16 %v271
  %v1191 = vunpack.c.l.b16 %v272
  %v1192 = vunpack.c.h.b16 %v272
  %v1193 = vunpack.c.l.b16 %v273
  %v1194 = vunpack.c.h.b16 %v273
  %v1195 = vunpack.c.l.b16 %v274
  %v1196 = vunpack.c.h.b16 %v274
  %v1197 = vunpack.c.l.b16 %v275
  %v1198 = vunpack.c.h.b16 %v275
  %v1199 = vunpack.c.l.b16 %v276
  %v1200 = vunpack.c.h.b16 %v276
  %v1201 = vunpack.c.l.b16 %v277
  %v1202 = vunpack.c.h.b16 %v277
  %v1203 = vunpack.c.l.b16 %v278
  %v1204 = vunpack.c.h.b16 %v278
  %v1205 = vunpack.c.l.b16 %v279
  %v1206 = vunpack.c.h.b16 %v279
  %v1207 = vunpack.c.l.b16 %v280
  %v1208 = vunpack.c.h.b16 %v280
  %v1209 = vunpack.c.l.b16 %v281
  %v1210 = vunpack.c.h.b16 %v281
  %v1211 = vunpack.c.l.b16 %v282
  %v1212 = vunpack.c.h.b16 %v282
  %v1213 = vunpack.c.l.b16 %v283
  %v1214 = vunpack.c.h.b16 %v283
  %v1215 = vunpack.c.l.b16 %v284
  %v1216 = vunpack.c.h.b16 %v284
  %v1217 = vunpack.c.l.b16 %v285
  %v1218 = vunpack.c.h.b16 %v285
  %v1219 = vunpack.c.l.b16 %v286
  %v1220 = vunpack.c.h.b16 %v286
  %v1221 = vunpack.c.l.b16 %v287
  %v1222 = vunpack.c.h.b16 %v287
  %v1223 = vunpack.c.l.b16 %v288
  %v1224 = vunpack.c.h.b16 %v288
  %v1225 = vunpack.c.l.b16 %v289
  %v1226 = vunpack.c.h.b16 %v289
  %v1227 = vunpack.c.l.b16 %v290
  %v1228 = vunpack.c.h.b16 %v290
  %v1229 = vunpack.c.l.b16 %v291
  %v1230 = vunpack.c.h.b16 %v291
  %v1231 = vunpack.c.l.b16 %v292
  %v1232 = vunpack.c.h.b16 %v292
  %v1233 = vunpack.c.l.b16 %v293
  %v1234 = vunpack.c.h.b16 %v293
  %v1235 = vunpack.c.l.b16 %v294
  %v1236 = vunpack.c.h.b16 %v294
  %v1237 = vunpack.c.l.b16 %v295
  %v1238 = vunpack.c.h.b16 %v295
  %v1239 = vunpack.c.l.b16 %v296
  %v1240 = vunpack.c.h.b16 %v296
  %v1241 = vunpack.c.l.b16 %v297
  %v1242 = vunpack.c.h.b16 %v297
  %v1243 = vunpack.c.l.b16 %v298
  %v1244 = vunpack.c.h.b16 %v298
  %v1245 = vunpack.c.l.b16 %v299
  %v1246 = vunpack.c.h.b16 %v299
  %v1247 = vunpack.c.l.b16 %v300
  %v1248 = vunpack.c.h.b16 %v300
  %v1249 = vunpack.c.l.b16 %v301
  %v1250 = vunpack.c.h.b16 %v301
  %v1251 = vunpack.c.l.b16 %v302
  %v1252 = vunpack.c.h.b16 %v302
  %v1253 = vunpack.c.l.b16 %v303
  %v1254 = vunpack.c.h.b16 %v303
  %v1255 = vunpack.c.l.b16 %v304
  %v1256 = vunpack.c.h.b16 %v304
  %v1257 = vunpack.c.l.b16 %v305
  %v1258 = vunpack.c.h.b16 %v305
  %v1259 = vunpack.c.l.b16 %v306
  %v1260 = vunpack.c.h.b16 %v306
  %v1261 = vunpack.c.l.b16 %v307
  %v1262 = vunpack.c.h.b16 %v307
  %v1263 = vunpack.c.l.b16 %v308
  %v1264 = vunpack.c.h.b16 %v308
  %v1265 = vunpack.c.l.b16 %v309
  %v1266 = vunpack.c.h.b16 %v309
  %v1267 = vunpack.c.l.b16 %v310
  %v1268 = vunpack.c.h.b16 %v310
  %v1269 = vunpack.c.l.b16 %v311
  %v1270 = vunpack.c.h.b16 %v311
  %v1271 = vunpack.c.l.b16 %v312
  %v1272 = vunpack.c.h.b16 %v312
  %v1273 = vpack.c.b16 %v701, %v697
  %v1274 = vpack.c.b16 %v702, %v698
  %v1275 = vpack.c.b16 %v703, %v699
  %v1276 = vpack.c.b16 %v704, %v700
  %v1277 = vpack.c.b16 %v709, %v705
  %v1278 = vpack.c.b16 %v710, %v706
  %v1279 = vpack.c.b16 %v711, %v707
  %v1280 = vpack.c.b16 %v712, %v708
  %v1281 = vpack.c.b16 %v717, %v713
  %v1282 = vpack.c.b16 %v718, %v714
  %v1283 = vpack.c.b16 %v719, %v715
  %v1284 = vpack.c.b16 %v720, %v716
  %v1285 = vpack.c.b16 %v725, %v721
  %v1286 = vpack.c.b16 %v726, %v722
  %v1287 = vpack.c.b16 %v727, %v723
  %v1288 = vpack.c.b16 %v728, %v724
  %v1289 = vpack.c.b16 %v733, %v729
  %v1290 = vpack.c.b16 %v734, %v730
  %v1291 = vpack.c.b16 %v735, %v731
  %v1292 = vpack.c.b16 %v736, %v732
  %v1293 = vpack.c.b16 %v741, %v737
  %v1294 = vpack.c.b16 %v742, %v738
  %v1295 = vpack.c.b16 %v743, %v739
  %v1296 = vpack.c.b16 %v744, %v740
  %v1297 = vpack.c.b16 %v749, %v745
  %v1298 = vpack.c.b16 %v750, %v746
  %v1299 = vpack.c.b16 %v751, %v747
  %v1300 = vpack.c.b16 %v752, %v748
  %v1301 = vpack.c.b16 %v757, %v753
  %v1302 = vpack.c.b16 %v758, %v754
  %v1303 = vpack.c.b16 %v759, %v755
  %v1304 = vpack.c.b16 %v760, %v756
  %v1305 = vpack.c.b16 %v765, %v761
  %v1306 = vpack.c.b16 %v766, %v762
  %v1307 = vpack.c.b16 %v767, %v763
  %v1308 = vpack.c.b16 %v768, %v764
  %v1309 = vpack.c.b16 %v773, %v769
  %v1310 = vpack.c.b16 %v774, %v770
  %v1311 = vpack.c.b16 %v775, %v771
  %v1312 = vpack.c.b16 %v776, %v772
  %v1313 = vpack.c.b16 %v781, %v777
  %v1314 = vpack.c.b16 %v782, %v778
  %v1315 = vpack.c.b16 %v783, %v779
  %v1316 = vpack.c.b16 %v784, %v780
  %v1317 = vpack.c.b16 %v789, %v785
  %v1318 = vpack.c.b16 %v790, %v786
  %v1319 = vpack.c.b16 %v791, %v787
  %v1320 = vpack.c.b16 %v792, %v788
  %v1321 = vpack.c.b16 %v797, %v793
  %v1322 = vpack.c.b16 %v798, %v794
  %v1323 = vpack.c.b16 %v799, %v795
  %v1324 = vpack.c.b16 %v800, %v796
  %v1325 = vpack.c.b16 %v805, %v801
  %v1326 = vpack.c.b16 %v806, %v802
  %v1327 = vpack.c.b16 %v807, %v803
  %v1328 = vpack.c.b16 %v808, %v804
  %v1329 = vpack.c.b16 %v813, %v809
  %v1330 = vpack.c.b16 %v814, %v810
  %v1331 = vpack.c.b16 %v815, %v811
  %v1332 = vpack.c.b16 %v816, %v812
  %v1333 = vpack.c.b16 %v821, %v817
  %v1334 = vpack.c.b16 %v822, %v818
  %v1335 = vpack.c.b16 %v823, %v819
  %v1336 = vpack.c.b16 %v824, %v820
  %v1337 = vpack.c.b16 %v829, %v825
  %v1338 = vpack.c.b16 %v830, %v826
  %v1339 = vpack.c.b16 %v831, %v827
  %v1340 = vpack.c.b16 %v832, %v828
  %v1341 = vpack.c.b16 %v837, %v833
  %v1342 = vpack.c.b16 %v838, %v834
  %v1343 = vpack.c.b16 %v839, %v835
  %v1344 = vpack.c.b16 %v840, %v836
  %v1345 = vpack.c.b16 %v845, %v841
  %v1346 = vpack.c.b16 %v846, %v842
  %v1347 = vpack.c.b16 %v847, %v843
  %v1348 = vpack.c.b16 %v848, %v844
  %v1349 = vpack.c.b16 %v853, %v849
  %v1350 = vpack.c.b16 %v854, %v850
  %v1351 = vpack.c.b16 %v855, %v851
  %v1352 = vpack.c.b16 %v856, %v852
  %v1353 = vpack.c.b16 %v861, %v857
  %v1354 = vpack.c.b16 %v862, %v858
  %v1355 = vpack.c.b16 %v863, %v859
  %v1356 = vpack.c.b16 %v864, %v860
  %v1357 = vpack.c.b16 %v869, %v865
  %v1358 = vpack.c.b16 %v870, %v866
  %v1359 = vpack.c.b16 %v871, %v867
  %v1360 = vpack.c.b16 %v872, %v868
  %v1361 = vpack.c.b16 %v877, %v873
  %v1362 = vpack.c.b16 %v878, %v874
  %v1363 = vpack.c.b16 %v879, %v875
  %v1364 = vpack.c.b16 %v880, %v876
  %v1365 = vpack.c.b16 %v885, %v881
  %v1366 = vpack.c.b16 %v886, %v882
  %v1367 = vpack.c.b16 %v887, %v883
  %v1368 = vpack.c.b16 %v888, %v884
  %v1369 = vpack.c.b16 %v893, %v889
  %v1370 = vpack.c.b16 %v894, %v890
  %v1371 = vpack.c.b16 %v895, %v891
  %v1372 = vpack.c.b16 %v896, %v892
  %v1373 = vpack.c.b16 %v901, %v897
  %v1374 = vpack.c.b16 %v902, %v898
  %v1375 = vpack.c.b16 %v903, %v899
  %v1376 = vpack.c.b16 %v904, %v900
  %v1377 = vpack.c.b16 %v909, %v905
  %v1378 = vpack.c.b16 %v910, %v906
  %v1379 = vpack.c.b16 %v911, %v907
  %v1380 = vpack.c.b16 %v912, %v908
  %v1381 = vpack.c.b16 %v917, %v913
  %v1382 = vpack.c.b16 %v918, %v914
  %v1383 = vpack.c.b16 %v919, %v915
  %v1384 = vpack.c.b16 %v920, %v916
  %v1385 = vpack.c.b16 %v925, %v921
  %v1386 = vpack.c.b16 %v926, %v922
  %v1387 = vpack.c.b16 %v927, %v923
  %v1388 = vpack.c.b16 %v928, %v924
  %v1389 = vpack.c.b16 %v933, %v929
  %v1390 = vpack.c.b16 %v934, %v930
  %v1391 = vpack.c.b16 %v935, %v931
  %v1392 = vpack.c.b16 %v936, %v932
  %v1393 = vpack.c.b16 %v941, %v937
  %v1394 = vpack.c.b16 %v942, %v938
  %v1395 = vpack.c.b16 %v943, %v939
  %v1396 = vpack.c.b16 %v944, %v940
  %v1397 = vpack.c.b16 %v949, %v945
  %v1398 = vpack.c.b16 %v950, %v946
  %v1399 = vpack.c.b16 %v951, %v947
  %v1400 = vpack.c.b16 %v952, %v948
  %v1401 = vpack.c.b16 %v957, %v953
  %v1402 = vpack.c.b16 %v958, %v954
  %v1403 = vpack.c.b16 %v959, %v955
  %v1404 = vpack.c.b16 %v960, %v956
  %v1405 = vpack.c.b16 %v965, %v961
  %v1406 = vpack.c.b16 %v966, %v962
  %v1407 = vpack.c.b16 %v967, %v963
  %v1408 = vpack.c.b16 %v968, %v964
  %v1409 = vpack.c.b16 %v973, %v969
  %v1410 = vpack.c.b16 %v974, %v970
  %v1411 = vpack.c.b16 %v975, %v971
  %v1412 = vpack.c.b16 %v976, %v972
  %v1413 = vpack.c.b16 %v981, %v977
  %v1414 = vpack.c.b16 %v982, %v978
  %v1415 = vpack.c.b16 %v983, %v979
  %v1416 = vpack.c.b16 %v984, %v980
  %v1417 = vpack.c.b16 %v989, %v985
  %v1418 = vpack.c.b16 %v990, %v986
  %v1419 = vpack.c.b16 %v991, %v987
  %v1420 = vpack.c.b16 %v992, %v988
  %v1421 = vpack.c.b16 %v997, %v993
  %v1422 = vpack.c.b16 %v998, %v994
  %v1423 = vpack.c.b16 %v999, %v995
  %v1424 = vpack.c.b16 %v1000, %v996
  %v1425 = vpack.c.b16 %v1005, %v1001
  %v1426 = vpack.c.b16 %v1006, %v1002
  %v1427 = vpack.c.b16 %v1007, %v1003
  %v1428 = vpack.c.b16 %v1008, %v1004
  %v1429 = vpack.c.b16 %v1013, %v1009
  %v1430 = vpack.c.b16 %v1014, %v1010
  %v1431 = vpack.c.b16 %v1015, %v1011
  %v1432 = vpack.c.b16 %v1016, %v1012
  %v1433 = vpack.c.b16 %v1021, %v1017
  %v1434 = vpack.c.b16 %v1022, %v1018
  %v1435 = vpack.c.b16 %v1023, %v1019
  %v1436 = vpack.c.b16 %v1024, %v1020
  %v1437 = vpack.c.b16 %v1029, %v1025
  %v1438 = vpack.c.b16 %v1030, %v1026
  %v1439 = vpack.c.b16 %v1031, %v1027
  %v1440 = vpack.c.b16 %v1032, %v1028
  %v1441 = vpack.c.b16 %v1037, %v1033
  %v1442 = vpack.c.b16 %v1038, %v1034
  %v1443 = vpack.c.b16 %v1039, %v1035
  %v1444 = vpack.c.b16 %v1040, %v1036
  %v1445 = vpack.c.b16 %v1045, %v1041
  %v1446 = vpack.c.b16 %v1046, %v1042
  %v1447 = vpack.c.b16 %v1047, %v1043
  %v1448 = vpack.c.b16 %v1048, %v1044
  %v1449 = vpack.c.b16 %v1053, %v1049
  %v1450 = vpack.c.b16 %v1054, %v1050
  %v1451 = vpack.c.b16 %v1055, %v1051
  %v1452 = vpack.c.b16 %v1056, %v1052
  %v1453 = vpack.c.b16 %v1061, %v1057
  %v1454 = vpack.c.b16 %v1062, %v1058
  %v1455 = vpack.c.b16 %v1063, %v1059
  %v1456 = vpack.c.b16 %v1064, %v1060
  %v1457 = vpack.c.b16 %v1069, %v1065
  %v1458 = vpack.c.b16 %v1070, %v1066
  %v1459 = vpack.c.b16 %v1071, %v1067
  %v1460 = vpack.c.b16 %v1072, %v1068
  %v1461 = vpack.c.b16 %v1077, %v1073
  %v1462 = vpack.c.b16 %v1078, %v1074
  %v1463 = vpack.c.b16 %v1079, %v1075
  %v1464 = vpack.c.b16 %v1080, %v1076
  %v1465 = vpack.c.b16 %v1085, %v1081
  %v1466 = vpack.c.b16 %v1086, %v1082
  %v1467 = vpack.c.b16 %v1087, %v1083
  %v1468 = vpack.c.b16 %v1088, %v1084
  %v1469 = vpack.c.b16 %v1093, %v1089
  %v1470 = vpack.c.b16 %v1094, %v1090
  %v1471 = vpack.c.b16 %v1095, %v1091
  %v1472 = vpack.c.b16 %v1096, %v1092
  %v1473 = vpack.c.b16 %v1101, %v1097
  %v1474 = vpack.c.b16 %v1102, %v1098
  %v1475 = vpack.c.b16 %v1103, %v1099
  %v1476 = vpack.c.b16 %v1104, %v1100
  %v1477 = vpack.c.b16 %v1109, %v1105
  %v1478 = vpack.c.b16 %v1110, %v1106
  %v1479 = vpack.c.b16 %v1111, %v1107
  %v1480 = vpack.c.b16 %v1112, %v1108
  %v1481 = vpack.c.b16 %v1117, %v1113
  %v1482 = vpack.c.b16 %v1118, %v1114
  %v1483 = vpack.c.b16 %v1119, %v1115
  %v1484 = vpack.c.b16 %v1120, %v1116
  %v1485 = vpack.c.b16 %v1125, %v1121
  %v1486 = vpack.c.b16 %v1126, %v1122
  %v1487 = vpack.c.b16 %v1127, %v1123
  %v1488 = vpack.c.b16 %v1128, %v1124
  %v1489 = vpack.c.b16 %v1133, %v1129
  %v1490 = vpack.c.b16 %v1134, %v1130
  %v1491 = vpack.c.b16 %v1135, %v1131
  %v1492 = vpack.c.b16 %v1136, %v1132
  %v1493 = vpack.c.b16 %v1141, %v1137
  %v1494 = vpack.c.b16 %v1142, %v1138
  %v1495 = vpack.c.b16 %v1143, %v1139
  %v1496 = vpack.c.b16 %v1144, %v1140
  %v1497 = vpack.c.b16 %v1149, %v1145
  %v1498 = vpack.c.b16 %v1150, %v1146
  %v1499 = vpack.c.b16 %v1151, %v1147
  %v1500 = vpack.c.b16 %v1152, %v1148
  %v1501 = vpack.c.b16 %v1157, %v1153
  %v1502 = vpack.c.b16 %v1158, %v1154
  %v1503 = vpack.c.b16 %v1159, %v1155
  %v1504 = vpack.c.b16 %v1160, %v1156
  %v1505 = vpack.c.b16 %v1165, %v1161
  %v1506 = vpack.c.b16 %v1166, %v1162
  %v1507 = vpack.c.b16 %v1167, %v1163
  %v1508 = vpack.c.b16 %v1168, %v1164
  %v1509 = vpack.c.b16 %v1173, %v1169
  %v1510 = vpack.c.b16 %v1174, %v1170
  %v1511 = vpack.c.b16 %v1175, %v1171
  %v1512 = vpack.c.b16 %v1176, %v1172
  %v1513 = vpack.c.b16 %v1181, %v1177
  %v1514 = vpack.c.b16 %v1182, %v1178
  %v1515 = vpack.c.b16 %v1183, %v1179
  %v1516 = vpack.c.b16 %v1184, %v1180
  %v1517 = vpack.c.b16 %v1189, %v1185
  %v1518 = vpack.c.b16 %v1190, %v1186
  %v1519 = vpack.c.b16 %v1191, %v1187
  %v1520 = vpack.c.b16 %v1192, %v1188
  %v1521 = vpack.c.b16 %v1197, %v1193
  %v1522 = vpack.c.b16 %v1198, %v1194
  %v1523 = vpack.c.b16 %v1199, %v1195
  %v1524 = vpack.c.b16 %v1200, %v1196
  %v1525 = vpack.c.b16 %v1205, %v1201
  %v1526 = vpack.c.b16 %v1206, %v1202
  %v1527 = vpack.c.b16 %v1207, %v1203
  %v1528 = vpack.c.b16 %v1208, %v1204
  %v1529 = vpack.c.b16 %v1213, %v1209
  %v1530 = vpack.c.b16 %v1214, %v1210
  %v1531 = vpack.c.b16 %v1215, %v1211
  %v1532 = vpack.c.b16 %v1216, %v1212
  %v1533 = vpack.c.b16 %v1221, %v1217
  %v1534 = vpack.c.b16 %v1222, %v1218
  %v1535 = vpack.c.b16 %v1223, %v1219
  %v1536 = vpack.c.b16 %v1224, %v1220
  %v1537 = vpack.c.b16 %v1229, %v1225
  %v1538 = vpack.c.b16 %v1230, %v1226
  %v1539 = vpack.c.b16 %v1231, %v1227
  %v1540 = vpack.c.b16 %v1232, %v1228
  %v1541 = vpack.c.b16 %v1237, %v1233
  %v1542 = vpack.c.b16 %v1238, %v1234
  %v1543 = vpack.c.b16 %v1239, %v1235
  %v1544 = vpack.c.b16 %v1240, %v1236
  %v1545 = vpack.c.b16 %v1245, %v1241
  %v1546 = vpack.c.b16 %v1246, %v1242
  %v1547 = vpack.c.b16 %v1247, %v1243
  %v1548 = vpack.c.b16 %v1248, %v1244
  %v1549 = vpack.c.b16 %v1253, %v1249
  %v1550 = vpack.c.b16 %v1254, %v1250
  %v1551 = vpack.c.b16 %v1255, %v1251
  %v1552 = vpack.c.b16 %v1256, %v1252
  %v1553 = vpack.c.b16 %v1261, %v1257
  %v1554 = vpack.c.b16 %v1262, %v1258
  %v1555 = vpack.c.b16 %v1263, %v1259
  %v1556 = vpack.c.b16 %v1264, %v1260
  %v1557 = vpack.c.b16 %v1269, %v1265
  %v1558 = vpack.c.b16 %v1270, %v1266
  %v1559 = vpack.c.b16 %v1271, %v1267
  %v1560 = vpack.c.b16 %v1272, %v1268
  %1849 = vmatprep.subr.bf16.mxu0 %v1302
  %1850 = vmatpush1.bf16.msra.mxu0 %v1301
  %1851 = vmatprep.subr.bf16.mxu0 %v1298
  %1852 = vmatpush1.bf16.msra.mxu0 %v1297
  %1853 = vmatprep.subr.bf16.mxu0 %v1294
  %1854 = vmatpush1.bf16.msra.mxu0 %v1293
  %1855 = vmatprep.subr.bf16.mxu0 %v1290
  %1856 = vmatpush1.bf16.msra.mxu0 %v1289
  %1857 = vmatprep.subr.bf16.mxu0 %v1286
  %1858 = vmatpush1.bf16.msra.mxu0 %v1285
  %1859 = vmatprep.subr.bf16.mxu0 %v1282
  %1860 = vmatpush1.bf16.msra.mxu0 %v1281
  %1861 = vmatprep.subr.bf16.mxu0 %v1278
  %1862 = vmatpush1.bf16.msra.mxu0 %v1277
  %1863 = vmatprep.subr.bf16.mxu0 %v1274
  %1864 = vmatpush1.bf16.msra.mxu0 %v1273
  %1865 = vmatprep.subr.bf16.mxu0 %v1334
  %1866 = vmatpush2.bf16.msra.mxu0 %v1333
  %1867 = vmatprep.subr.bf16.mxu0 %v1330
  %1868 = vmatpush2.bf16.msra.mxu0 %v1329
  %1869 = vmatprep.subr.bf16.mxu0 %v1326
  %1870 = vmatpush2.bf16.msra.mxu0 %v1325
  %1871 = vmatprep.subr.bf16.mxu0 %v1322
  %1872 = vmatpush2.bf16.msra.mxu0 %v1321
  %1873 = vmatprep.subr.bf16.mxu0 %v1318
  %1874 = vmatpush2.bf16.msra.mxu0 %v1317
  %1875 = vmatprep.subr.bf16.mxu0 %v1314
  %1876 = vmatpush2.bf16.msra.mxu0 %v1313
  %1877 = vmatprep.subr.bf16.mxu0 %v1310
  %1878 = vmatpush2.bf16.msra.mxu0 %v1309
  %1879 = vmatprep.subr.bf16.mxu0 %v1306
  %1880 = vmatpush2.bf16.msra.mxu0 %v1305
  %1881 = vmatprep.mubr.bf16.mxu0 %v374
  %1882 = vmatmul.mubr.bf16.gmra.mxu0 %v360
  %v1883 = vpop.f32.mrf.mxu0
  %v1884 = vadd.f32 %v318, %v1883
  %v1885 = vpop.f32.mrf.mxu0
  %v1886 = vadd.f32 %v322, %v1885
  %v1887 = vpop.f32.mrf.mxu0
  %v1888 = vpop.f32.mrf.mxu0
  %1889 = vdwg.mxu0
  %1890 = vmatprep.subr.bf16.mxu0 %v1366
  %1891 = vmatpush1.bf16.msra.mxu0 %v1365
  %1892 = vmatprep.subr.bf16.mxu0 %v1362
  %1893 = vmatpush1.bf16.msra.mxu0 %v1361
  %1894 = vmatprep.subr.bf16.mxu0 %v1358
  %1895 = vmatpush1.bf16.msra.mxu0 %v1357
  %1896 = vmatprep.subr.bf16.mxu0 %v1354
  %1897 = vmatpush1.bf16.msra.mxu0 %v1353
  %1898 = vmatprep.subr.bf16.mxu0 %v1350
  %1899 = vmatpush1.bf16.msra.mxu0 %v1349
  %1900 = vmatprep.subr.bf16.mxu0 %v1346
  %1901 = vmatpush1.bf16.msra.mxu0 %v1345
  %1902 = vmatprep.subr.bf16.mxu0 %v1342
  %1903 = vmatpush1.bf16.msra.mxu0 %v1341
  %1904 = vmatprep.subr.bf16.mxu0 %v1338
  %1905 = vmatpush1.bf16.msra.mxu0 %v1337
  %1906 = vmatprep.subr.bf16.mxu0 %v1398
  %1907 = vmatpush2.bf16.msra.mxu0 %v1397
  %1908 = vmatprep.subr.bf16.mxu0 %v1394
  %1909 = vmatpush2.bf16.msra.mxu0 %v1393
  %1910 = vmatprep.subr.bf16.mxu0 %v1390
  %1911 = vmatpush2.bf16.msra.mxu0 %v1389
  %1912 = vmatprep.subr.bf16.mxu0 %v1386
  %1913 = vmatpush2.bf16.msra.mxu0 %v1385
  %1914 = vmatprep.subr.bf16.mxu0 %v1382
  %1915 = vmatpush2.bf16.msra.mxu0 %v1381
  %1916 = vmatprep.subr.bf16.mxu0 %v1378
  %1917 = vmatpush2.bf16.msra.mxu0 %v1377
  %1918 = vmatprep.subr.bf16.mxu0 %v1374
  %1919 = vmatpush2.bf16.msra.mxu0 %v1373
  %1920 = vmatprep.subr.bf16.mxu0 %v1370
  %1921 = vmatpush2.bf16.msra.mxu0 %v1369
  %1922 = vmatprep.mubr.bf16.mxu0 %v384
  %1923 = vmatmul.mubr.bf16.gmra.mxu0 %v382
  %v1924 = vpop.f32.mrf.mxu0
  %v1925 = vadd.f32 %v1884, %v1924
  %v1926 = vpop.f32.mrf.mxu0
  %v1927 = vadd.f32 %v1886, %v1926
  %v1928 = vpop.f32.mrf.mxu0
  %v1929 = vpop.f32.mrf.mxu0
  %1930 = vdwg.mxu0
  %1931 = vmatprep.subr.bf16.mxu0 %v1430
  %1932 = vmatpush1.bf16.msra.mxu0 %v1429
  %1933 = vmatprep.subr.bf16.mxu0 %v1426
  %1934 = vmatpush1.bf16.msra.mxu0 %v1425
  %1935 = vmatprep.subr.bf16.mxu0 %v1422
  %1936 = vmatpush1.bf16.msra.mxu0 %v1421
  %1937 = vmatprep.subr.bf16.mxu0 %v1418
  %1938 = vmatpush1.bf16.msra.mxu0 %v1417
  %1939 = vmatprep.subr.bf16.mxu0 %v1414
  %1940 = vmatpush1.bf16.msra.mxu0 %v1413
  %1941 = vmatprep.subr.bf16.mxu0 %v1410
  %1942 = vmatpush1.bf16.msra.mxu0 %v1409
  %1943 = vmatprep.subr.bf16.mxu0 %v1406
  %1944 = vmatpush1.bf16.msra.mxu0 %v1405
  %1945 = vmatprep.subr.bf16.mxu0 %v1402
  %1946 = vmatpush1.bf16.msra.mxu0 %v1401
  %1947 = vmatprep.subr.bf16.mxu0 %v1462
  %1948 = vmatpush2.bf16.msra.mxu0 %v1461
  %1949 = vmatprep.subr.bf16.mxu0 %v1458
  %1950 = vmatpush2.bf16.msra.mxu0 %v1457
  %1951 = vmatprep.subr.bf16.mxu0 %v1454
  %1952 = vmatpush2.bf16.msra.mxu0 %v1453
  %1953 = vmatprep.subr.bf16.mxu0 %v1450
  %1954 = vmatpush2.bf16.msra.mxu0 %v1449
  %1955 = vmatprep.subr.bf16.mxu0 %v1446
  %1956 = vmatpush2.bf16.msra.mxu0 %v1445
  %1957 = vmatprep.subr.bf16.mxu0 %v1442
  %1958 = vmatpush2.bf16.msra.mxu0 %v1441
  %1959 = vmatprep.subr.bf16.mxu0 %v1438
  %1960 = vmatpush2.bf16.msra.mxu0 %v1437
  %1961 = vmatprep.subr.bf16.mxu0 %v1434
  %1962 = vmatpush2.bf16.msra.mxu0 %v1433
  %1963 = vmatprep.mubr.bf16.mxu0 %v381
  %1964 = vmatmul.mubr.bf16.gmra.mxu0 %v367
  %v1965 = vpop.f32.mrf.mxu0
  %v1966 = vadd.f32 %v1925, %v1965
  %v1967 = vpop.f32.mrf.mxu0
  %v1968 = vadd.f32 %v1927, %v1967
  %v1969 = vpop.f32.mrf.mxu0
  %v1970 = vpop.f32.mrf.mxu0
  %1971 = vdwg.mxu0
  %1972 = vmatprep.subr.bf16.mxu0 %v1494
  %1973 = vmatpush1.bf16.msra.mxu0 %v1493
  %1974 = vmatprep.subr.bf16.mxu0 %v1490
  %1975 = vmatpush1.bf16.msra.mxu0 %v1489
  %1976 = vmatprep.subr.bf16.mxu0 %v1486
  %1977 = vmatpush1.bf16.msra.mxu0 %v1485
  %1978 = vmatprep.subr.bf16.mxu0 %v1482
  %1979 = vmatpush1.bf16.msra.mxu0 %v1481
  %1980 = vmatprep.subr.bf16.mxu0 %v1478
  %1981 = vmatpush1.bf16.msra.mxu0 %v1477
  %1982 = vmatprep.subr.bf16.mxu0 %v1474
  %1983 = vmatpush1.bf16.msra.mxu0 %v1473
  %1984 = vmatprep.subr.bf16.mxu0 %v1470
  %1985 = vmatpush1.bf16.msra.mxu0 %v1469
  %1986 = vmatprep.subr.bf16.mxu0 %v1466
  %1987 = vmatpush1.bf16.msra.mxu0 %v1465
  %1988 = vmatprep.subr.bf16.mxu0 %v1526
  %1989 = vmatpush2.bf16.msra.mxu0 %v1525
  %1990 = vmatprep.subr.bf16.mxu0 %v1522
  %1991 = vmatpush2.bf16.msra.mxu0 %v1521
  %1992 = vmatprep.subr.bf16.mxu0 %v1518
  %1993 = vmatpush2.bf16.msra.mxu0 %v1517
  %1994 = vmatprep.subr.bf16.mxu0 %v1514
  %1995 = vmatpush2.bf16.msra.mxu0 %v1513
  %1996 = vmatprep.subr.bf16.mxu0 %v1510
  %1997 = vmatpush2.bf16.msra.mxu0 %v1509
  %1998 = vmatprep.subr.bf16.mxu0 %v1506
  %1999 = vmatpush2.bf16.msra.mxu0 %v1505
  %2000 = vmatprep.subr.bf16.mxu0 %v1502
  %2001 = vmatpush2.bf16.msra.mxu0 %v1501
  %2002 = vmatprep.subr.bf16.mxu0 %v1498
  %2003 = vmatpush2.bf16.msra.mxu0 %v1497
  %2004 = vmatprep.mubr.bf16.mxu0 %v385
  %2005 = vmatmul.mubr.bf16.gmra.mxu0 %v383
  %v2006 = vpop.f32.mrf.mxu0
  %v2007 = vadd.f32 %v1966, %v2006
  %v2008 = vpop.f32.mrf.mxu0
  %v2009 = vadd.f32 %v1968, %v2008
  %v2010 = vpop.f32.mrf.mxu0
  %v2011 = vpop.f32.mrf.mxu0
  %2012 = vdwg.mxu0
  %2013 = vmatprep.subr.bf16.mxu0 %v1558
  %2014 = vmatpush1.bf16.msra.mxu0 %v1557
  %2015 = vmatprep.subr.bf16.mxu0 %v1554
  %2016 = vmatpush1.bf16.msra.mxu0 %v1553
  %2017 = vmatprep.subr.bf16.mxu0 %v1550
  %2018 = vmatpush1.bf16.msra.mxu0 %v1549
  %2019 = vmatprep.subr.bf16.mxu0 %v1546
  %2020 = vmatpush1.bf16.msra.mxu0 %v1545
  %2021 = vmatprep.subr.bf16.mxu0 %v1542
  %2022 = vmatpush1.bf16.msra.mxu0 %v1541
  %2023 = vmatprep.subr.bf16.mxu0 %v1538
  %2024 = vmatpush1.bf16.msra.mxu0 %v1537
  %2025 = vmatprep.subr.bf16.mxu0 %v1534
  %2026 = vmatpush1.bf16.msra.mxu0 %v1533
  %2027 = vmatprep.subr.bf16.mxu0 %v1530
  %2028 = vmatpush1.bf16.msra.mxu0 %v1529
  %2029 = vmatprep.subr.bf16.mxu0 0
  %2030 = vmatpush2.bf16.msra.mxu0 0
  %2031 = vmatprep.subr.bf16.mxu0 0
  %2032 = vmatpush2.bf16.msra.mxu0 0
  %2033 = vmatprep.subr.bf16.mxu0 0
  %2034 = vmatpush2.bf16.msra.mxu0 0
  %2035 = vmatprep.subr.bf16.mxu0 0
  %2036 = vmatpush2.bf16.msra.mxu0 0
  %2037 = vmatprep.subr.bf16.mxu0 0
  %2038 = vmatpush2.bf16.msra.mxu0 0
  %2039 = vmatprep.subr.bf16.mxu0 0
  %2040 = vmatpush2.bf16.msra.mxu0 0
  %2041 = vmatprep.subr.bf16.mxu0 0
  %2042 = vmatpush2.bf16.msra.mxu0 0
  %2043 = vmatprep.subr.bf16.mxu0 0
  %2044 = vmatpush2.bf16.msra.mxu0 0
  %2045 = vmatprep.mubr.bf16.mxu0 0
  %2046 = vmatmul.mubr.bf16.gmra.mxu0 %v399
  %v2047 = vpop.f32.mrf.mxu0
  %v2048 = vadd.f32 %v2007, %v2047
  %v2049 = vpop.f32.mrf.mxu0
  %v2050 = vadd.f32 %v2009, %v2049
  %v2051 = vpop.f32.mrf.mxu0
  %v2052 = vpop.f32.mrf.mxu0
  %2053 = vdwg.mxu0
  %2054 = vmatprep.subr.bf16.mxu0 %v1304
  %2055 = vmatpush1.bf16.msra.mxu0 %v1303
  %2056 = vmatprep.subr.bf16.mxu0 %v1300
  %2057 = vmatpush1.bf16.msra.mxu0 %v1299
  %2058 = vmatprep.subr.bf16.mxu0 %v1296
  %2059 = vmatpush1.bf16.msra.mxu0 %v1295
  %2060 = vmatprep.subr.bf16.mxu0 %v1292
  %2061 = vmatpush1.bf16.msra.mxu0 %v1291
  %2062 = vmatprep.subr.bf16.mxu0 %v1288
  %2063 = vmatpush1.bf16.msra.mxu0 %v1287
  %2064 = vmatprep.subr.bf16.mxu0 %v1284
  %2065 = vmatpush1.bf16.msra.mxu0 %v1283
  %2066 = vmatprep.subr.bf16.mxu0 %v1280
  %2067 = vmatpush1.bf16.msra.mxu0 %v1279
  %2068 = vmatprep.subr.bf16.mxu0 %v1276
  %2069 = vmatpush1.bf16.msra.mxu0 %v1275
  %2070 = vmatprep.subr.bf16.mxu0 %v1336
  %2071 = vmatpush2.bf16.msra.mxu0 %v1335
  %2072 = vmatprep.subr.bf16.mxu0 %v1332
  %2073 = vmatpush2.bf16.msra.mxu0 %v1331
  %2074 = vmatprep.subr.bf16.mxu0 %v1328
  %2075 = vmatpush2.bf16.msra.mxu0 %v1327
  %2076 = vmatprep.subr.bf16.mxu0 %v1324
  %2077 = vmatpush2.bf16.msra.mxu0 %v1323
  %2078 = vmatprep.subr.bf16.mxu0 %v1320
  %2079 = vmatpush2.bf16.msra.mxu0 %v1319
  %2080 = vmatprep.subr.bf16.mxu0 %v1316
  %2081 = vmatpush2.bf16.msra.mxu0 %v1315
  %2082 = vmatprep.subr.bf16.mxu0 %v1312
  %2083 = vmatpush2.bf16.msra.mxu0 %v1311
  %2084 = vmatprep.subr.bf16.mxu0 %v1308
  %2085 = vmatpush2.bf16.msra.mxu0 %v1307
  %2086 = vmatprep.mubr.bf16.mxu0 %v374
  %2087 = vmatmul.mubr.bf16.gmra.mxu0 %v360
  %v2088 = vpop.f32.mrf.mxu0
  %v2089 = vadd.f32 %v326, %v2088
  %v2090 = vpop.f32.mrf.mxu0
  %v2091 = vadd.f32 %v330, %v2090
  %v2092 = vpop.f32.mrf.mxu0
  %v2093 = vpop.f32.mrf.mxu0
  %2094 = vdwg.mxu0
  %2095 = vmatprep.subr.bf16.mxu0 %v1368
  %2096 = vmatpush1.bf16.msra.mxu0 %v1367
  %2097 = vmatprep.subr.bf16.mxu0 %v1364
  %2098 = vmatpush1.bf16.msra.mxu0 %v1363
  %2099 = vmatprep.subr.bf16.mxu0 %v1360
  %2100 = vmatpush1.bf16.msra.mxu0 %v1359
  %2101 = vmatprep.subr.bf16.mxu0 %v1356
  %2102 = vmatpush1.bf16.msra.mxu0 %v1355
  %2103 = vmatprep.subr.bf16.mxu0 %v1352
  %2104 = vmatpush1.bf16.msra.mxu0 %v1351
  %2105 = vmatprep.subr.bf16.mxu0 %v1348
  %2106 = vmatpush1.bf16.msra.mxu0 %v1347
  %2107 = vmatprep.subr.bf16.mxu0 %v1344
  %2108 = vmatpush1.bf16.msra.mxu0 %v1343
  %2109 = vmatprep.subr.bf16.mxu0 %v1340
  %2110 = vmatpush1.bf16.msra.mxu0 %v1339
  %2111 = vmatprep.subr.bf16.mxu0 %v1400
  %2112 = vmatpush2.bf16.msra.mxu0 %v1399
  %2113 = vmatprep.subr.bf16.mxu0 %v1396
  %2114 = vmatpush2.bf16.msra.mxu0 %v1395
  %2115 = vmatprep.subr.bf16.mxu0 %v1392
  %2116 = vmatpush2.bf16.msra.mxu0 %v1391
  %2117 = vmatprep.subr.bf16.mxu0 %v1388
  %2118 = vmatpush2.bf16.msra.mxu0 %v1387
  %2119 = vmatprep.subr.bf16.mxu0 %v1384
  %2120 = vmatpush2.bf16.msra.mxu0 %v1383
  %2121 = vmatprep.subr.bf16.mxu0 %v1380
  %2122 = vmatpush2.bf16.msra.mxu0 %v1379
  %2123 = vmatprep.subr.bf16.mxu0 %v1376
  %2124 = vmatpush2.bf16.msra.mxu0 %v1375
  %2125 = vmatprep.subr.bf16.mxu0 %v1372
  %2126 = vmatpush2.bf16.msra.mxu0 %v1371
  %2127 = vmatprep.mubr.bf16.mxu0 %v384
  %2128 = vmatmul.mubr.bf16.gmra.mxu0 %v382
  %v2129 = vpop.f32.mrf.mxu0
  %v2130 = vadd.f32 %v2089, %v2129
  %v2131 = vpop.f32.mrf.mxu0
  %v2132 = vadd.f32 %v2091, %v2131
  %v2133 = vpop.f32.mrf.mxu0
  %v2134 = vpop.f32.mrf.mxu0
  %2135 = vdwg.mxu0
  %2136 = vmatprep.subr.bf16.mxu0 %v1432
  %2137 = vmatpush1.bf16.msra.mxu0 %v1431
  %2138 = vmatprep.subr.bf16.mxu0 %v1428
  %2139 = vmatpush1.bf16.msra.mxu0 %v1427
  %2140 = vmatprep.subr.bf16.mxu0 %v1424
  %2141 = vmatpush1.bf16.msra.mxu0 %v1423
  %2142 = vmatprep.subr.bf16.mxu0 %v1420
  %2143 = vmatpush1.bf16.msra.mxu0 %v1419
  %2144 = vmatprep.subr.bf16.mxu0 %v1416
  %2145 = vmatpush1.bf16.msra.mxu0 %v1415
  %2146 = vmatprep.subr.bf16.mxu0 %v1412
  %2147 = vmatpush1.bf16.msra.mxu0 %v1411
  %2148 = vmatprep.subr.bf16.mxu0 %v1408
  %2149 = vmatpush1.bf16.msra.mxu0 %v1407
  %2150 = vmatprep.subr.bf16.mxu0 %v1404
  %2151 = vmatpush1.bf16.msra.mxu0 %v1403
  %2152 = vmatprep.subr.bf16.mxu0 %v1464
  %2153 = vmatpush2.bf16.msra.mxu0 %v1463
  %2154 = vmatprep.subr.bf16.mxu0 %v1460
  %2155 = vmatpush2.bf16.msra.mxu0 %v1459
  %2156 = vmatprep.subr.bf16.mxu0 %v1456
  %2157 = vmatpush2.bf16.msra.mxu0 %v1455
  %2158 = vmatprep.subr.bf16.mxu0 %v1452
  %2159 = vmatpush2.bf16.msra.mxu0 %v1451
  %2160 = vmatprep.subr.bf16.mxu0 %v1448
  %2161 = vmatpush2.bf16.msra.mxu0 %v1447
  %2162 = vmatprep.subr.bf16.mxu0 %v1444
  %2163 = vmatpush2.bf16.msra.mxu0 %v1443
  %2164 = vmatprep.subr.bf16.mxu0 %v1440
  %2165 = vmatpush2.bf16.msra.mxu0 %v1439
  %2166 = vmatprep.subr.bf16.mxu0 %v1436
  %2167 = vmatpush2.bf16.msra.mxu0 %v1435
  %2168 = vmatprep.mubr.bf16.mxu0 %v381
  %2169 = vmatmul.mubr.bf16.gmra.mxu0 %v367
  %v2170 = vpop.f32.mrf.mxu0
  %v2171 = vadd.f32 %v2130, %v2170
  %v2172 = vpop.f32.mrf.mxu0
  %v2173 = vadd.f32 %v2132, %v2172
  %v2174 = vpop.f32.mrf.mxu0
  %v2175 = vpop.f32.mrf.mxu0
  %2176 = vdwg.mxu0
  %2177 = vmatprep.subr.bf16.mxu0 %v1496
  %2178 = vmatpush1.bf16.msra.mxu0 %v1495
  %2179 = vmatprep.subr.bf16.mxu0 %v1492
  %2180 = vmatpush1.bf16.msra.mxu0 %v1491
  %2181 = vmatprep.subr.bf16.mxu0 %v1488
  %2182 = vmatpush1.bf16.msra.mxu0 %v1487
  %2183 = vmatprep.subr.bf16.mxu0 %v1484
  %2184 = vmatpush1.bf16.msra.mxu0 %v1483
  %2185 = vmatprep.subr.bf16.mxu0 %v1480
  %2186 = vmatpush1.bf16.msra.mxu0 %v1479
  %2187 = vmatprep.subr.bf16.mxu0 %v1476
  %2188 = vmatpush1.bf16.msra.mxu0 %v1475
  %2189 = vmatprep.subr.bf16.mxu0 %v1472
  %2190 = vmatpush1.bf16.msra.mxu0 %v1471
  %2191 = vmatprep.subr.bf16.mxu0 %v1468
  %2192 = vmatpush1.bf16.msra.mxu0 %v1467
  %2193 = vmatprep.subr.bf16.mxu0 %v1528
  %2194 = vmatpush2.bf16.msra.mxu0 %v1527
  %2195 = vmatprep.subr.bf16.mxu0 %v1524
  %2196 = vmatpush2.bf16.msra.mxu0 %v1523
  %2197 = vmatprep.subr.bf16.mxu0 %v1520
  %2198 = vmatpush2.bf16.msra.mxu0 %v1519
  %2199 = vmatprep.subr.bf16.mxu0 %v1516
  %2200 = vmatpush2.bf16.msra.mxu0 %v1515
  %2201 = vmatprep.subr.bf16.mxu0 %v1512
  %2202 = vmatpush2.bf16.msra.mxu0 %v1511
  %2203 = vmatprep.subr.bf16.mxu0 %v1508
  %2204 = vmatpush2.bf16.msra.mxu0 %v1507
  %2205 = vmatprep.subr.bf16.mxu0 %v1504
  %2206 = vmatpush2.bf16.msra.mxu0 %v1503
  %2207 = vmatprep.subr.bf16.mxu0 %v1500
  %2208 = vmatpush2.bf16.msra.mxu0 %v1499
  %2209 = vmatprep.mubr.bf16.mxu0 %v385
  %2210 = vmatmul.mubr.bf16.gmra.mxu0 %v383
  %v2211 = vpop.f32.mrf.mxu0
  %v2212 = vadd.f32 %v2171, %v2211
  %v2213 = vpop.f32.mrf.mxu0
  %v2214 = vadd.f32 %v2173, %v2213
  %v2215 = vpop.f32.mrf.mxu0
  %v2216 = vpop.f32.mrf.mxu0
  %2217 = vdwg.mxu0
  %2218 = vmatprep.subr.bf16.mxu0 %v1560
  %2219 = vmatpush1.bf16.msra.mxu0 %v1559
  %2220 = vmatprep.subr.bf16.mxu0 %v1556
  %2221 = vmatpush1.bf16.msra.mxu0 %v1555
  %2222 = vmatprep.subr.bf16.mxu0 %v1552
  %2223 = vmatpush1.bf16.msra.mxu0 %v1551
  %2224 = vmatprep.subr.bf16.mxu0 %v1548
  %2225 = vmatpush1.bf16.msra.mxu0 %v1547
  %2226 = vmatprep.subr.bf16.mxu0 %v1544
  %2227 = vmatpush1.bf16.msra.mxu0 %v1543
  %2228 = vmatprep.subr.bf16.mxu0 %v1540
  %2229 = vmatpush1.bf16.msra.mxu0 %v1539
  %2230 = vmatprep.subr.bf16.mxu0 %v1536
  %2231 = vmatpush1.bf16.msra.mxu0 %v1535
  %2232 = vmatprep.subr.bf16.mxu0 %v1532
  %2233 = vmatpush1.bf16.msra.mxu0 %v1531
  %2234 = vmatprep.subr.bf16.mxu0 0
  %2235 = vmatpush2.bf16.msra.mxu0 0
  %2236 = vmatprep.subr.bf16.mxu0 0
  %2237 = vmatpush2.bf16.msra.mxu0 0
  %2238 = vmatprep.subr.bf16.mxu0 0
  %2239 = vmatpush2.bf16.msra.mxu0 0
  %2240 = vmatprep.subr.bf16.mxu0 0
  %2241 = vmatpush2.bf16.msra.mxu0 0
  %2242 = vmatprep.subr.bf16.mxu0 0
  %2243 = vmatpush2.bf16.msra.mxu0 0
  %2244 = vmatprep.subr.bf16.mxu0 0
  %2245 = vmatpush2.bf16.msra.mxu0 0
  %2246 = vmatprep.subr.bf16.mxu0 0
  %2247 = vmatpush2.bf16.msra.mxu0 0
  %2248 = vmatprep.subr.bf16.mxu0 0
  %2249 = vmatpush2.bf16.msra.mxu0 0
  %2250 = vmatprep.mubr.bf16.mxu0 0
  %2251 = vmatmul.mubr.bf16.gmra.mxu0 %v399
  %v2252 = vpop.f32.mrf.mxu0
  %v2253 = vadd.f32 %v2212, %v2252
  %v2254 = vpop.f32.mrf.mxu0
  %v2255 = vadd.f32 %v2214, %v2254
  %v2256 = vpop.f32.mrf.mxu0
  %v2257 = vpop.f32.mrf.mxu0
  %2258 = vdwg.mxu0
  %v2259 = vmax.f32 %v2048, 0.0
  %v2260 = vmax.f32 %v2050, 0.0
  %v2261 = vmax.f32 %v2253, 0.0
  %v2262 = vmax.f32 %v2255, 0.0
  %v2263 = vld [vmem:[%s3] sm:$0xf]
  %v2265 = vlaneseq
  %v2266 = vshrl.u32 %v2265, 7
  %v2267 = vsub.s32 0, %v2266
  %v2268 = vrot.slane %v2263, %v2267
  %v2269 = vlaneseq
  %v2270 = vshrl.u32 %v2269, 7
  %v2271 = vsub.s32 1, %v2270
  %v2272 = vrot.slane %v2263, %v2271
  %v2273 = vlaneseq
  %v2274 = vshrl.u32 %v2273, 7
  %v2275 = vsub.s32 2, %v2274
  %v2276 = vrot.slane %v2263, %v2275
  %v2277 = vlaneseq
  %v2278 = vshrl.u32 %v2277, 7
  %v2279 = vsub.s32 3, %v2278
  %v2280 = vrot.slane %v2263, %v2279
  %v2285 = vmul.f32 %v2259, %v2268
  %v2286 = vmul.f32 %v2260, %v2272
  %v2287 = vmul.f32 %v2261, %v2276
  %v2288 = vmul.f32 %v2262, %v2280
  %vm2289 = vcmask 1041408
  %v2290 = vsel %vm2289, %v2285, 0.0
  %v2291 = vsel %vm2289, %v2286, 0.0
  %v2292 = vadd.f32 %v2290, %v2291
  %v2293 = vsel %vm2289, %v2287, 0.0
  %v2294 = vadd.f32 %v2292, %v2293
  %v2295 = vsel %vm2289, %v2288, 0.0
  %v2296 = vadd.f32 %v2294, %v2295
  %2297 = vadd.xlane.f32.xlu0 %v2296
  %v2298 = vpop.xlane.xlu0 %2297
  %v2299 = vld [vmem:[#allocation2] sm:$0x1]
  %v2301 = vlaneseq
  %v2302 = vshrl.u32 %v2301, 7
  %v2303 = vsub.s32 0, %v2302
  %v2304 = vrot.slane %v2299, %v2303
  %v2306 = vadd.f32 %v2298, %v2304
  %vm2307 = vcmask 1024
  %2308 = vst.msk [vmem:[%s5] sm:$0x3] %vm2307, %v2306
  // Predicated region
  $region22: #{value_net_forward.11} parent=0 // pred_check
    _
  $region23: #{value_net_forward.11} parent=0 // pred_check_branch
    %2310 = sbr.rel (0) target = $region25
  $region24: #{value_net_forward.11} parent=0 // pred_region
    _
  $region25: #{value_net_forward.11} parent=0 // pred_fallthru
    _
  // Predicated region
  $region26: #{value_net_forward.11} parent=0 // pred_check
    _
  $region27: #{value_net_forward.11} parent=0 // pred_check_branch
    %2312 = sbr.rel (0) target = $region29
  $region28: #{value_net_forward.11} parent=0 // pred_region
    _
  $region29: #{value_net_forward.11} parent=0 // pred_fallthru
    _

</llo_original>
